<compile_context>
chip_gen: v7x
topology: tpu7x:2x2x1
jax: 0.10.0
libtpu: 0.0.40
codegen_flags: <defaults>
</compile_context>

<pallas_src>
import jax
import jax.numpy as jnp
from jax.experimental import pallas as pl
from jax.experimental.pallas import tpu as pltpu

N_FEATURES = 100
N_OUT = 784
H0, H1, H2 = 256, 512, 1024
LEAKY_SLOPE = 0.2

K_PAD = 128        # 100 -> 128   (unmasked lane loads for x / w0 rows)
N_OUT_PAD = 896    # 784 -> 7*128 (lane-dense, unmasked vst output stores)


def _round_up(x, m):
    return (x + m - 1) // m * m


def _leaky_relu(x, slope=LEAKY_SLOPE):
    # slope is a Python float -> weakly typed, result stays in x's dtype (bf16).
    return jnp.where(x >= 0, x, slope * x)


def _choose_tile(B, batch_tile):
    """Pick (padded_batch, tile) such that:
       * tile >= 128 rows (fills MXU M dim / bf16 sublane packing),
       * tile <= batch_tile and tile divides the padded batch exactly,
       * the grid has >= 2 steps whenever the padded batch allows it
         (so v7x's two TensorCores both get work on the 'parallel' axis)."""
    batch_tile = max(128, batch_tile)
    Bp = max(128, _round_up(B, 128))
    m = Bp // 128
    best_k = 1
    for k in range(1, m + 1):
        if m % k == 0 and 128 * k <= batch_tile and (m == 1 or m // k >= 2):
            best_k = k
    return Bp, 128 * best_k


def _make_generator_kernel(n_sub, sub_rows):
    """Fused 4-layer MLP on one batch tile, split into `n_sub` independent
    sub-tiles of `sub_rows` rows each.  The sub-tile chains have no data
    dependence on each other, so the VLIW scheduler interleaves one
    sub-tile's VPU/EUP epilogue with the other's MXU matmuls."""

    def kernel(x_ref,
               w0_ref, b0_ref,
               w1_ref, b1_ref,
               w2_ref, b2_ref,
               w3_ref, b3_ref,
               o_ref):
        for s in range(n_sub):
            r0 = s * sub_rows                     # static slice -> free view
            h = x_ref[r0:r0 + sub_rows, :]        # (sub_rows, 128) bf16

            # Hidden layers: bf16 in -> f32 MXU accumulate -> bf16 bias+act.
            h = _leaky_relu(
                jnp.dot(h, w0_ref[...], preferred_element_type=jnp.float32)
                .astype(jnp.bfloat16) + b0_ref[...])
            h = _leaky_relu(
                jnp.dot(h, w1_ref[...], preferred_element_type=jnp.float32)
                .astype(jnp.bfloat16) + b1_ref[...])
            h = _leaky_relu(
                jnp.dot(h, w2_ref[...], preferred_element_type=jnp.float32)
                .astype(jnp.bfloat16) + b2_ref[...])

            # Output layer + tanh, stored in bf16 (lane-dense 896-wide store).
            h = jnp.tanh(
                jnp.dot(h, w3_ref[...], preferred_element_type=jnp.float32)
                .astype(jnp.bfloat16) + b3_ref[...])
            o_ref[r0:r0 + sub_rows, :] = h

    return kernel


def generator_forward(x, params, *, batch_tile=512):
    """x: (B, 100) f32. params: dict from init_params (padded bf16 W and b).
    Returns (B, 784) f32."""
    B = x.shape[0]
    Bp, tile = _choose_tile(B, batch_tile)
    n_sub = 2 if tile >= 256 else 1
    sub_rows = tile // n_sub

    # Zero-pad batch rows to Bp and features 100 -> 128, directly in bf16
    # (halves the x-tile DMA and drops the first in-kernel cast).
    xp = jnp.zeros((Bp, K_PAD), jnp.bfloat16).at[:B, :N_FEATURES].set(
        x.astype(jnp.bfloat16))

    w0, b0 = params["w0"], params["b0"]
    w1, b1 = params["w1"], params["b1"]
    w2, b2 = params["w2"], params["b2"]
    w3, b3 = params["w3"], params["b3"]

    # Whole (padded, bf16) weights/biases stay resident in VMEM (~3 MiB);
    # the grid only tiles the batch dimension.
    full = lambda a: pl.BlockSpec(a.shape, lambda i: (0, 0))

    out = pl.pallas_call(
        _make_generator_kernel(n_sub, sub_rows),
        out_shape=jax.ShapeDtypeStruct((Bp, N_OUT_PAD), jnp.bfloat16),
        grid=(Bp // tile,),
        in_specs=[
            pl.BlockSpec((tile, K_PAD), lambda i: (i, 0)),    # x tile
            full(w0), full(b0),
            full(w1), full(b1),
            full(w2), full(b2),
            full(w3), full(b3),
        ],
        out_specs=pl.BlockSpec((tile, N_OUT_PAD), lambda i: (i, 0)),
        compiler_params=pltpu.CompilerParams(
            dimension_semantics=("parallel",),
            vmem_limit_bytes=48 * 1024 * 1024,
        ),
    )(xp, w0, b0, w1, b1, w2, b2, w3, b3)

    return out[:B, :N_OUT].astype(jnp.float32)


def init_params(key):
    """PyTorch-Linear-style U(-1/sqrt(fan_in), ...) init, stored as (in, out),
    zero-padded to MXU/lane-friendly shapes; weights and biases cast to bf16."""
    dims = [(N_FEATURES, H0), (H0, H1), (H1, H2), (H2, N_OUT)]
    pads = [(K_PAD, H0), (H0, H1), (H1, H2), (H2, N_OUT_PAD)]
    params = {}
    for li, ((fi, fo), (pi, po)) in enumerate(zip(dims, pads)):
        key, kw, kb = jax.random.split(key, 3)
        bound = 1.0 / jnp.sqrt(fi)
        w = jax.random.uniform(kw, (fi, fo), jnp.float32,
                               minval=-bound, maxval=bound)
        b = jax.random.uniform(kb, (1, fo), jnp.float32,
                               minval=-bound, maxval=bound)
        wp = jnp.zeros((pi, po), jnp.float32).at[:fi, :fo].set(w)
        bp = jnp.zeros((1, po), jnp.float32).at[:, :fo].set(b)
        params[f"w{li}"] = wp.astype(jnp.bfloat16)
        params[f"b{li}"] = bp.astype(jnp.bfloat16)
    return params


def reference_forward(x, params):
    """Pure-JAX reference mirroring the kernel's padded bf16 math
    (bf16 dot inputs, f32 accumulate, bf16 bias/activation/output)."""
    B = x.shape[0]
    h = jnp.zeros((B, K_PAD), jnp.bfloat16).at[:, :N_FEATURES].set(
        x.astype(jnp.bfloat16))
    acts = (_leaky_relu, _leaky_relu, _leaky_relu, jnp.tanh)
    for li, act in enumerate(acts):
        acc = jnp.dot(h, params[f"w{li}"], preferred_element_type=jnp.float32)
        h = act(acc.astype(jnp.bfloat16) + params[f"b{li}"])
    return h[:, :N_OUT].astype(jnp.float32)


if __name__ == "__main__":
    key = jax.random.PRNGKey(0)
    kx, kp = jax.random.split(key)
    params = init_params(kp)

    # Small batch: rows padded 16 -> 128, single grid step, n_sub = 1.
    B = 16
    x = jax.random.normal(kx, (B, N_FEATURES), jnp.float32)
    ref = reference_forward(x, params)
    out = jax.block_until_ready(generator_forward(x, params))
    assert out.shape == (B, N_OUT)
    assert out.dtype == jnp.float32
    assert jnp.max(jnp.abs(out - ref)) < 3e-2, "mismatch vs reference (small)"

    # Larger batch: exercises a 2-step grid (both v7x TCs) and the
    # 2-sub-tile interleave (tile=256, sub_rows=128).
    B2 = 512
    x2 = jax.random.normal(kx, (B2, N_FEATURES), jnp.float32)
    ref2 = reference_forward(x2, params)
    out2 = jax.block_until_ready(generator_forward(x2, params))
    assert out2.shape == (B2, N_OUT)
    assert jnp.max(jnp.abs(out2 - ref2)) < 3e-2, "mismatch vs reference (tiled)"

    print("KERNEL_OK")
</pallas_src>

<mosaic_0001>
module attributes {stable_mosaic.version = 11 : i64} {
  func.func @kernel(%arg0: i32, %arg1: memref<128x128xbf16, #tpu.memory_space<vmem>>, %arg2: memref<128x256xbf16, #tpu.memory_space<vmem>>, %arg3: memref<1x256xbf16, #tpu.memory_space<vmem>>, %arg4: memref<256x512xbf16, #tpu.memory_space<vmem>>, %arg5: memref<1x512xbf16, #tpu.memory_space<vmem>>, %arg6: memref<512x1024xbf16, #tpu.memory_space<vmem>>, %arg7: memref<1x1024xbf16, #tpu.memory_space<vmem>>, %arg8: memref<1024x896xbf16, #tpu.memory_space<vmem>>, %arg9: memref<1x896xbf16, #tpu.memory_space<vmem>>, %arg10: memref<128x896xbf16, #tpu.memory_space<vmem>>) attributes {dimension_semantics = [#tpu.dimension_semantics<parallel>], iteration_bounds = array<i64: 1>, scalar_prefetch = 0 : i64, scratch_operands = 0 : i64, tpu.core_type = #tpu.core_type<tc>, window_params = [{transform_indices = @transform_0, window_bounds = array<i64: 128, 128>}, {pipeline_mode = #tpu.pipeline_mode<synchronous>, transform_indices = @transform_1, window_bounds = array<i64: 128, 256>}, {pipeline_mode = #tpu.pipeline_mode<synchronous>, transform_indices = @transform_2, window_bounds = array<i64: 1, 256>}, {pipeline_mode = #tpu.pipeline_mode<synchronous>, transform_indices = @transform_3, window_bounds = array<i64: 256, 512>}, {pipeline_mode = #tpu.pipeline_mode<synchronous>, transform_indices = @transform_4, window_bounds = array<i64: 1, 512>}, {pipeline_mode = #tpu.pipeline_mode<synchronous>, transform_indices = @transform_5, window_bounds = array<i64: 512, 1024>}, {pipeline_mode = #tpu.pipeline_mode<synchronous>, transform_indices = @transform_6, window_bounds = array<i64: 1, 1024>}, {pipeline_mode = #tpu.pipeline_mode<synchronous>, transform_indices = @transform_7, window_bounds = array<i64: 1024, 896>}, {pipeline_mode = #tpu.pipeline_mode<synchronous>, transform_indices = @transform_8, window_bounds = array<i64: 1, 896>}, {transform_indices = @transform_9, window_bounds = array<i64: 128, 896>}]} {
    %c0 = arith.constant 0 : index
    %c0_0 = arith.constant 0 : index
    %0 = vector.load %arg1[%c0, %c0_0] : memref<128x128xbf16, #tpu.memory_space<vmem>>, vector<128x128xbf16>
    %c0_1 = arith.constant 0 : index
    %c0_2 = arith.constant 0 : index
    %1 = vector.load %arg2[%c0_1, %c0_2] : memref<128x256xbf16, #tpu.memory_space<vmem>>, vector<128x256xbf16>
    %cst = arith.constant dense<0.000000e+00> : vector<128x256xf32>
    %2 = tpu.matmul %0, %1, %cst {dimension_numbers = #tpu.dot_dimension_numbers<[1], [0], [0], [1], [0, 0, 1, 1], [], []>} : vector<128x128xbf16>, vector<128x256xbf16>, vector<128x256xf32> -> vector<128x256xf32>
    %3 = arith.truncf %2 : vector<128x256xf32> to vector<128x256xbf16>
    %c0_3 = arith.constant 0 : index
    %c0_4 = arith.constant 0 : index
    %4 = vector.load %arg3[%c0_3, %c0_4] : memref<1x256xbf16, #tpu.memory_space<vmem>>, vector<1x256xbf16>
    %5 = vector.broadcast %4 : vector<1x256xbf16> to vector<128x256xbf16>
    %6 = arith.addf %3, %5 : vector<128x256xbf16>
    %cst_5 = arith.constant 0.000000e+00 : bf16
    %7 = vector.broadcast %cst_5 : bf16 to vector<128x256xbf16>
    %8 = arith.cmpf oge, %6, %7 : vector<128x256xbf16>
    %cst_6 = arith.constant 2.001950e-01 : bf16
    %9 = vector.broadcast %cst_6 : bf16 to vector<128x256xbf16>
    %10 = arith.mulf %9, %6 : vector<128x256xbf16>
    %11 = arith.select %8, %6, %10 : vector<128x256xi1>, vector<128x256xbf16>
    %c0_7 = arith.constant 0 : index
    %c0_8 = arith.constant 0 : index
    %12 = vector.load %arg4[%c0_7, %c0_8] : memref<256x512xbf16, #tpu.memory_space<vmem>>, vector<256x512xbf16>
    %cst_9 = arith.constant dense<0.000000e+00> : vector<128x512xf32>
    %13 = tpu.matmul %11, %12, %cst_9 {dimension_numbers = #tpu.dot_dimension_numbers<[1], [0], [0], [1], [0, 0, 1, 1], [], []>} : vector<128x256xbf16>, vector<256x512xbf16>, vector<128x512xf32> -> vector<128x512xf32>
    %14 = arith.truncf %13 : vector<128x512xf32> to vector<128x512xbf16>
    %c0_10 = arith.constant 0 : index
    %c0_11 = arith.constant 0 : index
    %15 = vector.load %arg5[%c0_10, %c0_11] : memref<1x512xbf16, #tpu.memory_space<vmem>>, vector<1x512xbf16>
    %16 = vector.broadcast %15 : vector<1x512xbf16> to vector<128x512xbf16>
    %17 = arith.addf %14, %16 : vector<128x512xbf16>
    %cst_12 = arith.constant 0.000000e+00 : bf16
    %18 = vector.broadcast %cst_12 : bf16 to vector<128x512xbf16>
    %19 = arith.cmpf oge, %17, %18 : vector<128x512xbf16>
    %cst_13 = arith.constant 2.001950e-01 : bf16
    %20 = vector.broadcast %cst_13 : bf16 to vector<128x512xbf16>
    %21 = arith.mulf %20, %17 : vector<128x512xbf16>
    %22 = arith.select %19, %17, %21 : vector<128x512xi1>, vector<128x512xbf16>
    %c0_14 = arith.constant 0 : index
    %c0_15 = arith.constant 0 : index
    %23 = vector.load %arg6[%c0_14, %c0_15] : memref<512x1024xbf16, #tpu.memory_space<vmem>>, vector<512x1024xbf16>
    %cst_16 = arith.constant dense<0.000000e+00> : vector<128x1024xf32>
    %24 = tpu.matmul %22, %23, %cst_16 {dimension_numbers = #tpu.dot_dimension_numbers<[1], [0], [0], [1], [0, 0, 1, 1], [], []>} : vector<128x512xbf16>, vector<512x1024xbf16>, vector<128x1024xf32> -> vector<128x1024xf32>
    %25 = arith.truncf %24 : vector<128x1024xf32> to vector<128x1024xbf16>
    %c0_17 = arith.constant 0 : index
    %c0_18 = arith.constant 0 : index
    %26 = vector.load %arg7[%c0_17, %c0_18] : memref<1x1024xbf16, #tpu.memory_space<vmem>>, vector<1x1024xbf16>
    %27 = vector.broadcast %26 : vector<1x1024xbf16> to vector<128x1024xbf16>
    %28 = arith.addf %25, %27 : vector<128x1024xbf16>
    %cst_19 = arith.constant 0.000000e+00 : bf16
    %29 = vector.broadcast %cst_19 : bf16 to vector<128x1024xbf16>
    %30 = arith.cmpf oge, %28, %29 : vector<128x1024xbf16>
    %cst_20 = arith.constant 2.001950e-01 : bf16
    %31 = vector.broadcast %cst_20 : bf16 to vector<128x1024xbf16>
    %32 = arith.mulf %31, %28 : vector<128x1024xbf16>
    %33 = arith.select %30, %28, %32 : vector<128x1024xi1>, vector<128x1024xbf16>
    %c0_21 = arith.constant 0 : index
    %c0_22 = arith.constant 0 : index
    %34 = vector.load %arg8[%c0_21, %c0_22] : memref<1024x896xbf16, #tpu.memory_space<vmem>>, vector<1024x896xbf16>
    %cst_23 = arith.constant dense<0.000000e+00> : vector<128x896xf32>
    %35 = tpu.matmul %33, %34, %cst_23 {dimension_numbers = #tpu.dot_dimension_numbers<[1], [0], [0], [1], [0, 0, 1, 1], [], []>} : vector<128x1024xbf16>, vector<1024x896xbf16>, vector<128x896xf32> -> vector<128x896xf32>
    %36 = arith.truncf %35 : vector<128x896xf32> to vector<128x896xbf16>
    %c0_24 = arith.constant 0 : index
    %c0_25 = arith.constant 0 : index
    %37 = vector.load %arg9[%c0_24, %c0_25] : memref<1x896xbf16, #tpu.memory_space<vmem>>, vector<1x896xbf16>
    %38 = vector.broadcast %37 : vector<1x896xbf16> to vector<128x896xbf16>
    %39 = arith.addf %36, %38 : vector<128x896xbf16>
    %40 = math.tanh %39 : vector<128x896xbf16>
    %c0_26 = arith.constant 0 : index
    %c0_27 = arith.constant 0 : index
    %41 = vector.load %arg10[%c0_26, %c0_27] : memref<128x896xbf16, #tpu.memory_space<vmem>>, vector<128x896xbf16>
    tpu.vector_store %arg10[%c0_26, %c0_27], %40 {strides = array<i32>} : memref<128x896xbf16, #tpu.memory_space<vmem>>, vector<128x896xbf16>,
    return
  }
  func.func @transform_0(%arg0: i32) -> (i32, i32) {
    %c0_i32 = arith.constant 0 : i32
    %c0_i32_0 = arith.constant 0 : i32
    return %arg0, %c0_i32 : i32, i32
  }
  func.func @transform_1(%arg0: i32) -> (i32, i32) {
    %c0_i32 = arith.constant 0 : i32
    %c0_i32_0 = arith.constant 0 : i32
    %c0_i32_1 = arith.constant 0 : i32
    return %c0_i32, %c0_i32_0 : i32, i32
  }
  func.func @transform_2(%arg0: i32) -> (i32, i32) {
    %c0_i32 = arith.constant 0 : i32
    %c0_i32_0 = arith.constant 0 : i32
    %c0_i32_1 = arith.constant 0 : i32
    return %c0_i32, %c0_i32_0 : i32, i32
  }
  func.func @transform_3(%arg0: i32) -> (i32, i32) {
    %c0_i32 = arith.constant 0 : i32
    %c0_i32_0 = arith.constant 0 : i32
    %c0_i32_1 = arith.constant 0 : i32
    return %c0_i32, %c0_i32_0 : i32, i32
  }
  func.func @transform_4(%arg0: i32) -> (i32, i32) {
    %c0_i32 = arith.constant 0 : i32
    %c0_i32_0 = arith.constant 0 : i32
    %c0_i32_1 = arith.constant 0 : i32
    return %c0_i32, %c0_i32_0 : i32, i32
  }
  func.func @transform_5(%arg0: i32) -> (i32, i32) {
    %c0_i32 = arith.constant 0 : i32
    %c0_i32_0 = arith.constant 0 : i32
    %c0_i32_1 = arith.constant 0 : i32
    return %c0_i32, %c0_i32_0 : i32, i32
  }
  func.func @transform_6(%arg0: i32) -> (i32, i32) {
    %c0_i32 = arith.constant 0 : i32
    %c0_i32_0 = arith.constant 0 : i32
    %c0_i32_1 = arith.constant 0 : i32
    return %c0_i32, %c0_i32_0 : i32, i32
  }
  func.func @transform_7(%arg0: i32) -> (i32, i32) {
    %c0_i32 = arith.constant 0 : i32
    %c0_i32_0 = arith.constant 0 : i32
    %c0_i32_1 = arith.constant 0 : i32
    return %c0_i32, %c0_i32_0 : i32, i32
  }
  func.func @transform_8(%arg0: i32) -> (i32, i32) {
    %c0_i32 = arith.constant 0 : i32
    %c0_i32_0 = arith.constant 0 : i32
    %c0_i32_1 = arith.constant 0 : i32
    return %c0_i32, %c0_i32_0 : i32, i32
  }
  func.func @transform_9(%arg0: i32) -> (i32, i32) {
    %c0_i32 = arith.constant 0 : i32
    %c0_i32_0 = arith.constant 0 : i32
    return %arg0, %c0_i32 : i32, i32
  }
}

</mosaic_0001>

<llo_original>
// kernel: tpu_custom_call.1
$region0: #{tpu_custom_call.1}
  #allocation0 [shape = 'u32[]', space=smem, size = 0x4, offset = 0x4, fixed_abs, tag = 'smem constant byte address 0x4 - core index']
  #allocation1 [shape = 'u32[144,128]{1,0:T(1,128)}', space=vmem, size = 0x12000, scoped, tag = 'internal scratch']
  %s0 = inlined_call_operand.hbm [shape: bf16[128,128], index: 0, kind: input, shape index: {}]
  %s1 = inlined_call_operand.hbm [shape: bf16[128,256], index: 1, kind: input, shape index: {}]
  %s2 = inlined_call_operand.hbm [shape: bf16[1,256], index: 2, kind: input, shape index: {}]
  %s3 = inlined_call_operand.hbm [shape: bf16[256,512], index: 3, kind: input, shape index: {}]
  %s4 = inlined_call_operand.hbm [shape: bf16[1,512], index: 4, kind: input, shape index: {}]
  %s5 = inlined_call_operand.hbm [shape: bf16[512,1024], index: 5, kind: input, shape index: {}]
  %s6 = inlined_call_operand.hbm [shape: bf16[1,1024], index: 6, kind: input, shape index: {}]
  %s7 = inlined_call_operand.hbm [shape: bf16[1024,896], index: 7, kind: input, shape index: {}]
  %s8 = inlined_call_operand.hbm [shape: bf16[1,896], index: 8, kind: input, shape index: {}]
  %s9 = inlined_call_operand.hbm [shape: bf16[128,896], index: 9, kind: output, shape index: {}]
  %s10 = sld [smem:[#allocation0]]
  $region82: #{tpu_custom_call.1} parent=0
    _
  %s12 = ssub.s32 1, %s10
  %s13 = scalar_select 0, %s12, %s10
  $region1: #{tpu_custom_call.1} parent=0
    #allocation2 [shape = 'u8[32768]{0}', space=vmem, size = 0x8000, scoped, tag = 'input window, operand 0, single buffered']
    #allocation3 [shape = 's32[1]{0}', space=sflag, size = 0x4, scoped, tag = 'scoped memory for tpu_custom_call.1']
    #allocation4 [shape = 's32[1]{0}', space=sflag, size = 0x4, scoped, tag = 'scoped memory for tpu_custom_call.1']
    #allocation5 [shape = 'u8[65536]{0}', space=vmem, size = 0x10000, scoped, tag = 'input window, operand 1, single buffered']
    #allocation6 [shape = 's32[1]{0}', space=sflag, size = 0x4, scoped, tag = 'scoped memory for tpu_custom_call.1']
    #allocation7 [shape = 'u8[1024]{0}', space=vmem, size = 0x400, scoped, tag = 'input window, operand 2, single buffered']
    #allocation8 [shape = 'u8[262144]{0}', space=vmem, size = 0x40000, scoped, tag = 'input window, operand 3, single buffered']
    #allocation9 [shape = 's32[1]{0}', space=sflag, size = 0x4, scoped, tag = 'scoped memory for tpu_custom_call.1']
    #allocation10 [shape = 'u8[2048]{0}', space=vmem, size = 0x800, scoped, tag = 'input window, operand 4, single buffered']
    #allocation11 [shape = 'u8[1048576]{0}', space=vmem, size = 0x100000, scoped, tag = 'input window, operand 5, single buffered']
    #allocation12 [shape = 's32[1]{0}', space=sflag, size = 0x4, scoped, tag = 'scoped memory for tpu_custom_call.1']
    #allocation13 [shape = 'u8[4096]{0}', space=vmem, size = 0x1000, scoped, tag = 'input window, operand 6, single buffered']
    #allocation14 [shape = 'u8[1835008]{0}', space=vmem, size = 0x1c0000, scoped, tag = 'input window, operand 7, single buffered']
    #allocation15 [shape = 's32[1]{0}', space=sflag, size = 0x4, scoped, tag = 'scoped memory for tpu_custom_call.1']
    #allocation16 [shape = 'u8[3584]{0}', space=vmem, size = 0x1000, scoped, tag = 'input window, operand 8, single buffered']
    #allocation17 [shape = 'u8[229376]{0}', space=vmem, size = 0x38000, scoped, tag = 'output window, operand 0, single buffered']
    %14 = vsyncpa [#allocation3], 0
    %15 = vsyncpa [#allocation6], 0
    %16 = vsyncpa [#allocation9], 0
    %17 = vsyncpa [#allocation12], 0
    %18 = vsyncpa [#allocation15], 0
    %19 = vsyncpa [#allocation4], 0
    // Predicated region
    $region2: #{tpu_custom_call.1} parent=1 // pred_check
      _
    $region3: #{tpu_custom_call.1} parent=1 // pred_check_branch
      %21 = sbr.rel (0) target = $region5
    $region4: #{tpu_custom_call.1} parent=1 // pred_region
      %s23 = ssub.s32 1024, 1024
      %24 = vsyncadd [#allocation3], %s23
      %s25 = sshll.u32 [#allocation2], 4
      %s26 = int_to_ptr.vmem [resolvable:$true] %s25
      %31 = dma.hbm_to_vmem [thread:$0]  %s0, 1024, %s26, [#allocation3], 64, 64, 4
    $region5: #{tpu_custom_call.1} parent=1 // pred_fallthru
      _
    // Predicated region
    $region6: #{tpu_custom_call.1} parent=1 // pred_check
      _
    $region7: #{tpu_custom_call.1} parent=1 // pred_check_branch
      %33 = sbr.rel (0) target = $region9
    $region8: #{tpu_custom_call.1} parent=1 // pred_region
      %s35 = ssub.s32 2048, 2048
      %36 = vsyncadd [#allocation6], %s35
      %s37 = sshll.u32 [#allocation5], 4
      %s38 = int_to_ptr.vmem [resolvable:$true] %s37
      %43 = dma.hbm_to_vmem [thread:$0]  %s1, 2048, %s38, [#allocation6], 128, 128, 8
    $region9: #{tpu_custom_call.1} parent=1 // pred_fallthru
      _
    // Predicated region
    $region10: #{tpu_custom_call.1} parent=1 // pred_check
      _
    $region11: #{tpu_custom_call.1} parent=1 // pred_check_branch
      %45 = sbr.rel (0) target = $region13
    $region12: #{tpu_custom_call.1} parent=1 // pred_region
      %s47 = ssub.s32 32, 32
      %48 = vsyncadd [#allocation6], %s47
      %s50 = sshll.u32 [#allocation7], 4
      %s51 = int_to_ptr.vmem [resolvable:$true] %s50
      %53 = dma.hbm_to_vmem [thread:$0]  %s2, 32, %s51, [#allocation6]
    $region13: #{tpu_custom_call.1} parent=1 // pred_fallthru
      _
    // Predicated region
    $region14: #{tpu_custom_call.1} parent=1 // pred_check
      _
    $region15: #{tpu_custom_call.1} parent=1 // pred_check_branch
      %55 = sbr.rel (0) target = $region17
    $region16: #{tpu_custom_call.1} parent=1 // pred_region
      %s57 = ssub.s32 8192, 8192
      %58 = vsyncadd [#allocation9], %s57
      %s59 = sshll.u32 [#allocation8], 4
      %s60 = int_to_ptr.vmem [resolvable:$true] %s59
      %65 = dma.hbm_to_vmem [thread:$0]  %s3, 8192, %s60, [#allocation9], 256, 256, 16
    $region17: #{tpu_custom_call.1} parent=1 // pred_fallthru
      _
    // Predicated region
    $region18: #{tpu_custom_call.1} parent=1 // pred_check
      _
    $region19: #{tpu_custom_call.1} parent=1 // pred_check_branch
      %67 = sbr.rel (0) target = $region21
    $region20: #{tpu_custom_call.1} parent=1 // pred_region
      %s69 = ssub.s32 64, 64
      %70 = vsyncadd [#allocation9], %s69
      %s72 = sshll.u32 [#allocation10], 4
      %s73 = int_to_ptr.vmem [resolvable:$true] %s72
      %75 = dma.hbm_to_vmem [thread:$0]  %s4, 64, %s73, [#allocation9]
    $region21: #{tpu_custom_call.1} parent=1 // pred_fallthru
      _
    // Predicated region
    $region22: #{tpu_custom_call.1} parent=1 // pred_check
      _
    $region23: #{tpu_custom_call.1} parent=1 // pred_check_branch
      %77 = sbr.rel (0) target = $region25
    $region24: #{tpu_custom_call.1} parent=1 // pred_region
      %s79 = ssub.s32 32768, 32768
      %80 = vsyncadd [#allocation12], %s79
      %s81 = sshll.u32 [#allocation11], 4
      %s82 = int_to_ptr.vmem [resolvable:$true] %s81
      %87 = dma.hbm_to_vmem [thread:$0]  %s5, 32768, %s82, [#allocation12], 512, 512, 32
    $region25: #{tpu_custom_call.1} parent=1 // pred_fallthru
      _
    // Predicated region
    $region26: #{tpu_custom_call.1} parent=1 // pred_check
      _
    $region27: #{tpu_custom_call.1} parent=1 // pred_check_branch
      %89 = sbr.rel (0) target = $region29
    $region28: #{tpu_custom_call.1} parent=1 // pred_region
      %s91 = ssub.s32 128, 128
      %92 = vsyncadd [#allocation12], %s91
      %s94 = sshll.u32 [#allocation13], 4
      %s95 = int_to_ptr.vmem [resolvable:$true] %s94
      %97 = dma.hbm_to_vmem [thread:$0]  %s6, 128, %s95, [#allocation12]
    $region29: #{tpu_custom_call.1} parent=1 // pred_fallthru
      _
    // Predicated region
    $region30: #{tpu_custom_call.1} parent=1 // pred_check
      _
    $region31: #{tpu_custom_call.1} parent=1 // pred_check_branch
      %99 = sbr.rel (0) target = $region33
    $region32: #{tpu_custom_call.1} parent=1 // pred_region
      %s101 = ssub.s32 57344, 57344
      %102 = vsyncadd [#allocation15], %s101
      %s103 = sshll.u32 [#allocation14], 4
      %s104 = int_to_ptr.vmem [resolvable:$true] %s103
      %109 = dma.hbm_to_vmem [thread:$0]  %s7, 57344, %s104, [#allocation15], 448, 448, 28
    $region33: #{tpu_custom_call.1} parent=1 // pred_fallthru
      _
    // Predicated region
    $region34: #{tpu_custom_call.1} parent=1 // pred_check
      _
    $region35: #{tpu_custom_call.1} parent=1 // pred_check_branch
      %111 = sbr.rel (0) target = $region37
    $region36: #{tpu_custom_call.1} parent=1 // pred_region
      %s113 = ssub.s32 112, 112
      %114 = vsyncadd [#allocation15], %s113
      %s116 = sshll.u32 [#allocation16], 4
      %s117 = int_to_ptr.vmem [resolvable:$true] %s116
      %119 = dma.hbm_to_vmem [thread:$0]  %s8, 112, %s117, [#allocation15]
    $region37: #{tpu_custom_call.1} parent=1 // pred_fallthru
      _
    // Predicated region
    $region38: #{tpu_custom_call.1} parent=1 // pred_check
      _
    $region39: #{tpu_custom_call.1} parent=1 // pred_check_branch
      %121 = sbr.rel (0) target = $region41
    $region40: #{tpu_custom_call.1} parent=1 // pred_region
      %122 = dma.done [#allocation3], 1024
    $region41: #{tpu_custom_call.1} parent=1 // pred_fallthru
      _
    // Predicated region
    $region42: #{tpu_custom_call.1} parent=1 // pred_check
      _
    $region43: #{tpu_custom_call.1} parent=1 // pred_check_branch
      %124 = sbr.rel (0) target = $region45
    $region44: #{tpu_custom_call.1} parent=1 // pred_region
      %125 = dma.done [#allocation6], 2048
    $region45: #{tpu_custom_call.1} parent=1 // pred_fallthru
      _
    // Predicated region
    $region46: #{tpu_custom_call.1} parent=1 // pred_check
      _
    $region47: #{tpu_custom_call.1} parent=1 // pred_check_branch
      %127 = sbr.rel (0) target = $region49
    $region48: #{tpu_custom_call.1} parent=1 // pred_region
      %128 = dma.done [#allocation6], 32
    $region49: #{tpu_custom_call.1} parent=1 // pred_fallthru
      _
    // Predicated region
    $region50: #{tpu_custom_call.1} parent=1 // pred_check
      _
    $region51: #{tpu_custom_call.1} parent=1 // pred_check_branch
      %130 = sbr.rel (0) target = $region53
    $region52: #{tpu_custom_call.1} parent=1 // pred_region
      %131 = dma.done [#allocation9], 8192
    $region53: #{tpu_custom_call.1} parent=1 // pred_fallthru
      _
    // Predicated region
    $region54: #{tpu_custom_call.1} parent=1 // pred_check
      _
    $region55: #{tpu_custom_call.1} parent=1 // pred_check_branch
      %133 = sbr.rel (0) target = $region57
    $region56: #{tpu_custom_call.1} parent=1 // pred_region
      %134 = dma.done [#allocation9], 64
    $region57: #{tpu_custom_call.1} parent=1 // pred_fallthru
      _
    // Predicated region
    $region58: #{tpu_custom_call.1} parent=1 // pred_check
      _
    $region59: #{tpu_custom_call.1} parent=1 // pred_check_branch
      %136 = sbr.rel (0) target = $region61
    $region60: #{tpu_custom_call.1} parent=1 // pred_region
      %137 = dma.done [#allocation12], 32768
    $region61: #{tpu_custom_call.1} parent=1 // pred_fallthru
      _
    // Predicated region
    $region62: #{tpu_custom_call.1} parent=1 // pred_check
      _
    $region63: #{tpu_custom_call.1} parent=1 // pred_check_branch
      %139 = sbr.rel (0) target = $region65
    $region64: #{tpu_custom_call.1} parent=1 // pred_region
      %140 = dma.done [#allocation12], 128
    $region65: #{tpu_custom_call.1} parent=1 // pred_fallthru
      _
    // Predicated region
    $region66: #{tpu_custom_call.1} parent=1 // pred_check
      _
    $region67: #{tpu_custom_call.1} parent=1 // pred_check_branch
      %142 = sbr.rel (0) target = $region69
    $region68: #{tpu_custom_call.1} parent=1 // pred_region
      %143 = dma.done [#allocation15], 57344
    $region69: #{tpu_custom_call.1} parent=1 // pred_fallthru
      _
    // Predicated region
    $region70: #{tpu_custom_call.1} parent=1 // pred_check
      _
    $region71: #{tpu_custom_call.1} parent=1 // pred_check_branch
      %145 = sbr.rel (0) target = $region73
    $region72: #{tpu_custom_call.1} parent=1 // pred_region
      %146 = dma.done [#allocation15], 112
    $region73: #{tpu_custom_call.1} parent=1 // pred_fallthru
      _
    %v149 = vld [vmem:[#allocation2] sm:$0xf]
    %v150 = vld [vmem:[#allocation2 + $0x4] sm:$0xf]
    %v151 = vld [vmem:[#allocation2 + $0x8] sm:$0xf]
    %v152 = vld [vmem:[#allocation2 + $0xc] sm:$0xf]
    %v153 = vld [vmem:[#allocation2 + $0x10] sm:$0xf]
    %v154 = vld [vmem:[#allocation2 + $0x14] sm:$0xf]
    %v155 = vld [vmem:[#allocation2 + $0x18] sm:$0xf]
    %v156 = vld [vmem:[#allocation2 + $0x1c] sm:$0xf]
    %v157 = vld [vmem:[#allocation2 + $0x20] sm:$0xf]
    %v158 = vld [vmem:[#allocation2 + $0x24] sm:$0xf]
    %v159 = vld [vmem:[#allocation2 + $0x28] sm:$0xf]
    %v160 = vld [vmem:[#allocation2 + $0x2c] sm:$0xf]
    %v161 = vld [vmem:[#allocation2 + $0x30] sm:$0xf]
    %v162 = vld [vmem:[#allocation2 + $0x34] sm:$0xf]
    %v163 = vld [vmem:[#allocation2 + $0x38] sm:$0xf]
    %v164 = vld [vmem:[#allocation2 + $0x3c] sm:$0xf]
    %v165 = vld [vmem:[#allocation5] sm:$0xff]
    %v166 = vld [vmem:[#allocation5 + $0x8] sm:$0xff]
    %v167 = vld [vmem:[#allocation5 + $0x10] sm:$0xff]
    %v168 = vld [vmem:[#allocation5 + $0x18] sm:$0xff]
    %v169 = vld [vmem:[#allocation5 + $0x20] sm:$0xff]
    %v170 = vld [vmem:[#allocation5 + $0x28] sm:$0xff]
    %v171 = vld [vmem:[#allocation5 + $0x30] sm:$0xff]
    %v172 = vld [vmem:[#allocation5 + $0x38] sm:$0xff]
    %v173 = vld [vmem:[#allocation5 + $0x40] sm:$0xff]
    %v174 = vld [vmem:[#allocation5 + $0x48] sm:$0xff]
    %v175 = vld [vmem:[#allocation5 + $0x50] sm:$0xff]
    %v176 = vld [vmem:[#allocation5 + $0x58] sm:$0xff]
    %v177 = vld [vmem:[#allocation5 + $0x60] sm:$0xff]
    %v178 = vld [vmem:[#allocation5 + $0x68] sm:$0xff]
    %v179 = vld [vmem:[#allocation5 + $0x70] sm:$0xff]
    %v180 = vld [vmem:[#allocation5 + $0x78] sm:$0xff]
    %v197 = vunpack.c.l.b16 %v149
    %v198 = vunpack.c.l.b16 %v150
    %v199 = vunpack.c.l.b16 %v151
    %v200 = vunpack.c.l.b16 %v152
    %v201 = vunpack.c.l.b16 %v153
    %v202 = vunpack.c.l.b16 %v154
    %v203 = vunpack.c.l.b16 %v155
    %v204 = vunpack.c.l.b16 %v156
    %v205 = vunpack.c.l.b16 %v157
    %v206 = vunpack.c.l.b16 %v158
    %v207 = vunpack.c.l.b16 %v159
    %v208 = vunpack.c.l.b16 %v160
    %v209 = vunpack.c.l.b16 %v161
    %v210 = vunpack.c.l.b16 %v162
    %v211 = vunpack.c.l.b16 %v163
    %v212 = vunpack.c.l.b16 %v164
    %v213 = vpack.c.b16 %v198, %v197
    %v214 = vpack.c.b16 %v200, %v199
    %v215 = vpack.c.b16 %v202, %v201
    %v216 = vpack.c.b16 %v204, %v203
    %v217 = vpack.c.b16 %v206, %v205
    %v218 = vpack.c.b16 %v208, %v207
    %v219 = vpack.c.b16 %v210, %v209
    %v220 = vpack.c.b16 %v212, %v211
    %v245 = vunpack.c.l.b16 %v165
    %v246 = vunpack.c.h.b16 %v165
    %v247 = vunpack.c.l.b16 %v166
    %v248 = vunpack.c.h.b16 %v166
    %v249 = vunpack.c.l.b16 %v167
    %v250 = vunpack.c.h.b16 %v167
    %v251 = vunpack.c.l.b16 %v168
    %v252 = vunpack.c.h.b16 %v168
    %v253 = vunpack.c.l.b16 %v169
    %v254 = vunpack.c.h.b16 %v169
    %v255 = vunpack.c.l.b16 %v170
    %v256 = vunpack.c.h.b16 %v170
    %v257 = vunpack.c.l.b16 %v171
    %v258 = vunpack.c.h.b16 %v171
    %v259 = vunpack.c.l.b16 %v172
    %v260 = vunpack.c.h.b16 %v172
    %v261 = vunpack.c.l.b16 %v173
    %v262 = vunpack.c.h.b16 %v173
    %v263 = vunpack.c.l.b16 %v174
    %v264 = vunpack.c.h.b16 %v174
    %v265 = vunpack.c.l.b16 %v175
    %v266 = vunpack.c.h.b16 %v175
    %v267 = vunpack.c.l.b16 %v176
    %v268 = vunpack.c.h.b16 %v176
    %v269 = vunpack.c.l.b16 %v177
    %v270 = vunpack.c.h.b16 %v177
    %v271 = vunpack.c.l.b16 %v178
    %v272 = vunpack.c.h.b16 %v178
    %v273 = vunpack.c.l.b16 %v179
    %v274 = vunpack.c.h.b16 %v179
    %v275 = vunpack.c.l.b16 %v180
    %v276 = vunpack.c.h.b16 %v180
    %v277 = vpack.c.b16 %v247, %v245
    %v278 = vpack.c.b16 %v248, %v246
    %v279 = vpack.c.b16 %v251, %v249
    %v280 = vpack.c.b16 %v252, %v250
    %v281 = vpack.c.b16 %v255, %v253
    %v282 = vpack.c.b16 %v256, %v254
    %v283 = vpack.c.b16 %v259, %v257
    %v284 = vpack.c.b16 %v260, %v258
    %v285 = vpack.c.b16 %v263, %v261
    %v286 = vpack.c.b16 %v264, %v262
    %v287 = vpack.c.b16 %v267, %v265
    %v288 = vpack.c.b16 %v268, %v266
    %v289 = vpack.c.b16 %v271, %v269
    %v290 = vpack.c.b16 %v272, %v270
    %v291 = vpack.c.b16 %v275, %v273
    %v292 = vpack.c.b16 %v276, %v274
    %309 = vmatprep.subr.bf16.mxu0 %v278
    %310 = vmatpush1.bf16.msra.mxu0 %v277
    %311 = vmatprep.subr.bf16.mxu0 %v280
    %312 = vmatpush1.bf16.msra.mxu0 %v279
    %313 = vmatprep.subr.bf16.mxu0 %v282
    %314 = vmatpush1.bf16.msra.mxu0 %v281
    %315 = vmatprep.subr.bf16.mxu0 %v284
    %316 = vmatpush1.bf16.msra.mxu0 %v283
    %317 = vmatprep.subr.bf16.mxu0 %v286
    %318 = vmatpush1.bf16.msra.mxu0 %v285
    %319 = vmatprep.subr.bf16.mxu0 %v288
    %320 = vmatpush1.bf16.msra.mxu0 %v287
    %321 = vmatprep.subr.bf16.mxu0 %v290
    %322 = vmatpush1.bf16.msra.mxu0 %v289
    %323 = vmatprep.subr.bf16.mxu0 %v292
    %324 = vmatpush1.bf16.msra.mxu0 %v291
    %325 = vmatprep.subr.bf16.mxu0 0
    %326 = vmatpush1.bf16.msra.mxu0 0
    %327 = vmatprep.subr.bf16.mxu0 0
    %328 = vmatpush1.bf16.msra.mxu0 0
    %329 = vmatprep.subr.bf16.mxu0 0
    %330 = vmatpush1.bf16.msra.mxu0 0
    %331 = vmatprep.subr.bf16.mxu0 0
    %332 = vmatpush1.bf16.msra.mxu0 0
    %333 = vmatprep.subr.bf16.mxu0 0
    %334 = vmatpush1.bf16.msra.mxu0 0
    %335 = vmatprep.subr.bf16.mxu0 0
    %336 = vmatpush1.bf16.msra.mxu0 0
    %337 = vmatprep.subr.bf16.mxu0 0
    %338 = vmatpush1.bf16.msra.mxu0 0
    %339 = vmatprep.subr.bf16.mxu0 0
    %340 = vmatpush1.bf16.msra.mxu0 0
    %341 = vmatprep.mubr.bf16.mxu0 0
    %342 = vmatmul.mubr.bf16.gmra.mrb[0].mxu0 %v213
    %v343 = vpop.f32.mrb[0].mxu0
    %v344 = vadd.f32 0.0, %v343
    %v345 = vpop.f32.mrb[0].mxu0
    %v346 = vadd.f32 0.0, %v345
    %v347 = vpop.f32.mrb[0].mxu0
    %v348 = vadd.f32 0.0, %v347
    %v349 = vpop.f32.mrb[0].mxu0
    %v350 = vadd.f32 0.0, %v349
    %351 = vmatprep.mubr.bf16.mxu0 0
    %352 = vmatmul.mubr.bf16.gmra.mrb[0].mxu0 %v214
    %v353 = vpop.f32.mrb[0].mxu0
    %v354 = vadd.f32 0.0, %v353
    %v355 = vpop.f32.mrb[0].mxu0
    %v356 = vadd.f32 0.0, %v355
    %v357 = vpop.f32.mrb[0].mxu0
    %v358 = vadd.f32 0.0, %v357
    %v359 = vpop.f32.mrb[0].mxu0
    %v360 = vadd.f32 0.0, %v359
    %361 = vmatprep.mubr.bf16.mxu0 0
    %362 = vmatmul.mubr.bf16.gmra.mrb[0].mxu0 %v215
    %v363 = vpop.f32.mrb[0].mxu0
    %v364 = vadd.f32 0.0, %v363
    %v365 = vpop.f32.mrb[0].mxu0
    %v366 = vadd.f32 0.0, %v365
    %v367 = vpop.f32.mrb[0].mxu0
    %v368 = vadd.f32 0.0, %v367
    %v369 = vpop.f32.mrb[0].mxu0
    %v370 = vadd.f32 0.0, %v369
    %371 = vmatprep.mubr.bf16.mxu0 0
    %372 = vmatmul.mubr.bf16.gmra.mrb[0].mxu0 %v216
    %v373 = vpop.f32.mrb[0].mxu0
    %v374 = vadd.f32 0.0, %v373
    %v375 = vpop.f32.mrb[0].mxu0
    %v376 = vadd.f32 0.0, %v375
    %v377 = vpop.f32.mrb[0].mxu0
    %v378 = vadd.f32 0.0, %v377
    %v379 = vpop.f32.mrb[0].mxu0
    %v380 = vadd.f32 0.0, %v379
    %381 = vmatprep.mubr.bf16.mxu0 0
    %382 = vmatmul.mubr.bf16.gmra.mrb[0].mxu0 %v217
    %v383 = vpop.f32.mrb[0].mxu0
    %v384 = vadd.f32 0.0, %v383
    %v385 = vpop.f32.mrb[0].mxu0
    %v386 = vadd.f32 0.0, %v385
    %v387 = vpop.f32.mrb[0].mxu0
    %v388 = vadd.f32 0.0, %v387
    %v389 = vpop.f32.mrb[0].mxu0
    %v390 = vadd.f32 0.0, %v389
    %391 = vmatprep.mubr.bf16.mxu0 0
    %392 = vmatmul.mubr.bf16.gmra.mrb[0].mxu0 %v218
    %v393 = vpop.f32.mrb[0].mxu0
    %v394 = vadd.f32 0.0, %v393
    %v395 = vpop.f32.mrb[0].mxu0
    %v396 = vadd.f32 0.0, %v395
    %v397 = vpop.f32.mrb[0].mxu0
    %v398 = vadd.f32 0.0, %v397
    %v399 = vpop.f32.mrb[0].mxu0
    %v400 = vadd.f32 0.0, %v399
    %401 = vmatprep.mubr.bf16.mxu0 0
    %402 = vmatmul.mubr.bf16.gmra.mrb[0].mxu0 %v219
    %v403 = vpop.f32.mrb[0].mxu0
    %v404 = vadd.f32 0.0, %v403
    %v405 = vpop.f32.mrb[0].mxu0
    %v406 = vadd.f32 0.0, %v405
    %v407 = vpop.f32.mrb[0].mxu0
    %v408 = vadd.f32 0.0, %v407
    %v409 = vpop.f32.mrb[0].mxu0
    %v410 = vadd.f32 0.0, %v409
    %411 = vmatprep.mubr.bf16.mxu0 0
    %412 = vmatmul.mubr.bf16.gmra.mrb[0].mxu0 %v220
    %v413 = vpop.f32.mrb[0].mxu0
    %v414 = vadd.f32 0.0, %v413
    %v415 = vpop.f32.mrb[0].mxu0
    %v416 = vadd.f32 0.0, %v415
    %v417 = vpop.f32.mrb[0].mxu0
    %v418 = vadd.f32 0.0, %v417
    %v419 = vpop.f32.mrb[0].mxu0
    %v420 = vadd.f32 0.0, %v419
    %421 = vdwg.mxu0
    %v422 = vpack.c.bf16 %v348, %v344
    %v423 = vpack.c.bf16 %v350, %v346
    %v424 = vpack.c.bf16 %v358, %v354
    %v425 = vpack.c.bf16 %v360, %v356
    %v426 = vpack.c.bf16 %v368, %v364
    %v427 = vpack.c.bf16 %v370, %v366
    %v428 = vpack.c.bf16 %v378, %v374
    %v429 = vpack.c.bf16 %v380, %v376
    %v430 = vpack.c.bf16 %v388, %v384
    %v431 = vpack.c.bf16 %v390, %v386
    %v432 = vpack.c.bf16 %v398, %v394
    %v433 = vpack.c.bf16 %v400, %v396
    %v434 = vpack.c.bf16 %v408, %v404
    %v435 = vpack.c.bf16 %v410, %v406
    %v436 = vpack.c.bf16 %v418, %v414
    %v437 = vpack.c.bf16 %v420, %v416
    %v438 = vld [vmem:[#allocation7] sm:$0x3]
    %v441 = vunpack.c.l.s4 1966171168
    %v442 = vunpack.c.0.s8 %v441
    %v443 = vlaneseq
    %v444 = vshrl.u32 %v443, 7
    %v445 = vsub.s32 %v442, %v444
    %v446 = vrot.slane %v438, %v445
    %v447 = vcombine.high %v446, %v446
    %v449 = vunpack.c.l.s4 1966171168
    %v450 = vunpack.c.0.s8 %v449
    %v451 = vlaneseq
    %v452 = vshrl.u32 %v451, 7
    %v453 = vsub.s32 %v450, %v452
    %v454 = vrot.slane %v446, %v453
    %v456 = vunpack.c.l.s4 1966171168
    %v457 = vunpack.c.0.s8 %v456
    %v458 = vlaneseq
    %v459 = vshrl.u32 %v458, 7
    %v460 = vsub.s32 %v457, %v459
    %v461 = vrot.slane %v447, %v460
    %v463 = vpack.i.b16 %v454, %v454
    %v465 = vlaneseq
    %v466 = vshrl.u32 %v465, 7
    %v467 = vsub.s32 0, %v466
    %v468 = vrot.slane %v463, %v467
    %v470 = vpack.i.b16 %v461, %v461
    %v472 = vlaneseq
    %v473 = vshrl.u32 %v472, 7
    %v474 = vsub.s32 0, %v473
    %v475 = vrot.slane %v470, %v474
    %v476 = vadd.bf16 %v422, %v468
    %v477 = vadd.bf16 %v423, %v475
    %v478 = vadd.bf16 %v424, %v468
    %v479 = vadd.bf16 %v425, %v475
    %v480 = vadd.bf16 %v426, %v468
    %v481 = vadd.bf16 %v427, %v475
    %v482 = vadd.bf16 %v428, %v468
    %v483 = vadd.bf16 %v429, %v475
    %v484 = vadd.bf16 %v430, %v468
    %v485 = vadd.bf16 %v431, %v475
    %v486 = vadd.bf16 %v432, %v468
    %v487 = vadd.bf16 %v433, %v475
    %v488 = vadd.bf16 %v434, %v468
    %v489 = vadd.bf16 %v435, %v475
    %v490 = vadd.bf16 %v436, %v468
    %v491 = vadd.bf16 %v437, %v475
    %vm492 = vcmp.ge.bf16.partialorder %v476, 0
    %vm493 = vcmp.ge.bf16.partialorder %v477, 0
    %vm494 = vcmp.ge.bf16.partialorder %v478, 0
    %vm495 = vcmp.ge.bf16.partialorder %v479, 0
    %vm496 = vcmp.ge.bf16.partialorder %v480, 0
    %vm497 = vcmp.ge.bf16.partialorder %v481, 0
    %vm498 = vcmp.ge.bf16.partialorder %v482, 0
    %vm499 = vcmp.ge.bf16.partialorder %v483, 0
    %vm500 = vcmp.ge.bf16.partialorder %v484, 0
    %vm501 = vcmp.ge.bf16.partialorder %v485, 0
    %vm502 = vcmp.ge.bf16.partialorder %v486, 0
    %vm503 = vcmp.ge.bf16.partialorder %v487, 0
    %vm504 = vcmp.ge.bf16.partialorder %v488, 0
    %vm505 = vcmp.ge.bf16.partialorder %v489, 0
    %vm506 = vcmp.ge.bf16.partialorder %v490, 0
    %vm507 = vcmp.ge.bf16.partialorder %v491, 0
    %v508 = vmul.bf16 %v476, 1045249613
    %v509 = vmul.bf16 %v477, 1045249613
    %v510 = vmul.bf16 %v478, 1045249613
    %v511 = vmul.bf16 %v479, 1045249613
    %v512 = vmul.bf16 %v480, 1045249613
    %v513 = vmul.bf16 %v481, 1045249613
    %v514 = vmul.bf16 %v482, 1045249613
    %v515 = vmul.bf16 %v483, 1045249613
    %v516 = vmul.bf16 %v484, 1045249613
    %v517 = vmul.bf16 %v485, 1045249613
    %v518 = vmul.bf16 %v486, 1045249613
    %v519 = vmul.bf16 %v487, 1045249613
    %v520 = vmul.bf16 %v488, 1045249613
    %v521 = vmul.bf16 %v489, 1045249613
    %v522 = vmul.bf16 %v490, 1045249613
    %v523 = vmul.bf16 %v491, 1045249613
    %v524 = vsel %vm492, %v476, %v508
    %v525 = vsel %vm493, %v477, %v509
    %v526 = vsel %vm494, %v478, %v510
    %v527 = vsel %vm495, %v479, %v511
    %v528 = vsel %vm496, %v480, %v512
    %v529 = vsel %vm497, %v481, %v513
    %v530 = vsel %vm498, %v482, %v514
    %v531 = vsel %vm499, %v483, %v515
    %v532 = vsel %vm500, %v484, %v516
    %v533 = vsel %vm501, %v485, %v517
    %v534 = vsel %vm502, %v486, %v518
    %v535 = vsel %vm503, %v487, %v519
    %v536 = vsel %vm504, %v488, %v520
    %v537 = vsel %vm505, %v489, %v521
    %v538 = vsel %vm506, %v490, %v522
    %v539 = vsel %vm507, %v491, %v523
    %v540 = vld [vmem:[#allocation8] sm:$0xff]
    %v541 = vld [vmem:[#allocation8 + $0x8] sm:$0xff]
    %v542 = vld [vmem:[#allocation8 + $0x10] sm:$0xff]
    %v543 = vld [vmem:[#allocation8 + $0x18] sm:$0xff]
    %v544 = vld [vmem:[#allocation8 + $0x20] sm:$0xff]
    %v545 = vld [vmem:[#allocation8 + $0x28] sm:$0xff]
    %v546 = vld [vmem:[#allocation8 + $0x30] sm:$0xff]
    %v547 = vld [vmem:[#allocation8 + $0x38] sm:$0xff]
    %v548 = vld [vmem:[#allocation8 + $0x40] sm:$0xff]
    %v549 = vld [vmem:[#allocation8 + $0x48] sm:$0xff]
    %v550 = vld [vmem:[#allocation8 + $0x50] sm:$0xff]
    %v551 = vld [vmem:[#allocation8 + $0x58] sm:$0xff]
    %v552 = vld [vmem:[#allocation8 + $0x60] sm:$0xff]
    %v553 = vld [vmem:[#allocation8 + $0x68] sm:$0xff]
    %v554 = vld [vmem:[#allocation8 + $0x70] sm:$0xff]
    %v555 = vld [vmem:[#allocation8 + $0x78] sm:$0xff]
    %v556 = vld [vmem:[#allocation8 + $0x80] sm:$0xff]
    %v557 = vld [vmem:[#allocation8 + $0x88] sm:$0xff]
    %v558 = vld [vmem:[#allocation8 + $0x90] sm:$0xff]
    %v559 = vld [vmem:[#allocation8 + $0x98] sm:$0xff]
    %v560 = vld [vmem:[#allocation8 + $0xa0] sm:$0xff]
    %v561 = vld [vmem:[#allocation8 + $0xa8] sm:$0xff]
    %v562 = vld [vmem:[#allocation8 + $0xb0] sm:$0xff]
    %v563 = vld [vmem:[#allocation8 + $0xb8] sm:$0xff]
    %v564 = vld [vmem:[#allocation8 + $0xc0] sm:$0xff]
    %v565 = vld [vmem:[#allocation8 + $0xc8] sm:$0xff]
    %v566 = vld [vmem:[#allocation8 + $0xd0] sm:$0xff]
    %v567 = vld [vmem:[#allocation8 + $0xd8] sm:$0xff]
    %v568 = vld [vmem:[#allocation8 + $0xe0] sm:$0xff]
    %v569 = vld [vmem:[#allocation8 + $0xe8] sm:$0xff]
    %v570 = vld [vmem:[#allocation8 + $0xf0] sm:$0xff]
    %v571 = vld [vmem:[#allocation8 + $0xf8] sm:$0xff]
    %v572 = vld [vmem:[#allocation8 + $0x100] sm:$0xff]
    %v573 = vld [vmem:[#allocation8 + $0x108] sm:$0xff]
    %v574 = vld [vmem:[#allocation8 + $0x110] sm:$0xff]
    %v575 = vld [vmem:[#allocation8 + $0x118] sm:$0xff]
    %v576 = vld [vmem:[#allocation8 + $0x120] sm:$0xff]
    %v577 = vld [vmem:[#allocation8 + $0x128] sm:$0xff]
    %v578 = vld [vmem:[#allocation8 + $0x130] sm:$0xff]
    %v579 = vld [vmem:[#allocation8 + $0x138] sm:$0xff]
    %v580 = vld [vmem:[#allocation8 + $0x140] sm:$0xff]
    %v581 = vld [vmem:[#allocation8 + $0x148] sm:$0xff]
    %v582 = vld [vmem:[#allocation8 + $0x150] sm:$0xff]
    %v583 = vld [vmem:[#allocation8 + $0x158] sm:$0xff]
    %v584 = vld [vmem:[#allocation8 + $0x160] sm:$0xff]
    %v585 = vld [vmem:[#allocation8 + $0x168] sm:$0xff]
    %v586 = vld [vmem:[#allocation8 + $0x170] sm:$0xff]
    %v587 = vld [vmem:[#allocation8 + $0x178] sm:$0xff]
    %v588 = vld [vmem:[#allocation8 + $0x180] sm:$0xff]
    %v589 = vld [vmem:[#allocation8 + $0x188] sm:$0xff]
    %v590 = vld [vmem:[#allocation8 + $0x190] sm:$0xff]
    %v591 = vld [vmem:[#allocation8 + $0x198] sm:$0xff]
    %v592 = vld [vmem:[#allocation8 + $0x1a0] sm:$0xff]
    %v593 = vld [vmem:[#allocation8 + $0x1a8] sm:$0xff]
    %v594 = vld [vmem:[#allocation8 + $0x1b0] sm:$0xff]
    %v595 = vld [vmem:[#allocation8 + $0x1b8] sm:$0xff]
    %v596 = vld [vmem:[#allocation8 + $0x1c0] sm:$0xff]
    %v597 = vld [vmem:[#allocation8 + $0x1c8] sm:$0xff]
    %v598 = vld [vmem:[#allocation8 + $0x1d0] sm:$0xff]
    %v599 = vld [vmem:[#allocation8 + $0x1d8] sm:$0xff]
    %v600 = vld [vmem:[#allocation8 + $0x1e0] sm:$0xff]
    %v601 = vld [vmem:[#allocation8 + $0x1e8] sm:$0xff]
    %v602 = vld [vmem:[#allocation8 + $0x1f0] sm:$0xff]
    %v603 = vld [vmem:[#allocation8 + $0x1f8] sm:$0xff]
    %v668 = vunpack.c.l.b16 %v540
    %v669 = vunpack.c.h.b16 %v540
    %v670 = vunpack.c.l.b16 %v541
    %v671 = vunpack.c.h.b16 %v541
    %v672 = vunpack.c.l.b16 %v542
    %v673 = vunpack.c.h.b16 %v542
    %v674 = vunpack.c.l.b16 %v543
    %v675 = vunpack.c.h.b16 %v543
    %v676 = vunpack.c.l.b16 %v544
    %v677 = vunpack.c.h.b16 %v544
    %v678 = vunpack.c.l.b16 %v545
    %v679 = vunpack.c.h.b16 %v545
    %v680 = vunpack.c.l.b16 %v546
    %v681 = vunpack.c.h.b16 %v546
    %v682 = vunpack.c.l.b16 %v547
    %v683 = vunpack.c.h.b16 %v547
    %v684 = vunpack.c.l.b16 %v548
    %v685 = vunpack.c.h.b16 %v548
    %v686 = vunpack.c.l.b16 %v549
    %v687 = vunpack.c.h.b16 %v549
    %v688 = vunpack.c.l.b16 %v550
    %v689 = vunpack.c.h.b16 %v550
    %v690 = vunpack.c.l.b16 %v551
    %v691 = vunpack.c.h.b16 %v551
    %v692 = vunpack.c.l.b16 %v552
    %v693 = vunpack.c.h.b16 %v552
    %v694 = vunpack.c.l.b16 %v553
    %v695 = vunpack.c.h.b16 %v553
    %v696 = vunpack.c.l.b16 %v554
    %v697 = vunpack.c.h.b16 %v554
    %v698 = vunpack.c.l.b16 %v555
    %v699 = vunpack.c.h.b16 %v555
    %v700 = vunpack.c.l.b16 %v556
    %v701 = vunpack.c.h.b16 %v556
    %v702 = vunpack.c.l.b16 %v557
    %v703 = vunpack.c.h.b16 %v557
    %v704 = vunpack.c.l.b16 %v558
    %v705 = vunpack.c.h.b16 %v558
    %v706 = vunpack.c.l.b16 %v559
    %v707 = vunpack.c.h.b16 %v559
    %v708 = vunpack.c.l.b16 %v560
    %v709 = vunpack.c.h.b16 %v560
    %v710 = vunpack.c.l.b16 %v561
    %v711 = vunpack.c.h.b16 %v561
    %v712 = vunpack.c.l.b16 %v562
    %v713 = vunpack.c.h.b16 %v562
    %v714 = vunpack.c.l.b16 %v563
    %v715 = vunpack.c.h.b16 %v563
    %v716 = vunpack.c.l.b16 %v564
    %v717 = vunpack.c.h.b16 %v564
    %v718 = vunpack.c.l.b16 %v565
    %v719 = vunpack.c.h.b16 %v565
    %v720 = vunpack.c.l.b16 %v566
    %v721 = vunpack.c.h.b16 %v566
    %v722 = vunpack.c.l.b16 %v567
    %v723 = vunpack.c.h.b16 %v567
    %v724 = vunpack.c.l.b16 %v568
    %v725 = vunpack.c.h.b16 %v568
    %v726 = vunpack.c.l.b16 %v569
    %v727 = vunpack.c.h.b16 %v569
    %v728 = vunpack.c.l.b16 %v570
    %v729 = vunpack.c.h.b16 %v570
    %v730 = vunpack.c.l.b16 %v571
    %v731 = vunpack.c.h.b16 %v571
    %v732 = vunpack.c.l.b16 %v572
    %v733 = vunpack.c.h.b16 %v572
    %v734 = vunpack.c.l.b16 %v573
    %v735 = vunpack.c.h.b16 %v573
    %v736 = vunpack.c.l.b16 %v574
    %v737 = vunpack.c.h.b16 %v574
    %v738 = vunpack.c.l.b16 %v575
    %v739 = vunpack.c.h.b16 %v575
    %v740 = vunpack.c.l.b16 %v576
    %v741 = vunpack.c.h.b16 %v576
    %v742 = vunpack.c.l.b16 %v577
    %v743 = vunpack.c.h.b16 %v577
    %v744 = vunpack.c.l.b16 %v578
    %v745 = vunpack.c.h.b16 %v578
    %v746 = vunpack.c.l.b16 %v579
    %v747 = vunpack.c.h.b16 %v579
    %v748 = vunpack.c.l.b16 %v580
    %v749 = vunpack.c.h.b16 %v580
    %v750 = vunpack.c.l.b16 %v581
    %v751 = vunpack.c.h.b16 %v581
    %v752 = vunpack.c.l.b16 %v582
    %v753 = vunpack.c.h.b16 %v582
    %v754 = vunpack.c.l.b16 %v583
    %v755 = vunpack.c.h.b16 %v583
    %v756 = vunpack.c.l.b16 %v584
    %v757 = vunpack.c.h.b16 %v584
    %v758 = vunpack.c.l.b16 %v585
    %v759 = vunpack.c.h.b16 %v585
    %v760 = vunpack.c.l.b16 %v586
    %v761 = vunpack.c.h.b16 %v586
    %v762 = vunpack.c.l.b16 %v587
    %v763 = vunpack.c.h.b16 %v587
    %v764 = vunpack.c.l.b16 %v588
    %v765 = vunpack.c.h.b16 %v588
    %v766 = vunpack.c.l.b16 %v589
    %v767 = vunpack.c.h.b16 %v589
    %v768 = vunpack.c.l.b16 %v590
    %v769 = vunpack.c.h.b16 %v590
    %v770 = vunpack.c.l.b16 %v591
    %v771 = vunpack.c.h.b16 %v591
    %v772 = vunpack.c.l.b16 %v592
    %v773 = vunpack.c.h.b16 %v592
    %v774 = vunpack.c.l.b16 %v593
    %v775 = vunpack.c.h.b16 %v593
    %v776 = vunpack.c.l.b16 %v594
    %v777 = vunpack.c.h.b16 %v594
    %v778 = vunpack.c.l.b16 %v595
    %v779 = vunpack.c.h.b16 %v595
    %v780 = vunpack.c.l.b16 %v596
    %v781 = vunpack.c.h.b16 %v596
    %v782 = vunpack.c.l.b16 %v597
    %v783 = vunpack.c.h.b16 %v597
    %v784 = vunpack.c.l.b16 %v598
    %v785 = vunpack.c.h.b16 %v598
    %v786 = vunpack.c.l.b16 %v599
    %v787 = vunpack.c.h.b16 %v599
    %v788 = vunpack.c.l.b16 %v600
    %v789 = vunpack.c.h.b16 %v600
    %v790 = vunpack.c.l.b16 %v601
    %v791 = vunpack.c.h.b16 %v601
    %v792 = vunpack.c.l.b16 %v602
    %v793 = vunpack.c.h.b16 %v602
    %v794 = vunpack.c.l.b16 %v603
    %v795 = vunpack.c.h.b16 %v603
    %v796 = vpack.c.b16 %v672, %v668
    %v797 = vpack.c.b16 %v673, %v669
    %v798 = vpack.c.b16 %v674, %v670
    %v799 = vpack.c.b16 %v675, %v671
    %v800 = vpack.c.b16 %v680, %v676
    %v801 = vpack.c.b16 %v681, %v677
    %v802 = vpack.c.b16 %v682, %v678
    %v803 = vpack.c.b16 %v683, %v679
    %v804 = vpack.c.b16 %v688, %v684
    %v805 = vpack.c.b16 %v689, %v685
    %v806 = vpack.c.b16 %v690, %v686
    %v807 = vpack.c.b16 %v691, %v687
    %v808 = vpack.c.b16 %v696, %v692
    %v809 = vpack.c.b16 %v697, %v693
    %v810 = vpack.c.b16 %v698, %v694
    %v811 = vpack.c.b16 %v699, %v695
    %v812 = vpack.c.b16 %v704, %v700
    %v813 = vpack.c.b16 %v705, %v701
    %v814 = vpack.c.b16 %v706, %v702
    %v815 = vpack.c.b16 %v707, %v703
    %v816 = vpack.c.b16 %v712, %v708
    %v817 = vpack.c.b16 %v713, %v709
    %v818 = vpack.c.b16 %v714, %v710
    %v819 = vpack.c.b16 %v715, %v711
    %v820 = vpack.c.b16 %v720, %v716
    %v821 = vpack.c.b16 %v721, %v717
    %v822 = vpack.c.b16 %v722, %v718
    %v823 = vpack.c.b16 %v723, %v719
    %v824 = vpack.c.b16 %v728, %v724
    %v825 = vpack.c.b16 %v729, %v725
    %v826 = vpack.c.b16 %v730, %v726
    %v827 = vpack.c.b16 %v731, %v727
    %v828 = vpack.c.b16 %v736, %v732
    %v829 = vpack.c.b16 %v737, %v733
    %v830 = vpack.c.b16 %v738, %v734
    %v831 = vpack.c.b16 %v739, %v735
    %v832 = vpack.c.b16 %v744, %v740
    %v833 = vpack.c.b16 %v745, %v741
    %v834 = vpack.c.b16 %v746, %v742
    %v835 = vpack.c.b16 %v747, %v743
    %v836 = vpack.c.b16 %v752, %v748
    %v837 = vpack.c.b16 %v753, %v749
    %v838 = vpack.c.b16 %v754, %v750
    %v839 = vpack.c.b16 %v755, %v751
    %v840 = vpack.c.b16 %v760, %v756
    %v841 = vpack.c.b16 %v761, %v757
    %v842 = vpack.c.b16 %v762, %v758
    %v843 = vpack.c.b16 %v763, %v759
    %v844 = vpack.c.b16 %v768, %v764
    %v845 = vpack.c.b16 %v769, %v765
    %v846 = vpack.c.b16 %v770, %v766
    %v847 = vpack.c.b16 %v771, %v767
    %v848 = vpack.c.b16 %v776, %v772
    %v849 = vpack.c.b16 %v777, %v773
    %v850 = vpack.c.b16 %v778, %v774
    %v851 = vpack.c.b16 %v779, %v775
    %v852 = vpack.c.b16 %v784, %v780
    %v853 = vpack.c.b16 %v785, %v781
    %v854 = vpack.c.b16 %v786, %v782
    %v855 = vpack.c.b16 %v787, %v783
    %v856 = vpack.c.b16 %v792, %v788
    %v857 = vpack.c.b16 %v793, %v789
    %v858 = vpack.c.b16 %v794, %v790
    %v859 = vpack.c.b16 %v795, %v791
    %924 = vmatprep.subr.bf16.mxu0 %v797
    %925 = vmatpush1.bf16.msra.mxu0 %v796
    %926 = vmatprep.subr.bf16.mxu0 %v801
    %927 = vmatpush1.bf16.msra.mxu0 %v800
    %928 = vmatprep.subr.bf16.mxu0 %v805
    %929 = vmatpush1.bf16.msra.mxu0 %v804
    %930 = vmatprep.subr.bf16.mxu0 %v809
    %931 = vmatpush1.bf16.msra.mxu0 %v808
    %932 = vmatprep.subr.bf16.mxu0 %v813
    %933 = vmatpush1.bf16.msra.mxu0 %v812
    %934 = vmatprep.subr.bf16.mxu0 %v817
    %935 = vmatpush1.bf16.msra.mxu0 %v816
    %936 = vmatprep.subr.bf16.mxu0 %v821
    %937 = vmatpush1.bf16.msra.mxu0 %v820
    %938 = vmatprep.subr.bf16.mxu0 %v825
    %939 = vmatpush1.bf16.msra.mxu0 %v824
    %940 = vmatprep.subr.bf16.mxu0 %v829
    %941 = vmatpush1.bf16.msra.mxu0 %v828
    %942 = vmatprep.subr.bf16.mxu0 %v833
    %943 = vmatpush1.bf16.msra.mxu0 %v832
    %944 = vmatprep.subr.bf16.mxu0 %v837
    %945 = vmatpush1.bf16.msra.mxu0 %v836
    %946 = vmatprep.subr.bf16.mxu0 %v841
    %947 = vmatpush1.bf16.msra.mxu0 %v840
    %948 = vmatprep.subr.bf16.mxu0 %v845
    %949 = vmatpush1.bf16.msra.mxu0 %v844
    %950 = vmatprep.subr.bf16.mxu0 %v849
    %951 = vmatpush1.bf16.msra.mxu0 %v848
    %952 = vmatprep.subr.bf16.mxu0 %v853
    %953 = vmatpush1.bf16.msra.mxu0 %v852
    %954 = vmatprep.subr.bf16.mxu0 %v857
    %955 = vmatpush1.bf16.msra.mxu0 %v856
    %956 = vmatprep.mubr.bf16.mxu0 %v525
    %957 = vmatmul.mubr.bf16.gmra.mrb[0].mxu0 %v524
    %v958 = vpop.f32.mrb[0].mxu0
    %v959 = vadd.f32 0.0, %v958
    %v960 = vpop.f32.mrb[0].mxu0
    %v961 = vadd.f32 0.0, %v960
    %v962 = vpop.f32.mrb[0].mxu0
    %v963 = vadd.f32 0.0, %v962
    %v964 = vpop.f32.mrb[0].mxu0
    %v965 = vadd.f32 0.0, %v964
    %966 = vmatprep.mubr.bf16.mxu0 %v527
    %967 = vmatmul.mubr.bf16.gmra.mrb[0].mxu0 %v526
    %v968 = vpop.f32.mrb[0].mxu0
    %v969 = vadd.f32 0.0, %v968
    %v970 = vpop.f32.mrb[0].mxu0
    %v971 = vadd.f32 0.0, %v970
    %v972 = vpop.f32.mrb[0].mxu0
    %v973 = vadd.f32 0.0, %v972
    %v974 = vpop.f32.mrb[0].mxu0
    %v975 = vadd.f32 0.0, %v974
    %976 = vmatprep.mubr.bf16.mxu0 %v529
    %977 = vmatmul.mubr.bf16.gmra.mrb[0].mxu0 %v528
    %v978 = vpop.f32.mrb[0].mxu0
    %v979 = vadd.f32 0.0, %v978
    %v980 = vpop.f32.mrb[0].mxu0
    %v981 = vadd.f32 0.0, %v980
    %v982 = vpop.f32.mrb[0].mxu0
    %v983 = vadd.f32 0.0, %v982
    %v984 = vpop.f32.mrb[0].mxu0
    %v985 = vadd.f32 0.0, %v984
    %986 = vmatprep.mubr.bf16.mxu0 %v531
    %987 = vmatmul.mubr.bf16.gmra.mrb[0].mxu0 %v530
    %v988 = vpop.f32.mrb[0].mxu0
    %v989 = vadd.f32 0.0, %v988
    %v990 = vpop.f32.mrb[0].mxu0
    %v991 = vadd.f32 0.0, %v990
    %v992 = vpop.f32.mrb[0].mxu0
    %v993 = vadd.f32 0.0, %v992
    %v994 = vpop.f32.mrb[0].mxu0
    %v995 = vadd.f32 0.0, %v994
    %996 = vmatprep.mubr.bf16.mxu0 %v533
    %997 = vmatmul.mubr.bf16.gmra.mrb[0].mxu0 %v532
    %v998 = vpop.f32.mrb[0].mxu0
    %v999 = vadd.f32 0.0, %v998
    %v1000 = vpop.f32.mrb[0].mxu0
    %v1001 = vadd.f32 0.0, %v1000
    %v1002 = vpop.f32.mrb[0].mxu0
    %v1003 = vadd.f32 0.0, %v1002
    %v1004 = vpop.f32.mrb[0].mxu0
    %v1005 = vadd.f32 0.0, %v1004
    %1006 = vmatprep.mubr.bf16.mxu0 %v535
    %1007 = vmatmul.mubr.bf16.gmra.mrb[0].mxu0 %v534
    %v1008 = vpop.f32.mrb[0].mxu0
    %v1009 = vadd.f32 0.0, %v1008
    %v1010 = vpop.f32.mrb[0].mxu0
    %v1011 = vadd.f32 0.0, %v1010
    %v1012 = vpop.f32.mrb[0].mxu0
    %v1013 = vadd.f32 0.0, %v1012
    %v1014 = vpop.f32.mrb[0].mxu0
    %v1015 = vadd.f32 0.0, %v1014
    %1016 = vmatprep.mubr.bf16.mxu0 %v537
    %1017 = vmatmul.mubr.bf16.gmra.mrb[0].mxu0 %v536
    %v1018 = vpop.f32.mrb[0].mxu0
    %v1019 = vadd.f32 0.0, %v1018
    %v1020 = vpop.f32.mrb[0].mxu0
    %v1021 = vadd.f32 0.0, %v1020
    %v1022 = vpop.f32.mrb[0].mxu0
    %v1023 = vadd.f32 0.0, %v1022
    %v1024 = vpop.f32.mrb[0].mxu0
    %v1025 = vadd.f32 0.0, %v1024
    %1026 = vmatprep.mubr.bf16.mxu0 %v539
    %1027 = vmatmul.mubr.bf16.gmra.mrb[0].mxu0 %v538
    %v1028 = vpop.f32.mrb[0].mxu0
    %v1029 = vadd.f32 0.0, %v1028
    %v1030 = vpop.f32.mrb[0].mxu0
    %v1031 = vadd.f32 0.0, %v1030
    %v1032 = vpop.f32.mrb[0].mxu0
    %v1033 = vadd.f32 0.0, %v1032
    %v1034 = vpop.f32.mrb[0].mxu0
    %v1035 = vadd.f32 0.0, %v1034
    %1036 = vdwg.mxu0
    %1037 = vmatprep.subr.bf16.mxu0 %v799
    %1038 = vmatpush1.bf16.msra.mxu0 %v798
    %1039 = vmatprep.subr.bf16.mxu0 %v803
    %1040 = vmatpush1.bf16.msra.mxu0 %v802
    %1041 = vmatprep.subr.bf16.mxu0 %v807
    %1042 = vmatpush1.bf16.msra.mxu0 %v806
    %1043 = vmatprep.subr.bf16.mxu0 %v811
    %1044 = vmatpush1.bf16.msra.mxu0 %v810
    %1045 = vmatprep.subr.bf16.mxu0 %v815
    %1046 = vmatpush1.bf16.msra.mxu0 %v814
    %1047 = vmatprep.subr.bf16.mxu0 %v819
    %1048 = vmatpush1.bf16.msra.mxu0 %v818
    %1049 = vmatprep.subr.bf16.mxu0 %v823
    %1050 = vmatpush1.bf16.msra.mxu0 %v822
    %1051 = vmatprep.subr.bf16.mxu0 %v827
    %1052 = vmatpush1.bf16.msra.mxu0 %v826
    %1053 = vmatprep.subr.bf16.mxu0 %v831
    %1054 = vmatpush1.bf16.msra.mxu0 %v830
    %1055 = vmatprep.subr.bf16.mxu0 %v835
    %1056 = vmatpush1.bf16.msra.mxu0 %v834
    %1057 = vmatprep.subr.bf16.mxu0 %v839
    %1058 = vmatpush1.bf16.msra.mxu0 %v838
    %1059 = vmatprep.subr.bf16.mxu0 %v843
    %1060 = vmatpush1.bf16.msra.mxu0 %v842
    %1061 = vmatprep.subr.bf16.mxu0 %v847
    %1062 = vmatpush1.bf16.msra.mxu0 %v846
    %1063 = vmatprep.subr.bf16.mxu0 %v851
    %1064 = vmatpush1.bf16.msra.mxu0 %v850
    %1065 = vmatprep.subr.bf16.mxu0 %v855
    %1066 = vmatpush1.bf16.msra.mxu0 %v854
    %1067 = vmatprep.subr.bf16.mxu0 %v859
    %1068 = vmatpush1.bf16.msra.mxu0 %v858
    %1069 = vmatprep.mubr.bf16.mxu0 %v525
    %1070 = vmatmul.mubr.bf16.gmra.mrb[0].mxu0 %v524
    %v1071 = vpop.f32.mrb[0].mxu0
    %v1072 = vadd.f32 0.0, %v1071
    %v1073 = vpop.f32.mrb[0].mxu0
    %v1074 = vadd.f32 0.0, %v1073
    %v1075 = vpop.f32.mrb[0].mxu0
    %v1076 = vadd.f32 0.0, %v1075
    %v1077 = vpop.f32.mrb[0].mxu0
    %v1078 = vadd.f32 0.0, %v1077
    %1079 = vmatprep.mubr.bf16.mxu0 %v527
    %1080 = vmatmul.mubr.bf16.gmra.mrb[0].mxu0 %v526
    %v1081 = vpop.f32.mrb[0].mxu0
    %v1082 = vadd.f32 0.0, %v1081
    %v1083 = vpop.f32.mrb[0].mxu0
    %v1084 = vadd.f32 0.0, %v1083
    %v1085 = vpop.f32.mrb[0].mxu0
    %v1086 = vadd.f32 0.0, %v1085
    %v1087 = vpop.f32.mrb[0].mxu0
    %v1088 = vadd.f32 0.0, %v1087
    %1089 = vmatprep.mubr.bf16.mxu0 %v529
    %1090 = vmatmul.mubr.bf16.gmra.mrb[0].mxu0 %v528
    %v1091 = vpop.f32.mrb[0].mxu0
    %v1092 = vadd.f32 0.0, %v1091
    %v1093 = vpop.f32.mrb[0].mxu0
    %v1094 = vadd.f32 0.0, %v1093
    %v1095 = vpop.f32.mrb[0].mxu0
    %v1096 = vadd.f32 0.0, %v1095
    %v1097 = vpop.f32.mrb[0].mxu0
    %v1098 = vadd.f32 0.0, %v1097
    %1099 = vmatprep.mubr.bf16.mxu0 %v531
    %1100 = vmatmul.mubr.bf16.gmra.mrb[0].mxu0 %v530
    %v1101 = vpop.f32.mrb[0].mxu0
    %v1102 = vadd.f32 0.0, %v1101
    %v1103 = vpop.f32.mrb[0].mxu0
    %v1104 = vadd.f32 0.0, %v1103
    %v1105 = vpop.f32.mrb[0].mxu0
    %v1106 = vadd.f32 0.0, %v1105
    %v1107 = vpop.f32.mrb[0].mxu0
    %v1108 = vadd.f32 0.0, %v1107
    %1109 = vmatprep.mubr.bf16.mxu0 %v533
    %1110 = vmatmul.mubr.bf16.gmra.mrb[0].mxu0 %v532
    %v1111 = vpop.f32.mrb[0].mxu0
    %v1112 = vadd.f32 0.0, %v1111
    %v1113 = vpop.f32.mrb[0].mxu0
    %v1114 = vadd.f32 0.0, %v1113
    %v1115 = vpop.f32.mrb[0].mxu0
    %v1116 = vadd.f32 0.0, %v1115
    %v1117 = vpop.f32.mrb[0].mxu0
    %v1118 = vadd.f32 0.0, %v1117
    %1119 = vmatprep.mubr.bf16.mxu0 %v535
    %1120 = vmatmul.mubr.bf16.gmra.mrb[0].mxu0 %v534
    %v1121 = vpop.f32.mrb[0].mxu0
    %v1122 = vadd.f32 0.0, %v1121
    %v1123 = vpop.f32.mrb[0].mxu0
    %v1124 = vadd.f32 0.0, %v1123
    %v1125 = vpop.f32.mrb[0].mxu0
    %v1126 = vadd.f32 0.0, %v1125
    %v1127 = vpop.f32.mrb[0].mxu0
    %v1128 = vadd.f32 0.0, %v1127
    %1129 = vmatprep.mubr.bf16.mxu0 %v537
    %1130 = vmatmul.mubr.bf16.gmra.mrb[0].mxu0 %v536
    %v1131 = vpop.f32.mrb[0].mxu0
    %v1132 = vadd.f32 0.0, %v1131
    %v1133 = vpop.f32.mrb[0].mxu0
    %v1134 = vadd.f32 0.0, %v1133
    %v1135 = vpop.f32.mrb[0].mxu0
    %v1136 = vadd.f32 0.0, %v1135
    %v1137 = vpop.f32.mrb[0].mxu0
    %v1138 = vadd.f32 0.0, %v1137
    %1139 = vmatprep.mubr.bf16.mxu0 %v539
    %1140 = vmatmul.mubr.bf16.gmra.mrb[0].mxu0 %v538
    %v1141 = vpop.f32.mrb[0].mxu0
    %v1142 = vadd.f32 0.0, %v1141
    %v1143 = vpop.f32.mrb[0].mxu0
    %v1144 = vadd.f32 0.0, %v1143
    %v1145 = vpop.f32.mrb[0].mxu0
    %v1146 = vadd.f32 0.0, %v1145
    %v1147 = vpop.f32.mrb[0].mxu0
    %v1148 = vadd.f32 0.0, %v1147
    %1149 = vdwg.mxu0
    %v1150 = vpack.c.bf16 %v963, %v959
    %v1151 = vpack.c.bf16 %v965, %v961
    %v1152 = vpack.c.bf16 %v1076, %v1072
    %v1153 = vpack.c.bf16 %v1078, %v1074
    %v1154 = vpack.c.bf16 %v973, %v969
    %v1155 = vpack.c.bf16 %v975, %v971
    %v1156 = vpack.c.bf16 %v1086, %v1082
    %v1157 = vpack.c.bf16 %v1088, %v1084
    %v1158 = vpack.c.bf16 %v983, %v979
    %v1159 = vpack.c.bf16 %v985, %v981
    %v1160 = vpack.c.bf16 %v1096, %v1092
    %v1161 = vpack.c.bf16 %v1098, %v1094
    %v1162 = vpack.c.bf16 %v993, %v989
    %v1163 = vpack.c.bf16 %v995, %v991
    %v1164 = vpack.c.bf16 %v1106, %v1102
    %v1165 = vpack.c.bf16 %v1108, %v1104
    %v1166 = vpack.c.bf16 %v1003, %v999
    %v1167 = vpack.c.bf16 %v1005, %v1001
    %v1168 = vpack.c.bf16 %v1116, %v1112
    %v1169 = vpack.c.bf16 %v1118, %v1114
    %v1170 = vpack.c.bf16 %v1013, %v1009
    %v1171 = vpack.c.bf16 %v1015, %v1011
    %v1172 = vpack.c.bf16 %v1126, %v1122
    %v1173 = vpack.c.bf16 %v1128, %v1124
    %v1174 = vpack.c.bf16 %v1023, %v1019
    %v1175 = vpack.c.bf16 %v1025, %v1021
    %v1176 = vpack.c.bf16 %v1136, %v1132
    %v1177 = vpack.c.bf16 %v1138, %v1134
    %v1178 = vpack.c.bf16 %v1033, %v1029
    %v1179 = vpack.c.bf16 %v1035, %v1031
    %v1180 = vpack.c.bf16 %v1146, %v1142
    %v1181 = vpack.c.bf16 %v1148, %v1144
    %v1182 = vld [vmem:[#allocation10] sm:$0xf]
    %v1185 = vunpack.c.l.s4 1966171168
    %v1186 = vunpack.c.0.s8 %v1185
    %v1187 = vlaneseq
    %v1188 = vshrl.u32 %v1187, 7
    %v1189 = vsub.s32 %v1186, %v1188
    %v1190 = vrot.slane %v1182, %v1189
    %v1191 = vcombine.high %v1190, %v1190
    %v1193 = vunpack.c.l.s4 1966171168
    %v1194 = vunpack.c.0.s8 %v1193
    %v1195 = vlaneseq
    %v1196 = vshrl.u32 %v1195, 7
    %v1197 = vsub.s32 %v1194, %v1196
    %v1198 = vrot.slane %v1190, %v1197
    %v1200 = vunpack.c.l.s4 1966171168
    %v1201 = vunpack.c.0.s8 %v1200
    %v1202 = vlaneseq
    %v1203 = vshrl.u32 %v1202, 7
    %v1204 = vsub.s32 %v1201, %v1203
    %v1205 = vrot.slane %v1191, %v1204
    %v1206 = vcombine.high %v1198, %v1198
    %v1207 = vcombine.high %v1205, %v1205
    %v1209 = vpack.i.b16 %v1198, %v1198
    %v1211 = vlaneseq
    %v1212 = vshrl.u32 %v1211, 7
    %v1213 = vsub.s32 0, %v1212
    %v1214 = vrot.slane %v1209, %v1213
    %v1216 = vpack.i.b16 %v1205, %v1205
    %v1218 = vlaneseq
    %v1219 = vshrl.u32 %v1218, 7
    %v1220 = vsub.s32 0, %v1219
    %v1221 = vrot.slane %v1216, %v1220
    %v1223 = vpack.i.b16 %v1206, %v1206
    %v1225 = vlaneseq
    %v1226 = vshrl.u32 %v1225, 7
    %v1227 = vsub.s32 0, %v1226
    %v1228 = vrot.slane %v1223, %v1227
    %v1230 = vpack.i.b16 %v1207, %v1207
    %v1232 = vlaneseq
    %v1233 = vshrl.u32 %v1232, 7
    %v1234 = vsub.s32 0, %v1233
    %v1235 = vrot.slane %v1230, %v1234
    %v1236 = vadd.bf16 %v1150, %v1214
    %v1237 = vadd.bf16 %v1151, %v1221
    %v1238 = vadd.bf16 %v1152, %v1228
    %v1239 = vadd.bf16 %v1153, %v1235
    %v1240 = vadd.bf16 %v1154, %v1214
    %v1241 = vadd.bf16 %v1155, %v1221
    %v1242 = vadd.bf16 %v1156, %v1228
    %v1243 = vadd.bf16 %v1157, %v1235
    %v1244 = vadd.bf16 %v1158, %v1214
    %v1245 = vadd.bf16 %v1159, %v1221
    %v1246 = vadd.bf16 %v1160, %v1228
    %v1247 = vadd.bf16 %v1161, %v1235
    %v1248 = vadd.bf16 %v1162, %v1214
    %v1249 = vadd.bf16 %v1163, %v1221
    %v1250 = vadd.bf16 %v1164, %v1228
    %v1251 = vadd.bf16 %v1165, %v1235
    %v1252 = vadd.bf16 %v1166, %v1214
    %v1253 = vadd.bf16 %v1167, %v1221
    %v1254 = vadd.bf16 %v1168, %v1228
    %v1255 = vadd.bf16 %v1169, %v1235
    %v1256 = vadd.bf16 %v1170, %v1214
    %v1257 = vadd.bf16 %v1171, %v1221
    %v1258 = vadd.bf16 %v1172, %v1228
    %v1259 = vadd.bf16 %v1173, %v1235
    %v1260 = vadd.bf16 %v1174, %v1214
    %v1261 = vadd.bf16 %v1175, %v1221
    %v1262 = vadd.bf16 %v1176, %v1228
    %v1263 = vadd.bf16 %v1177, %v1235
    %v1264 = vadd.bf16 %v1178, %v1214
    %v1265 = vadd.bf16 %v1179, %v1221
    %v1266 = vadd.bf16 %v1180, %v1228
    %v1267 = vadd.bf16 %v1181, %v1235
    %vm1268 = vcmp.ge.bf16.partialorder %v1236, 0
    %vm1269 = vcmp.ge.bf16.partialorder %v1237, 0
    %vm1270 = vcmp.ge.bf16.partialorder %v1238, 0
    %vm1271 = vcmp.ge.bf16.partialorder %v1239, 0
    %vm1272 = vcmp.ge.bf16.partialorder %v1240, 0
    %vm1273 = vcmp.ge.bf16.partialorder %v1241, 0
    %vm1274 = vcmp.ge.bf16.partialorder %v1242, 0
    %vm1275 = vcmp.ge.bf16.partialorder %v1243, 0
    %vm1276 = vcmp.ge.bf16.partialorder %v1244, 0
    %vm1277 = vcmp.ge.bf16.partialorder %v1245, 0
    %vm1278 = vcmp.ge.bf16.partialorder %v1246, 0
    %vm1279 = vcmp.ge.bf16.partialorder %v1247, 0
    %vm1280 = vcmp.ge.bf16.partialorder %v1248, 0
    %vm1281 = vcmp.ge.bf16.partialorder %v1249, 0
    %vm1282 = vcmp.ge.bf16.partialorder %v1250, 0
    %vm1283 = vcmp.ge.bf16.partialorder %v1251, 0
    %vm1284 = vcmp.ge.bf16.partialorder %v1252, 0
    %vm1285 = vcmp.ge.bf16.partialorder %v1253, 0
    %vm1286 = vcmp.ge.bf16.partialorder %v1254, 0
    %vm1287 = vcmp.ge.bf16.partialorder %v1255, 0
    %vm1288 = vcmp.ge.bf16.partialorder %v1256, 0
    %vm1289 = vcmp.ge.bf16.partialorder %v1257, 0
    %vm1290 = vcmp.ge.bf16.partialorder %v1258, 0
    %vm1291 = vcmp.ge.bf16.partialorder %v1259, 0
    %vm1292 = vcmp.ge.bf16.partialorder %v1260, 0
    %vm1293 = vcmp.ge.bf16.partialorder %v1261, 0
    %vm1294 = vcmp.ge.bf16.partialorder %v1262, 0
    %vm1295 = vcmp.ge.bf16.partialorder %v1263, 0
    %vm1296 = vcmp.ge.bf16.partialorder %v1264, 0
    %vm1297 = vcmp.ge.bf16.partialorder %v1265, 0
    %vm1298 = vcmp.ge.bf16.partialorder %v1266, 0
    %vm1299 = vcmp.ge.bf16.partialorder %v1267, 0
    %v1300 = vmul.bf16 %v1236, 1045249613
    %v1301 = vmul.bf16 %v1237, 1045249613
    %v1302 = vmul.bf16 %v1238, 1045249613
    %v1303 = vmul.bf16 %v1239, 1045249613
    %v1304 = vmul.bf16 %v1240, 1045249613
    %v1305 = vmul.bf16 %v1241, 1045249613
    %v1306 = vmul.bf16 %v1242, 1045249613
    %v1307 = vmul.bf16 %v1243, 1045249613
    %v1308 = vmul.bf16 %v1244, 1045249613
    %v1309 = vmul.bf16 %v1245, 1045249613
    %v1310 = vmul.bf16 %v1246, 1045249613
    %v1311 = vmul.bf16 %v1247, 1045249613
    %v1312 = vmul.bf16 %v1248, 1045249613
    %v1313 = vmul.bf16 %v1249, 1045249613
    %v1314 = vmul.bf16 %v1250, 1045249613
    %v1315 = vmul.bf16 %v1251, 1045249613
    %v1316 = vmul.bf16 %v1252, 1045249613
    %v1317 = vmul.bf16 %v1253, 1045249613
    %v1318 = vmul.bf16 %v1254, 1045249613
    %v1319 = vmul.bf16 %v1255, 1045249613
    %v1320 = vmul.bf16 %v1256, 1045249613
    %v1321 = vmul.bf16 %v1257, 1045249613
    %v1322 = vmul.bf16 %v1258, 1045249613
    %v1323 = vmul.bf16 %v1259, 1045249613
    %v1324 = vmul.bf16 %v1260, 1045249613
    %v1325 = vmul.bf16 %v1261, 1045249613
    %v1326 = vmul.bf16 %v1262, 1045249613
    %v1327 = vmul.bf16 %v1263, 1045249613
    %v1328 = vmul.bf16 %v1264, 1045249613
    %v1329 = vmul.bf16 %v1265, 1045249613
    %v1330 = vmul.bf16 %v1266, 1045249613
    %v1331 = vmul.bf16 %v1267, 1045249613
    %v1332 = vsel %vm1268, %v1236, %v1300
    %v1333 = vsel %vm1269, %v1237, %v1301
    %v1334 = vsel %vm1270, %v1238, %v1302
    %v1335 = vsel %vm1271, %v1239, %v1303
    %v1336 = vsel %vm1272, %v1240, %v1304
    %v1337 = vsel %vm1273, %v1241, %v1305
    %v1338 = vsel %vm1274, %v1242, %v1306
    %v1339 = vsel %vm1275, %v1243, %v1307
    %v1340 = vsel %vm1276, %v1244, %v1308
    %v1341 = vsel %vm1277, %v1245, %v1309
    %v1342 = vsel %vm1278, %v1246, %v1310
    %v1343 = vsel %vm1279, %v1247, %v1311
    %v1344 = vsel %vm1280, %v1248, %v1312
    %v1345 = vsel %vm1281, %v1249, %v1313
    %v1346 = vsel %vm1282, %v1250, %v1314
    %v1347 = vsel %vm1283, %v1251, %v1315
    %v1348 = vsel %vm1284, %v1252, %v1316
    %v1349 = vsel %vm1285, %v1253, %v1317
    %v1350 = vsel %vm1286, %v1254, %v1318
    %v1351 = vsel %vm1287, %v1255, %v1319
    %v1352 = vsel %vm1288, %v1256, %v1320
    %v1353 = vsel %vm1289, %v1257, %v1321
    %v1354 = vsel %vm1290, %v1258, %v1322
    %v1355 = vsel %vm1291, %v1259, %v1323
    %v1356 = vsel %vm1292, %v1260, %v1324
    %v1357 = vsel %vm1293, %v1261, %v1325
    %v1358 = vsel %vm1294, %v1262, %v1326
    %v1359 = vsel %vm1295, %v1263, %v1327
    %v1360 = vsel %vm1296, %v1264, %v1328
    %v1361 = vsel %vm1297, %v1265, %v1329
    %v1362 = vsel %vm1298, %v1266, %v1330
    %v1363 = vsel %vm1299, %v1267, %v1331
    %v1364 = vld [vmem:[#allocation11] sm:$0xff]
    %v1365 = vld [vmem:[#allocation11 + $0x8] sm:$0xff]
    %v1366 = vld [vmem:[#allocation11 + $0x10] sm:$0xff]
    %v1367 = vld [vmem:[#allocation11 + $0x18] sm:$0xff]
    %v1368 = vld [vmem:[#allocation11 + $0x20] sm:$0xff]
    %v1369 = vld [vmem:[#allocation11 + $0x28] sm:$0xff]
    %v1370 = vld [vmem:[#allocation11 + $0x30] sm:$0xff]
    %v1371 = vld [vmem:[#allocation11 + $0x38] sm:$0xff]
    %v1372 = vld [vmem:[#allocation11 + $0x40] sm:$0xff]
    %v1373 = vld [vmem:[#allocation11 + $0x48] sm:$0xff]
    %v1374 = vld [vmem:[#allocation11 + $0x50] sm:$0xff]
    %v1375 = vld [vmem:[#allocation11 + $0x58] sm:$0xff]
    %v1376 = vld [vmem:[#allocation11 + $0x60] sm:$0xff]
    %v1377 = vld [vmem:[#allocation11 + $0x68] sm:$0xff]
    %v1378 = vld [vmem:[#allocation11 + $0x70] sm:$0xff]
    %v1379 = vld [vmem:[#allocation11 + $0x78] sm:$0xff]
    %v1380 = vld [vmem:[#allocation11 + $0x80] sm:$0xff]
    %v1381 = vld [vmem:[#allocation11 + $0x88] sm:$0xff]
    %v1382 = vld [vmem:[#allocation11 + $0x90] sm:$0xff]
    %v1383 = vld [vmem:[#allocation11 + $0x98] sm:$0xff]
    %v1384 = vld [vmem:[#allocation11 + $0xa0] sm:$0xff]
    %v1385 = vld [vmem:[#allocation11 + $0xa8] sm:$0xff]
    %v1386 = vld [vmem:[#allocation11 + $0xb0] sm:$0xff]
    %v1387 = vld [vmem:[#allocation11 + $0xb8] sm:$0xff]
    %v1388 = vld [vmem:[#allocation11 + $0xc0] sm:$0xff]
    %v1389 = vld [vmem:[#allocation11 + $0xc8] sm:$0xff]
    %v1390 = vld [vmem:[#allocation11 + $0xd0] sm:$0xff]
    %v1391 = vld [vmem:[#allocation11 + $0xd8] sm:$0xff]
    %v1392 = vld [vmem:[#allocation11 + $0xe0] sm:$0xff]
    %v1393 = vld [vmem:[#allocation11 + $0xe8] sm:$0xff]
    %v1394 = vld [vmem:[#allocation11 + $0xf0] sm:$0xff]
    %v1395 = vld [vmem:[#allocation11 + $0xf8] sm:$0xff]
    %v1396 = vld [vmem:[#allocation11 + $0x100] sm:$0xff]
    %v1397 = vld [vmem:[#allocation11 + $0x108] sm:$0xff]
    %v1398 = vld [vmem:[#allocation11 + $0x110] sm:$0xff]
    %v1399 = vld [vmem:[#allocation11 + $0x118] sm:$0xff]
    %v1400 = vld [vmem:[#allocation11 + $0x120] sm:$0xff]
    %v1401 = vld [vmem:[#allocation11 + $0x128] sm:$0xff]
    %v1402 = vld [vmem:[#allocation11 + $0x130] sm:$0xff]
    %v1403 = vld [vmem:[#allocation11 + $0x138] sm:$0xff]
    %v1404 = vld [vmem:[#allocation11 + $0x140] sm:$0xff]
    %v1405 = vld [vmem:[#allocation11 + $0x148] sm:$0xff]
    %v1406 = vld [vmem:[#allocation11 + $0x150] sm:$0xff]
    %v1407 = vld [vmem:[#allocation11 + $0x158] sm:$0xff]
    %v1408 = vld [vmem:[#allocation11 + $0x160] sm:$0xff]
    %v1409 = vld [vmem:[#allocation11 + $0x168] sm:$0xff]
    %v1410 = vld [vmem:[#allocation11 + $0x170] sm:$0xff]
    %v1411 = vld [vmem:[#allocation11 + $0x178] sm:$0xff]
    %v1412 = vld [vmem:[#allocation11 + $0x180] sm:$0xff]
    %v1413 = vld [vmem:[#allocation11 + $0x188] sm:$0xff]
    %v1414 = vld [vmem:[#allocation11 + $0x190] sm:$0xff]
    %v1415 = vld [vmem:[#allocation11 + $0x198] sm:$0xff]
    %v1416 = vld [vmem:[#allocation11 + $0x1a0] sm:$0xff]
    %v1417 = vld [vmem:[#allocation11 + $0x1a8] sm:$0xff]
    %v1418 = vld [vmem:[#allocation11 + $0x1b0] sm:$0xff]
    %v1419 = vld [vmem:[#allocation11 + $0x1b8] sm:$0xff]
    %v1420 = vld [vmem:[#allocation11 + $0x1c0] sm:$0xff]
    %v1421 = vld [vmem:[#allocation11 + $0x1c8] sm:$0xff]
    %v1422 = vld [vmem:[#allocation11 + $0x1d0] sm:$0xff]
    %v1423 = vld [vmem:[#allocation11 + $0x1d8] sm:$0xff]
    %v1424 = vld [vmem:[#allocation11 + $0x1e0] sm:$0xff]
    %v1425 = vld [vmem:[#allocation11 + $0x1e8] sm:$0xff]
    %v1426 = vld [vmem:[#allocation11 + $0x1f0] sm:$0xff]
    %v1427 = vld [vmem:[#allocation11 + $0x1f8] sm:$0xff]
    %v1428 = vld [vmem:[#allocation11 + $0x200] sm:$0xff]
    %v1429 = vld [vmem:[#allocation11 + $0x208] sm:$0xff]
    %v1430 = vld [vmem:[#allocation11 + $0x210] sm:$0xff]
    %v1431 = vld [vmem:[#allocation11 + $0x218] sm:$0xff]
    %v1432 = vld [vmem:[#allocation11 + $0x220] sm:$0xff]
    %v1433 = vld [vmem:[#allocation11 + $0x228] sm:$0xff]
    %v1434 = vld [vmem:[#allocation11 + $0x230] sm:$0xff]
    %v1435 = vld [vmem:[#allocation11 + $0x238] sm:$0xff]
    %v1436 = vld [vmem:[#allocation11 + $0x240] sm:$0xff]
    %v1437 = vld [vmem:[#allocation11 + $0x248] sm:$0xff]
    %v1438 = vld [vmem:[#allocation11 + $0x250] sm:$0xff]
    %v1439 = vld [vmem:[#allocation11 + $0x258] sm:$0xff]
    %v1440 = vld [vmem:[#allocation11 + $0x260] sm:$0xff]
    %v1441 = vld [vmem:[#allocation11 + $0x268] sm:$0xff]
    %v1442 = vld [vmem:[#allocation11 + $0x270] sm:$0xff]
    %v1443 = vld [vmem:[#allocation11 + $0x278] sm:$0xff]
    %v1444 = vld [vmem:[#allocation11 + $0x280] sm:$0xff]
    %v1445 = vld [vmem:[#allocation11 + $0x288] sm:$0xff]
    %v1446 = vld [vmem:[#allocation11 + $0x290] sm:$0xff]
    %v1447 = vld [vmem:[#allocation11 + $0x298] sm:$0xff]
    %v1448 = vld [vmem:[#allocation11 + $0x2a0] sm:$0xff]
    %v1449 = vld [vmem:[#allocation11 + $0x2a8] sm:$0xff]
    %v1450 = vld [vmem:[#allocation11 + $0x2b0] sm:$0xff]
    %v1451 = vld [vmem:[#allocation11 + $0x2b8] sm:$0xff]
    %v1452 = vld [vmem:[#allocation11 + $0x2c0] sm:$0xff]
    %v1453 = vld [vmem:[#allocation11 + $0x2c8] sm:$0xff]
    %v1454 = vld [vmem:[#allocation11 + $0x2d0] sm:$0xff]
    %v1455 = vld [vmem:[#allocation11 + $0x2d8] sm:$0xff]
    %v1456 = vld [vmem:[#allocation11 + $0x2e0] sm:$0xff]
    %v1457 = vld [vmem:[#allocation11 + $0x2e8] sm:$0xff]
    %v1458 = vld [vmem:[#allocation11 + $0x2f0] sm:$0xff]
    %v1459 = vld [vmem:[#allocation11 + $0x2f8] sm:$0xff]
    %v1460 = vld [vmem:[#allocation11 + $0x300] sm:$0xff]
    %v1461 = vld [vmem:[#allocation11 + $0x308] sm:$0xff]
    %v1462 = vld [vmem:[#allocation11 + $0x310] sm:$0xff]
    %v1463 = vld [vmem:[#allocation11 + $0x318] sm:$0xff]
    %v1464 = vld [vmem:[#allocation11 + $0x320] sm:$0xff]
    %v1465 = vld [vmem:[#allocation11 + $0x328] sm:$0xff]
    %v1466 = vld [vmem:[#allocation11 + $0x330] sm:$0xff]
    %v1467 = vld [vmem:[#allocation11 + $0x338] sm:$0xff]
    %v1468 = vld [vmem:[#allocation11 + $0x340] sm:$0xff]
    %v1469 = vld [vmem:[#allocation11 + $0x348] sm:$0xff]
    %v1470 = vld [vmem:[#allocation11 + $0x350] sm:$0xff]
    %v1471 = vld [vmem:[#allocation11 + $0x358] sm:$0xff]
    %v1472 = vld [vmem:[#allocation11 + $0x360] sm:$0xff]
    %v1473 = vld [vmem:[#allocation11 + $0x368] sm:$0xff]
    %v1474 = vld [vmem:[#allocation11 + $0x370] sm:$0xff]
    %v1475 = vld [vmem:[#allocation11 + $0x378] sm:$0xff]
    %v1476 = vld [vmem:[#allocation11 + $0x380] sm:$0xff]
    %v1477 = vld [vmem:[#allocation11 + $0x388] sm:$0xff]
    %v1478 = vld [vmem:[#allocation11 + $0x390] sm:$0xff]
    %v1479 = vld [vmem:[#allocation11 + $0x398] sm:$0xff]
    %v1480 = vld [vmem:[#allocation11 + $0x3a0] sm:$0xff]
    %v1481 = vld [vmem:[#allocation11 + $0x3a8] sm:$0xff]
    %v1482 = vld [vmem:[#allocation11 + $0x3b0] sm:$0xff]
    %v1483 = vld [vmem:[#allocation11 + $0x3b8] sm:$0xff]
    %v1484 = vld [vmem:[#allocation11 + $0x3c0] sm:$0xff]
    %v1485 = vld [vmem:[#allocation11 + $0x3c8] sm:$0xff]
    %v1486 = vld [vmem:[#allocation11 + $0x3d0] sm:$0xff]
    %v1487 = vld [vmem:[#allocation11 + $0x3d8] sm:$0xff]
    %v1488 = vld [vmem:[#allocation11 + $0x3e0] sm:$0xff]
    %v1489 = vld [vmem:[#allocation11 + $0x3e8] sm:$0xff]
    %v1490 = vld [vmem:[#allocation11 + $0x3f0] sm:$0xff]
    %v1491 = vld [vmem:[#allocation11 + $0x3f8] sm:$0xff]
    %v1492 = vld [vmem:[#allocation11 + $0x400] sm:$0xff]
    %v1493 = vld [vmem:[#allocation11 + $0x408] sm:$0xff]
    %v1494 = vld [vmem:[#allocation11 + $0x410] sm:$0xff]
    %v1495 = vld [vmem:[#allocation11 + $0x418] sm:$0xff]
    %v1496 = vld [vmem:[#allocation11 + $0x420] sm:$0xff]
    %v1497 = vld [vmem:[#allocation11 + $0x428] sm:$0xff]
    %v1498 = vld [vmem:[#allocation11 + $0x430] sm:$0xff]
    %v1499 = vld [vmem:[#allocation11 + $0x438] sm:$0xff]
    %v1500 = vld [vmem:[#allocation11 + $0x440] sm:$0xff]
    %v1501 = vld [vmem:[#allocation11 + $0x448] sm:$0xff]
    %v1502 = vld [vmem:[#allocation11 + $0x450] sm:$0xff]
    %v1503 = vld [vmem:[#allocation11 + $0x458] sm:$0xff]
    %v1504 = vld [vmem:[#allocation11 + $0x460] sm:$0xff]
    %v1505 = vld [vmem:[#allocation11 + $0x468] sm:$0xff]
    %v1506 = vld [vmem:[#allocation11 + $0x470] sm:$0xff]
    %v1507 = vld [vmem:[#allocation11 + $0x478] sm:$0xff]
    %v1508 = vld [vmem:[#allocation11 + $0x480] sm:$0xff]
    %v1509 = vld [vmem:[#allocation11 + $0x488] sm:$0xff]
    %v1510 = vld [vmem:[#allocation11 + $0x490] sm:$0xff]
    %v1511 = vld [vmem:[#allocation11 + $0x498] sm:$0xff]
    %v1512 = vld [vmem:[#allocation11 + $0x4a0] sm:$0xff]
    %v1513 = vld [vmem:[#allocation11 + $0x4a8] sm:$0xff]
    %v1514 = vld [vmem:[#allocation11 + $0x4b0] sm:$0xff]
    %v1515 = vld [vmem:[#allocation11 + $0x4b8] sm:$0xff]
    %v1516 = vld [vmem:[#allocation11 + $0x4c0] sm:$0xff]
    %v1517 = vld [vmem:[#allocation11 + $0x4c8] sm:$0xff]
    %v1518 = vld [vmem:[#allocation11 + $0x4d0] sm:$0xff]
    %v1519 = vld [vmem:[#allocation11 + $0x4d8] sm:$0xff]
    %v1520 = vld [vmem:[#allocation11 + $0x4e0] sm:$0xff]
    %v1521 = vld [vmem:[#allocation11 + $0x4e8] sm:$0xff]
    %v1522 = vld [vmem:[#allocation11 + $0x4f0] sm:$0xff]
    %v1523 = vld [vmem:[#allocation11 + $0x4f8] sm:$0xff]
    %v1524 = vld [vmem:[#allocation11 + $0x500] sm:$0xff]
    %v1525 = vld [vmem:[#allocation11 + $0x508] sm:$0xff]
    %v1526 = vld [vmem:[#allocation11 + $0x510] sm:$0xff]
    %v1527 = vld [vmem:[#allocation11 + $0x518] sm:$0xff]
    %v1528 = vld [vmem:[#allocation11 + $0x520] sm:$0xff]
    %v1529 = vld [vmem:[#allocation11 + $0x528] sm:$0xff]
    %v1530 = vld [vmem:[#allocation11 + $0x530] sm:$0xff]
    %v1531 = vld [vmem:[#allocation11 + $0x538] sm:$0xff]
    %v1532 = vld [vmem:[#allocation11 + $0x540] sm:$0xff]
    %v1533 = vld [vmem:[#allocation11 + $0x548] sm:$0xff]
    %v1534 = vld [vmem:[#allocation11 + $0x550] sm:$0xff]
    %v1535 = vld [vmem:[#allocation11 + $0x558] sm:$0xff]
    %v1536 = vld [vmem:[#allocation11 + $0x560] sm:$0xff]
    %v1537 = vld [vmem:[#allocation11 + $0x568] sm:$0xff]
    %v1538 = vld [vmem:[#allocation11 + $0x570] sm:$0xff]
    %v1539 = vld [vmem:[#allocation11 + $0x578] sm:$0xff]
    %v1540 = vld [vmem:[#allocation11 + $0x580] sm:$0xff]
    %v1541 = vld [vmem:[#allocation11 + $0x588] sm:$0xff]
    %v1542 = vld [vmem:[#allocation11 + $0x590] sm:$0xff]
    %v1543 = vld [vmem:[#allocation11 + $0x598] sm:$0xff]
    %v1544 = vld [vmem:[#allocation11 + $0x5a0] sm:$0xff]
    %v1545 = vld [vmem:[#allocation11 + $0x5a8] sm:$0xff]
    %v1546 = vld [vmem:[#allocation11 + $0x5b0] sm:$0xff]
    %v1547 = vld [vmem:[#allocation11 + $0x5b8] sm:$0xff]
    %v1548 = vld [vmem:[#allocation11 + $0x5c0] sm:$0xff]
    %v1549 = vld [vmem:[#allocation11 + $0x5c8] sm:$0xff]
    %v1550 = vld [vmem:[#allocation11 + $0x5d0] sm:$0xff]
    %v1551 = vld [vmem:[#allocation11 + $0x5d8] sm:$0xff]
    %v1552 = vld [vmem:[#allocation11 + $0x5e0] sm:$0xff]
    %v1553 = vld [vmem:[#allocation11 + $0x5e8] sm:$0xff]
    %v1554 = vld [vmem:[#allocation11 + $0x5f0] sm:$0xff]
    %v1555 = vld [vmem:[#allocation11 + $0x5f8] sm:$0xff]
    %v1556 = vld [vmem:[#allocation11 + $0x600] sm:$0xff]
    %v1557 = vld [vmem:[#allocation11 + $0x608] sm:$0xff]
    %v1558 = vld [vmem:[#allocation11 + $0x610] sm:$0xff]
    %v1559 = vld [vmem:[#allocation11 + $0x618] sm:$0xff]
    %v1560 = vld [vmem:[#allocation11 + $0x620] sm:$0xff]
    %v1561 = vld [vmem:[#allocation11 + $0x628] sm:$0xff]
    %v1562 = vld [vmem:[#allocation11 + $0x630] sm:$0xff]
    %v1563 = vld [vmem:[#allocation11 + $0x638] sm:$0xff]
    %v1564 = vld [vmem:[#allocation11 + $0x640] sm:$0xff]
    %v1565 = vld [vmem:[#allocation11 + $0x648] sm:$0xff]
    %v1566 = vld [vmem:[#allocation11 + $0x650] sm:$0xff]
    %v1567 = vld [vmem:[#allocation11 + $0x658] sm:$0xff]
    %v1568 = vld [vmem:[#allocation11 + $0x660] sm:$0xff]
    %v1569 = vld [vmem:[#allocation11 + $0x668] sm:$0xff]
    %v1570 = vld [vmem:[#allocation11 + $0x670] sm:$0xff]
    %v1571 = vld [vmem:[#allocation11 + $0x678] sm:$0xff]
    %v1572 = vld [vmem:[#allocation11 + $0x680] sm:$0xff]
    %v1573 = vld [vmem:[#allocation11 + $0x688] sm:$0xff]
    %v1574 = vld [vmem:[#allocation11 + $0x690] sm:$0xff]
    %v1575 = vld [vmem:[#allocation11 + $0x698] sm:$0xff]
    %v1576 = vld [vmem:[#allocation11 + $0x6a0] sm:$0xff]
    %v1577 = vld [vmem:[#allocation11 + $0x6a8] sm:$0xff]
    %v1578 = vld [vmem:[#allocation11 + $0x6b0] sm:$0xff]
    %v1579 = vld [vmem:[#allocation11 + $0x6b8] sm:$0xff]
    %v1580 = vld [vmem:[#allocation11 + $0x6c0] sm:$0xff]
    %v1581 = vld [vmem:[#allocation11 + $0x6c8] sm:$0xff]
    %v1582 = vld [vmem:[#allocation11 + $0x6d0] sm:$0xff]
    %v1583 = vld [vmem:[#allocation11 + $0x6d8] sm:$0xff]
    %v1584 = vld [vmem:[#allocation11 + $0x6e0] sm:$0xff]
    %v1585 = vld [vmem:[#allocation11 + $0x6e8] sm:$0xff]
    %v1586 = vld [vmem:[#allocation11 + $0x6f0] sm:$0xff]
    %v1587 = vld [vmem:[#allocation11 + $0x6f8] sm:$0xff]
    %v1588 = vld [vmem:[#allocation11 + $0x700] sm:$0xff]
    %v1589 = vld [vmem:[#allocation11 + $0x708] sm:$0xff]
    %v1590 = vld [vmem:[#allocation11 + $0x710] sm:$0xff]
    %v1591 = vld [vmem:[#allocation11 + $0x718] sm:$0xff]
    %v1592 = vld [vmem:[#allocation11 + $0x720] sm:$0xff]
    %v1593 = vld [vmem:[#allocation11 + $0x728] sm:$0xff]
    %v1594 = vld [vmem:[#allocation11 + $0x730] sm:$0xff]
    %v1595 = vld [vmem:[#allocation11 + $0x738] sm:$0xff]
    %v1596 = vld [vmem:[#allocation11 + $0x740] sm:$0xff]
    %v1597 = vld [vmem:[#allocation11 + $0x748] sm:$0xff]
    %v1598 = vld [vmem:[#allocation11 + $0x750] sm:$0xff]
    %v1599 = vld [vmem:[#allocation11 + $0x758] sm:$0xff]
    %v1600 = vld [vmem:[#allocation11 + $0x760] sm:$0xff]
    %v1601 = vld [vmem:[#allocation11 + $0x768] sm:$0xff]
    %v1602 = vld [vmem:[#allocation11 + $0x770] sm:$0xff]
    %v1603 = vld [vmem:[#allocation11 + $0x778] sm:$0xff]
    %v1604 = vld [vmem:[#allocation11 + $0x780] sm:$0xff]
    %v1605 = vld [vmem:[#allocation11 + $0x788] sm:$0xff]
    %v1606 = vld [vmem:[#allocation11 + $0x790] sm:$0xff]
    %v1607 = vld [vmem:[#allocation11 + $0x798] sm:$0xff]
    %v1608 = vld [vmem:[#allocation11 + $0x7a0] sm:$0xff]
    %v1609 = vld [vmem:[#allocation11 + $0x7a8] sm:$0xff]
    %v1610 = vld [vmem:[#allocation11 + $0x7b0] sm:$0xff]
    %v1611 = vld [vmem:[#allocation11 + $0x7b8] sm:$0xff]
    %v1612 = vld [vmem:[#allocation11 + $0x7c0] sm:$0xff]
    %v1613 = vld [vmem:[#allocation11 + $0x7c8] sm:$0xff]
    %v1614 = vld [vmem:[#allocation11 + $0x7d0] sm:$0xff]
    %v1615 = vld [vmem:[#allocation11 + $0x7d8] sm:$0xff]
    %v1616 = vld [vmem:[#allocation11 + $0x7e0] sm:$0xff]
    %v1617 = vld [vmem:[#allocation11 + $0x7e8] sm:$0xff]
    %v1618 = vld [vmem:[#allocation11 + $0x7f0] sm:$0xff]
    %v1619 = vld [vmem:[#allocation11 + $0x7f8] sm:$0xff]
    %v1876 = vunpack.c.l.b16 %v1364
    %v1877 = vunpack.c.h.b16 %v1364
    %v1878 = vunpack.c.l.b16 %v1365
    %v1879 = vunpack.c.h.b16 %v1365
    %v1880 = vunpack.c.l.b16 %v1366
    %v1881 = vunpack.c.h.b16 %v1366
    %v1882 = vunpack.c.l.b16 %v1367
    %v1883 = vunpack.c.h.b16 %v1367
    %v1884 = vunpack.c.l.b16 %v1368
    %v1885 = vunpack.c.h.b16 %v1368
    %v1886 = vunpack.c.l.b16 %v1369
    %v1887 = vunpack.c.h.b16 %v1369
    %v1888 = vunpack.c.l.b16 %v1370
    %v1889 = vunpack.c.h.b16 %v1370
    %v1890 = vunpack.c.l.b16 %v1371
    %v1891 = vunpack.c.h.b16 %v1371
    %v1892 = vunpack.c.l.b16 %v1372
    %v1893 = vunpack.c.h.b16 %v1372
    %v1894 = vunpack.c.l.b16 %v1373
    %v1895 = vunpack.c.h.b16 %v1373
    %v1896 = vunpack.c.l.b16 %v1374
    %v1897 = vunpack.c.h.b16 %v1374
    %v1898 = vunpack.c.l.b16 %v1375
    %v1899 = vunpack.c.h.b16 %v1375
    %v1900 = vunpack.c.l.b16 %v1376
    %v1901 = vunpack.c.h.b16 %v1376
    %v1902 = vunpack.c.l.b16 %v1377
    %v1903 = vunpack.c.h.b16 %v1377
    %v1904 = vunpack.c.l.b16 %v1378
    %v1905 = vunpack.c.h.b16 %v1378
    %v1906 = vunpack.c.l.b16 %v1379
    %v1907 = vunpack.c.h.b16 %v1379
    %v1908 = vunpack.c.l.b16 %v1380
    %v1909 = vunpack.c.h.b16 %v1380
    %v1910 = vunpack.c.l.b16 %v1381
    %v1911 = vunpack.c.h.b16 %v1381
    %v1912 = vunpack.c.l.b16 %v1382
    %v1913 = vunpack.c.h.b16 %v1382
    %v1914 = vunpack.c.l.b16 %v1383
    %v1915 = vunpack.c.h.b16 %v1383
    %v1916 = vunpack.c.l.b16 %v1384
    %v1917 = vunpack.c.h.b16 %v1384
    %v1918 = vunpack.c.l.b16 %v1385
    %v1919 = vunpack.c.h.b16 %v1385
    %v1920 = vunpack.c.l.b16 %v1386
    %v1921 = vunpack.c.h.b16 %v1386
    %v1922 = vunpack.c.l.b16 %v1387
    %v1923 = vunpack.c.h.b16 %v1387
    %v1924 = vunpack.c.l.b16 %v1388
    %v1925 = vunpack.c.h.b16 %v1388
    %v1926 = vunpack.c.l.b16 %v1389
    %v1927 = vunpack.c.h.b16 %v1389
    %v1928 = vunpack.c.l.b16 %v1390
    %v1929 = vunpack.c.h.b16 %v1390
    %v1930 = vunpack.c.l.b16 %v1391
    %v1931 = vunpack.c.h.b16 %v1391
    %v1932 = vunpack.c.l.b16 %v1392
    %v1933 = vunpack.c.h.b16 %v1392
    %v1934 = vunpack.c.l.b16 %v1393
    %v1935 = vunpack.c.h.b16 %v1393
    %v1936 = vunpack.c.l.b16 %v1394
    %v1937 = vunpack.c.h.b16 %v1394
    %v1938 = vunpack.c.l.b16 %v1395
    %v1939 = vunpack.c.h.b16 %v1395
    %v1940 = vunpack.c.l.b16 %v1396
    %v1941 = vunpack.c.h.b16 %v1396
    %v1942 = vunpack.c.l.b16 %v1397
    %v1943 = vunpack.c.h.b16 %v1397
    %v1944 = vunpack.c.l.b16 %v1398
    %v1945 = vunpack.c.h.b16 %v1398
    %v1946 = vunpack.c.l.b16 %v1399
    %v1947 = vunpack.c.h.b16 %v1399
    %v1948 = vunpack.c.l.b16 %v1400
    %v1949 = vunpack.c.h.b16 %v1400
    %v1950 = vunpack.c.l.b16 %v1401
    %v1951 = vunpack.c.h.b16 %v1401
    %v1952 = vunpack.c.l.b16 %v1402
    %v1953 = vunpack.c.h.b16 %v1402
    %v1954 = vunpack.c.l.b16 %v1403
    %v1955 = vunpack.c.h.b16 %v1403
    %v1956 = vunpack.c.l.b16 %v1404
    %v1957 = vunpack.c.h.b16 %v1404
    %v1958 = vunpack.c.l.b16 %v1405
    %v1959 = vunpack.c.h.b16 %v1405
    %v1960 = vunpack.c.l.b16 %v1406
    %v1961 = vunpack.c.h.b16 %v1406
    %v1962 = vunpack.c.l.b16 %v1407
    %v1963 = vunpack.c.h.b16 %v1407
    %v1964 = vunpack.c.l.b16 %v1408
    %v1965 = vunpack.c.h.b16 %v1408
    %v1966 = vunpack.c.l.b16 %v1409
    %v1967 = vunpack.c.h.b16 %v1409
    %v1968 = vunpack.c.l.b16 %v1410
    %v1969 = vunpack.c.h.b16 %v1410
    %v1970 = vunpack.c.l.b16 %v1411
    %v1971 = vunpack.c.h.b16 %v1411
    %v1972 = vunpack.c.l.b16 %v1412
    %v1973 = vunpack.c.h.b16 %v1412
    %v1974 = vunpack.c.l.b16 %v1413
    %v1975 = vunpack.c.h.b16 %v1413
    %v1976 = vunpack.c.l.b16 %v1414
    %v1977 = vunpack.c.h.b16 %v1414
    %v1978 = vunpack.c.l.b16 %v1415
    %v1979 = vunpack.c.h.b16 %v1415
    %v1980 = vunpack.c.l.b16 %v1416
    %v1981 = vunpack.c.h.b16 %v1416
    %v1982 = vunpack.c.l.b16 %v1417
    %v1983 = vunpack.c.h.b16 %v1417
    %v1984 = vunpack.c.l.b16 %v1418
    %v1985 = vunpack.c.h.b16 %v1418
    %v1986 = vunpack.c.l.b16 %v1419
    %v1987 = vunpack.c.h.b16 %v1419
    %v1988 = vunpack.c.l.b16 %v1420
    %v1989 = vunpack.c.h.b16 %v1420
    %v1990 = vunpack.c.l.b16 %v1421
    %v1991 = vunpack.c.h.b16 %v1421
    %v1992 = vunpack.c.l.b16 %v1422
    %v1993 = vunpack.c.h.b16 %v1422
    %v1994 = vunpack.c.l.b16 %v1423
    %v1995 = vunpack.c.h.b16 %v1423
    %v1996 = vunpack.c.l.b16 %v1424
    %v1997 = vunpack.c.h.b16 %v1424
    %v1998 = vunpack.c.l.b16 %v1425
    %v1999 = vunpack.c.h.b16 %v1425
    %v2000 = vunpack.c.l.b16 %v1426
    %v2001 = vunpack.c.h.b16 %v1426
    %v2002 = vunpack.c.l.b16 %v1427
    %v2003 = vunpack.c.h.b16 %v1427
    %v2004 = vunpack.c.l.b16 %v1428
    %v2005 = vunpack.c.h.b16 %v1428
    %v2006 = vunpack.c.l.b16 %v1429
    %v2007 = vunpack.c.h.b16 %v1429
    %v2008 = vunpack.c.l.b16 %v1430
    %v2009 = vunpack.c.h.b16 %v1430
    %v2010 = vunpack.c.l.b16 %v1431
    %v2011 = vunpack.c.h.b16 %v1431
    %v2012 = vunpack.c.l.b16 %v1432
    %v2013 = vunpack.c.h.b16 %v1432
    %v2014 = vunpack.c.l.b16 %v1433
    %v2015 = vunpack.c.h.b16 %v1433
    %v2016 = vunpack.c.l.b16 %v1434
    %v2017 = vunpack.c.h.b16 %v1434
    %v2018 = vunpack.c.l.b16 %v1435
    %v2019 = vunpack.c.h.b16 %v1435
    %v2020 = vunpack.c.l.b16 %v1436
    %v2021 = vunpack.c.h.b16 %v1436
    %v2022 = vunpack.c.l.b16 %v1437
    %v2023 = vunpack.c.h.b16 %v1437
    %v2024 = vunpack.c.l.b16 %v1438
    %v2025 = vunpack.c.h.b16 %v1438
    %v2026 = vunpack.c.l.b16 %v1439
    %v2027 = vunpack.c.h.b16 %v1439
    %v2028 = vunpack.c.l.b16 %v1440
    %v2029 = vunpack.c.h.b16 %v1440
    %v2030 = vunpack.c.l.b16 %v1441
    %v2031 = vunpack.c.h.b16 %v1441
    %v2032 = vunpack.c.l.b16 %v1442
    %v2033 = vunpack.c.h.b16 %v1442
    %v2034 = vunpack.c.l.b16 %v1443
    %v2035 = vunpack.c.h.b16 %v1443
    %v2036 = vunpack.c.l.b16 %v1444
    %v2037 = vunpack.c.h.b16 %v1444
    %v2038 = vunpack.c.l.b16 %v1445
    %v2039 = vunpack.c.h.b16 %v1445
    %v2040 = vunpack.c.l.b16 %v1446
    %v2041 = vunpack.c.h.b16 %v1446
    %v2042 = vunpack.c.l.b16 %v1447
    %v2043 = vunpack.c.h.b16 %v1447
    %v2044 = vunpack.c.l.b16 %v1448
    %v2045 = vunpack.c.h.b16 %v1448
    %v2046 = vunpack.c.l.b16 %v1449
    %v2047 = vunpack.c.h.b16 %v1449
    %v2048 = vunpack.c.l.b16 %v1450
    %v2049 = vunpack.c.h.b16 %v1450
    %v2050 = vunpack.c.l.b16 %v1451
    %v2051 = vunpack.c.h.b16 %v1451
    %v2052 = vunpack.c.l.b16 %v1452
    %v2053 = vunpack.c.h.b16 %v1452
    %v2054 = vunpack.c.l.b16 %v1453
    %v2055 = vunpack.c.h.b16 %v1453
    %v2056 = vunpack.c.l.b16 %v1454
    %v2057 = vunpack.c.h.b16 %v1454
    %v2058 = vunpack.c.l.b16 %v1455
    %v2059 = vunpack.c.h.b16 %v1455
    %v2060 = vunpack.c.l.b16 %v1456
    %v2061 = vunpack.c.h.b16 %v1456
    %v2062 = vunpack.c.l.b16 %v1457
    %v2063 = vunpack.c.h.b16 %v1457
    %v2064 = vunpack.c.l.b16 %v1458
    %v2065 = vunpack.c.h.b16 %v1458
    %v2066 = vunpack.c.l.b16 %v1459
    %v2067 = vunpack.c.h.b16 %v1459
    %v2068 = vunpack.c.l.b16 %v1460
    %v2069 = vunpack.c.h.b16 %v1460
    %v2070 = vunpack.c.l.b16 %v1461
    %v2071 = vunpack.c.h.b16 %v1461
    %v2072 = vunpack.c.l.b16 %v1462
    %v2073 = vunpack.c.h.b16 %v1462
    %v2074 = vunpack.c.l.b16 %v1463
    %v2075 = vunpack.c.h.b16 %v1463
    %v2076 = vunpack.c.l.b16 %v1464
    %v2077 = vunpack.c.h.b16 %v1464
    %v2078 = vunpack.c.l.b16 %v1465
    %v2079 = vunpack.c.h.b16 %v1465
    %v2080 = vunpack.c.l.b16 %v1466
    %v2081 = vunpack.c.h.b16 %v1466
    %v2082 = vunpack.c.l.b16 %v1467
    %v2083 = vunpack.c.h.b16 %v1467
    %v2084 = vunpack.c.l.b16 %v1468
    %v2085 = vunpack.c.h.b16 %v1468
    %v2086 = vunpack.c.l.b16 %v1469
    %v2087 = vunpack.c.h.b16 %v1469
    %v2088 = vunpack.c.l.b16 %v1470
    %v2089 = vunpack.c.h.b16 %v1470
    %v2090 = vunpack.c.l.b16 %v1471
    %v2091 = vunpack.c.h.b16 %v1471
    %v2092 = vunpack.c.l.b16 %v1472
    %v2093 = vunpack.c.h.b16 %v1472
    %v2094 = vunpack.c.l.b16 %v1473
    %v2095 = vunpack.c.h.b16 %v1473
    %v2096 = vunpack.c.l.b16 %v1474
    %v2097 = vunpack.c.h.b16 %v1474
    %v2098 = vunpack.c.l.b16 %v1475
    %v2099 = vunpack.c.h.b16 %v1475
    %v2100 = vunpack.c.l.b16 %v1476
    %v2101 = vunpack.c.h.b16 %v1476
    %v2102 = vunpack.c.l.b16 %v1477
    %v2103 = vunpack.c.h.b16 %v1477
    %v2104 = vunpack.c.l.b16 %v1478
    %v2105 = vunpack.c.h.b16 %v1478
    %v2106 = vunpack.c.l.b16 %v1479
    %v2107 = vunpack.c.h.b16 %v1479
    %v2108 = vunpack.c.l.b16 %v1480
    %v2109 = vunpack.c.h.b16 %v1480
    %v2110 = vunpack.c.l.b16 %v1481
    %v2111 = vunpack.c.h.b16 %v1481
    %v2112 = vunpack.c.l.b16 %v1482
    %v2113 = vunpack.c.h.b16 %v1482
    %v2114 = vunpack.c.l.b16 %v1483
    %v2115 = vunpack.c.h.b16 %v1483
    %v2116 = vunpack.c.l.b16 %v1484
    %v2117 = vunpack.c.h.b16 %v1484
    %v2118 = vunpack.c.l.b16 %v1485
    %v2119 = vunpack.c.h.b16 %v1485
    %v2120 = vunpack.c.l.b16 %v1486
    %v2121 = vunpack.c.h.b16 %v1486
    %v2122 = vunpack.c.l.b16 %v1487
    %v2123 = vunpack.c.h.b16 %v1487
    %v2124 = vunpack.c.l.b16 %v1488
    %v2125 = vunpack.c.h.b16 %v1488
    %v2126 = vunpack.c.l.b16 %v1489
    %v2127 = vunpack.c.h.b16 %v1489
    %v2128 = vunpack.c.l.b16 %v1490
    %v2129 = vunpack.c.h.b16 %v1490
    %v2130 = vunpack.c.l.b16 %v1491
    %v2131 = vunpack.c.h.b16 %v1491
    %v2132 = vunpack.c.l.b16 %v1492
    %v2133 = vunpack.c.h.b16 %v1492
    %v2134 = vunpack.c.l.b16 %v1493
    %v2135 = vunpack.c.h.b16 %v1493
    %v2136 = vunpack.c.l.b16 %v1494
    %v2137 = vunpack.c.h.b16 %v1494
    %v2138 = vunpack.c.l.b16 %v1495
    %v2139 = vunpack.c.h.b16 %v1495
    %v2140 = vunpack.c.l.b16 %v1496
    %v2141 = vunpack.c.h.b16 %v1496
    %v2142 = vunpack.c.l.b16 %v1497
    %v2143 = vunpack.c.h.b16 %v1497
    %v2144 = vunpack.c.l.b16 %v1498
    %v2145 = vunpack.c.h.b16 %v1498
    %v2146 = vunpack.c.l.b16 %v1499
    %v2147 = vunpack.c.h.b16 %v1499
    %v2148 = vunpack.c.l.b16 %v1500
    %v2149 = vunpack.c.h.b16 %v1500
    %v2150 = vunpack.c.l.b16 %v1501
    %v2151 = vunpack.c.h.b16 %v1501
    %v2152 = vunpack.c.l.b16 %v1502
    %v2153 = vunpack.c.h.b16 %v1502
    %v2154 = vunpack.c.l.b16 %v1503
    %v2155 = vunpack.c.h.b16 %v1503
    %v2156 = vunpack.c.l.b16 %v1504
    %v2157 = vunpack.c.h.b16 %v1504
    %v2158 = vunpack.c.l.b16 %v1505
    %v2159 = vunpack.c.h.b16 %v1505
    %v2160 = vunpack.c.l.b16 %v1506
    %v2161 = vunpack.c.h.b16 %v1506
    %v2162 = vunpack.c.l.b16 %v1507
    %v2163 = vunpack.c.h.b16 %v1507
    %v2164 = vunpack.c.l.b16 %v1508
    %v2165 = vunpack.c.h.b16 %v1508
    %v2166 = vunpack.c.l.b16 %v1509
    %v2167 = vunpack.c.h.b16 %v1509
    %v2168 = vunpack.c.l.b16 %v1510
    %v2169 = vunpack.c.h.b16 %v1510
    %v2170 = vunpack.c.l.b16 %v1511
    %v2171 = vunpack.c.h.b16 %v1511
    %v2172 = vunpack.c.l.b16 %v1512
    %v2173 = vunpack.c.h.b16 %v1512
    %v2174 = vunpack.c.l.b16 %v1513
    %v2175 = vunpack.c.h.b16 %v1513
    %v2176 = vunpack.c.l.b16 %v1514
    %v2177 = vunpack.c.h.b16 %v1514
    %v2178 = vunpack.c.l.b16 %v1515
    %v2179 = vunpack.c.h.b16 %v1515
    %v2180 = vunpack.c.l.b16 %v1516
    %v2181 = vunpack.c.h.b16 %v1516
    %v2182 = vunpack.c.l.b16 %v1517
    %v2183 = vunpack.c.h.b16 %v1517
    %v2184 = vunpack.c.l.b16 %v1518
    %v2185 = vunpack.c.h.b16 %v1518
    %v2186 = vunpack.c.l.b16 %v1519
    %v2187 = vunpack.c.h.b16 %v1519
    %v2188 = vunpack.c.l.b16 %v1520
    %v2189 = vunpack.c.h.b16 %v1520
    %v2190 = vunpack.c.l.b16 %v1521
    %v2191 = vunpack.c.h.b16 %v1521
    %v2192 = vunpack.c.l.b16 %v1522
    %v2193 = vunpack.c.h.b16 %v1522
    %v2194 = vunpack.c.l.b16 %v1523
    %v2195 = vunpack.c.h.b16 %v1523
    %v2196 = vunpack.c.l.b16 %v1524
    %v2197 = vunpack.c.h.b16 %v1524
    %v2198 = vunpack.c.l.b16 %v1525
    %v2199 = vunpack.c.h.b16 %v1525
    %v2200 = vunpack.c.l.b16 %v1526
    %v2201 = vunpack.c.h.b16 %v1526
    %v2202 = vunpack.c.l.b16 %v1527
    %v2203 = vunpack.c.h.b16 %v1527
    %v2204 = vunpack.c.l.b16 %v1528
    %v2205 = vunpack.c.h.b16 %v1528
    %v2206 = vunpack.c.l.b16 %v1529
    %v2207 = vunpack.c.h.b16 %v1529
    %v2208 = vunpack.c.l.b16 %v1530
    %v2209 = vunpack.c.h.b16 %v1530
    %v2210 = vunpack.c.l.b16 %v1531
    %v2211 = vunpack.c.h.b16 %v1531
    %v2212 = vunpack.c.l.b16 %v1532
    %v2213 = vunpack.c.h.b16 %v1532
    %v2214 = vunpack.c.l.b16 %v1533
    %v2215 = vunpack.c.h.b16 %v1533
    %v2216 = vunpack.c.l.b16 %v1534
    %v2217 = vunpack.c.h.b16 %v1534
    %v2218 = vunpack.c.l.b16 %v1535
    %v2219 = vunpack.c.h.b16 %v1535
    %v2220 = vunpack.c.l.b16 %v1536
    %v2221 = vunpack.c.h.b16 %v1536
    %v2222 = vunpack.c.l.b16 %v1537
    %v2223 = vunpack.c.h.b16 %v1537
    %v2224 = vunpack.c.l.b16 %v1538
    %v2225 = vunpack.c.h.b16 %v1538
    %v2226 = vunpack.c.l.b16 %v1539
    %v2227 = vunpack.c.h.b16 %v1539
    %v2228 = vunpack.c.l.b16 %v1540
    %v2229 = vunpack.c.h.b16 %v1540
    %v2230 = vunpack.c.l.b16 %v1541
    %v2231 = vunpack.c.h.b16 %v1541
    %v2232 = vunpack.c.l.b16 %v1542
    %v2233 = vunpack.c.h.b16 %v1542
    %v2234 = vunpack.c.l.b16 %v1543
    %v2235 = vunpack.c.h.b16 %v1543
    %v2236 = vunpack.c.l.b16 %v1544
    %v2237 = vunpack.c.h.b16 %v1544
    %v2238 = vunpack.c.l.b16 %v1545
    %v2239 = vunpack.c.h.b16 %v1545
    %v2240 = vunpack.c.l.b16 %v1546
    %v2241 = vunpack.c.h.b16 %v1546
    %v2242 = vunpack.c.l.b16 %v1547
    %v2243 = vunpack.c.h.b16 %v1547
    %v2244 = vunpack.c.l.b16 %v1548
    %v2245 = vunpack.c.h.b16 %v1548
    %v2246 = vunpack.c.l.b16 %v1549
    %v2247 = vunpack.c.h.b16 %v1549
    %v2248 = vunpack.c.l.b16 %v1550
    %v2249 = vunpack.c.h.b16 %v1550
    %v2250 = vunpack.c.l.b16 %v1551
    %v2251 = vunpack.c.h.b16 %v1551
    %v2252 = vunpack.c.l.b16 %v1552
    %v2253 = vunpack.c.h.b16 %v1552
    %v2254 = vunpack.c.l.b16 %v1553
    %v2255 = vunpack.c.h.b16 %v1553
    %v2256 = vunpack.c.l.b16 %v1554
    %v2257 = vunpack.c.h.b16 %v1554
    %v2258 = vunpack.c.l.b16 %v1555
    %v2259 = vunpack.c.h.b16 %v1555
    %v2260 = vunpack.c.l.b16 %v1556
    %v2261 = vunpack.c.h.b16 %v1556
    %v2262 = vunpack.c.l.b16 %v1557
    %v2263 = vunpack.c.h.b16 %v1557
    %v2264 = vunpack.c.l.b16 %v1558
    %v2265 = vunpack.c.h.b16 %v1558
    %v2266 = vunpack.c.l.b16 %v1559
    %v2267 = vunpack.c.h.b16 %v1559
    %v2268 = vunpack.c.l.b16 %v1560
    %v2269 = vunpack.c.h.b16 %v1560
    %v2270 = vunpack.c.l.b16 %v1561
    %v2271 = vunpack.c.h.b16 %v1561
    %v2272 = vunpack.c.l.b16 %v1562
    %v2273 = vunpack.c.h.b16 %v1562
    %v2274 = vunpack.c.l.b16 %v1563
    %v2275 = vunpack.c.h.b16 %v1563
    %v2276 = vunpack.c.l.b16 %v1564
    %v2277 = vunpack.c.h.b16 %v1564
    %v2278 = vunpack.c.l.b16 %v1565
    %v2279 = vunpack.c.h.b16 %v1565
    %v2280 = vunpack.c.l.b16 %v1566
    %v2281 = vunpack.c.h.b16 %v1566
    %v2282 = vunpack.c.l.b16 %v1567
    %v2283 = vunpack.c.h.b16 %v1567
    %v2284 = vunpack.c.l.b16 %v1568
    %v2285 = vunpack.c.h.b16 %v1568
    %v2286 = vunpack.c.l.b16 %v1569
    %v2287 = vunpack.c.h.b16 %v1569
    %v2288 = vunpack.c.l.b16 %v1570
    %v2289 = vunpack.c.h.b16 %v1570
    %v2290 = vunpack.c.l.b16 %v1571
    %v2291 = vunpack.c.h.b16 %v1571
    %v2292 = vunpack.c.l.b16 %v1572
    %v2293 = vunpack.c.h.b16 %v1572
    %v2294 = vunpack.c.l.b16 %v1573
    %v2295 = vunpack.c.h.b16 %v1573
    %v2296 = vunpack.c.l.b16 %v1574
    %v2297 = vunpack.c.h.b16 %v1574
    %v2298 = vunpack.c.l.b16 %v1575
    %v2299 = vunpack.c.h.b16 %v1575
    %v2300 = vunpack.c.l.b16 %v1576
    %v2301 = vunpack.c.h.b16 %v1576
    %v2302 = vunpack.c.l.b16 %v1577
    %v2303 = vunpack.c.h.b16 %v1577
    %v2304 = vunpack.c.l.b16 %v1578
    %v2305 = vunpack.c.h.b16 %v1578
    %v2306 = vunpack.c.l.b16 %v1579
    %v2307 = vunpack.c.h.b16 %v1579
    %v2308 = vunpack.c.l.b16 %v1580
    %v2309 = vunpack.c.h.b16 %v1580
    %v2310 = vunpack.c.l.b16 %v1581
    %v2311 = vunpack.c.h.b16 %v1581
    %v2312 = vunpack.c.l.b16 %v1582
    %v2313 = vunpack.c.h.b16 %v1582
    %v2314 = vunpack.c.l.b16 %v1583
    %v2315 = vunpack.c.h.b16 %v1583
    %v2316 = vunpack.c.l.b16 %v1584
    %v2317 = vunpack.c.h.b16 %v1584
    %v2318 = vunpack.c.l.b16 %v1585
    %v2319 = vunpack.c.h.b16 %v1585
    %v2320 = vunpack.c.l.b16 %v1586
    %v2321 = vunpack.c.h.b16 %v1586
    %v2322 = vunpack.c.l.b16 %v1587
    %v2323 = vunpack.c.h.b16 %v1587
    %v2324 = vunpack.c.l.b16 %v1588
    %v2325 = vunpack.c.h.b16 %v1588
    %v2326 = vunpack.c.l.b16 %v1589
    %v2327 = vunpack.c.h.b16 %v1589
    %v2328 = vunpack.c.l.b16 %v1590
    %v2329 = vunpack.c.h.b16 %v1590
    %v2330 = vunpack.c.l.b16 %v1591
    %v2331 = vunpack.c.h.b16 %v1591
    %v2332 = vunpack.c.l.b16 %v1592
    %v2333 = vunpack.c.h.b16 %v1592
    %v2334 = vunpack.c.l.b16 %v1593
    %v2335 = vunpack.c.h.b16 %v1593
    %v2336 = vunpack.c.l.b16 %v1594
    %v2337 = vunpack.c.h.b16 %v1594
    %v2338 = vunpack.c.l.b16 %v1595
    %v2339 = vunpack.c.h.b16 %v1595
    %v2340 = vunpack.c.l.b16 %v1596
    %v2341 = vunpack.c.h.b16 %v1596
    %v2342 = vunpack.c.l.b16 %v1597
    %v2343 = vunpack.c.h.b16 %v1597
    %v2344 = vunpack.c.l.b16 %v1598
    %v2345 = vunpack.c.h.b16 %v1598
    %v2346 = vunpack.c.l.b16 %v1599
    %v2347 = vunpack.c.h.b16 %v1599
    %v2348 = vunpack.c.l.b16 %v1600
    %v2349 = vunpack.c.h.b16 %v1600
    %v2350 = vunpack.c.l.b16 %v1601
    %v2351 = vunpack.c.h.b16 %v1601
    %v2352 = vunpack.c.l.b16 %v1602
    %v2353 = vunpack.c.h.b16 %v1602
    %v2354 = vunpack.c.l.b16 %v1603
    %v2355 = vunpack.c.h.b16 %v1603
    %v2356 = vunpack.c.l.b16 %v1604
    %v2357 = vunpack.c.h.b16 %v1604
    %v2358 = vunpack.c.l.b16 %v1605
    %v2359 = vunpack.c.h.b16 %v1605
    %v2360 = vunpack.c.l.b16 %v1606
    %v2361 = vunpack.c.h.b16 %v1606
    %v2362 = vunpack.c.l.b16 %v1607
    %v2363 = vunpack.c.h.b16 %v1607
    %v2364 = vunpack.c.l.b16 %v1608
    %v2365 = vunpack.c.h.b16 %v1608
    %v2366 = vunpack.c.l.b16 %v1609
    %v2367 = vunpack.c.h.b16 %v1609
    %v2368 = vunpack.c.l.b16 %v1610
    %v2369 = vunpack.c.h.b16 %v1610
    %v2370 = vunpack.c.l.b16 %v1611
    %v2371 = vunpack.c.h.b16 %v1611
    %v2372 = vunpack.c.l.b16 %v1612
    %v2373 = vunpack.c.h.b16 %v1612
    %v2374 = vunpack.c.l.b16 %v1613
    %v2375 = vunpack.c.h.b16 %v1613
    %v2376 = vunpack.c.l.b16 %v1614
    %v2377 = vunpack.c.h.b16 %v1614
    %v2378 = vunpack.c.l.b16 %v1615
    %v2379 = vunpack.c.h.b16 %v1615
    %v2380 = vunpack.c.l.b16 %v1616
    %v2381 = vunpack.c.h.b16 %v1616
    %v2382 = vunpack.c.l.b16 %v1617
    %v2383 = vunpack.c.h.b16 %v1617
    %v2384 = vunpack.c.l.b16 %v1618
    %v2385 = vunpack.c.h.b16 %v1618
    %v2386 = vunpack.c.l.b16 %v1619
    %v2387 = vunpack.c.h.b16 %v1619
    %v2388 = vpack.c.b16 %v1884, %v1876
    %v2389 = vpack.c.b16 %v1885, %v1877
    %v2390 = vpack.c.b16 %v1886, %v1878
    %v2391 = vpack.c.b16 %v1887, %v1879
    %v2392 = vpack.c.b16 %v1888, %v1880
    %v2393 = vpack.c.b16 %v1889, %v1881
    %v2394 = vpack.c.b16 %v1890, %v1882
    %v2395 = vpack.c.b16 %v1891, %v1883
    %v2396 = vpack.c.b16 %v1900, %v1892
    %v2397 = vpack.c.b16 %v1901, %v1893
    %v2398 = vpack.c.b16 %v1902, %v1894
    %v2399 = vpack.c.b16 %v1903, %v1895
    %v2400 = vpack.c.b16 %v1904, %v1896
    %v2401 = vpack.c.b16 %v1905, %v1897
    %v2402 = vpack.c.b16 %v1906, %v1898
    %v2403 = vpack.c.b16 %v1907, %v1899
    %v2404 = vpack.c.b16 %v1916, %v1908
    %v2405 = vpack.c.b16 %v1917, %v1909
    %v2406 = vpack.c.b16 %v1918, %v1910
    %v2407 = vpack.c.b16 %v1919, %v1911
    %v2408 = vpack.c.b16 %v1920, %v1912
    %v2409 = vpack.c.b16 %v1921, %v1913
    %v2410 = vpack.c.b16 %v1922, %v1914
    %v2411 = vpack.c.b16 %v1923, %v1915
    %v2412 = vpack.c.b16 %v1932, %v1924
    %v2413 = vpack.c.b16 %v1933, %v1925
    %v2414 = vpack.c.b16 %v1934, %v1926
    %v2415 = vpack.c.b16 %v1935, %v1927
    %v2416 = vpack.c.b16 %v1936, %v1928
    %v2417 = vpack.c.b16 %v1937, %v1929
    %v2418 = vpack.c.b16 %v1938, %v1930
    %v2419 = vpack.c.b16 %v1939, %v1931
    %v2420 = vpack.c.b16 %v1948, %v1940
    %v2421 = vpack.c.b16 %v1949, %v1941
    %v2422 = vpack.c.b16 %v1950, %v1942
    %v2423 = vpack.c.b16 %v1951, %v1943
    %v2424 = vpack.c.b16 %v1952, %v1944
    %v2425 = vpack.c.b16 %v1953, %v1945
    %v2426 = vpack.c.b16 %v1954, %v1946
    %v2427 = vpack.c.b16 %v1955, %v1947
    %v2428 = vpack.c.b16 %v1964, %v1956
    %v2429 = vpack.c.b16 %v1965, %v1957
    %v2430 = vpack.c.b16 %v1966, %v1958
    %v2431 = vpack.c.b16 %v1967, %v1959
    %v2432 = vpack.c.b16 %v1968, %v1960
    %v2433 = vpack.c.b16 %v1969, %v1961
    %v2434 = vpack.c.b16 %v1970, %v1962
    %v2435 = vpack.c.b16 %v1971, %v1963
    %v2436 = vpack.c.b16 %v1980, %v1972
    %v2437 = vpack.c.b16 %v1981, %v1973
    %v2438 = vpack.c.b16 %v1982, %v1974
    %v2439 = vpack.c.b16 %v1983, %v1975
    %v2440 = vpack.c.b16 %v1984, %v1976
    %v2441 = vpack.c.b16 %v1985, %v1977
    %v2442 = vpack.c.b16 %v1986, %v1978
    %v2443 = vpack.c.b16 %v1987, %v1979
    %v2444 = vpack.c.b16 %v1996, %v1988
    %v2445 = vpack.c.b16 %v1997, %v1989
    %v2446 = vpack.c.b16 %v1998, %v1990
    %v2447 = vpack.c.b16 %v1999, %v1991
    %v2448 = vpack.c.b16 %v2000, %v1992
    %v2449 = vpack.c.b16 %v2001, %v1993
    %v2450 = vpack.c.b16 %v2002, %v1994
    %v2451 = vpack.c.b16 %v2003, %v1995
    %v2452 = vpack.c.b16 %v2012, %v2004
    %v2453 = vpack.c.b16 %v2013, %v2005
    %v2454 = vpack.c.b16 %v2014, %v2006
    %v2455 = vpack.c.b16 %v2015, %v2007
    %v2456 = vpack.c.b16 %v2016, %v2008
    %v2457 = vpack.c.b16 %v2017, %v2009
    %v2458 = vpack.c.b16 %v2018, %v2010
    %v2459 = vpack.c.b16 %v2019, %v2011
    %v2460 = vpack.c.b16 %v2028, %v2020
    %v2461 = vpack.c.b16 %v2029, %v2021
    %v2462 = vpack.c.b16 %v2030, %v2022
    %v2463 = vpack.c.b16 %v2031, %v2023
    %v2464 = vpack.c.b16 %v2032, %v2024
    %v2465 = vpack.c.b16 %v2033, %v2025
    %v2466 = vpack.c.b16 %v2034, %v2026
    %v2467 = vpack.c.b16 %v2035, %v2027
    %v2468 = vpack.c.b16 %v2044, %v2036
    %v2469 = vpack.c.b16 %v2045, %v2037
    %v2470 = vpack.c.b16 %v2046, %v2038
    %v2471 = vpack.c.b16 %v2047, %v2039
    %v2472 = vpack.c.b16 %v2048, %v2040
    %v2473 = vpack.c.b16 %v2049, %v2041
    %v2474 = vpack.c.b16 %v2050, %v2042
    %v2475 = vpack.c.b16 %v2051, %v2043
    %v2476 = vpack.c.b16 %v2060, %v2052
    %v2477 = vpack.c.b16 %v2061, %v2053
    %v2478 = vpack.c.b16 %v2062, %v2054
    %v2479 = vpack.c.b16 %v2063, %v2055
    %v2480 = vpack.c.b16 %v2064, %v2056
    %v2481 = vpack.c.b16 %v2065, %v2057
    %v2482 = vpack.c.b16 %v2066, %v2058
    %v2483 = vpack.c.b16 %v2067, %v2059
    %v2484 = vpack.c.b16 %v2076, %v2068
    %v2485 = vpack.c.b16 %v2077, %v2069
    %v2486 = vpack.c.b16 %v2078, %v2070
    %v2487 = vpack.c.b16 %v2079, %v2071
    %v2488 = vpack.c.b16 %v2080, %v2072
    %v2489 = vpack.c.b16 %v2081, %v2073
    %v2490 = vpack.c.b16 %v2082, %v2074
    %v2491 = vpack.c.b16 %v2083, %v2075
    %v2492 = vpack.c.b16 %v2092, %v2084
    %v2493 = vpack.c.b16 %v2093, %v2085
    %v2494 = vpack.c.b16 %v2094, %v2086
    %v2495 = vpack.c.b16 %v2095, %v2087
    %v2496 = vpack.c.b16 %v2096, %v2088
    %v2497 = vpack.c.b16 %v2097, %v2089
    %v2498 = vpack.c.b16 %v2098, %v2090
    %v2499 = vpack.c.b16 %v2099, %v2091
    %v2500 = vpack.c.b16 %v2108, %v2100
    %v2501 = vpack.c.b16 %v2109, %v2101
    %v2502 = vpack.c.b16 %v2110, %v2102
    %v2503 = vpack.c.b16 %v2111, %v2103
    %v2504 = vpack.c.b16 %v2112, %v2104
    %v2505 = vpack.c.b16 %v2113, %v2105
    %v2506 = vpack.c.b16 %v2114, %v2106
    %v2507 = vpack.c.b16 %v2115, %v2107
    %v2508 = vpack.c.b16 %v2124, %v2116
    %v2509 = vpack.c.b16 %v2125, %v2117
    %v2510 = vpack.c.b16 %v2126, %v2118
    %v2511 = vpack.c.b16 %v2127, %v2119
    %v2512 = vpack.c.b16 %v2128, %v2120
    %v2513 = vpack.c.b16 %v2129, %v2121
    %v2514 = vpack.c.b16 %v2130, %v2122
    %v2515 = vpack.c.b16 %v2131, %v2123
    %v2516 = vpack.c.b16 %v2140, %v2132
    %v2517 = vpack.c.b16 %v2141, %v2133
    %v2518 = vpack.c.b16 %v2142, %v2134
    %v2519 = vpack.c.b16 %v2143, %v2135
    %v2520 = vpack.c.b16 %v2144, %v2136
    %v2521 = vpack.c.b16 %v2145, %v2137
    %v2522 = vpack.c.b16 %v2146, %v2138
    %v2523 = vpack.c.b16 %v2147, %v2139
    %v2524 = vpack.c.b16 %v2156, %v2148
    %v2525 = vpack.c.b16 %v2157, %v2149
    %v2526 = vpack.c.b16 %v2158, %v2150
    %v2527 = vpack.c.b16 %v2159, %v2151
    %v2528 = vpack.c.b16 %v2160, %v2152
    %v2529 = vpack.c.b16 %v2161, %v2153
    %v2530 = vpack.c.b16 %v2162, %v2154
    %v2531 = vpack.c.b16 %v2163, %v2155
    %v2532 = vpack.c.b16 %v2172, %v2164
    %v2533 = vpack.c.b16 %v2173, %v2165
    %v2534 = vpack.c.b16 %v2174, %v2166
    %v2535 = vpack.c.b16 %v2175, %v2167
    %v2536 = vpack.c.b16 %v2176, %v2168
    %v2537 = vpack.c.b16 %v2177, %v2169
    %v2538 = vpack.c.b16 %v2178, %v2170
    %v2539 = vpack.c.b16 %v2179, %v2171
    %v2540 = vpack.c.b16 %v2188, %v2180
    %v2541 = vpack.c.b16 %v2189, %v2181
    %v2542 = vpack.c.b16 %v2190, %v2182
    %v2543 = vpack.c.b16 %v2191, %v2183
    %v2544 = vpack.c.b16 %v2192, %v2184
    %v2545 = vpack.c.b16 %v2193, %v2185
    %v2546 = vpack.c.b16 %v2194, %v2186
    %v2547 = vpack.c.b16 %v2195, %v2187
    %v2548 = vpack.c.b16 %v2204, %v2196
    %v2549 = vpack.c.b16 %v2205, %v2197
    %v2550 = vpack.c.b16 %v2206, %v2198
    %v2551 = vpack.c.b16 %v2207, %v2199
    %v2552 = vpack.c.b16 %v2208, %v2200
    %v2553 = vpack.c.b16 %v2209, %v2201
    %v2554 = vpack.c.b16 %v2210, %v2202
    %v2555 = vpack.c.b16 %v2211, %v2203
    %v2556 = vpack.c.b16 %v2220, %v2212
    %v2557 = vpack.c.b16 %v2221, %v2213
    %v2558 = vpack.c.b16 %v2222, %v2214
    %v2559 = vpack.c.b16 %v2223, %v2215
    %v2560 = vpack.c.b16 %v2224, %v2216
    %v2561 = vpack.c.b16 %v2225, %v2217
    %v2562 = vpack.c.b16 %v2226, %v2218
    %v2563 = vpack.c.b16 %v2227, %v2219
    %v2564 = vpack.c.b16 %v2236, %v2228
    %v2565 = vpack.c.b16 %v2237, %v2229
    %v2566 = vpack.c.b16 %v2238, %v2230
    %v2567 = vpack.c.b16 %v2239, %v2231
    %v2568 = vpack.c.b16 %v2240, %v2232
    %v2569 = vpack.c.b16 %v2241, %v2233
    %v2570 = vpack.c.b16 %v2242, %v2234
    %v2571 = vpack.c.b16 %v2243, %v2235
    %v2572 = vpack.c.b16 %v2252, %v2244
    %v2573 = vpack.c.b16 %v2253, %v2245
    %v2574 = vpack.c.b16 %v2254, %v2246
    %v2575 = vpack.c.b16 %v2255, %v2247
    %v2576 = vpack.c.b16 %v2256, %v2248
    %v2577 = vpack.c.b16 %v2257, %v2249
    %v2578 = vpack.c.b16 %v2258, %v2250
    %v2579 = vpack.c.b16 %v2259, %v2251
    %v2580 = vpack.c.b16 %v2268, %v2260
    %v2581 = vpack.c.b16 %v2269, %v2261
    %v2582 = vpack.c.b16 %v2270, %v2262
    %v2583 = vpack.c.b16 %v2271, %v2263
    %v2584 = vpack.c.b16 %v2272, %v2264
    %v2585 = vpack.c.b16 %v2273, %v2265
    %v2586 = vpack.c.b16 %v2274, %v2266
    %v2587 = vpack.c.b16 %v2275, %v2267
    %v2588 = vpack.c.b16 %v2284, %v2276
    %v2589 = vpack.c.b16 %v2285, %v2277
    %v2590 = vpack.c.b16 %v2286, %v2278
    %v2591 = vpack.c.b16 %v2287, %v2279
    %v2592 = vpack.c.b16 %v2288, %v2280
    %v2593 = vpack.c.b16 %v2289, %v2281
    %v2594 = vpack.c.b16 %v2290, %v2282
    %v2595 = vpack.c.b16 %v2291, %v2283
    %v2596 = vpack.c.b16 %v2300, %v2292
    %v2597 = vpack.c.b16 %v2301, %v2293
    %v2598 = vpack.c.b16 %v2302, %v2294
    %v2599 = vpack.c.b16 %v2303, %v2295
    %v2600 = vpack.c.b16 %v2304, %v2296
    %v2601 = vpack.c.b16 %v2305, %v2297
    %v2602 = vpack.c.b16 %v2306, %v2298
    %v2603 = vpack.c.b16 %v2307, %v2299
    %v2604 = vpack.c.b16 %v2316, %v2308
    %v2605 = vpack.c.b16 %v2317, %v2309
    %v2606 = vpack.c.b16 %v2318, %v2310
    %v2607 = vpack.c.b16 %v2319, %v2311
    %v2608 = vpack.c.b16 %v2320, %v2312
    %v2609 = vpack.c.b16 %v2321, %v2313
    %v2610 = vpack.c.b16 %v2322, %v2314
    %v2611 = vpack.c.b16 %v2323, %v2315
    %v2612 = vpack.c.b16 %v2332, %v2324
    %v2613 = vpack.c.b16 %v2333, %v2325
    %v2614 = vpack.c.b16 %v2334, %v2326
    %v2615 = vpack.c.b16 %v2335, %v2327
    %v2616 = vpack.c.b16 %v2336, %v2328
    %v2617 = vpack.c.b16 %v2337, %v2329
    %v2618 = vpack.c.b16 %v2338, %v2330
    %v2619 = vpack.c.b16 %v2339, %v2331
    %v2620 = vpack.c.b16 %v2348, %v2340
    %v2621 = vpack.c.b16 %v2349, %v2341
    %v2622 = vpack.c.b16 %v2350, %v2342
    %v2623 = vpack.c.b16 %v2351, %v2343
    %v2624 = vpack.c.b16 %v2352, %v2344
    %v2625 = vpack.c.b16 %v2353, %v2345
    %v2626 = vpack.c.b16 %v2354, %v2346
    %v2627 = vpack.c.b16 %v2355, %v2347
    %v2628 = vpack.c.b16 %v2364, %v2356
    %v2629 = vpack.c.b16 %v2365, %v2357
    %v2630 = vpack.c.b16 %v2366, %v2358
    %v2631 = vpack.c.b16 %v2367, %v2359
    %v2632 = vpack.c.b16 %v2368, %v2360
    %v2633 = vpack.c.b16 %v2369, %v2361
    %v2634 = vpack.c.b16 %v2370, %v2362
    %v2635 = vpack.c.b16 %v2371, %v2363
    %v2636 = vpack.c.b16 %v2380, %v2372
    %v2637 = vpack.c.b16 %v2381, %v2373
    %v2638 = vpack.c.b16 %v2382, %v2374
    %v2639 = vpack.c.b16 %v2383, %v2375
    %v2640 = vpack.c.b16 %v2384, %v2376
    %v2641 = vpack.c.b16 %v2385, %v2377
    %v2642 = vpack.c.b16 %v2386, %v2378
    %v2643 = vpack.c.b16 %v2387, %v2379
    %2900 = vmatprep.subr.bf16.mxu0 %v2389
    %2901 = vmatpush1.bf16.msra.mxu0 %v2388
    %2902 = vmatprep.subr.bf16.mxu0 %v2397
    %2903 = vmatpush1.bf16.msra.mxu0 %v2396
    %2904 = vmatprep.subr.bf16.mxu0 %v2405
    %2905 = vmatpush1.bf16.msra.mxu0 %v2404
    %2906 = vmatprep.subr.bf16.mxu0 %v2413
    %2907 = vmatpush1.bf16.msra.mxu0 %v2412
    %2908 = vmatprep.subr.bf16.mxu0 %v2421
    %2909 = vmatpush1.bf16.msra.mxu0 %v2420
    %2910 = vmatprep.subr.bf16.mxu0 %v2429
    %2911 = vmatpush1.bf16.msra.mxu0 %v2428
    %2912 = vmatprep.subr.bf16.mxu0 %v2437
    %2913 = vmatpush1.bf16.msra.mxu0 %v2436
    %2914 = vmatprep.subr.bf16.mxu0 %v2445
    %2915 = vmatpush1.bf16.msra.mxu0 %v2444
    %2916 = vmatprep.subr.bf16.mxu0 %v2453
    %2917 = vmatpush1.bf16.msra.mxu0 %v2452
    %2918 = vmatprep.subr.bf16.mxu0 %v2461
    %2919 = vmatpush1.bf16.msra.mxu0 %v2460
    %2920 = vmatprep.subr.bf16.mxu0 %v2469
    %2921 = vmatpush1.bf16.msra.mxu0 %v2468
    %2922 = vmatprep.subr.bf16.mxu0 %v2477
    %2923 = vmatpush1.bf16.msra.mxu0 %v2476
    %2924 = vmatprep.subr.bf16.mxu0 %v2485
    %2925 = vmatpush1.bf16.msra.mxu0 %v2484
    %2926 = vmatprep.subr.bf16.mxu0 %v2493
    %2927 = vmatpush1.bf16.msra.mxu0 %v2492
    %2928 = vmatprep.subr.bf16.mxu0 %v2501
    %2929 = vmatpush1.bf16.msra.mxu0 %v2500
    %2930 = vmatprep.subr.bf16.mxu0 %v2509
    %2931 = vmatpush1.bf16.msra.mxu0 %v2508
    %2932 = vmatprep.mubr.bf16.mxu0 %v1333
    %2933 = vmatmul.mubr.bf16.gmra.mrb[0].mxu0 %v1332
    %v2934 = vpop.f32.mrb[0].mxu0
    %v2935 = vadd.f32 0.0, %v2934
    %v2936 = vpop.f32.mrb[0].mxu0
    %v2937 = vadd.f32 0.0, %v2936
    %v2938 = vpop.f32.mrb[0].mxu0
    %v2939 = vadd.f32 0.0, %v2938
    %v2940 = vpop.f32.mrb[0].mxu0
    %v2941 = vadd.f32 0.0, %v2940
    %2942 = vmatprep.mubr.bf16.mxu0 %v1337
    %2943 = vmatmul.mubr.bf16.gmra.mrb[0].mxu0 %v1336
    %v2944 = vpop.f32.mrb[0].mxu0
    %v2945 = vadd.f32 0.0, %v2944
    %v2946 = vpop.f32.mrb[0].mxu0
    %v2947 = vadd.f32 0.0, %v2946
    %v2948 = vpop.f32.mrb[0].mxu0
    %v2949 = vadd.f32 0.0, %v2948
    %v2950 = vpop.f32.mrb[0].mxu0
    %v2951 = vadd.f32 0.0, %v2950
    %2952 = vmatprep.mubr.bf16.mxu0 %v1341
    %2953 = vmatmul.mubr.bf16.gmra.mrb[0].mxu0 %v1340
    %v2954 = vpop.f32.mrb[0].mxu0
    %v2955 = vadd.f32 0.0, %v2954
    %v2956 = vpop.f32.mrb[0].mxu0
    %v2957 = vadd.f32 0.0, %v2956
    %v2958 = vpop.f32.mrb[0].mxu0
    %v2959 = vadd.f32 0.0, %v2958
    %v2960 = vpop.f32.mrb[0].mxu0
    %v2961 = vadd.f32 0.0, %v2960
    %2962 = vmatprep.mubr.bf16.mxu0 %v1345
    %2963 = vmatmul.mubr.bf16.gmra.mrb[0].mxu0 %v1344
    %v2964 = vpop.f32.mrb[0].mxu0
    %v2965 = vadd.f32 0.0, %v2964
    %v2966 = vpop.f32.mrb[0].mxu0
    %v2967 = vadd.f32 0.0, %v2966
    %v2968 = vpop.f32.mrb[0].mxu0
    %v2969 = vadd.f32 0.0, %v2968
    %v2970 = vpop.f32.mrb[0].mxu0
    %v2971 = vadd.f32 0.0, %v2970
    %2972 = vmatprep.mubr.bf16.mxu0 %v1349
    %2973 = vmatmul.mubr.bf16.gmra.mrb[0].mxu0 %v1348
    %v2974 = vpop.f32.mrb[0].mxu0
    %v2975 = vadd.f32 0.0, %v2974
    %v2976 = vpop.f32.mrb[0].mxu0
    %v2977 = vadd.f32 0.0, %v2976
    %v2978 = vpop.f32.mrb[0].mxu0
    %v2979 = vadd.f32 0.0, %v2978
    %v2980 = vpop.f32.mrb[0].mxu0
    %v2981 = vadd.f32 0.0, %v2980
    %2982 = vmatprep.mubr.bf16.mxu0 %v1353
    %2983 = vmatmul.mubr.bf16.gmra.mrb[0].mxu0 %v1352
    %v2984 = vpop.f32.mrb[0].mxu0
    %v2985 = vadd.f32 0.0, %v2984
    %v2986 = vpop.f32.mrb[0].mxu0
    %v2987 = vadd.f32 0.0, %v2986
    %v2988 = vpop.f32.mrb[0].mxu0
    %v2989 = vadd.f32 0.0, %v2988
    %v2990 = vpop.f32.mrb[0].mxu0
    %v2991 = vadd.f32 0.0, %v2990
    %2992 = vmatprep.mubr.bf16.mxu0 %v1357
    %2993 = vmatmul.mubr.bf16.gmra.mrb[0].mxu0 %v1356
    %v2994 = vpop.f32.mrb[0].mxu0
    %v2995 = vadd.f32 0.0, %v2994
    %v2996 = vpop.f32.mrb[0].mxu0
    %v2997 = vadd.f32 0.0, %v2996
    %v2998 = vpop.f32.mrb[0].mxu0
    %v2999 = vadd.f32 0.0, %v2998
    %v3000 = vpop.f32.mrb[0].mxu0
    %v3001 = vadd.f32 0.0, %v3000
    %3002 = vmatprep.mubr.bf16.mxu0 %v1361
    %3003 = vmatmul.mubr.bf16.gmra.mrb[0].mxu0 %v1360
    %v3004 = vpop.f32.mrb[0].mxu0
    %v3005 = vadd.f32 0.0, %v3004
    %v3006 = vpop.f32.mrb[0].mxu0
    %v3007 = vadd.f32 0.0, %v3006
    %v3008 = vpop.f32.mrb[0].mxu0
    %v3009 = vadd.f32 0.0, %v3008
    %v3010 = vpop.f32.mrb[0].mxu0
    %v3011 = vadd.f32 0.0, %v3010
    %3012 = vdwg.mxu0
    %3013 = vmatprep.subr.bf16.mxu0 %v2517
    %3014 = vmatpush1.bf16.msra.mxu0 %v2516
    %3015 = vmatprep.subr.bf16.mxu0 %v2525
    %3016 = vmatpush1.bf16.msra.mxu0 %v2524
    %3017 = vmatprep.subr.bf16.mxu0 %v2533
    %3018 = vmatpush1.bf16.msra.mxu0 %v2532
    %3019 = vmatprep.subr.bf16.mxu0 %v2541
    %3020 = vmatpush1.bf16.msra.mxu0 %v2540
    %3021 = vmatprep.subr.bf16.mxu0 %v2549
    %3022 = vmatpush1.bf16.msra.mxu0 %v2548
    %3023 = vmatprep.subr.bf16.mxu0 %v2557
    %3024 = vmatpush1.bf16.msra.mxu0 %v2556
    %3025 = vmatprep.subr.bf16.mxu0 %v2565
    %3026 = vmatpush1.bf16.msra.mxu0 %v2564
    %3027 = vmatprep.subr.bf16.mxu0 %v2573
    %3028 = vmatpush1.bf16.msra.mxu0 %v2572
    %3029 = vmatprep.subr.bf16.mxu0 %v2581
    %3030 = vmatpush1.bf16.msra.mxu0 %v2580
    %3031 = vmatprep.subr.bf16.mxu0 %v2589
    %3032 = vmatpush1.bf16.msra.mxu0 %v2588
    %3033 = vmatprep.subr.bf16.mxu0 %v2597
    %3034 = vmatpush1.bf16.msra.mxu0 %v2596
    %3035 = vmatprep.subr.bf16.mxu0 %v2605
    %3036 = vmatpush1.bf16.msra.mxu0 %v2604
    %3037 = vmatprep.subr.bf16.mxu0 %v2613
    %3038 = vmatpush1.bf16.msra.mxu0 %v2612
    %3039 = vmatprep.subr.bf16.mxu0 %v2621
    %3040 = vmatpush1.bf16.msra.mxu0 %v2620
    %3041 = vmatprep.subr.bf16.mxu0 %v2629
    %3042 = vmatpush1.bf16.msra.mxu0 %v2628
    %3043 = vmatprep.subr.bf16.mxu0 %v2637
    %3044 = vmatpush1.bf16.msra.mxu0 %v2636
    %3045 = vmatprep.mubr.bf16.mxu0 %v1335
    %3046 = vmatmul.mubr.bf16.gmra.mrb[0].mxu0 %v1334
    %v3047 = vpop.f32.mrb[0].mxu0
    %v3048 = vadd.f32 %v2935, %v3047
    %v3049 = vpop.f32.mrb[0].mxu0
    %v3050 = vadd.f32 %v2937, %v3049
    %v3051 = vpop.f32.mrb[0].mxu0
    %v3052 = vadd.f32 %v2939, %v3051
    %v3053 = vpop.f32.mrb[0].mxu0
    %v3054 = vadd.f32 %v2941, %v3053
    %3055 = vmatprep.mubr.bf16.mxu0 %v1339
    %3056 = vmatmul.mubr.bf16.gmra.mrb[0].mxu0 %v1338
    %v3057 = vpop.f32.mrb[0].mxu0
    %v3058 = vadd.f32 %v2945, %v3057
    %v3059 = vpop.f32.mrb[0].mxu0
    %v3060 = vadd.f32 %v2947, %v3059
    %v3061 = vpop.f32.mrb[0].mxu0
    %v3062 = vadd.f32 %v2949, %v3061
    %v3063 = vpop.f32.mrb[0].mxu0
    %v3064 = vadd.f32 %v2951, %v3063
    %3065 = vmatprep.mubr.bf16.mxu0 %v1343
    %3066 = vmatmul.mubr.bf16.gmra.mrb[0].mxu0 %v1342
    %v3067 = vpop.f32.mrb[0].mxu0
    %v3068 = vadd.f32 %v2955, %v3067
    %v3069 = vpop.f32.mrb[0].mxu0
    %v3070 = vadd.f32 %v2957, %v3069
    %v3071 = vpop.f32.mrb[0].mxu0
    %v3072 = vadd.f32 %v2959, %v3071
    %v3073 = vpop.f32.mrb[0].mxu0
    %v3074 = vadd.f32 %v2961, %v3073
    %3075 = vmatprep.mubr.bf16.mxu0 %v1347
    %3076 = vmatmul.mubr.bf16.gmra.mrb[0].mxu0 %v1346
    %v3077 = vpop.f32.mrb[0].mxu0
    %v3078 = vadd.f32 %v2965, %v3077
    %v3079 = vpop.f32.mrb[0].mxu0
    %v3080 = vadd.f32 %v2967, %v3079
    %v3081 = vpop.f32.mrb[0].mxu0
    %v3082 = vadd.f32 %v2969, %v3081
    %v3083 = vpop.f32.mrb[0].mxu0
    %v3084 = vadd.f32 %v2971, %v3083
    %3085 = vmatprep.mubr.bf16.mxu0 %v1351
    %3086 = vmatmul.mubr.bf16.gmra.mrb[0].mxu0 %v1350
    %v3087 = vpop.f32.mrb[0].mxu0
    %v3088 = vadd.f32 %v2975, %v3087
    %v3089 = vpop.f32.mrb[0].mxu0
    %v3090 = vadd.f32 %v2977, %v3089
    %v3091 = vpop.f32.mrb[0].mxu0
    %v3092 = vadd.f32 %v2979, %v3091
    %v3093 = vpop.f32.mrb[0].mxu0
    %v3094 = vadd.f32 %v2981, %v3093
    %3095 = vmatprep.mubr.bf16.mxu0 %v1355
    %3096 = vmatmul.mubr.bf16.gmra.mrb[0].mxu0 %v1354
    %v3097 = vpop.f32.mrb[0].mxu0
    %v3098 = vadd.f32 %v2985, %v3097
    %v3099 = vpop.f32.mrb[0].mxu0
    %v3100 = vadd.f32 %v2987, %v3099
    %v3101 = vpop.f32.mrb[0].mxu0
    %v3102 = vadd.f32 %v2989, %v3101
    %v3103 = vpop.f32.mrb[0].mxu0
    %v3104 = vadd.f32 %v2991, %v3103
    %3105 = vmatprep.mubr.bf16.mxu0 %v1359
    %3106 = vmatmul.mubr.bf16.gmra.mrb[0].mxu0 %v1358
    %v3107 = vpop.f32.mrb[0].mxu0
    %v3108 = vadd.f32 %v2995, %v3107
    %v3109 = vpop.f32.mrb[0].mxu0
    %v3110 = vadd.f32 %v2997, %v3109
    %v3111 = vpop.f32.mrb[0].mxu0
    %v3112 = vadd.f32 %v2999, %v3111
    %v3113 = vpop.f32.mrb[0].mxu0
    %v3114 = vadd.f32 %v3001, %v3113
    %3115 = vmatprep.mubr.bf16.mxu0 %v1363
    %3116 = vmatmul.mubr.bf16.gmra.mrb[0].mxu0 %v1362
    %v3117 = vpop.f32.mrb[0].mxu0
    %v3118 = vadd.f32 %v3005, %v3117
    %v3119 = vpop.f32.mrb[0].mxu0
    %v3120 = vadd.f32 %v3007, %v3119
    %v3121 = vpop.f32.mrb[0].mxu0
    %v3122 = vadd.f32 %v3009, %v3121
    %v3123 = vpop.f32.mrb[0].mxu0
    %v3124 = vadd.f32 %v3011, %v3123
    %3125 = vdwg.mxu0
    %3126 = vmatprep.subr.bf16.mxu0 %v2391
    %3127 = vmatpush1.bf16.msra.mxu0 %v2390
    %3128 = vmatprep.subr.bf16.mxu0 %v2399
    %3129 = vmatpush1.bf16.msra.mxu0 %v2398
    %3130 = vmatprep.subr.bf16.mxu0 %v2407
    %3131 = vmatpush1.bf16.msra.mxu0 %v2406
    %3132 = vmatprep.subr.bf16.mxu0 %v2415
    %3133 = vmatpush1.bf16.msra.mxu0 %v2414
    %3134 = vmatprep.subr.bf16.mxu0 %v2423
    %3135 = vmatpush1.bf16.msra.mxu0 %v2422
    %3136 = vmatprep.subr.bf16.mxu0 %v2431
    %3137 = vmatpush1.bf16.msra.mxu0 %v2430
    %3138 = vmatprep.subr.bf16.mxu0 %v2439
    %3139 = vmatpush1.bf16.msra.mxu0 %v2438
    %3140 = vmatprep.subr.bf16.mxu0 %v2447
    %3141 = vmatpush1.bf16.msra.mxu0 %v2446
    %3142 = vmatprep.subr.bf16.mxu0 %v2455
    %3143 = vmatpush1.bf16.msra.mxu0 %v2454
    %3144 = vmatprep.subr.bf16.mxu0 %v2463
    %3145 = vmatpush1.bf16.msra.mxu0 %v2462
    %3146 = vmatprep.subr.bf16.mxu0 %v2471
    %3147 = vmatpush1.bf16.msra.mxu0 %v2470
    %3148 = vmatprep.subr.bf16.mxu0 %v2479
    %3149 = vmatpush1.bf16.msra.mxu0 %v2478
    %3150 = vmatprep.subr.bf16.mxu0 %v2487
    %3151 = vmatpush1.bf16.msra.mxu0 %v2486
    %3152 = vmatprep.subr.bf16.mxu0 %v2495
    %3153 = vmatpush1.bf16.msra.mxu0 %v2494
    %3154 = vmatprep.subr.bf16.mxu0 %v2503
    %3155 = vmatpush1.bf16.msra.mxu0 %v2502
    %3156 = vmatprep.subr.bf16.mxu0 %v2511
    %3157 = vmatpush1.bf16.msra.mxu0 %v2510
    %3158 = vmatprep.mubr.bf16.mxu0 %v1333
    %3159 = vmatmul.mubr.bf16.gmra.mrb[0].mxu0 %v1332
    %v3160 = vpop.f32.mrb[0].mxu0
    %v3161 = vadd.f32 0.0, %v3160
    %v3162 = vpop.f32.mrb[0].mxu0
    %v3163 = vadd.f32 0.0, %v3162
    %v3164 = vpop.f32.mrb[0].mxu0
    %v3165 = vadd.f32 0.0, %v3164
    %v3166 = vpop.f32.mrb[0].mxu0
    %v3167 = vadd.f32 0.0, %v3166
    %3168 = vmatprep.mubr.bf16.mxu0 %v1337
    %3169 = vmatmul.mubr.bf16.gmra.mrb[0].mxu0 %v1336
    %v3170 = vpop.f32.mrb[0].mxu0
    %v3171 = vadd.f32 0.0, %v3170
    %v3172 = vpop.f32.mrb[0].mxu0
    %v3173 = vadd.f32 0.0, %v3172
    %v3174 = vpop.f32.mrb[0].mxu0
    %v3175 = vadd.f32 0.0, %v3174
    %v3176 = vpop.f32.mrb[0].mxu0
    %v3177 = vadd.f32 0.0, %v3176
    %3178 = vmatprep.mubr.bf16.mxu0 %v1341
    %3179 = vmatmul.mubr.bf16.gmra.mrb[0].mxu0 %v1340
    %v3180 = vpop.f32.mrb[0].mxu0
    %v3181 = vadd.f32 0.0, %v3180
    %v3182 = vpop.f32.mrb[0].mxu0
    %v3183 = vadd.f32 0.0, %v3182
    %v3184 = vpop.f32.mrb[0].mxu0
    %v3185 = vadd.f32 0.0, %v3184
    %v3186 = vpop.f32.mrb[0].mxu0
    %v3187 = vadd.f32 0.0, %v3186
    %3188 = vmatprep.mubr.bf16.mxu0 %v1345
    %3189 = vmatmul.mubr.bf16.gmra.mrb[0].mxu0 %v1344
    %v3190 = vpop.f32.mrb[0].mxu0
    %v3191 = vadd.f32 0.0, %v3190
    %v3192 = vpop.f32.mrb[0].mxu0
    %v3193 = vadd.f32 0.0, %v3192
    %v3194 = vpop.f32.mrb[0].mxu0
    %v3195 = vadd.f32 0.0, %v3194
    %v3196 = vpop.f32.mrb[0].mxu0
    %v3197 = vadd.f32 0.0, %v3196
    %3198 = vmatprep.mubr.bf16.mxu0 %v1349
    %3199 = vmatmul.mubr.bf16.gmra.mrb[0].mxu0 %v1348
    %v3200 = vpop.f32.mrb[0].mxu0
    %v3201 = vadd.f32 0.0, %v3200
    %v3202 = vpop.f32.mrb[0].mxu0
    %v3203 = vadd.f32 0.0, %v3202
    %v3204 = vpop.f32.mrb[0].mxu0
    %v3205 = vadd.f32 0.0, %v3204
    %v3206 = vpop.f32.mrb[0].mxu0
    %v3207 = vadd.f32 0.0, %v3206
    %3208 = vmatprep.mubr.bf16.mxu0 %v1353
    %3209 = vmatmul.mubr.bf16.gmra.mrb[0].mxu0 %v1352
    %v3210 = vpop.f32.mrb[0].mxu0
    %v3211 = vadd.f32 0.0, %v3210
    %v3212 = vpop.f32.mrb[0].mxu0
    %v3213 = vadd.f32 0.0, %v3212
    %v3214 = vpop.f32.mrb[0].mxu0
    %v3215 = vadd.f32 0.0, %v3214
    %v3216 = vpop.f32.mrb[0].mxu0
    %v3217 = vadd.f32 0.0, %v3216
    %3218 = vmatprep.mubr.bf16.mxu0 %v1357
    %3219 = vmatmul.mubr.bf16.gmra.mrb[0].mxu0 %v1356
    %v3220 = vpop.f32.mrb[0].mxu0
    %v3221 = vadd.f32 0.0, %v3220
    %v3222 = vpop.f32.mrb[0].mxu0
    %v3223 = vadd.f32 0.0, %v3222
    %v3224 = vpop.f32.mrb[0].mxu0
    %v3225 = vadd.f32 0.0, %v3224
    %v3226 = vpop.f32.mrb[0].mxu0
    %v3227 = vadd.f32 0.0, %v3226
    %3228 = vmatprep.mubr.bf16.mxu0 %v1361
    %3229 = vmatmul.mubr.bf16.gmra.mrb[0].mxu0 %v1360
    %v3230 = vpop.f32.mrb[0].mxu0
    %v3231 = vadd.f32 0.0, %v3230
    %v3232 = vpop.f32.mrb[0].mxu0
    %v3233 = vadd.f32 0.0, %v3232
    %v3234 = vpop.f32.mrb[0].mxu0
    %v3235 = vadd.f32 0.0, %v3234
    %v3236 = vpop.f32.mrb[0].mxu0
    %v3237 = vadd.f32 0.0, %v3236
    %3238 = vdwg.mxu0
    %3239 = vmatprep.subr.bf16.mxu0 %v2519
    %3240 = vmatpush1.bf16.msra.mxu0 %v2518
    %3241 = vmatprep.subr.bf16.mxu0 %v2527
    %3242 = vmatpush1.bf16.msra.mxu0 %v2526
    %3243 = vmatprep.subr.bf16.mxu0 %v2535
    %3244 = vmatpush1.bf16.msra.mxu0 %v2534
    %3245 = vmatprep.subr.bf16.mxu0 %v2543
    %3246 = vmatpush1.bf16.msra.mxu0 %v2542
    %3247 = vmatprep.subr.bf16.mxu0 %v2551
    %3248 = vmatpush1.bf16.msra.mxu0 %v2550
    %3249 = vmatprep.subr.bf16.mxu0 %v2559
    %3250 = vmatpush1.bf16.msra.mxu0 %v2558
    %3251 = vmatprep.subr.bf16.mxu0 %v2567
    %3252 = vmatpush1.bf16.msra.mxu0 %v2566
    %3253 = vmatprep.subr.bf16.mxu0 %v2575
    %3254 = vmatpush1.bf16.msra.mxu0 %v2574
    %3255 = vmatprep.subr.bf16.mxu0 %v2583
    %3256 = vmatpush1.bf16.msra.mxu0 %v2582
    %3257 = vmatprep.subr.bf16.mxu0 %v2591
    %3258 = vmatpush1.bf16.msra.mxu0 %v2590
    %3259 = vmatprep.subr.bf16.mxu0 %v2599
    %3260 = vmatpush1.bf16.msra.mxu0 %v2598
    %3261 = vmatprep.subr.bf16.mxu0 %v2607
    %3262 = vmatpush1.bf16.msra.mxu0 %v2606
    %3263 = vmatprep.subr.bf16.mxu0 %v2615
    %3264 = vmatpush1.bf16.msra.mxu0 %v2614
    %3265 = vmatprep.subr.bf16.mxu0 %v2623
    %3266 = vmatpush1.bf16.msra.mxu0 %v2622
    %3267 = vmatprep.subr.bf16.mxu0 %v2631
    %3268 = vmatpush1.bf16.msra.mxu0 %v2630
    %3269 = vmatprep.subr.bf16.mxu0 %v2639
    %3270 = vmatpush1.bf16.msra.mxu0 %v2638
    %3271 = vmatprep.mubr.bf16.mxu0 %v1335
    %3272 = vmatmul.mubr.bf16.gmra.mrb[0].mxu0 %v1334
    %v3273 = vpop.f32.mrb[0].mxu0
    %v3274 = vadd.f32 %v3161, %v3273
    %v3275 = vpop.f32.mrb[0].mxu0
    %v3276 = vadd.f32 %v3163, %v3275
    %v3277 = vpop.f32.mrb[0].mxu0
    %v3278 = vadd.f32 %v3165, %v3277
    %v3279 = vpop.f32.mrb[0].mxu0
    %v3280 = vadd.f32 %v3167, %v3279
    %3281 = vmatprep.mubr.bf16.mxu0 %v1339
    %3282 = vmatmul.mubr.bf16.gmra.mrb[0].mxu0 %v1338
    %v3283 = vpop.f32.mrb[0].mxu0
    %v3284 = vadd.f32 %v3171, %v3283
    %v3285 = vpop.f32.mrb[0].mxu0
    %v3286 = vadd.f32 %v3173, %v3285
    %v3287 = vpop.f32.mrb[0].mxu0
    %v3288 = vadd.f32 %v3175, %v3287
    %v3289 = vpop.f32.mrb[0].mxu0
    %v3290 = vadd.f32 %v3177, %v3289
    %3291 = vmatprep.mubr.bf16.mxu0 %v1343
    %3292 = vmatmul.mubr.bf16.gmra.mrb[0].mxu0 %v1342
    %v3293 = vpop.f32.mrb[0].mxu0
    %v3294 = vadd.f32 %v3181, %v3293
    %v3295 = vpop.f32.mrb[0].mxu0
    %v3296 = vadd.f32 %v3183, %v3295
    %v3297 = vpop.f32.mrb[0].mxu0
    %v3298 = vadd.f32 %v3185, %v3297
    %v3299 = vpop.f32.mrb[0].mxu0
    %v3300 = vadd.f32 %v3187, %v3299
    %3301 = vmatprep.mubr.bf16.mxu0 %v1347
    %3302 = vmatmul.mubr.bf16.gmra.mrb[0].mxu0 %v1346
    %v3303 = vpop.f32.mrb[0].mxu0
    %v3304 = vadd.f32 %v3191, %v3303
    %v3305 = vpop.f32.mrb[0].mxu0
    %v3306 = vadd.f32 %v3193, %v3305
    %v3307 = vpop.f32.mrb[0].mxu0
    %v3308 = vadd.f32 %v3195, %v3307
    %v3309 = vpop.f32.mrb[0].mxu0
    %v3310 = vadd.f32 %v3197, %v3309
    %3311 = vmatprep.mubr.bf16.mxu0 %v1351
    %3312 = vmatmul.mubr.bf16.gmra.mrb[0].mxu0 %v1350
    %v3313 = vpop.f32.mrb[0].mxu0
    %v3314 = vadd.f32 %v3201, %v3313
    %v3315 = vpop.f32.mrb[0].mxu0
    %v3316 = vadd.f32 %v3203, %v3315
    %v3317 = vpop.f32.mrb[0].mxu0
    %v3318 = vadd.f32 %v3205, %v3317
    %v3319 = vpop.f32.mrb[0].mxu0
    %v3320 = vadd.f32 %v3207, %v3319
    %3321 = vmatprep.mubr.bf16.mxu0 %v1355
    %3322 = vmatmul.mubr.bf16.gmra.mrb[0].mxu0 %v1354
    %v3323 = vpop.f32.mrb[0].mxu0
    %v3324 = vadd.f32 %v3211, %v3323
    %v3325 = vpop.f32.mrb[0].mxu0
    %v3326 = vadd.f32 %v3213, %v3325
    %v3327 = vpop.f32.mrb[0].mxu0
    %v3328 = vadd.f32 %v3215, %v3327
    %v3329 = vpop.f32.mrb[0].mxu0
    %v3330 = vadd.f32 %v3217, %v3329
    %3331 = vmatprep.mubr.bf16.mxu0 %v1359
    %3332 = vmatmul.mubr.bf16.gmra.mrb[0].mxu0 %v1358
    %v3333 = vpop.f32.mrb[0].mxu0
    %v3334 = vadd.f32 %v3221, %v3333
    %v3335 = vpop.f32.mrb[0].mxu0
    %v3336 = vadd.f32 %v3223, %v3335
    %v3337 = vpop.f32.mrb[0].mxu0
    %v3338 = vadd.f32 %v3225, %v3337
    %v3339 = vpop.f32.mrb[0].mxu0
    %v3340 = vadd.f32 %v3227, %v3339
    %3341 = vmatprep.mubr.bf16.mxu0 %v1363
    %3342 = vmatmul.mubr.bf16.gmra.mrb[0].mxu0 %v1362
    %v3343 = vpop.f32.mrb[0].mxu0
    %v3344 = vadd.f32 %v3231, %v3343
    %v3345 = vpop.f32.mrb[0].mxu0
    %v3346 = vadd.f32 %v3233, %v3345
    %v3347 = vpop.f32.mrb[0].mxu0
    %v3348 = vadd.f32 %v3235, %v3347
    %v3349 = vpop.f32.mrb[0].mxu0
    %v3350 = vadd.f32 %v3237, %v3349
    %3351 = vdwg.mxu0
    %3352 = vmatprep.subr.bf16.mxu0 %v2393
    %3353 = vmatpush1.bf16.msra.mxu0 %v2392
    %3354 = vmatprep.subr.bf16.mxu0 %v2401
    %3355 = vmatpush1.bf16.msra.mxu0 %v2400
    %3356 = vmatprep.subr.bf16.mxu0 %v2409
    %3357 = vmatpush1.bf16.msra.mxu0 %v2408
    %3358 = vmatprep.subr.bf16.mxu0 %v2417
    %3359 = vmatpush1.bf16.msra.mxu0 %v2416
    %3360 = vmatprep.subr.bf16.mxu0 %v2425
    %3361 = vmatpush1.bf16.msra.mxu0 %v2424
    %3362 = vmatprep.subr.bf16.mxu0 %v2433
    %3363 = vmatpush1.bf16.msra.mxu0 %v2432
    %3364 = vmatprep.subr.bf16.mxu0 %v2441
    %3365 = vmatpush1.bf16.msra.mxu0 %v2440
    %3366 = vmatprep.subr.bf16.mxu0 %v2449
    %3367 = vmatpush1.bf16.msra.mxu0 %v2448
    %3368 = vmatprep.subr.bf16.mxu0 %v2457
    %3369 = vmatpush1.bf16.msra.mxu0 %v2456
    %3370 = vmatprep.subr.bf16.mxu0 %v2465
    %3371 = vmatpush1.bf16.msra.mxu0 %v2464
    %3372 = vmatprep.subr.bf16.mxu0 %v2473
    %3373 = vmatpush1.bf16.msra.mxu0 %v2472
    %3374 = vmatprep.subr.bf16.mxu0 %v2481
    %3375 = vmatpush1.bf16.msra.mxu0 %v2480
    %3376 = vmatprep.subr.bf16.mxu0 %v2489
    %3377 = vmatpush1.bf16.msra.mxu0 %v2488
    %3378 = vmatprep.subr.bf16.mxu0 %v2497
    %3379 = vmatpush1.bf16.msra.mxu0 %v2496
    %3380 = vmatprep.subr.bf16.mxu0 %v2505
    %3381 = vmatpush1.bf16.msra.mxu0 %v2504
    %3382 = vmatprep.subr.bf16.mxu0 %v2513
    %3383 = vmatpush1.bf16.msra.mxu0 %v2512
    %3384 = vmatprep.mubr.bf16.mxu0 %v1333
    %3385 = vmatmul.mubr.bf16.gmra.mrb[0].mxu0 %v1332
    %v3386 = vpop.f32.mrb[0].mxu0
    %v3387 = vadd.f32 0.0, %v3386
    %v3388 = vpop.f32.mrb[0].mxu0
    %v3389 = vadd.f32 0.0, %v3388
    %v3390 = vpop.f32.mrb[0].mxu0
    %v3391 = vadd.f32 0.0, %v3390
    %v3392 = vpop.f32.mrb[0].mxu0
    %v3393 = vadd.f32 0.0, %v3392
    %3394 = vmatprep.mubr.bf16.mxu0 %v1337
    %3395 = vmatmul.mubr.bf16.gmra.mrb[0].mxu0 %v1336
    %v3396 = vpop.f32.mrb[0].mxu0
    %v3397 = vadd.f32 0.0, %v3396
    %v3398 = vpop.f32.mrb[0].mxu0
    %v3399 = vadd.f32 0.0, %v3398
    %v3400 = vpop.f32.mrb[0].mxu0
    %v3401 = vadd.f32 0.0, %v3400
    %v3402 = vpop.f32.mrb[0].mxu0
    %v3403 = vadd.f32 0.0, %v3402
    %3404 = vmatprep.mubr.bf16.mxu0 %v1341
    %3405 = vmatmul.mubr.bf16.gmra.mrb[0].mxu0 %v1340
    %v3406 = vpop.f32.mrb[0].mxu0
    %v3407 = vadd.f32 0.0, %v3406
    %v3408 = vpop.f32.mrb[0].mxu0
    %v3409 = vadd.f32 0.0, %v3408
    %v3410 = vpop.f32.mrb[0].mxu0
    %v3411 = vadd.f32 0.0, %v3410
    %v3412 = vpop.f32.mrb[0].mxu0
    %v3413 = vadd.f32 0.0, %v3412
    %3414 = vmatprep.mubr.bf16.mxu0 %v1345
    %3415 = vmatmul.mubr.bf16.gmra.mrb[0].mxu0 %v1344
    %v3416 = vpop.f32.mrb[0].mxu0
    %v3417 = vadd.f32 0.0, %v3416
    %v3418 = vpop.f32.mrb[0].mxu0
    %v3419 = vadd.f32 0.0, %v3418
    %v3420 = vpop.f32.mrb[0].mxu0
    %v3421 = vadd.f32 0.0, %v3420
    %v3422 = vpop.f32.mrb[0].mxu0
    %v3423 = vadd.f32 0.0, %v3422
    %3424 = vmatprep.mubr.bf16.mxu0 %v1349
    %3425 = vmatmul.mubr.bf16.gmra.mrb[0].mxu0 %v1348
    %v3426 = vpop.f32.mrb[0].mxu0
    %v3427 = vadd.f32 0.0, %v3426
    %v3428 = vpop.f32.mrb[0].mxu0
    %v3429 = vadd.f32 0.0, %v3428
    %v3430 = vpop.f32.mrb[0].mxu0
    %v3431 = vadd.f32 0.0, %v3430
    %v3432 = vpop.f32.mrb[0].mxu0
    %v3433 = vadd.f32 0.0, %v3432
    %3434 = vmatprep.mubr.bf16.mxu0 %v1353
    %3435 = vmatmul.mubr.bf16.gmra.mrb[0].mxu0 %v1352
    %v3436 = vpop.f32.mrb[0].mxu0
    %v3437 = vadd.f32 0.0, %v3436
    %v3438 = vpop.f32.mrb[0].mxu0
    %v3439 = vadd.f32 0.0, %v3438
    %v3440 = vpop.f32.mrb[0].mxu0
    %v3441 = vadd.f32 0.0, %v3440
    %v3442 = vpop.f32.mrb[0].mxu0
    %v3443 = vadd.f32 0.0, %v3442
    %3444 = vmatprep.mubr.bf16.mxu0 %v1357
    %3445 = vmatmul.mubr.bf16.gmra.mrb[0].mxu0 %v1356
    %v3446 = vpop.f32.mrb[0].mxu0
    %v3447 = vadd.f32 0.0, %v3446
    %v3448 = vpop.f32.mrb[0].mxu0
    %v3449 = vadd.f32 0.0, %v3448
    %v3450 = vpop.f32.mrb[0].mxu0
    %v3451 = vadd.f32 0.0, %v3450
    %v3452 = vpop.f32.mrb[0].mxu0
    %v3453 = vadd.f32 0.0, %v3452
    %3454 = vmatprep.mubr.bf16.mxu0 %v1361
    %3455 = vmatmul.mubr.bf16.gmra.mrb[0].mxu0 %v1360
    %v3456 = vpop.f32.mrb[0].mxu0
    %v3457 = vadd.f32 0.0, %v3456
    %v3458 = vpop.f32.mrb[0].mxu0
    %v3459 = vadd.f32 0.0, %v3458
    %v3460 = vpop.f32.mrb[0].mxu0
    %v3461 = vadd.f32 0.0, %v3460
    %v3462 = vpop.f32.mrb[0].mxu0
    %v3463 = vadd.f32 0.0, %v3462
    %3464 = vdwg.mxu0
    %3465 = vmatprep.subr.bf16.mxu0 %v2521
    %3466 = vmatpush1.bf16.msra.mxu0 %v2520
    %3467 = vmatprep.subr.bf16.mxu0 %v2529
    %3468 = vmatpush1.bf16.msra.mxu0 %v2528
    %3469 = vmatprep.subr.bf16.mxu0 %v2537
    %3470 = vmatpush1.bf16.msra.mxu0 %v2536
    %3471 = vmatprep.subr.bf16.mxu0 %v2545
    %3472 = vmatpush1.bf16.msra.mxu0 %v2544
    %3473 = vmatprep.subr.bf16.mxu0 %v2553
    %3474 = vmatpush1.bf16.msra.mxu0 %v2552
    %3475 = vmatprep.subr.bf16.mxu0 %v2561
    %3476 = vmatpush1.bf16.msra.mxu0 %v2560
    %3477 = vmatprep.subr.bf16.mxu0 %v2569
    %3478 = vmatpush1.bf16.msra.mxu0 %v2568
    %3479 = vmatprep.subr.bf16.mxu0 %v2577
    %3480 = vmatpush1.bf16.msra.mxu0 %v2576
    %3481 = vmatprep.subr.bf16.mxu0 %v2585
    %3482 = vmatpush1.bf16.msra.mxu0 %v2584
    %3483 = vmatprep.subr.bf16.mxu0 %v2593
    %3484 = vmatpush1.bf16.msra.mxu0 %v2592
    %3485 = vmatprep.subr.bf16.mxu0 %v2601
    %3486 = vmatpush1.bf16.msra.mxu0 %v2600
    %3487 = vmatprep.subr.bf16.mxu0 %v2609
    %3488 = vmatpush1.bf16.msra.mxu0 %v2608
    %3489 = vmatprep.subr.bf16.mxu0 %v2617
    %3490 = vmatpush1.bf16.msra.mxu0 %v2616
    %3491 = vmatprep.subr.bf16.mxu0 %v2625
    %3492 = vmatpush1.bf16.msra.mxu0 %v2624
    %3493 = vmatprep.subr.bf16.mxu0 %v2633
    %3494 = vmatpush1.bf16.msra.mxu0 %v2632
    %3495 = vmatprep.subr.bf16.mxu0 %v2641
    %3496 = vmatpush1.bf16.msra.mxu0 %v2640
    %3497 = vmatprep.mubr.bf16.mxu0 %v1335
    %3498 = vmatmul.mubr.bf16.gmra.mrb[0].mxu0 %v1334
    %v3499 = vpop.f32.mrb[0].mxu0
    %v3500 = vadd.f32 %v3387, %v3499
    %v3501 = vpop.f32.mrb[0].mxu0
    %v3502 = vadd.f32 %v3389, %v3501
    %v3503 = vpop.f32.mrb[0].mxu0
    %v3504 = vadd.f32 %v3391, %v3503
    %v3505 = vpop.f32.mrb[0].mxu0
    %v3506 = vadd.f32 %v3393, %v3505
    %3507 = vmatprep.mubr.bf16.mxu0 %v1339
    %3508 = vmatmul.mubr.bf16.gmra.mrb[0].mxu0 %v1338
    %v3509 = vpop.f32.mrb[0].mxu0
    %v3510 = vadd.f32 %v3397, %v3509
    %v3511 = vpop.f32.mrb[0].mxu0
    %v3512 = vadd.f32 %v3399, %v3511
    %v3513 = vpop.f32.mrb[0].mxu0
    %v3514 = vadd.f32 %v3401, %v3513
    %v3515 = vpop.f32.mrb[0].mxu0
    %v3516 = vadd.f32 %v3403, %v3515
    %3517 = vmatprep.mubr.bf16.mxu0 %v1343
    %3518 = vmatmul.mubr.bf16.gmra.mrb[0].mxu0 %v1342
    %v3519 = vpop.f32.mrb[0].mxu0
    %v3520 = vadd.f32 %v3407, %v3519
    %v3521 = vpop.f32.mrb[0].mxu0
    %v3522 = vadd.f32 %v3409, %v3521
    %v3523 = vpop.f32.mrb[0].mxu0
    %v3524 = vadd.f32 %v3411, %v3523
    %v3525 = vpop.f32.mrb[0].mxu0
    %v3526 = vadd.f32 %v3413, %v3525
    %3527 = vmatprep.mubr.bf16.mxu0 %v1347
    %3528 = vmatmul.mubr.bf16.gmra.mrb[0].mxu0 %v1346
    %v3529 = vpop.f32.mrb[0].mxu0
    %v3530 = vadd.f32 %v3417, %v3529
    %v3531 = vpop.f32.mrb[0].mxu0
    %v3532 = vadd.f32 %v3419, %v3531
    %v3533 = vpop.f32.mrb[0].mxu0
    %v3534 = vadd.f32 %v3421, %v3533
    %v3535 = vpop.f32.mrb[0].mxu0
    %v3536 = vadd.f32 %v3423, %v3535
    %3537 = vmatprep.mubr.bf16.mxu0 %v1351
    %3538 = vmatmul.mubr.bf16.gmra.mrb[0].mxu0 %v1350
    %v3539 = vpop.f32.mrb[0].mxu0
    %v3540 = vadd.f32 %v3427, %v3539
    %v3541 = vpop.f32.mrb[0].mxu0
    %v3542 = vadd.f32 %v3429, %v3541
    %v3543 = vpop.f32.mrb[0].mxu0
    %v3544 = vadd.f32 %v3431, %v3543
    %v3545 = vpop.f32.mrb[0].mxu0
    %v3546 = vadd.f32 %v3433, %v3545
    %3547 = vmatprep.mubr.bf16.mxu0 %v1355
    %3548 = vmatmul.mubr.bf16.gmra.mrb[0].mxu0 %v1354
    %v3549 = vpop.f32.mrb[0].mxu0
    %v3550 = vadd.f32 %v3437, %v3549
    %v3551 = vpop.f32.mrb[0].mxu0
    %v3552 = vadd.f32 %v3439, %v3551
    %v3553 = vpop.f32.mrb[0].mxu0
    %v3554 = vadd.f32 %v3441, %v3553
    %v3555 = vpop.f32.mrb[0].mxu0
    %v3556 = vadd.f32 %v3443, %v3555
    %3557 = vmatprep.mubr.bf16.mxu0 %v1359
    %3558 = vmatmul.mubr.bf16.gmra.mrb[0].mxu0 %v1358
    %v3559 = vpop.f32.mrb[0].mxu0
    %v3560 = vadd.f32 %v3447, %v3559
    %v3561 = vpop.f32.mrb[0].mxu0
    %v3562 = vadd.f32 %v3449, %v3561
    %v3563 = vpop.f32.mrb[0].mxu0
    %v3564 = vadd.f32 %v3451, %v3563
    %v3565 = vpop.f32.mrb[0].mxu0
    %v3566 = vadd.f32 %v3453, %v3565
    %3567 = vmatprep.mubr.bf16.mxu0 %v1363
    %3568 = vmatmul.mubr.bf16.gmra.mrb[0].mxu0 %v1362
    %v3569 = vpop.f32.mrb[0].mxu0
    %v3570 = vadd.f32 %v3457, %v3569
    %v3571 = vpop.f32.mrb[0].mxu0
    %v3572 = vadd.f32 %v3459, %v3571
    %v3573 = vpop.f32.mrb[0].mxu0
    %v3574 = vadd.f32 %v3461, %v3573
    %v3575 = vpop.f32.mrb[0].mxu0
    %v3576 = vadd.f32 %v3463, %v3575
    %3577 = vdwg.mxu0
    %3578 = vmatprep.subr.bf16.mxu0 %v2395
    %3579 = vmatpush1.bf16.msra.mxu0 %v2394
    %3580 = vmatprep.subr.bf16.mxu0 %v2403
    %3581 = vmatpush1.bf16.msra.mxu0 %v2402
    %3582 = vmatprep.subr.bf16.mxu0 %v2411
    %3583 = vmatpush1.bf16.msra.mxu0 %v2410
    %3584 = vmatprep.subr.bf16.mxu0 %v2419
    %3585 = vmatpush1.bf16.msra.mxu0 %v2418
    %3586 = vmatprep.subr.bf16.mxu0 %v2427
    %3587 = vmatpush1.bf16.msra.mxu0 %v2426
    %3588 = vmatprep.subr.bf16.mxu0 %v2435
    %3589 = vmatpush1.bf16.msra.mxu0 %v2434
    %3590 = vmatprep.subr.bf16.mxu0 %v2443
    %3591 = vmatpush1.bf16.msra.mxu0 %v2442
    %3592 = vmatprep.subr.bf16.mxu0 %v2451
    %3593 = vmatpush1.bf16.msra.mxu0 %v2450
    %3594 = vmatprep.subr.bf16.mxu0 %v2459
    %3595 = vmatpush1.bf16.msra.mxu0 %v2458
    %3596 = vmatprep.subr.bf16.mxu0 %v2467
    %3597 = vmatpush1.bf16.msra.mxu0 %v2466
    %3598 = vmatprep.subr.bf16.mxu0 %v2475
    %3599 = vmatpush1.bf16.msra.mxu0 %v2474
    %3600 = vmatprep.subr.bf16.mxu0 %v2483
    %3601 = vmatpush1.bf16.msra.mxu0 %v2482
    %3602 = vmatprep.subr.bf16.mxu0 %v2491
    %3603 = vmatpush1.bf16.msra.mxu0 %v2490
    %3604 = vmatprep.subr.bf16.mxu0 %v2499
    %3605 = vmatpush1.bf16.msra.mxu0 %v2498
    %3606 = vmatprep.subr.bf16.mxu0 %v2507
    %3607 = vmatpush1.bf16.msra.mxu0 %v2506
    %3608 = vmatprep.subr.bf16.mxu0 %v2515
    %3609 = vmatpush1.bf16.msra.mxu0 %v2514
    %3610 = vmatprep.mubr.bf16.mxu0 %v1333
    %3611 = vmatmul.mubr.bf16.gmra.mrb[0].mxu0 %v1332
    %v3612 = vpop.f32.mrb[0].mxu0
    %v3613 = vadd.f32 0.0, %v3612
    %v3614 = vpop.f32.mrb[0].mxu0
    %v3615 = vadd.f32 0.0, %v3614
    %v3616 = vpop.f32.mrb[0].mxu0
    %v3617 = vadd.f32 0.0, %v3616
    %v3618 = vpop.f32.mrb[0].mxu0
    %v3619 = vadd.f32 0.0, %v3618
    %3620 = vmatprep.mubr.bf16.mxu0 %v1337
    %3621 = vmatmul.mubr.bf16.gmra.mrb[0].mxu0 %v1336
    %v3622 = vpop.f32.mrb[0].mxu0
    %v3623 = vadd.f32 0.0, %v3622
    %v3624 = vpop.f32.mrb[0].mxu0
    %v3625 = vadd.f32 0.0, %v3624
    %v3626 = vpop.f32.mrb[0].mxu0
    %v3627 = vadd.f32 0.0, %v3626
    %v3628 = vpop.f32.mrb[0].mxu0
    %v3629 = vadd.f32 0.0, %v3628
    %3630 = vmatprep.mubr.bf16.mxu0 %v1341
    %3631 = vmatmul.mubr.bf16.gmra.mrb[0].mxu0 %v1340
    %v3632 = vpop.f32.mrb[0].mxu0
    %v3633 = vadd.f32 0.0, %v3632
    %v3634 = vpop.f32.mrb[0].mxu0
    %v3635 = vadd.f32 0.0, %v3634
    %v3636 = vpop.f32.mrb[0].mxu0
    %v3637 = vadd.f32 0.0, %v3636
    %v3638 = vpop.f32.mrb[0].mxu0
    %v3639 = vadd.f32 0.0, %v3638
    %3640 = vmatprep.mubr.bf16.mxu0 %v1345
    %3641 = vmatmul.mubr.bf16.gmra.mrb[0].mxu0 %v1344
    %v3642 = vpop.f32.mrb[0].mxu0
    %v3643 = vadd.f32 0.0, %v3642
    %v3644 = vpop.f32.mrb[0].mxu0
    %v3645 = vadd.f32 0.0, %v3644
    %v3646 = vpop.f32.mrb[0].mxu0
    %v3647 = vadd.f32 0.0, %v3646
    %v3648 = vpop.f32.mrb[0].mxu0
    %v3649 = vadd.f32 0.0, %v3648
    %3650 = vmatprep.mubr.bf16.mxu0 %v1349
    %3651 = vmatmul.mubr.bf16.gmra.mrb[0].mxu0 %v1348
    %v3652 = vpop.f32.mrb[0].mxu0
    %v3653 = vadd.f32 0.0, %v3652
    %v3654 = vpop.f32.mrb[0].mxu0
    %v3655 = vadd.f32 0.0, %v3654
    %v3656 = vpop.f32.mrb[0].mxu0
    %v3657 = vadd.f32 0.0, %v3656
    %v3658 = vpop.f32.mrb[0].mxu0
    %v3659 = vadd.f32 0.0, %v3658
    %3660 = vmatprep.mubr.bf16.mxu0 %v1353
    %3661 = vmatmul.mubr.bf16.gmra.mrb[0].mxu0 %v1352
    %v3662 = vpop.f32.mrb[0].mxu0
    %v3663 = vadd.f32 0.0, %v3662
    %v3664 = vpop.f32.mrb[0].mxu0
    %v3665 = vadd.f32 0.0, %v3664
    %v3666 = vpop.f32.mrb[0].mxu0
    %v3667 = vadd.f32 0.0, %v3666
    %v3668 = vpop.f32.mrb[0].mxu0
    %v3669 = vadd.f32 0.0, %v3668
    %3670 = vmatprep.mubr.bf16.mxu0 %v1357
    %3671 = vmatmul.mubr.bf16.gmra.mrb[0].mxu0 %v1356
    %v3672 = vpop.f32.mrb[0].mxu0
    %v3673 = vadd.f32 0.0, %v3672
    %v3674 = vpop.f32.mrb[0].mxu0
    %v3675 = vadd.f32 0.0, %v3674
    %v3676 = vpop.f32.mrb[0].mxu0
    %v3677 = vadd.f32 0.0, %v3676
    %v3678 = vpop.f32.mrb[0].mxu0
    %v3679 = vadd.f32 0.0, %v3678
    %3680 = vmatprep.mubr.bf16.mxu0 %v1361
    %3681 = vmatmul.mubr.bf16.gmra.mrb[0].mxu0 %v1360
    %v3682 = vpop.f32.mrb[0].mxu0
    %v3683 = vadd.f32 0.0, %v3682
    %v3684 = vpop.f32.mrb[0].mxu0
    %v3685 = vadd.f32 0.0, %v3684
    %v3686 = vpop.f32.mrb[0].mxu0
    %v3687 = vadd.f32 0.0, %v3686
    %v3688 = vpop.f32.mrb[0].mxu0
    %v3689 = vadd.f32 0.0, %v3688
    %3690 = vdwg.mxu0
    %3691 = vmatprep.subr.bf16.mxu0 %v2523
    %3692 = vmatpush1.bf16.msra.mxu0 %v2522
    %3693 = vmatprep.subr.bf16.mxu0 %v2531
    %3694 = vmatpush1.bf16.msra.mxu0 %v2530
    %3695 = vmatprep.subr.bf16.mxu0 %v2539
    %3696 = vmatpush1.bf16.msra.mxu0 %v2538
    %3697 = vmatprep.subr.bf16.mxu0 %v2547
    %3698 = vmatpush1.bf16.msra.mxu0 %v2546
    %3699 = vmatprep.subr.bf16.mxu0 %v2555
    %3700 = vmatpush1.bf16.msra.mxu0 %v2554
    %3701 = vmatprep.subr.bf16.mxu0 %v2563
    %3702 = vmatpush1.bf16.msra.mxu0 %v2562
    %3703 = vmatprep.subr.bf16.mxu0 %v2571
    %3704 = vmatpush1.bf16.msra.mxu0 %v2570
    %3705 = vmatprep.subr.bf16.mxu0 %v2579
    %3706 = vmatpush1.bf16.msra.mxu0 %v2578
    %3707 = vmatprep.subr.bf16.mxu0 %v2587
    %3708 = vmatpush1.bf16.msra.mxu0 %v2586
    %3709 = vmatprep.subr.bf16.mxu0 %v2595
    %3710 = vmatpush1.bf16.msra.mxu0 %v2594
    %3711 = vmatprep.subr.bf16.mxu0 %v2603
    %3712 = vmatpush1.bf16.msra.mxu0 %v2602
    %3713 = vmatprep.subr.bf16.mxu0 %v2611
    %3714 = vmatpush1.bf16.msra.mxu0 %v2610
    %3715 = vmatprep.subr.bf16.mxu0 %v2619
    %3716 = vmatpush1.bf16.msra.mxu0 %v2618
    %3717 = vmatprep.subr.bf16.mxu0 %v2627
    %3718 = vmatpush1.bf16.msra.mxu0 %v2626
    %3719 = vmatprep.subr.bf16.mxu0 %v2635
    %3720 = vmatpush1.bf16.msra.mxu0 %v2634
    %3721 = vmatprep.subr.bf16.mxu0 %v2643
    %3722 = vmatpush1.bf16.msra.mxu0 %v2642
    %3723 = vmatprep.mubr.bf16.mxu0 %v1335
    %3724 = vmatmul.mubr.bf16.gmra.mrb[0].mxu0 %v1334
    %v3725 = vpop.f32.mrb[0].mxu0
    %v3726 = vadd.f32 %v3613, %v3725
    %v3727 = vpop.f32.mrb[0].mxu0
    %v3728 = vadd.f32 %v3615, %v3727
    %v3729 = vpop.f32.mrb[0].mxu0
    %v3730 = vadd.f32 %v3617, %v3729
    %v3731 = vpop.f32.mrb[0].mxu0
    %v3732 = vadd.f32 %v3619, %v3731
    %3733 = vmatprep.mubr.bf16.mxu0 %v1339
    %3734 = vmatmul.mubr.bf16.gmra.mrb[0].mxu0 %v1338
    %v3735 = vpop.f32.mrb[0].mxu0
    %v3736 = vadd.f32 %v3623, %v3735
    %v3737 = vpop.f32.mrb[0].mxu0
    %v3738 = vadd.f32 %v3625, %v3737
    %v3739 = vpop.f32.mrb[0].mxu0
    %v3740 = vadd.f32 %v3627, %v3739
    %v3741 = vpop.f32.mrb[0].mxu0
    %v3742 = vadd.f32 %v3629, %v3741
    %3743 = vmatprep.mubr.bf16.mxu0 %v1343
    %3744 = vmatmul.mubr.bf16.gmra.mrb[0].mxu0 %v1342
    %v3745 = vpop.f32.mrb[0].mxu0
    %v3746 = vadd.f32 %v3633, %v3745
    %v3747 = vpop.f32.mrb[0].mxu0
    %v3748 = vadd.f32 %v3635, %v3747
    %v3749 = vpop.f32.mrb[0].mxu0
    %v3750 = vadd.f32 %v3637, %v3749
    %v3751 = vpop.f32.mrb[0].mxu0
    %v3752 = vadd.f32 %v3639, %v3751
    %3753 = vmatprep.mubr.bf16.mxu0 %v1347
    %3754 = vmatmul.mubr.bf16.gmra.mrb[0].mxu0 %v1346
    %v3755 = vpop.f32.mrb[0].mxu0
    %v3756 = vadd.f32 %v3643, %v3755
    %v3757 = vpop.f32.mrb[0].mxu0
    %v3758 = vadd.f32 %v3645, %v3757
    %v3759 = vpop.f32.mrb[0].mxu0
    %v3760 = vadd.f32 %v3647, %v3759
    %v3761 = vpop.f32.mrb[0].mxu0
    %v3762 = vadd.f32 %v3649, %v3761
    %3763 = vmatprep.mubr.bf16.mxu0 %v1351
    %3764 = vmatmul.mubr.bf16.gmra.mrb[0].mxu0 %v1350
    %v3765 = vpop.f32.mrb[0].mxu0
    %v3766 = vadd.f32 %v3653, %v3765
    %v3767 = vpop.f32.mrb[0].mxu0
    %v3768 = vadd.f32 %v3655, %v3767
    %v3769 = vpop.f32.mrb[0].mxu0
    %v3770 = vadd.f32 %v3657, %v3769
    %v3771 = vpop.f32.mrb[0].mxu0
    %v3772 = vadd.f32 %v3659, %v3771
    %3773 = vmatprep.mubr.bf16.mxu0 %v1355
    %3774 = vmatmul.mubr.bf16.gmra.mrb[0].mxu0 %v1354
    %v3775 = vpop.f32.mrb[0].mxu0
    %v3776 = vadd.f32 %v3663, %v3775
    %v3777 = vpop.f32.mrb[0].mxu0
    %v3778 = vadd.f32 %v3665, %v3777
    %v3779 = vpop.f32.mrb[0].mxu0
    %v3780 = vadd.f32 %v3667, %v3779
    %v3781 = vpop.f32.mrb[0].mxu0
    %v3782 = vadd.f32 %v3669, %v3781
    %3783 = vmatprep.mubr.bf16.mxu0 %v1359
    %3784 = vmatmul.mubr.bf16.gmra.mrb[0].mxu0 %v1358
    %v3785 = vpop.f32.mrb[0].mxu0
    %v3786 = vadd.f32 %v3673, %v3785
    %v3787 = vpop.f32.mrb[0].mxu0
    %v3788 = vadd.f32 %v3675, %v3787
    %v3789 = vpop.f32.mrb[0].mxu0
    %v3790 = vadd.f32 %v3677, %v3789
    %v3791 = vpop.f32.mrb[0].mxu0
    %v3792 = vadd.f32 %v3679, %v3791
    %3793 = vmatprep.mubr.bf16.mxu0 %v1363
    %3794 = vmatmul.mubr.bf16.gmra.mrb[0].mxu0 %v1362
    %v3795 = vpop.f32.mrb[0].mxu0
    %v3796 = vadd.f32 %v3683, %v3795
    %v3797 = vpop.f32.mrb[0].mxu0
    %v3798 = vadd.f32 %v3685, %v3797
    %v3799 = vpop.f32.mrb[0].mxu0
    %v3800 = vadd.f32 %v3687, %v3799
    %v3801 = vpop.f32.mrb[0].mxu0
    %v3802 = vadd.f32 %v3689, %v3801
    %3803 = vdwg.mxu0
    %v3804 = vpack.c.bf16 %v3052, %v3048
    %v3805 = vpack.c.bf16 %v3054, %v3050
    %v3806 = vpack.c.bf16 %v3278, %v3274
    %v3807 = vpack.c.bf16 %v3280, %v3276
    %v3808 = vpack.c.bf16 %v3504, %v3500
    %v3809 = vpack.c.bf16 %v3506, %v3502
    %v3810 = vpack.c.bf16 %v3730, %v3726
    %v3811 = vpack.c.bf16 %v3732, %v3728
    %v3812 = vpack.c.bf16 %v3062, %v3058
    %v3813 = vpack.c.bf16 %v3064, %v3060
    %v3814 = vpack.c.bf16 %v3288, %v3284
    %v3815 = vpack.c.bf16 %v3290, %v3286
    %v3816 = vpack.c.bf16 %v3514, %v3510
    %v3817 = vpack.c.bf16 %v3516, %v3512
    %v3818 = vpack.c.bf16 %v3740, %v3736
    %v3819 = vpack.c.bf16 %v3742, %v3738
    %v3820 = vpack.c.bf16 %v3072, %v3068
    %v3821 = vpack.c.bf16 %v3074, %v3070
    %v3822 = vpack.c.bf16 %v3298, %v3294
    %v3823 = vpack.c.bf16 %v3300, %v3296
    %v3824 = vpack.c.bf16 %v3524, %v3520
    %v3825 = vpack.c.bf16 %v3526, %v3522
    %v3826 = vpack.c.bf16 %v3750, %v3746
    %v3827 = vpack.c.bf16 %v3752, %v3748
    %v3828 = vpack.c.bf16 %v3082, %v3078
    %v3829 = vpack.c.bf16 %v3084, %v3080
    %v3830 = vpack.c.bf16 %v3308, %v3304
    %v3831 = vpack.c.bf16 %v3310, %v3306
    %v3832 = vpack.c.bf16 %v3534, %v3530
    %v3833 = vpack.c.bf16 %v3536, %v3532
    %v3834 = vpack.c.bf16 %v3760, %v3756
    %v3835 = vpack.c.bf16 %v3762, %v3758
    %v3836 = vpack.c.bf16 %v3092, %v3088
    %v3837 = vpack.c.bf16 %v3094, %v3090
    %v3838 = vpack.c.bf16 %v3318, %v3314
    %v3839 = vpack.c.bf16 %v3320, %v3316
    %v3840 = vpack.c.bf16 %v3544, %v3540
    %v3841 = vpack.c.bf16 %v3546, %v3542
    %v3842 = vpack.c.bf16 %v3770, %v3766
    %v3843 = vpack.c.bf16 %v3772, %v3768
    %v3844 = vpack.c.bf16 %v3102, %v3098
    %v3845 = vpack.c.bf16 %v3104, %v3100
    %v3846 = vpack.c.bf16 %v3328, %v3324
    %v3847 = vpack.c.bf16 %v3330, %v3326
    %v3848 = vpack.c.bf16 %v3554, %v3550
    %v3849 = vpack.c.bf16 %v3556, %v3552
    %v3850 = vpack.c.bf16 %v3780, %v3776
    %v3851 = vpack.c.bf16 %v3782, %v3778
    %v3852 = vpack.c.bf16 %v3112, %v3108
    %v3853 = vpack.c.bf16 %v3114, %v3110
    %v3854 = vpack.c.bf16 %v3338, %v3334
    %v3855 = vpack.c.bf16 %v3340, %v3336
    %v3856 = vpack.c.bf16 %v3564, %v3560
    %v3857 = vpack.c.bf16 %v3566, %v3562
    %v3858 = vpack.c.bf16 %v3790, %v3786
    %v3859 = vpack.c.bf16 %v3792, %v3788
    %v3860 = vpack.c.bf16 %v3122, %v3118
    %v3861 = vpack.c.bf16 %v3124, %v3120
    %v3862 = vpack.c.bf16 %v3348, %v3344
    %v3863 = vpack.c.bf16 %v3350, %v3346
    %v3864 = vpack.c.bf16 %v3574, %v3570
    %v3865 = vpack.c.bf16 %v3576, %v3572
    %v3866 = vpack.c.bf16 %v3800, %v3796
    %v3867 = vpack.c.bf16 %v3802, %v3798
    %v3868 = vld [vmem:[#allocation13] sm:$0xff]
    %v3870 = vcombine.high %v3868, %v3868
    %v3872 = vunpack.c.l.s4 1966171168
    %v3873 = vunpack.c.0.s8 %v3872
    %v3874 = vlaneseq
    %v3875 = vshrl.u32 %v3874, 7
    %v3876 = vsub.s32 %v3873, %v3875
    %v3877 = vrot.slane %v3868, %v3876
    %v3879 = vunpack.c.l.s4 1966171168
    %v3880 = vunpack.c.0.s8 %v3879
    %v3881 = vlaneseq
    %v3882 = vshrl.u32 %v3881, 7
    %v3883 = vsub.s32 %v3880, %v3882
    %v3884 = vrot.slane %v3870, %v3883
    %v3885 = vcombine.high %v3877, %v3877
    %v3886 = vcombine.high %v3884, %v3884
    %v3888 = vunpack.c.l.s4 1966171168
    %v3889 = vunpack.c.0.s8 %v3888
    %v3890 = vlaneseq
    %v3891 = vshrl.u32 %v3890, 7
    %v3892 = vsub.s32 %v3889, %v3891
    %v3893 = vrot.slane %v3877, %v3892
    %v3895 = vunpack.c.l.s4 1966171168
    %v3896 = vunpack.c.0.s8 %v3895
    %v3897 = vlaneseq
    %v3898 = vshrl.u32 %v3897, 7
    %v3899 = vsub.s32 %v3896, %v3898
    %v3900 = vrot.slane %v3884, %v3899
    %v3902 = vunpack.c.l.s4 1966171168
    %v3903 = vunpack.c.0.s8 %v3902
    %v3904 = vlaneseq
    %v3905 = vshrl.u32 %v3904, 7
    %v3906 = vsub.s32 %v3903, %v3905
    %v3907 = vrot.slane %v3885, %v3906
    %v3909 = vunpack.c.l.s4 1966171168
    %v3910 = vunpack.c.0.s8 %v3909
    %v3911 = vlaneseq
    %v3912 = vshrl.u32 %v3911, 7
    %v3913 = vsub.s32 %v3910, %v3912
    %v3914 = vrot.slane %v3886, %v3913
    %v3915 = vcombine.high %v3893, %v3893
    %v3916 = vcombine.high %v3900, %v3900
    %v3917 = vcombine.high %v3907, %v3907
    %v3918 = vcombine.high %v3914, %v3914
    %v3920 = vpack.i.b16 %v3893, %v3893
    %v3922 = vlaneseq
    %v3923 = vshrl.u32 %v3922, 7
    %v3924 = vsub.s32 0, %v3923
    %v3925 = vrot.slane %v3920, %v3924
    %v3927 = vpack.i.b16 %v3907, %v3907
    %v3929 = vlaneseq
    %v3930 = vshrl.u32 %v3929, 7
    %v3931 = vsub.s32 0, %v3930
    %v3932 = vrot.slane %v3927, %v3931
    %v3934 = vpack.i.b16 %v3915, %v3915
    %v3936 = vlaneseq
    %v3937 = vshrl.u32 %v3936, 7
    %v3938 = vsub.s32 0, %v3937
    %v3939 = vrot.slane %v3934, %v3938
    %v3941 = vpack.i.b16 %v3917, %v3917
    %v3943 = vlaneseq
    %v3944 = vshrl.u32 %v3943, 7
    %v3945 = vsub.s32 0, %v3944
    %v3946 = vrot.slane %v3941, %v3945
    %v3948 = vpack.i.b16 %v3900, %v3900
    %v3950 = vlaneseq
    %v3951 = vshrl.u32 %v3950, 7
    %v3952 = vsub.s32 0, %v3951
    %v3953 = vrot.slane %v3948, %v3952
    %v3955 = vpack.i.b16 %v3914, %v3914
    %v3957 = vlaneseq
    %v3958 = vshrl.u32 %v3957, 7
    %v3959 = vsub.s32 0, %v3958
    %v3960 = vrot.slane %v3955, %v3959
    %v3962 = vpack.i.b16 %v3916, %v3916
    %v3964 = vlaneseq
    %v3965 = vshrl.u32 %v3964, 7
    %v3966 = vsub.s32 0, %v3965
    %v3967 = vrot.slane %v3962, %v3966
    %v3969 = vpack.i.b16 %v3918, %v3918
    %v3971 = vlaneseq
    %v3972 = vshrl.u32 %v3971, 7
    %v3973 = vsub.s32 0, %v3972
    %v3974 = vrot.slane %v3969, %v3973
    %v3975 = vadd.bf16 %v3804, %v3925
    %v3976 = vadd.bf16 %v3805, %v3932
    %v3977 = vadd.bf16 %v3806, %v3939
    %v3978 = vadd.bf16 %v3807, %v3946
    %v3979 = vadd.bf16 %v3808, %v3953
    %v3980 = vadd.bf16 %v3809, %v3960
    %v3981 = vadd.bf16 %v3810, %v3967
    %v3982 = vadd.bf16 %v3811, %v3974
    %v3983 = vadd.bf16 %v3812, %v3925
    %v3984 = vadd.bf16 %v3813, %v3932
    %v3985 = vadd.bf16 %v3814, %v3939
    %v3986 = vadd.bf16 %v3815, %v3946
    %v3987 = vadd.bf16 %v3816, %v3953
    %v3988 = vadd.bf16 %v3817, %v3960
    %v3989 = vadd.bf16 %v3818, %v3967
    %v3990 = vadd.bf16 %v3819, %v3974
    %v3991 = vadd.bf16 %v3820, %v3925
    %v3992 = vadd.bf16 %v3821, %v3932
    %v3993 = vadd.bf16 %v3822, %v3939
    %v3994 = vadd.bf16 %v3823, %v3946
    %v3995 = vadd.bf16 %v3824, %v3953
    %v3996 = vadd.bf16 %v3825, %v3960
    %v3997 = vadd.bf16 %v3826, %v3967
    %v3998 = vadd.bf16 %v3827, %v3974
    %v3999 = vadd.bf16 %v3828, %v3925
    %v4000 = vadd.bf16 %v3829, %v3932
    %v4001 = vadd.bf16 %v3830, %v3939
    %v4002 = vadd.bf16 %v3831, %v3946
    %v4003 = vadd.bf16 %v3832, %v3953
    %v4004 = vadd.bf16 %v3833, %v3960
    %v4005 = vadd.bf16 %v3834, %v3967
    %v4006 = vadd.bf16 %v3835, %v3974
    %v4007 = vadd.bf16 %v3836, %v3925
    %v4008 = vadd.bf16 %v3837, %v3932
    %v4009 = vadd.bf16 %v3838, %v3939
    %v4010 = vadd.bf16 %v3839, %v3946
    %v4011 = vadd.bf16 %v3840, %v3953
    %v4012 = vadd.bf16 %v3841, %v3960
    %v4013 = vadd.bf16 %v3842, %v3967
    %v4014 = vadd.bf16 %v3843, %v3974
    %v4015 = vadd.bf16 %v3844, %v3925
    %v4016 = vadd.bf16 %v3845, %v3932
    %v4017 = vadd.bf16 %v3846, %v3939
    %v4018 = vadd.bf16 %v3847, %v3946
    %v4019 = vadd.bf16 %v3848, %v3953
    %v4020 = vadd.bf16 %v3849, %v3960
    %v4021 = vadd.bf16 %v3850, %v3967
    %v4022 = vadd.bf16 %v3851, %v3974
    %v4023 = vadd.bf16 %v3852, %v3925
    %v4024 = vadd.bf16 %v3853, %v3932
    %v4025 = vadd.bf16 %v3854, %v3939
    %v4026 = vadd.bf16 %v3855, %v3946
    %v4027 = vadd.bf16 %v3856, %v3953
    %v4028 = vadd.bf16 %v3857, %v3960
    %v4029 = vadd.bf16 %v3858, %v3967
    %v4030 = vadd.bf16 %v3859, %v3974
    %v4031 = vadd.bf16 %v3860, %v3925
    %v4032 = vadd.bf16 %v3861, %v3932
    %v4033 = vadd.bf16 %v3862, %v3939
    %v4034 = vadd.bf16 %v3863, %v3946
    %v4035 = vadd.bf16 %v3864, %v3953
    %v4036 = vadd.bf16 %v3865, %v3960
    %v4037 = vadd.bf16 %v3866, %v3967
    %v4038 = vadd.bf16 %v3867, %v3974
    %vm4039 = vcmp.ge.bf16.partialorder %v3975, 0
    %vm4040 = vcmp.ge.bf16.partialorder %v3976, 0
    %vm4041 = vcmp.ge.bf16.partialorder %v3977, 0
    %vm4042 = vcmp.ge.bf16.partialorder %v3978, 0
    %vm4043 = vcmp.ge.bf16.partialorder %v3979, 0
    %vm4044 = vcmp.ge.bf16.partialorder %v3980, 0
    %vm4045 = vcmp.ge.bf16.partialorder %v3981, 0
    %vm4046 = vcmp.ge.bf16.partialorder %v3982, 0
    %vm4047 = vcmp.ge.bf16.partialorder %v3983, 0
    %vm4048 = vcmp.ge.bf16.partialorder %v3984, 0
    %vm4049 = vcmp.ge.bf16.partialorder %v3985, 0
    %vm4050 = vcmp.ge.bf16.partialorder %v3986, 0
    %vm4051 = vcmp.ge.bf16.partialorder %v3987, 0
    %vm4052 = vcmp.ge.bf16.partialorder %v3988, 0
    %vm4053 = vcmp.ge.bf16.partialorder %v3989, 0
    %vm4054 = vcmp.ge.bf16.partialorder %v3990, 0
    %vm4055 = vcmp.ge.bf16.partialorder %v3991, 0
    %vm4056 = vcmp.ge.bf16.partialorder %v3992, 0
    %vm4057 = vcmp.ge.bf16.partialorder %v3993, 0
    %vm4058 = vcmp.ge.bf16.partialorder %v3994, 0
    %vm4059 = vcmp.ge.bf16.partialorder %v3995, 0
    %vm4060 = vcmp.ge.bf16.partialorder %v3996, 0
    %vm4061 = vcmp.ge.bf16.partialorder %v3997, 0
    %vm4062 = vcmp.ge.bf16.partialorder %v3998, 0
    %vm4063 = vcmp.ge.bf16.partialorder %v3999, 0
    %vm4064 = vcmp.ge.bf16.partialorder %v4000, 0
    %vm4065 = vcmp.ge.bf16.partialorder %v4001, 0
    %vm4066 = vcmp.ge.bf16.partialorder %v4002, 0
    %vm4067 = vcmp.ge.bf16.partialorder %v4003, 0
    %vm4068 = vcmp.ge.bf16.partialorder %v4004, 0
    %vm4069 = vcmp.ge.bf16.partialorder %v4005, 0
    %vm4070 = vcmp.ge.bf16.partialorder %v4006, 0
    %vm4071 = vcmp.ge.bf16.partialorder %v4007, 0
    %vm4072 = vcmp.ge.bf16.partialorder %v4008, 0
    %vm4073 = vcmp.ge.bf16.partialorder %v4009, 0
    %vm4074 = vcmp.ge.bf16.partialorder %v4010, 0
    %vm4075 = vcmp.ge.bf16.partialorder %v4011, 0
    %vm4076 = vcmp.ge.bf16.partialorder %v4012, 0
    %vm4077 = vcmp.ge.bf16.partialorder %v4013, 0
    %vm4078 = vcmp.ge.bf16.partialorder %v4014, 0
    %vm4079 = vcmp.ge.bf16.partialorder %v4015, 0
    %vm4080 = vcmp.ge.bf16.partialorder %v4016, 0
    %vm4081 = vcmp.ge.bf16.partialorder %v4017, 0
    %vm4082 = vcmp.ge.bf16.partialorder %v4018, 0
    %vm4083 = vcmp.ge.bf16.partialorder %v4019, 0
    %vm4084 = vcmp.ge.bf16.partialorder %v4020, 0
    %vm4085 = vcmp.ge.bf16.partialorder %v4021, 0
    %vm4086 = vcmp.ge.bf16.partialorder %v4022, 0
    %vm4087 = vcmp.ge.bf16.partialorder %v4023, 0
    %vm4088 = vcmp.ge.bf16.partialorder %v4024, 0
    %vm4089 = vcmp.ge.bf16.partialorder %v4025, 0
    %vm4090 = vcmp.ge.bf16.partialorder %v4026, 0
    %vm4091 = vcmp.ge.bf16.partialorder %v4027, 0
    %vm4092 = vcmp.ge.bf16.partialorder %v4028, 0
    %vm4093 = vcmp.ge.bf16.partialorder %v4029, 0
    %vm4094 = vcmp.ge.bf16.partialorder %v4030, 0
    %vm4095 = vcmp.ge.bf16.partialorder %v4031, 0
    %vm4096 = vcmp.ge.bf16.partialorder %v4032, 0
    %vm4097 = vcmp.ge.bf16.partialorder %v4033, 0
    %vm4098 = vcmp.ge.bf16.partialorder %v4034, 0
    %vm4099 = vcmp.ge.bf16.partialorder %v4035, 0
    %vm4100 = vcmp.ge.bf16.partialorder %v4036, 0
    %vm4101 = vcmp.ge.bf16.partialorder %v4037, 0
    %vm4102 = vcmp.ge.bf16.partialorder %v4038, 0
    %v4103 = vmul.bf16 %v3975, 1045249613
    %v4104 = vmul.bf16 %v3976, 1045249613
    %v4105 = vmul.bf16 %v3977, 1045249613
    %v4106 = vmul.bf16 %v3978, 1045249613
    %v4107 = vmul.bf16 %v3979, 1045249613
    %v4108 = vmul.bf16 %v3980, 1045249613
    %v4109 = vmul.bf16 %v3981, 1045249613
    %v4110 = vmul.bf16 %v3982, 1045249613
    %v4111 = vmul.bf16 %v3983, 1045249613
    %v4112 = vmul.bf16 %v3984, 1045249613
    %v4113 = vmul.bf16 %v3985, 1045249613
    %v4114 = vmul.bf16 %v3986, 1045249613
    %v4115 = vmul.bf16 %v3987, 1045249613
    %v4116 = vmul.bf16 %v3988, 1045249613
    %v4117 = vmul.bf16 %v3989, 1045249613
    %v4118 = vmul.bf16 %v3990, 1045249613
    %v4119 = vmul.bf16 %v3991, 1045249613
    %v4120 = vmul.bf16 %v3992, 1045249613
    %v4121 = vmul.bf16 %v3993, 1045249613
    %v4122 = vmul.bf16 %v3994, 1045249613
    %v4123 = vmul.bf16 %v3995, 1045249613
    %v4124 = vmul.bf16 %v3996, 1045249613
    %v4125 = vmul.bf16 %v3997, 1045249613
    %v4126 = vmul.bf16 %v3998, 1045249613
    %v4127 = vmul.bf16 %v3999, 1045249613
    %v4128 = vmul.bf16 %v4000, 1045249613
    %v4129 = vmul.bf16 %v4001, 1045249613
    %v4130 = vmul.bf16 %v4002, 1045249613
    %v4131 = vmul.bf16 %v4003, 1045249613
    %v4132 = vmul.bf16 %v4004, 1045249613
    %v4133 = vmul.bf16 %v4005, 1045249613
    %v4134 = vmul.bf16 %v4006, 1045249613
    %v4135 = vmul.bf16 %v4007, 1045249613
    %v4136 = vmul.bf16 %v4008, 1045249613
    %v4137 = vmul.bf16 %v4009, 1045249613
    %v4138 = vmul.bf16 %v4010, 1045249613
    %v4139 = vmul.bf16 %v4011, 1045249613
    %v4140 = vmul.bf16 %v4012, 1045249613
    %v4141 = vmul.bf16 %v4013, 1045249613
    %v4142 = vmul.bf16 %v4014, 1045249613
    %v4143 = vmul.bf16 %v4015, 1045249613
    %v4144 = vmul.bf16 %v4016, 1045249613
    %v4145 = vmul.bf16 %v4017, 1045249613
    %v4146 = vmul.bf16 %v4018, 1045249613
    %v4147 = vmul.bf16 %v4019, 1045249613
    %v4148 = vmul.bf16 %v4020, 1045249613
    %v4149 = vmul.bf16 %v4021, 1045249613
    %v4150 = vmul.bf16 %v4022, 1045249613
    %v4151 = vmul.bf16 %v4023, 1045249613
    %v4152 = vmul.bf16 %v4024, 1045249613
    %v4153 = vmul.bf16 %v4025, 1045249613
    %v4154 = vmul.bf16 %v4026, 1045249613
    %v4155 = vmul.bf16 %v4027, 1045249613
    %v4156 = vmul.bf16 %v4028, 1045249613
    %v4157 = vmul.bf16 %v4029, 1045249613
    %v4158 = vmul.bf16 %v4030, 1045249613
    %v4159 = vmul.bf16 %v4031, 1045249613
    %v4160 = vmul.bf16 %v4032, 1045249613
    %v4161 = vmul.bf16 %v4033, 1045249613
    %v4162 = vmul.bf16 %v4034, 1045249613
    %v4163 = vmul.bf16 %v4035, 1045249613
    %v4164 = vmul.bf16 %v4036, 1045249613
    %v4165 = vmul.bf16 %v4037, 1045249613
    %v4166 = vmul.bf16 %v4038, 1045249613
    %v4167 = vsel %vm4039, %v3975, %v4103
    %v4168 = vsel %vm4040, %v3976, %v4104
    %v4169 = vsel %vm4041, %v3977, %v4105
    %v4170 = vsel %vm4042, %v3978, %v4106
    %v4171 = vsel %vm4043, %v3979, %v4107
    %v4172 = vsel %vm4044, %v3980, %v4108
    %v4173 = vsel %vm4045, %v3981, %v4109
    %v4174 = vsel %vm4046, %v3982, %v4110
    %v4175 = vsel %vm4047, %v3983, %v4111
    %v4176 = vsel %vm4048, %v3984, %v4112
    %v4177 = vsel %vm4049, %v3985, %v4113
    %v4178 = vsel %vm4050, %v3986, %v4114
    %v4179 = vsel %vm4051, %v3987, %v4115
    %v4180 = vsel %vm4052, %v3988, %v4116
    %v4181 = vsel %vm4053, %v3989, %v4117
    %v4182 = vsel %vm4054, %v3990, %v4118
    %v4183 = vsel %vm4055, %v3991, %v4119
    %v4184 = vsel %vm4056, %v3992, %v4120
    %v4185 = vsel %vm4057, %v3993, %v4121
    %v4186 = vsel %vm4058, %v3994, %v4122
    %v4187 = vsel %vm4059, %v3995, %v4123
    %v4188 = vsel %vm4060, %v3996, %v4124
    %v4189 = vsel %vm4061, %v3997, %v4125
    %v4190 = vsel %vm4062, %v3998, %v4126
    %v4191 = vsel %vm4063, %v3999, %v4127
    %v4192 = vsel %vm4064, %v4000, %v4128
    %v4193 = vsel %vm4065, %v4001, %v4129
    %v4194 = vsel %vm4066, %v4002, %v4130
    %v4195 = vsel %vm4067, %v4003, %v4131
    %v4196 = vsel %vm4068, %v4004, %v4132
    %v4197 = vsel %vm4069, %v4005, %v4133
    %v4198 = vsel %vm4070, %v4006, %v4134
    %v4199 = vsel %vm4071, %v4007, %v4135
    %v4200 = vsel %vm4072, %v4008, %v4136
    %v4201 = vsel %vm4073, %v4009, %v4137
    %v4202 = vsel %vm4074, %v4010, %v4138
    %v4203 = vsel %vm4075, %v4011, %v4139
    %v4204 = vsel %vm4076, %v4012, %v4140
    %v4205 = vsel %vm4077, %v4013, %v4141
    %v4206 = vsel %vm4078, %v4014, %v4142
    %v4207 = vsel %vm4079, %v4015, %v4143
    %v4208 = vsel %vm4080, %v4016, %v4144
    %v4209 = vsel %vm4081, %v4017, %v4145
    %v4210 = vsel %vm4082, %v4018, %v4146
    %v4211 = vsel %vm4083, %v4019, %v4147
    %v4212 = vsel %vm4084, %v4020, %v4148
    %v4213 = vsel %vm4085, %v4021, %v4149
    %v4214 = vsel %vm4086, %v4022, %v4150
    %v4215 = vsel %vm4087, %v4023, %v4151
    %v4216 = vsel %vm4088, %v4024, %v4152
    %v4217 = vsel %vm4089, %v4025, %v4153
    %v4218 = vsel %vm4090, %v4026, %v4154
    %v4219 = vsel %vm4091, %v4027, %v4155
    %v4220 = vsel %vm4092, %v4028, %v4156
    %v4221 = vsel %vm4093, %v4029, %v4157
    %v4222 = vsel %vm4094, %v4030, %v4158
    %v4223 = vsel %vm4095, %v4031, %v4159
    %v4224 = vsel %vm4096, %v4032, %v4160
    %v4225 = vsel %vm4097, %v4033, %v4161
    %v4226 = vsel %vm4098, %v4034, %v4162
    %v4227 = vsel %vm4099, %v4035, %v4163
    %v4228 = vsel %vm4100, %v4036, %v4164
    %v4229 = vsel %vm4101, %v4037, %v4165
    %v4230 = vsel %vm4102, %v4038, %v4166
    %v4231 = vld [vmem:[#allocation14] sm:$0xff]
    %v4232 = vld [vmem:[#allocation14 + $0x8] sm:$0xff]
    %v4233 = vld [vmem:[#allocation14 + $0x10] sm:$0xff]
    %v4234 = vld [vmem:[#allocation14 + $0x18] sm:$0xf]
    %v4235 = vld [vmem:[#allocation14 + $0x1c] sm:$0xff]
    %v4236 = vld [vmem:[#allocation14 + $0x24] sm:$0xff]
    %v4237 = vld [vmem:[#allocation14 + $0x2c] sm:$0xff]
    %v4238 = vld [vmem:[#allocation14 + $0x34] sm:$0xf]
    %v4239 = vld [vmem:[#allocation14 + $0x38] sm:$0xff]
    %v4240 = vld [vmem:[#allocation14 + $0x40] sm:$0xff]
    %v4241 = vld [vmem:[#allocation14 + $0x48] sm:$0xff]
    %v4242 = vld [vmem:[#allocation14 + $0x50] sm:$0xf]
    %v4243 = vld [vmem:[#allocation14 + $0x54] sm:$0xff]
    %v4244 = vld [vmem:[#allocation14 + $0x5c] sm:$0xff]
    %v4245 = vld [vmem:[#allocation14 + $0x64] sm:$0xff]
    %v4246 = vld [vmem:[#allocation14 + $0x6c] sm:$0xf]
    %v4247 = vld [vmem:[#allocation14 + $0x70] sm:$0xff]
    %v4248 = vld [vmem:[#allocation14 + $0x78] sm:$0xff]
    %v4249 = vld [vmem:[#allocation14 + $0x80] sm:$0xff]
    %v4250 = vld [vmem:[#allocation14 + $0x88] sm:$0xf]
    %v4251 = vld [vmem:[#allocation14 + $0x8c] sm:$0xff]
    %v4252 = vld [vmem:[#allocation14 + $0x94] sm:$0xff]
    %v4253 = vld [vmem:[#allocation14 + $0x9c] sm:$0xff]
    %v4254 = vld [vmem:[#allocation14 + $0xa4] sm:$0xf]
    %v4255 = vld [vmem:[#allocation14 + $0xa8] sm:$0xff]
    %v4256 = vld [vmem:[#allocation14 + $0xb0] sm:$0xff]
    %v4257 = vld [vmem:[#allocation14 + $0xb8] sm:$0xff]
    %v4258 = vld [vmem:[#allocation14 + $0xc0] sm:$0xf]
    %v4259 = vld [vmem:[#allocation14 + $0xc4] sm:$0xff]
    %v4260 = vld [vmem:[#allocation14 + $0xcc] sm:$0xff]
    %v4261 = vld [vmem:[#allocation14 + $0xd4] sm:$0xff]
    %v4262 = vld [vmem:[#allocation14 + $0xdc] sm:$0xf]
    %v4263 = vld [vmem:[#allocation14 + $0xe0] sm:$0xff]
    %v4264 = vld [vmem:[#allocation14 + $0xe8] sm:$0xff]
    %v4265 = vld [vmem:[#allocation14 + $0xf0] sm:$0xff]
    %v4266 = vld [vmem:[#allocation14 + $0xf8] sm:$0xf]
    %v4267 = vld [vmem:[#allocation14 + $0xfc] sm:$0xff]
    %v4268 = vld [vmem:[#allocation14 + $0x104] sm:$0xff]
    %v4269 = vld [vmem:[#allocation14 + $0x10c] sm:$0xff]
    %v4270 = vld [vmem:[#allocation14 + $0x114] sm:$0xf]
    %v4271 = vld [vmem:[#allocation14 + $0x118] sm:$0xff]
    %v4272 = vld [vmem:[#allocation14 + $0x120] sm:$0xff]
    %v4273 = vld [vmem:[#allocation14 + $0x128] sm:$0xff]
    %v4274 = vld [vmem:[#allocation14 + $0x130] sm:$0xf]
    %v4275 = vld [vmem:[#allocation14 + $0x134] sm:$0xff]
    %v4276 = vld [vmem:[#allocation14 + $0x13c] sm:$0xff]
    %v4277 = vld [vmem:[#allocation14 + $0x144] sm:$0xff]
    %v4278 = vld [vmem:[#allocation14 + $0x14c] sm:$0xf]
    %v4279 = vld [vmem:[#allocation14 + $0x150] sm:$0xff]
    %v4280 = vld [vmem:[#allocation14 + $0x158] sm:$0xff]
    %v4281 = vld [vmem:[#allocation14 + $0x160] sm:$0xff]
    %v4282 = vld [vmem:[#allocation14 + $0x168] sm:$0xf]
    %v4283 = vld [vmem:[#allocation14 + $0x16c] sm:$0xff]
    %v4284 = vld [vmem:[#allocation14 + $0x174] sm:$0xff]
    %v4285 = vld [vmem:[#allocation14 + $0x17c] sm:$0xff]
    %v4286 = vld [vmem:[#allocation14 + $0x184] sm:$0xf]
    %v4287 = vld [vmem:[#allocation14 + $0x188] sm:$0xff]
    %v4288 = vld [vmem:[#allocation14 + $0x190] sm:$0xff]
    %v4289 = vld [vmem:[#allocation14 + $0x198] sm:$0xff]
    %v4290 = vld [vmem:[#allocation14 + $0x1a0] sm:$0xf]
    %v4291 = vld [vmem:[#allocation14 + $0x1a4] sm:$0xff]
    %v4292 = vld [vmem:[#allocation14 + $0x1ac] sm:$0xff]
    %v4293 = vld [vmem:[#allocation14 + $0x1b4] sm:$0xff]
    %v4294 = vld [vmem:[#allocation14 + $0x1bc] sm:$0xf]
    %v4295 = vld [vmem:[#allocation14 + $0x1c0] sm:$0xff]
    %v4296 = vld [vmem:[#allocation14 + $0x1c8] sm:$0xff]
    %v4297 = vld [vmem:[#allocation14 + $0x1d0] sm:$0xff]
    %v4298 = vld [vmem:[#allocation14 + $0x1d8] sm:$0xf]
    %v4299 = vld [vmem:[#allocation14 + $0x1dc] sm:$0xff]
    %v4300 = vld [vmem:[#allocation14 + $0x1e4] sm:$0xff]
    %v4301 = vld [vmem:[#allocation14 + $0x1ec] sm:$0xff]
    %v4302 = vld [vmem:[#allocation14 + $0x1f4] sm:$0xf]
    %v4303 = vld [vmem:[#allocation14 + $0x1f8] sm:$0xff]
    %v4304 = vld [vmem:[#allocation14 + $0x200] sm:$0xff]
    %v4305 = vld [vmem:[#allocation14 + $0x208] sm:$0xff]
    %v4306 = vld [vmem:[#allocation14 + $0x210] sm:$0xf]
    %v4307 = vld [vmem:[#allocation14 + $0x214] sm:$0xff]
    %v4308 = vld [vmem:[#allocation14 + $0x21c] sm:$0xff]
    %v4309 = vld [vmem:[#allocation14 + $0x224] sm:$0xff]
    %v4310 = vld [vmem:[#allocation14 + $0x22c] sm:$0xf]
    %v4311 = vld [vmem:[#allocation14 + $0x230] sm:$0xff]
    %v4312 = vld [vmem:[#allocation14 + $0x238] sm:$0xff]
    %v4313 = vld [vmem:[#allocation14 + $0x240] sm:$0xff]
    %v4314 = vld [vmem:[#allocation14 + $0x248] sm:$0xf]
    %v4315 = vld [vmem:[#allocation14 + $0x24c] sm:$0xff]
    %v4316 = vld [vmem:[#allocation14 + $0x254] sm:$0xff]
    %v4317 = vld [vmem:[#allocation14 + $0x25c] sm:$0xff]
    %v4318 = vld [vmem:[#allocation14 + $0x264] sm:$0xf]
    %v4319 = vld [vmem:[#allocation14 + $0x268] sm:$0xff]
    %v4320 = vld [vmem:[#allocation14 + $0x270] sm:$0xff]
    %v4321 = vld [vmem:[#allocation14 + $0x278] sm:$0xff]
    %v4322 = vld [vmem:[#allocation14 + $0x280] sm:$0xf]
    %v4323 = vld [vmem:[#allocation14 + $0x284] sm:$0xff]
    %v4324 = vld [vmem:[#allocation14 + $0x28c] sm:$0xff]
    %v4325 = vld [vmem:[#allocation14 + $0x294] sm:$0xff]
    %v4326 = vld [vmem:[#allocation14 + $0x29c] sm:$0xf]
    %v4327 = vld [vmem:[#allocation14 + $0x2a0] sm:$0xff]
    %v4328 = vld [vmem:[#allocation14 + $0x2a8] sm:$0xff]
    %v4329 = vld [vmem:[#allocation14 + $0x2b0] sm:$0xff]
    %v4330 = vld [vmem:[#allocation14 + $0x2b8] sm:$0xf]
    %v4331 = vld [vmem:[#allocation14 + $0x2bc] sm:$0xff]
    %v4332 = vld [vmem:[#allocation14 + $0x2c4] sm:$0xff]
    %v4333 = vld [vmem:[#allocation14 + $0x2cc] sm:$0xff]
    %v4334 = vld [vmem:[#allocation14 + $0x2d4] sm:$0xf]
    %v4335 = vld [vmem:[#allocation14 + $0x2d8] sm:$0xff]
    %v4336 = vld [vmem:[#allocation14 + $0x2e0] sm:$0xff]
    %v4337 = vld [vmem:[#allocation14 + $0x2e8] sm:$0xff]
    %v4338 = vld [vmem:[#allocation14 + $0x2f0] sm:$0xf]
    %v4339 = vld [vmem:[#allocation14 + $0x2f4] sm:$0xff]
    %v4340 = vld [vmem:[#allocation14 + $0x2fc] sm:$0xff]
    %v4341 = vld [vmem:[#allocation14 + $0x304] sm:$0xff]
    %v4342 = vld [vmem:[#allocation14 + $0x30c] sm:$0xf]
    %v4343 = vld [vmem:[#allocation14 + $0x310] sm:$0xff]
    %v4344 = vld [vmem:[#allocation14 + $0x318] sm:$0xff]
    %v4345 = vld [vmem:[#allocation14 + $0x320] sm:$0xff]
    %v4346 = vld [vmem:[#allocation14 + $0x328] sm:$0xf]
    %v4347 = vld [vmem:[#allocation14 + $0x32c] sm:$0xff]
    %v4348 = vld [vmem:[#allocation14 + $0x334] sm:$0xff]
    %v4349 = vld [vmem:[#allocation14 + $0x33c] sm:$0xff]
    %v4350 = vld [vmem:[#allocation14 + $0x344] sm:$0xf]
    %v4351 = vld [vmem:[#allocation14 + $0x348] sm:$0xff]
    %v4352 = vld [vmem:[#allocation14 + $0x350] sm:$0xff]
    %v4353 = vld [vmem:[#allocation14 + $0x358] sm:$0xff]
    %v4354 = vld [vmem:[#allocation14 + $0x360] sm:$0xf]
    %v4355 = vld [vmem:[#allocation14 + $0x364] sm:$0xff]
    %v4356 = vld [vmem:[#allocation14 + $0x36c] sm:$0xff]
    %v4357 = vld [vmem:[#allocation14 + $0x374] sm:$0xff]
    %v4358 = vld [vmem:[#allocation14 + $0x37c] sm:$0xf]
    %v4359 = vld [vmem:[#allocation14 + $0x380] sm:$0xff]
    %v4360 = vld [vmem:[#allocation14 + $0x388] sm:$0xff]
    %v4361 = vld [vmem:[#allocation14 + $0x390] sm:$0xff]
    %v4362 = vld [vmem:[#allocation14 + $0x398] sm:$0xf]
    %v4363 = vld [vmem:[#allocation14 + $0x39c] sm:$0xff]
    %v4364 = vld [vmem:[#allocation14 + $0x3a4] sm:$0xff]
    %v4365 = vld [vmem:[#allocation14 + $0x3ac] sm:$0xff]
    %v4366 = vld [vmem:[#allocation14 + $0x3b4] sm:$0xf]
    %v4367 = vld [vmem:[#allocation14 + $0x3b8] sm:$0xff]
    %v4368 = vld [vmem:[#allocation14 + $0x3c0] sm:$0xff]
    %v4369 = vld [vmem:[#allocation14 + $0x3c8] sm:$0xff]
    %v4370 = vld [vmem:[#allocation14 + $0x3d0] sm:$0xf]
    %v4371 = vld [vmem:[#allocation14 + $0x3d4] sm:$0xff]
    %v4372 = vld [vmem:[#allocation14 + $0x3dc] sm:$0xff]
    %v4373 = vld [vmem:[#allocation14 + $0x3e4] sm:$0xff]
    %v4374 = vld [vmem:[#allocation14 + $0x3ec] sm:$0xf]
    %v4375 = vld [vmem:[#allocation14 + $0x3f0] sm:$0xff]
    %v4376 = vld [vmem:[#allocation14 + $0x3f8] sm:$0xff]
    %v4377 = vld [vmem:[#allocation14 + $0x400] sm:$0xff]
    %v4378 = vld [vmem:[#allocation14 + $0x408] sm:$0xf]
    %v4379 = vld [vmem:[#allocation14 + $0x40c] sm:$0xff]
    %v4380 = vld [vmem:[#allocation14 + $0x414] sm:$0xff]
    %v4381 = vld [vmem:[#allocation14 + $0x41c] sm:$0xff]
    %v4382 = vld [vmem:[#allocation14 + $0x424] sm:$0xf]
    %v4383 = vld [vmem:[#allocation14 + $0x428] sm:$0xff]
    %v4384 = vld [vmem:[#allocation14 + $0x430] sm:$0xff]
    %v4385 = vld [vmem:[#allocation14 + $0x438] sm:$0xff]
    %v4386 = vld [vmem:[#allocation14 + $0x440] sm:$0xf]
    %v4387 = vld [vmem:[#allocation14 + $0x444] sm:$0xff]
    %v4388 = vld [vmem:[#allocation14 + $0x44c] sm:$0xff]
    %v4389 = vld [vmem:[#allocation14 + $0x454] sm:$0xff]
    %v4390 = vld [vmem:[#allocation14 + $0x45c] sm:$0xf]
    %v4391 = vld [vmem:[#allocation14 + $0x460] sm:$0xff]
    %v4392 = vld [vmem:[#allocation14 + $0x468] sm:$0xff]
    %v4393 = vld [vmem:[#allocation14 + $0x470] sm:$0xff]
    %v4394 = vld [vmem:[#allocation14 + $0x478] sm:$0xf]
    %v4395 = vld [vmem:[#allocation14 + $0x47c] sm:$0xff]
    %v4396 = vld [vmem:[#allocation14 + $0x484] sm:$0xff]
    %v4397 = vld [vmem:[#allocation14 + $0x48c] sm:$0xff]
    %v4398 = vld [vmem:[#allocation14 + $0x494] sm:$0xf]
    %v4399 = vld [vmem:[#allocation14 + $0x498] sm:$0xff]
    %v4400 = vld [vmem:[#allocation14 + $0x4a0] sm:$0xff]
    %v4401 = vld [vmem:[#allocation14 + $0x4a8] sm:$0xff]
    %v4402 = vld [vmem:[#allocation14 + $0x4b0] sm:$0xf]
    %v4403 = vld [vmem:[#allocation14 + $0x4b4] sm:$0xff]
    %v4404 = vld [vmem:[#allocation14 + $0x4bc] sm:$0xff]
    %v4405 = vld [vmem:[#allocation14 + $0x4c4] sm:$0xff]
    %v4406 = vld [vmem:[#allocation14 + $0x4cc] sm:$0xf]
    %v4407 = vld [vmem:[#allocation14 + $0x4d0] sm:$0xff]
    %v4408 = vld [vmem:[#allocation14 + $0x4d8] sm:$0xff]
    %v4409 = vld [vmem:[#allocation14 + $0x4e0] sm:$0xff]
    %v4410 = vld [vmem:[#allocation14 + $0x4e8] sm:$0xf]
    %v4411 = vld [vmem:[#allocation14 + $0x4ec] sm:$0xff]
    %v4412 = vld [vmem:[#allocation14 + $0x4f4] sm:$0xff]
    %v4413 = vld [vmem:[#allocation14 + $0x4fc] sm:$0xff]
    %v4414 = vld [vmem:[#allocation14 + $0x504] sm:$0xf]
    %v4415 = vld [vmem:[#allocation14 + $0x508] sm:$0xff]
    %v4416 = vld [vmem:[#allocation14 + $0x510] sm:$0xff]
    %v4417 = vld [vmem:[#allocation14 + $0x518] sm:$0xff]
    %v4418 = vld [vmem:[#allocation14 + $0x520] sm:$0xf]
    %v4419 = vld [vmem:[#allocation14 + $0x524] sm:$0xff]
    %v4420 = vld [vmem:[#allocation14 + $0x52c] sm:$0xff]
    %v4421 = vld [vmem:[#allocation14 + $0x534] sm:$0xff]
    %v4422 = vld [vmem:[#allocation14 + $0x53c] sm:$0xf]
    %v4423 = vld [vmem:[#allocation14 + $0x540] sm:$0xff]
    %v4424 = vld [vmem:[#allocation14 + $0x548] sm:$0xff]
    %v4425 = vld [vmem:[#allocation14 + $0x550] sm:$0xff]
    %v4426 = vld [vmem:[#allocation14 + $0x558] sm:$0xf]
    %v4427 = vld [vmem:[#allocation14 + $0x55c] sm:$0xff]
    %v4428 = vld [vmem:[#allocation14 + $0x564] sm:$0xff]
    %v4429 = vld [vmem:[#allocation14 + $0x56c] sm:$0xff]
    %v4430 = vld [vmem:[#allocation14 + $0x574] sm:$0xf]
    %v4431 = vld [vmem:[#allocation14 + $0x578] sm:$0xff]
    %v4432 = vld [vmem:[#allocation14 + $0x580] sm:$0xff]
    %v4433 = vld [vmem:[#allocation14 + $0x588] sm:$0xff]
    %v4434 = vld [vmem:[#allocation14 + $0x590] sm:$0xf]
    %v4435 = vld [vmem:[#allocation14 + $0x594] sm:$0xff]
    %v4436 = vld [vmem:[#allocation14 + $0x59c] sm:$0xff]
    %v4437 = vld [vmem:[#allocation14 + $0x5a4] sm:$0xff]
    %v4438 = vld [vmem:[#allocation14 + $0x5ac] sm:$0xf]
    %v4439 = vld [vmem:[#allocation14 + $0x5b0] sm:$0xff]
    %v4440 = vld [vmem:[#allocation14 + $0x5b8] sm:$0xff]
    %v4441 = vld [vmem:[#allocation14 + $0x5c0] sm:$0xff]
    %v4442 = vld [vmem:[#allocation14 + $0x5c8] sm:$0xf]
    %v4443 = vld [vmem:[#allocation14 + $0x5cc] sm:$0xff]
    %v4444 = vld [vmem:[#allocation14 + $0x5d4] sm:$0xff]
    %v4445 = vld [vmem:[#allocation14 + $0x5dc] sm:$0xff]
    %v4446 = vld [vmem:[#allocation14 + $0x5e4] sm:$0xf]
    %v4447 = vld [vmem:[#allocation14 + $0x5e8] sm:$0xff]
    %v4448 = vld [vmem:[#allocation14 + $0x5f0] sm:$0xff]
    %v4449 = vld [vmem:[#allocation14 + $0x5f8] sm:$0xff]
    %v4450 = vld [vmem:[#allocation14 + $0x600] sm:$0xf]
    %v4451 = vld [vmem:[#allocation14 + $0x604] sm:$0xff]
    %v4452 = vld [vmem:[#allocation14 + $0x60c] sm:$0xff]
    %v4453 = vld [vmem:[#allocation14 + $0x614] sm:$0xff]
    %v4454 = vld [vmem:[#allocation14 + $0x61c] sm:$0xf]
    %v4455 = vld [vmem:[#allocation14 + $0x620] sm:$0xff]
    %v4456 = vld [vmem:[#allocation14 + $0x628] sm:$0xff]
    %v4457 = vld [vmem:[#allocation14 + $0x630] sm:$0xff]
    %v4458 = vld [vmem:[#allocation14 + $0x638] sm:$0xf]
    %v4459 = vld [vmem:[#allocation14 + $0x63c] sm:$0xff]
    %v4460 = vld [vmem:[#allocation14 + $0x644] sm:$0xff]
    %v4461 = vld [vmem:[#allocation14 + $0x64c] sm:$0xff]
    %v4462 = vld [vmem:[#allocation14 + $0x654] sm:$0xf]
    %v4463 = vld [vmem:[#allocation14 + $0x658] sm:$0xff]
    %v4464 = vld [vmem:[#allocation14 + $0x660] sm:$0xff]
    %v4465 = vld [vmem:[#allocation14 + $0x668] sm:$0xff]
    %v4466 = vld [vmem:[#allocation14 + $0x670] sm:$0xf]
    %v4467 = vld [vmem:[#allocation14 + $0x674] sm:$0xff]
    %v4468 = vld [vmem:[#allocation14 + $0x67c] sm:$0xff]
    %v4469 = vld [vmem:[#allocation14 + $0x684] sm:$0xff]
    %v4470 = vld [vmem:[#allocation14 + $0x68c] sm:$0xf]
    %v4471 = vld [vmem:[#allocation14 + $0x690] sm:$0xff]
    %v4472 = vld [vmem:[#allocation14 + $0x698] sm:$0xff]
    %v4473 = vld [vmem:[#allocation14 + $0x6a0] sm:$0xff]
    %v4474 = vld [vmem:[#allocation14 + $0x6a8] sm:$0xf]
    %v4475 = vld [vmem:[#allocation14 + $0x6ac] sm:$0xff]
    %v4476 = vld [vmem:[#allocation14 + $0x6b4] sm:$0xff]
    %v4477 = vld [vmem:[#allocation14 + $0x6bc] sm:$0xff]
    %v4478 = vld [vmem:[#allocation14 + $0x6c4] sm:$0xf]
    %v4479 = vld [vmem:[#allocation14 + $0x6c8] sm:$0xff]
    %v4480 = vld [vmem:[#allocation14 + $0x6d0] sm:$0xff]
    %v4481 = vld [vmem:[#allocation14 + $0x6d8] sm:$0xff]
    %v4482 = vld [vmem:[#allocation14 + $0x6e0] sm:$0xf]
    %v4483 = vld [vmem:[#allocation14 + $0x6e4] sm:$0xff]
    %v4484 = vld [vmem:[#allocation14 + $0x6ec] sm:$0xff]
    %v4485 = vld [vmem:[#allocation14 + $0x6f4] sm:$0xff]
    %v4486 = vld [vmem:[#allocation14 + $0x6fc] sm:$0xf]
    %v4487 = vld [vmem:[#allocation14 + $0x700] sm:$0xff]
    %v4488 = vld [vmem:[#allocation14 + $0x708] sm:$0xff]
    %v4489 = vld [vmem:[#allocation14 + $0x710] sm:$0xff]
    %v4490 = vld [vmem:[#allocation14 + $0x718] sm:$0xf]
    %v4491 = vld [vmem:[#allocation14 + $0x71c] sm:$0xff]
    %v4492 = vld [vmem:[#allocation14 + $0x724] sm:$0xff]
    %v4493 = vld [vmem:[#allocation14 + $0x72c] sm:$0xff]
    %v4494 = vld [vmem:[#allocation14 + $0x734] sm:$0xf]
    %v4495 = vld [vmem:[#allocation14 + $0x738] sm:$0xff]
    %v4496 = vld [vmem:[#allocation14 + $0x740] sm:$0xff]
    %v4497 = vld [vmem:[#allocation14 + $0x748] sm:$0xff]
    %v4498 = vld [vmem:[#allocation14 + $0x750] sm:$0xf]
    %v4499 = vld [vmem:[#allocation14 + $0x754] sm:$0xff]
    %v4500 = vld [vmem:[#allocation14 + $0x75c] sm:$0xff]
    %v4501 = vld [vmem:[#allocation14 + $0x764] sm:$0xff]
    %v4502 = vld [vmem:[#allocation14 + $0x76c] sm:$0xf]
    %v4503 = vld [vmem:[#allocation14 + $0x770] sm:$0xff]
    %v4504 = vld [vmem:[#allocation14 + $0x778] sm:$0xff]
    %v4505 = vld [vmem:[#allocation14 + $0x780] sm:$0xff]
    %v4506 = vld [vmem:[#allocation14 + $0x788] sm:$0xf]
    %v4507 = vld [vmem:[#allocation14 + $0x78c] sm:$0xff]
    %v4508 = vld [vmem:[#allocation14 + $0x794] sm:$0xff]
    %v4509 = vld [vmem:[#allocation14 + $0x79c] sm:$0xff]
    %v4510 = vld [vmem:[#allocation14 + $0x7a4] sm:$0xf]
    %v4511 = vld [vmem:[#allocation14 + $0x7a8] sm:$0xff]
    %v4512 = vld [vmem:[#allocation14 + $0x7b0] sm:$0xff]
    %v4513 = vld [vmem:[#allocation14 + $0x7b8] sm:$0xff]
    %v4514 = vld [vmem:[#allocation14 + $0x7c0] sm:$0xf]
    %v4515 = vld [vmem:[#allocation14 + $0x7c4] sm:$0xff]
    %v4516 = vld [vmem:[#allocation14 + $0x7cc] sm:$0xff]
    %v4517 = vld [vmem:[#allocation14 + $0x7d4] sm:$0xff]
    %v4518 = vld [vmem:[#allocation14 + $0x7dc] sm:$0xf]
    %v4519 = vld [vmem:[#allocation14 + $0x7e0] sm:$0xff]
    %v4520 = vld [vmem:[#allocation14 + $0x7e8] sm:$0xff]
    %v4521 = vld [vmem:[#allocation14 + $0x7f0] sm:$0xff]
    %v4522 = vld [vmem:[#allocation14 + $0x7f8] sm:$0xf]
    %v4523 = vld [vmem:[#allocation14 + $0x7fc] sm:$0xff]
    %v4524 = vld [vmem:[#allocation14 + $0x804] sm:$0xff]
    %v4525 = vld [vmem:[#allocation14 + $0x80c] sm:$0xff]
    %v4526 = vld [vmem:[#allocation14 + $0x814] sm:$0xf]
    %v4527 = vld [vmem:[#allocation14 + $0x818] sm:$0xff]
    %v4528 = vld [vmem:[#allocation14 + $0x820] sm:$0xff]
    %v4529 = vld [vmem:[#allocation14 + $0x828] sm:$0xff]
    %v4530 = vld [vmem:[#allocation14 + $0x830] sm:$0xf]
    %v4531 = vld [vmem:[#allocation14 + $0x834] sm:$0xff]
    %v4532 = vld [vmem:[#allocation14 + $0x83c] sm:$0xff]
    %v4533 = vld [vmem:[#allocation14 + $0x844] sm:$0xff]
    %v4534 = vld [vmem:[#allocation14 + $0x84c] sm:$0xf]
    %v4535 = vld [vmem:[#allocation14 + $0x850] sm:$0xff]
    %v4536 = vld [vmem:[#allocation14 + $0x858] sm:$0xff]
    %v4537 = vld [vmem:[#allocation14 + $0x860] sm:$0xff]
    %v4538 = vld [vmem:[#allocation14 + $0x868] sm:$0xf]
    %v4539 = vld [vmem:[#allocation14 + $0x86c] sm:$0xff]
    %v4540 = vld [vmem:[#allocation14 + $0x874] sm:$0xff]
    %v4541 = vld [vmem:[#allocation14 + $0x87c] sm:$0xff]
    %v4542 = vld [vmem:[#allocation14 + $0x884] sm:$0xf]
    %v4543 = vld [vmem:[#allocation14 + $0x888] sm:$0xff]
    %v4544 = vld [vmem:[#allocation14 + $0x890] sm:$0xff]
    %v4545 = vld [vmem:[#allocation14 + $0x898] sm:$0xff]
    %v4546 = vld [vmem:[#allocation14 + $0x8a0] sm:$0xf]
    %v4547 = vld [vmem:[#allocation14 + $0x8a4] sm:$0xff]
    %v4548 = vld [vmem:[#allocation14 + $0x8ac] sm:$0xff]
    %v4549 = vld [vmem:[#allocation14 + $0x8b4] sm:$0xff]
    %v4550 = vld [vmem:[#allocation14 + $0x8bc] sm:$0xf]
    %v4551 = vld [vmem:[#allocation14 + $0x8c0] sm:$0xff]
    %v4552 = vld [vmem:[#allocation14 + $0x8c8] sm:$0xff]
    %v4553 = vld [vmem:[#allocation14 + $0x8d0] sm:$0xff]
    %v4554 = vld [vmem:[#allocation14 + $0x8d8] sm:$0xf]
    %v4555 = vld [vmem:[#allocation14 + $0x8dc] sm:$0xff]
    %v4556 = vld [vmem:[#allocation14 + $0x8e4] sm:$0xff]
    %v4557 = vld [vmem:[#allocation14 + $0x8ec] sm:$0xff]
    %v4558 = vld [vmem:[#allocation14 + $0x8f4] sm:$0xf]
    %v4559 = vld [vmem:[#allocation14 + $0x8f8] sm:$0xff]
    %v4560 = vld [vmem:[#allocation14 + $0x900] sm:$0xff]
    %v4561 = vld [vmem:[#allocation14 + $0x908] sm:$0xff]
    %v4562 = vld [vmem:[#allocation14 + $0x910] sm:$0xf]
    %v4563 = vld [vmem:[#allocation14 + $0x914] sm:$0xff]
    %v4564 = vld [vmem:[#allocation14 + $0x91c] sm:$0xff]
    %v4565 = vld [vmem:[#allocation14 + $0x924] sm:$0xff]
    %v4566 = vld [vmem:[#allocation14 + $0x92c] sm:$0xf]
    %v4567 = vld [vmem:[#allocation14 + $0x930] sm:$0xff]
    %v4568 = vld [vmem:[#allocation14 + $0x938] sm:$0xff]
    %v4569 = vld [vmem:[#allocation14 + $0x940] sm:$0xff]
    %v4570 = vld [vmem:[#allocation14 + $0x948] sm:$0xf]
    %v4571 = vld [vmem:[#allocation14 + $0x94c] sm:$0xff]
    %v4572 = vld [vmem:[#allocation14 + $0x954] sm:$0xff]
    %v4573 = vld [vmem:[#allocation14 + $0x95c] sm:$0xff]
    %v4574 = vld [vmem:[#allocation14 + $0x964] sm:$0xf]
    %v4575 = vld [vmem:[#allocation14 + $0x968] sm:$0xff]
    %v4576 = vld [vmem:[#allocation14 + $0x970] sm:$0xff]
    %v4577 = vld [vmem:[#allocation14 + $0x978] sm:$0xff]
    %v4578 = vld [vmem:[#allocation14 + $0x980] sm:$0xf]
    %v4579 = vld [vmem:[#allocation14 + $0x984] sm:$0xff]
    %v4580 = vld [vmem:[#allocation14 + $0x98c] sm:$0xff]
    %v4581 = vld [vmem:[#allocation14 + $0x994] sm:$0xff]
    %v4582 = vld [vmem:[#allocation14 + $0x99c] sm:$0xf]
    %v4583 = vld [vmem:[#allocation14 + $0x9a0] sm:$0xff]
    %v4584 = vld [vmem:[#allocation14 + $0x9a8] sm:$0xff]
    %v4585 = vld [vmem:[#allocation14 + $0x9b0] sm:$0xff]
    %v4586 = vld [vmem:[#allocation14 + $0x9b8] sm:$0xf]
    %v4587 = vld [vmem:[#allocation14 + $0x9bc] sm:$0xff]
    %v4588 = vld [vmem:[#allocation14 + $0x9c4] sm:$0xff]
    %v4589 = vld [vmem:[#allocation14 + $0x9cc] sm:$0xff]
    %v4590 = vld [vmem:[#allocation14 + $0x9d4] sm:$0xf]
    %v4591 = vld [vmem:[#allocation14 + $0x9d8] sm:$0xff]
    %v4592 = vld [vmem:[#allocation14 + $0x9e0] sm:$0xff]
    %v4593 = vld [vmem:[#allocation14 + $0x9e8] sm:$0xff]
    %v4594 = vld [vmem:[#allocation14 + $0x9f0] sm:$0xf]
    %v4595 = vld [vmem:[#allocation14 + $0x9f4] sm:$0xff]
    %v4596 = vld [vmem:[#allocation14 + $0x9fc] sm:$0xff]
    %v4597 = vld [vmem:[#allocation14 + $0xa04] sm:$0xff]
    %v4598 = vld [vmem:[#allocation14 + $0xa0c] sm:$0xf]
    %v4599 = vld [vmem:[#allocation14 + $0xa10] sm:$0xff]
    %v4600 = vld [vmem:[#allocation14 + $0xa18] sm:$0xff]
    %v4601 = vld [vmem:[#allocation14 + $0xa20] sm:$0xff]
    %v4602 = vld [vmem:[#allocation14 + $0xa28] sm:$0xf]
    %v4603 = vld [vmem:[#allocation14 + $0xa2c] sm:$0xff]
    %v4604 = vld [vmem:[#allocation14 + $0xa34] sm:$0xff]
    %v4605 = vld [vmem:[#allocation14 + $0xa3c] sm:$0xff]
    %v4606 = vld [vmem:[#allocation14 + $0xa44] sm:$0xf]
    %v4607 = vld [vmem:[#allocation14 + $0xa48] sm:$0xff]
    %v4608 = vld [vmem:[#allocation14 + $0xa50] sm:$0xff]
    %v4609 = vld [vmem:[#allocation14 + $0xa58] sm:$0xff]
    %v4610 = vld [vmem:[#allocation14 + $0xa60] sm:$0xf]
    %v4611 = vld [vmem:[#allocation14 + $0xa64] sm:$0xff]
    %v4612 = vld [vmem:[#allocation14 + $0xa6c] sm:$0xff]
    %v4613 = vld [vmem:[#allocation14 + $0xa74] sm:$0xff]
    %v4614 = vld [vmem:[#allocation14 + $0xa7c] sm:$0xf]
    %v4615 = vld [vmem:[#allocation14 + $0xa80] sm:$0xff]
    %v4616 = vld [vmem:[#allocation14 + $0xa88] sm:$0xff]
    %v4617 = vld [vmem:[#allocation14 + $0xa90] sm:$0xff]
    %v4618 = vld [vmem:[#allocation14 + $0xa98] sm:$0xf]
    %v4619 = vld [vmem:[#allocation14 + $0xa9c] sm:$0xff]
    %v4620 = vld [vmem:[#allocation14 + $0xaa4] sm:$0xff]
    %v4621 = vld [vmem:[#allocation14 + $0xaac] sm:$0xff]
    %v4622 = vld [vmem:[#allocation14 + $0xab4] sm:$0xf]
    %v4623 = vld [vmem:[#allocation14 + $0xab8] sm:$0xff]
    %v4624 = vld [vmem:[#allocation14 + $0xac0] sm:$0xff]
    %v4625 = vld [vmem:[#allocation14 + $0xac8] sm:$0xff]
    %v4626 = vld [vmem:[#allocation14 + $0xad0] sm:$0xf]
    %v4627 = vld [vmem:[#allocation14 + $0xad4] sm:$0xff]
    %v4628 = vld [vmem:[#allocation14 + $0xadc] sm:$0xff]
    %v4629 = vld [vmem:[#allocation14 + $0xae4] sm:$0xff]
    %v4630 = vld [vmem:[#allocation14 + $0xaec] sm:$0xf]
    %v4631 = vld [vmem:[#allocation14 + $0xaf0] sm:$0xff]
    %v4632 = vld [vmem:[#allocation14 + $0xaf8] sm:$0xff]
    %v4633 = vld [vmem:[#allocation14 + $0xb00] sm:$0xff]
    %v4634 = vld [vmem:[#allocation14 + $0xb08] sm:$0xf]
    %v4635 = vld [vmem:[#allocation14 + $0xb0c] sm:$0xff]
    %v4636 = vld [vmem:[#allocation14 + $0xb14] sm:$0xff]
    %v4637 = vld [vmem:[#allocation14 + $0xb1c] sm:$0xff]
    %v4638 = vld [vmem:[#allocation14 + $0xb24] sm:$0xf]
    %v4639 = vld [vmem:[#allocation14 + $0xb28] sm:$0xff]
    %v4640 = vld [vmem:[#allocation14 + $0xb30] sm:$0xff]
    %v4641 = vld [vmem:[#allocation14 + $0xb38] sm:$0xff]
    %v4642 = vld [vmem:[#allocation14 + $0xb40] sm:$0xf]
    %v4643 = vld [vmem:[#allocation14 + $0xb44] sm:$0xff]
    %v4644 = vld [vmem:[#allocation14 + $0xb4c] sm:$0xff]
    %v4645 = vld [vmem:[#allocation14 + $0xb54] sm:$0xff]
    %v4646 = vld [vmem:[#allocation14 + $0xb5c] sm:$0xf]
    %v4647 = vld [vmem:[#allocation14 + $0xb60] sm:$0xff]
    %v4648 = vld [vmem:[#allocation14 + $0xb68] sm:$0xff]
    %v4649 = vld [vmem:[#allocation14 + $0xb70] sm:$0xff]
    %v4650 = vld [vmem:[#allocation14 + $0xb78] sm:$0xf]
    %v4651 = vld [vmem:[#allocation14 + $0xb7c] sm:$0xff]
    %v4652 = vld [vmem:[#allocation14 + $0xb84] sm:$0xff]
    %v4653 = vld [vmem:[#allocation14 + $0xb8c] sm:$0xff]
    %v4654 = vld [vmem:[#allocation14 + $0xb94] sm:$0xf]
    %v4655 = vld [vmem:[#allocation14 + $0xb98] sm:$0xff]
    %v4656 = vld [vmem:[#allocation14 + $0xba0] sm:$0xff]
    %v4657 = vld [vmem:[#allocation14 + $0xba8] sm:$0xff]
    %v4658 = vld [vmem:[#allocation14 + $0xbb0] sm:$0xf]
    %v4659 = vld [vmem:[#allocation14 + $0xbb4] sm:$0xff]
    %v4660 = vld [vmem:[#allocation14 + $0xbbc] sm:$0xff]
    %v4661 = vld [vmem:[#allocation14 + $0xbc4] sm:$0xff]
    %v4662 = vld [vmem:[#allocation14 + $0xbcc] sm:$0xf]
    %v4663 = vld [vmem:[#allocation14 + $0xbd0] sm:$0xff]
    %v4664 = vld [vmem:[#allocation14 + $0xbd8] sm:$0xff]
    %v4665 = vld [vmem:[#allocation14 + $0xbe0] sm:$0xff]
    %v4666 = vld [vmem:[#allocation14 + $0xbe8] sm:$0xf]
    %v4667 = vld [vmem:[#allocation14 + $0xbec] sm:$0xff]
    %v4668 = vld [vmem:[#allocation14 + $0xbf4] sm:$0xff]
    %v4669 = vld [vmem:[#allocation14 + $0xbfc] sm:$0xff]
    %v4670 = vld [vmem:[#allocation14 + $0xc04] sm:$0xf]
    %v4671 = vld [vmem:[#allocation14 + $0xc08] sm:$0xff]
    %v4672 = vld [vmem:[#allocation14 + $0xc10] sm:$0xff]
    %v4673 = vld [vmem:[#allocation14 + $0xc18] sm:$0xff]
    %v4674 = vld [vmem:[#allocation14 + $0xc20] sm:$0xf]
    %v4675 = vld [vmem:[#allocation14 + $0xc24] sm:$0xff]
    %v4676 = vld [vmem:[#allocation14 + $0xc2c] sm:$0xff]
    %v4677 = vld [vmem:[#allocation14 + $0xc34] sm:$0xff]
    %v4678 = vld [vmem:[#allocation14 + $0xc3c] sm:$0xf]
    %v4679 = vld [vmem:[#allocation14 + $0xc40] sm:$0xff]
    %v4680 = vld [vmem:[#allocation14 + $0xc48] sm:$0xff]
    %v4681 = vld [vmem:[#allocation14 + $0xc50] sm:$0xff]
    %v4682 = vld [vmem:[#allocation14 + $0xc58] sm:$0xf]
    %v4683 = vld [vmem:[#allocation14 + $0xc5c] sm:$0xff]
    %v4684 = vld [vmem:[#allocation14 + $0xc64] sm:$0xff]
    %v4685 = vld [vmem:[#allocation14 + $0xc6c] sm:$0xff]
    %v4686 = vld [vmem:[#allocation14 + $0xc74] sm:$0xf]
    %v4687 = vld [vmem:[#allocation14 + $0xc78] sm:$0xff]
    %v4688 = vld [vmem:[#allocation14 + $0xc80] sm:$0xff]
    %v4689 = vld [vmem:[#allocation14 + $0xc88] sm:$0xff]
    %v4690 = vld [vmem:[#allocation14 + $0xc90] sm:$0xf]
    %v4691 = vld [vmem:[#allocation14 + $0xc94] sm:$0xff]
    %v4692 = vld [vmem:[#allocation14 + $0xc9c] sm:$0xff]
    %v4693 = vld [vmem:[#allocation14 + $0xca4] sm:$0xff]
    %v4694 = vld [vmem:[#allocation14 + $0xcac] sm:$0xf]
    %v4695 = vld [vmem:[#allocation14 + $0xcb0] sm:$0xff]
    %v4696 = vld [vmem:[#allocation14 + $0xcb8] sm:$0xff]
    %v4697 = vld [vmem:[#allocation14 + $0xcc0] sm:$0xff]
    %v4698 = vld [vmem:[#allocation14 + $0xcc8] sm:$0xf]
    %v4699 = vld [vmem:[#allocation14 + $0xccc] sm:$0xff]
    %v4700 = vld [vmem:[#allocation14 + $0xcd4] sm:$0xff]
    %v4701 = vld [vmem:[#allocation14 + $0xcdc] sm:$0xff]
    %v4702 = vld [vmem:[#allocation14 + $0xce4] sm:$0xf]
    %v4703 = vld [vmem:[#allocation14 + $0xce8] sm:$0xff]
    %v4704 = vld [vmem:[#allocation14 + $0xcf0] sm:$0xff]
    %v4705 = vld [vmem:[#allocation14 + $0xcf8] sm:$0xff]
    %v4706 = vld [vmem:[#allocation14 + $0xd00] sm:$0xf]
    %v4707 = vld [vmem:[#allocation14 + $0xd04] sm:$0xff]
    %v4708 = vld [vmem:[#allocation14 + $0xd0c] sm:$0xff]
    %v4709 = vld [vmem:[#allocation14 + $0xd14] sm:$0xff]
    %v4710 = vld [vmem:[#allocation14 + $0xd1c] sm:$0xf]
    %v4711 = vld [vmem:[#allocation14 + $0xd20] sm:$0xff]
    %v4712 = vld [vmem:[#allocation14 + $0xd28] sm:$0xff]
    %v4713 = vld [vmem:[#allocation14 + $0xd30] sm:$0xff]
    %v4714 = vld [vmem:[#allocation14 + $0xd38] sm:$0xf]
    %v4715 = vld [vmem:[#allocation14 + $0xd3c] sm:$0xff]
    %v4716 = vld [vmem:[#allocation14 + $0xd44] sm:$0xff]
    %v4717 = vld [vmem:[#allocation14 + $0xd4c] sm:$0xff]
    %v4718 = vld [vmem:[#allocation14 + $0xd54] sm:$0xf]
    %v4719 = vld [vmem:[#allocation14 + $0xd58] sm:$0xff]
    %v4720 = vld [vmem:[#allocation14 + $0xd60] sm:$0xff]
    %v4721 = vld [vmem:[#allocation14 + $0xd68] sm:$0xff]
    %v4722 = vld [vmem:[#allocation14 + $0xd70] sm:$0xf]
    %v4723 = vld [vmem:[#allocation14 + $0xd74] sm:$0xff]
    %v4724 = vld [vmem:[#allocation14 + $0xd7c] sm:$0xff]
    %v4725 = vld [vmem:[#allocation14 + $0xd84] sm:$0xff]
    %v4726 = vld [vmem:[#allocation14 + $0xd8c] sm:$0xf]
    %v4727 = vld [vmem:[#allocation14 + $0xd90] sm:$0xff]
    %v4728 = vld [vmem:[#allocation14 + $0xd98] sm:$0xff]
    %v4729 = vld [vmem:[#allocation14 + $0xda0] sm:$0xff]
    %v4730 = vld [vmem:[#allocation14 + $0xda8] sm:$0xf]
    %v4731 = vld [vmem:[#allocation14 + $0xdac] sm:$0xff]
    %v4732 = vld [vmem:[#allocation14 + $0xdb4] sm:$0xff]
    %v4733 = vld [vmem:[#allocation14 + $0xdbc] sm:$0xff]
    %v4734 = vld [vmem:[#allocation14 + $0xdc4] sm:$0xf]
    %v4735 = vld [vmem:[#allocation14 + $0xdc8] sm:$0xff]
    %v4736 = vld [vmem:[#allocation14 + $0xdd0] sm:$0xff]
    %v4737 = vld [vmem:[#allocation14 + $0xdd8] sm:$0xff]
    %v4738 = vld [vmem:[#allocation14 + $0xde0] sm:$0xf]
    %v4739 = vld [vmem:[#allocation14 + $0xde4] sm:$0xff]
    %v4740 = vld [vmem:[#allocation14 + $0xdec] sm:$0xff]
    %v4741 = vld [vmem:[#allocation14 + $0xdf4] sm:$0xff]
    %v4742 = vld [vmem:[#allocation14 + $0xdfc] sm:$0xf]
    %v5255 = vunpack.c.l.b16 %v4231
    %v5256 = vunpack.c.h.b16 %v4231
    %v5257 = vunpack.c.l.b16 %v4232
    %v5258 = vunpack.c.h.b16 %v4232
    %v5259 = vunpack.c.l.b16 %v4233
    %v5260 = vunpack.c.h.b16 %v4233
    %v5261 = vunpack.c.l.b16 %v4234
    %v5262 = vunpack.c.l.b16 %v4235
    %v5263 = vunpack.c.h.b16 %v4235
    %v5264 = vunpack.c.l.b16 %v4236
    %v5265 = vunpack.c.h.b16 %v4236
    %v5266 = vunpack.c.l.b16 %v4237
    %v5267 = vunpack.c.h.b16 %v4237
    %v5268 = vunpack.c.l.b16 %v4238
    %v5269 = vunpack.c.l.b16 %v4239
    %v5270 = vunpack.c.h.b16 %v4239
    %v5271 = vunpack.c.l.b16 %v4240
    %v5272 = vunpack.c.h.b16 %v4240
    %v5273 = vunpack.c.l.b16 %v4241
    %v5274 = vunpack.c.h.b16 %v4241
    %v5275 = vunpack.c.l.b16 %v4242
    %v5276 = vunpack.c.l.b16 %v4243
    %v5277 = vunpack.c.h.b16 %v4243
    %v5278 = vunpack.c.l.b16 %v4244
    %v5279 = vunpack.c.h.b16 %v4244
    %v5280 = vunpack.c.l.b16 %v4245
    %v5281 = vunpack.c.h.b16 %v4245
    %v5282 = vunpack.c.l.b16 %v4246
    %v5283 = vunpack.c.l.b16 %v4247
    %v5284 = vunpack.c.h.b16 %v4247
    %v5285 = vunpack.c.l.b16 %v4248
    %v5286 = vunpack.c.h.b16 %v4248
    %v5287 = vunpack.c.l.b16 %v4249
    %v5288 = vunpack.c.h.b16 %v4249
    %v5289 = vunpack.c.l.b16 %v4250
    %v5290 = vunpack.c.l.b16 %v4251
    %v5291 = vunpack.c.h.b16 %v4251
    %v5292 = vunpack.c.l.b16 %v4252
    %v5293 = vunpack.c.h.b16 %v4252
    %v5294 = vunpack.c.l.b16 %v4253
    %v5295 = vunpack.c.h.b16 %v4253
    %v5296 = vunpack.c.l.b16 %v4254
    %v5297 = vunpack.c.l.b16 %v4255
    %v5298 = vunpack.c.h.b16 %v4255
    %v5299 = vunpack.c.l.b16 %v4256
    %v5300 = vunpack.c.h.b16 %v4256
    %v5301 = vunpack.c.l.b16 %v4257
    %v5302 = vunpack.c.h.b16 %v4257
    %v5303 = vunpack.c.l.b16 %v4258
    %v5304 = vunpack.c.l.b16 %v4259
    %v5305 = vunpack.c.h.b16 %v4259
    %v5306 = vunpack.c.l.b16 %v4260
    %v5307 = vunpack.c.h.b16 %v4260
    %v5308 = vunpack.c.l.b16 %v4261
    %v5309 = vunpack.c.h.b16 %v4261
    %v5310 = vunpack.c.l.b16 %v4262
    %v5311 = vunpack.c.l.b16 %v4263
    %v5312 = vunpack.c.h.b16 %v4263
    %v5313 = vunpack.c.l.b16 %v4264
    %v5314 = vunpack.c.h.b16 %v4264
    %v5315 = vunpack.c.l.b16 %v4265
    %v5316 = vunpack.c.h.b16 %v4265
    %v5317 = vunpack.c.l.b16 %v4266
    %v5318 = vunpack.c.l.b16 %v4267
    %v5319 = vunpack.c.h.b16 %v4267
    %v5320 = vunpack.c.l.b16 %v4268
    %v5321 = vunpack.c.h.b16 %v4268
    %v5322 = vunpack.c.l.b16 %v4269
    %v5323 = vunpack.c.h.b16 %v4269
    %v5324 = vunpack.c.l.b16 %v4270
    %v5325 = vunpack.c.l.b16 %v4271
    %v5326 = vunpack.c.h.b16 %v4271
    %v5327 = vunpack.c.l.b16 %v4272
    %v5328 = vunpack.c.h.b16 %v4272
    %v5329 = vunpack.c.l.b16 %v4273
    %v5330 = vunpack.c.h.b16 %v4273
    %v5331 = vunpack.c.l.b16 %v4274
    %v5332 = vunpack.c.l.b16 %v4275
    %v5333 = vunpack.c.h.b16 %v4275
    %v5334 = vunpack.c.l.b16 %v4276
    %v5335 = vunpack.c.h.b16 %v4276
    %v5336 = vunpack.c.l.b16 %v4277
    %v5337 = vunpack.c.h.b16 %v4277
    %v5338 = vunpack.c.l.b16 %v4278
    %v5339 = vunpack.c.l.b16 %v4279
    %v5340 = vunpack.c.h.b16 %v4279
    %v5341 = vunpack.c.l.b16 %v4280
    %v5342 = vunpack.c.h.b16 %v4280
    %v5343 = vunpack.c.l.b16 %v4281
    %v5344 = vunpack.c.h.b16 %v4281
    %v5345 = vunpack.c.l.b16 %v4282
    %v5346 = vunpack.c.l.b16 %v4283
    %v5347 = vunpack.c.h.b16 %v4283
    %v5348 = vunpack.c.l.b16 %v4284
    %v5349 = vunpack.c.h.b16 %v4284
    %v5350 = vunpack.c.l.b16 %v4285
    %v5351 = vunpack.c.h.b16 %v4285
    %v5352 = vunpack.c.l.b16 %v4286
    %v5353 = vunpack.c.l.b16 %v4287
    %v5354 = vunpack.c.h.b16 %v4287
    %v5355 = vunpack.c.l.b16 %v4288
    %v5356 = vunpack.c.h.b16 %v4288
    %v5357 = vunpack.c.l.b16 %v4289
    %v5358 = vunpack.c.h.b16 %v4289
    %v5359 = vunpack.c.l.b16 %v4290
    %v5360 = vunpack.c.l.b16 %v4291
    %v5361 = vunpack.c.h.b16 %v4291
    %v5362 = vunpack.c.l.b16 %v4292
    %v5363 = vunpack.c.h.b16 %v4292
    %v5364 = vunpack.c.l.b16 %v4293
    %v5365 = vunpack.c.h.b16 %v4293
    %v5366 = vunpack.c.l.b16 %v4294
    %v5367 = vunpack.c.l.b16 %v4295
    %v5368 = vunpack.c.h.b16 %v4295
    %v5369 = vunpack.c.l.b16 %v4296
    %v5370 = vunpack.c.h.b16 %v4296
    %v5371 = vunpack.c.l.b16 %v4297
    %v5372 = vunpack.c.h.b16 %v4297
    %v5373 = vunpack.c.l.b16 %v4298
    %v5374 = vunpack.c.l.b16 %v4299
    %v5375 = vunpack.c.h.b16 %v4299
    %v5376 = vunpack.c.l.b16 %v4300
    %v5377 = vunpack.c.h.b16 %v4300
    %v5378 = vunpack.c.l.b16 %v4301
    %v5379 = vunpack.c.h.b16 %v4301
    %v5380 = vunpack.c.l.b16 %v4302
    %v5381 = vunpack.c.l.b16 %v4303
    %v5382 = vunpack.c.h.b16 %v4303
    %v5383 = vunpack.c.l.b16 %v4304
    %v5384 = vunpack.c.h.b16 %v4304
    %v5385 = vunpack.c.l.b16 %v4305
    %v5386 = vunpack.c.h.b16 %v4305
    %v5387 = vunpack.c.l.b16 %v4306
    %v5388 = vunpack.c.l.b16 %v4307
    %v5389 = vunpack.c.h.b16 %v4307
    %v5390 = vunpack.c.l.b16 %v4308
    %v5391 = vunpack.c.h.b16 %v4308
    %v5392 = vunpack.c.l.b16 %v4309
    %v5393 = vunpack.c.h.b16 %v4309
    %v5394 = vunpack.c.l.b16 %v4310
    %v5395 = vunpack.c.l.b16 %v4311
    %v5396 = vunpack.c.h.b16 %v4311
    %v5397 = vunpack.c.l.b16 %v4312
    %v5398 = vunpack.c.h.b16 %v4312
    %v5399 = vunpack.c.l.b16 %v4313
    %v5400 = vunpack.c.h.b16 %v4313
    %v5401 = vunpack.c.l.b16 %v4314
    %v5402 = vunpack.c.l.b16 %v4315
    %v5403 = vunpack.c.h.b16 %v4315
    %v5404 = vunpack.c.l.b16 %v4316
    %v5405 = vunpack.c.h.b16 %v4316
    %v5406 = vunpack.c.l.b16 %v4317
    %v5407 = vunpack.c.h.b16 %v4317
    %v5408 = vunpack.c.l.b16 %v4318
    %v5409 = vunpack.c.l.b16 %v4319
    %v5410 = vunpack.c.h.b16 %v4319
    %v5411 = vunpack.c.l.b16 %v4320
    %v5412 = vunpack.c.h.b16 %v4320
    %v5413 = vunpack.c.l.b16 %v4321
    %v5414 = vunpack.c.h.b16 %v4321
    %v5415 = vunpack.c.l.b16 %v4322
    %v5416 = vunpack.c.l.b16 %v4323
    %v5417 = vunpack.c.h.b16 %v4323
    %v5418 = vunpack.c.l.b16 %v4324
    %v5419 = vunpack.c.h.b16 %v4324
    %v5420 = vunpack.c.l.b16 %v4325
    %v5421 = vunpack.c.h.b16 %v4325
    %v5422 = vunpack.c.l.b16 %v4326
    %v5423 = vunpack.c.l.b16 %v4327
    %v5424 = vunpack.c.h.b16 %v4327
    %v5425 = vunpack.c.l.b16 %v4328
    %v5426 = vunpack.c.h.b16 %v4328
    %v5427 = vunpack.c.l.b16 %v4329
    %v5428 = vunpack.c.h.b16 %v4329
    %v5429 = vunpack.c.l.b16 %v4330
    %v5430 = vunpack.c.l.b16 %v4331
    %v5431 = vunpack.c.h.b16 %v4331
    %v5432 = vunpack.c.l.b16 %v4332
    %v5433 = vunpack.c.h.b16 %v4332
    %v5434 = vunpack.c.l.b16 %v4333
    %v5435 = vunpack.c.h.b16 %v4333
    %v5436 = vunpack.c.l.b16 %v4334
    %v5437 = vunpack.c.l.b16 %v4335
    %v5438 = vunpack.c.h.b16 %v4335
    %v5439 = vunpack.c.l.b16 %v4336
    %v5440 = vunpack.c.h.b16 %v4336
    %v5441 = vunpack.c.l.b16 %v4337
    %v5442 = vunpack.c.h.b16 %v4337
    %v5443 = vunpack.c.l.b16 %v4338
    %v5444 = vunpack.c.l.b16 %v4339
    %v5445 = vunpack.c.h.b16 %v4339
    %v5446 = vunpack.c.l.b16 %v4340
    %v5447 = vunpack.c.h.b16 %v4340
    %v5448 = vunpack.c.l.b16 %v4341
    %v5449 = vunpack.c.h.b16 %v4341
    %v5450 = vunpack.c.l.b16 %v4342
    %v5451 = vunpack.c.l.b16 %v4343
    %v5452 = vunpack.c.h.b16 %v4343
    %v5453 = vunpack.c.l.b16 %v4344
    %v5454 = vunpack.c.h.b16 %v4344
    %v5455 = vunpack.c.l.b16 %v4345
    %v5456 = vunpack.c.h.b16 %v4345
    %v5457 = vunpack.c.l.b16 %v4346
    %v5458 = vunpack.c.l.b16 %v4347
    %v5459 = vunpack.c.h.b16 %v4347
    %v5460 = vunpack.c.l.b16 %v4348
    %v5461 = vunpack.c.h.b16 %v4348
    %v5462 = vunpack.c.l.b16 %v4349
    %v5463 = vunpack.c.h.b16 %v4349
    %v5464 = vunpack.c.l.b16 %v4350
    %v5465 = vunpack.c.l.b16 %v4351
    %v5466 = vunpack.c.h.b16 %v4351
    %v5467 = vunpack.c.l.b16 %v4352
    %v5468 = vunpack.c.h.b16 %v4352
    %v5469 = vunpack.c.l.b16 %v4353
    %v5470 = vunpack.c.h.b16 %v4353
    %v5471 = vunpack.c.l.b16 %v4354
    %v5472 = vunpack.c.l.b16 %v4355
    %v5473 = vunpack.c.h.b16 %v4355
    %v5474 = vunpack.c.l.b16 %v4356
    %v5475 = vunpack.c.h.b16 %v4356
    %v5476 = vunpack.c.l.b16 %v4357
    %v5477 = vunpack.c.h.b16 %v4357
    %v5478 = vunpack.c.l.b16 %v4358
    %v5479 = vunpack.c.l.b16 %v4359
    %v5480 = vunpack.c.h.b16 %v4359
    %v5481 = vunpack.c.l.b16 %v4360
    %v5482 = vunpack.c.h.b16 %v4360
    %v5483 = vunpack.c.l.b16 %v4361
    %v5484 = vunpack.c.h.b16 %v4361
    %v5485 = vunpack.c.l.b16 %v4362
    %v5486 = vunpack.c.l.b16 %v4363
    %v5487 = vunpack.c.h.b16 %v4363
    %v5488 = vunpack.c.l.b16 %v4364
    %v5489 = vunpack.c.h.b16 %v4364
    %v5490 = vunpack.c.l.b16 %v4365
    %v5491 = vunpack.c.h.b16 %v4365
    %v5492 = vunpack.c.l.b16 %v4366
    %v5493 = vunpack.c.l.b16 %v4367
    %v5494 = vunpack.c.h.b16 %v4367
    %v5495 = vunpack.c.l.b16 %v4368
    %v5496 = vunpack.c.h.b16 %v4368
    %v5497 = vunpack.c.l.b16 %v4369
    %v5498 = vunpack.c.h.b16 %v4369
    %v5499 = vunpack.c.l.b16 %v4370
    %v5500 = vunpack.c.l.b16 %v4371
    %v5501 = vunpack.c.h.b16 %v4371
    %v5502 = vunpack.c.l.b16 %v4372
    %v5503 = vunpack.c.h.b16 %v4372
    %v5504 = vunpack.c.l.b16 %v4373
    %v5505 = vunpack.c.h.b16 %v4373
    %v5506 = vunpack.c.l.b16 %v4374
    %v5507 = vunpack.c.l.b16 %v4375
    %v5508 = vunpack.c.h.b16 %v4375
    %v5509 = vunpack.c.l.b16 %v4376
    %v5510 = vunpack.c.h.b16 %v4376
    %v5511 = vunpack.c.l.b16 %v4377
    %v5512 = vunpack.c.h.b16 %v4377
    %v5513 = vunpack.c.l.b16 %v4378
    %v5514 = vunpack.c.l.b16 %v4379
    %v5515 = vunpack.c.h.b16 %v4379
    %v5516 = vunpack.c.l.b16 %v4380
    %v5517 = vunpack.c.h.b16 %v4380
    %v5518 = vunpack.c.l.b16 %v4381
    %v5519 = vunpack.c.h.b16 %v4381
    %v5520 = vunpack.c.l.b16 %v4382
    %v5521 = vunpack.c.l.b16 %v4383
    %v5522 = vunpack.c.h.b16 %v4383
    %v5523 = vunpack.c.l.b16 %v4384
    %v5524 = vunpack.c.h.b16 %v4384
    %v5525 = vunpack.c.l.b16 %v4385
    %v5526 = vunpack.c.h.b16 %v4385
    %v5527 = vunpack.c.l.b16 %v4386
    %v5528 = vunpack.c.l.b16 %v4387
    %v5529 = vunpack.c.h.b16 %v4387
    %v5530 = vunpack.c.l.b16 %v4388
    %v5531 = vunpack.c.h.b16 %v4388
    %v5532 = vunpack.c.l.b16 %v4389
    %v5533 = vunpack.c.h.b16 %v4389
    %v5534 = vunpack.c.l.b16 %v4390
    %v5535 = vunpack.c.l.b16 %v4391
    %v5536 = vunpack.c.h.b16 %v4391
    %v5537 = vunpack.c.l.b16 %v4392
    %v5538 = vunpack.c.h.b16 %v4392
    %v5539 = vunpack.c.l.b16 %v4393
    %v5540 = vunpack.c.h.b16 %v4393
    %v5541 = vunpack.c.l.b16 %v4394
    %v5542 = vunpack.c.l.b16 %v4395
    %v5543 = vunpack.c.h.b16 %v4395
    %v5544 = vunpack.c.l.b16 %v4396
    %v5545 = vunpack.c.h.b16 %v4396
    %v5546 = vunpack.c.l.b16 %v4397
    %v5547 = vunpack.c.h.b16 %v4397
    %v5548 = vunpack.c.l.b16 %v4398
    %v5549 = vunpack.c.l.b16 %v4399
    %v5550 = vunpack.c.h.b16 %v4399
    %v5551 = vunpack.c.l.b16 %v4400
    %v5552 = vunpack.c.h.b16 %v4400
    %v5553 = vunpack.c.l.b16 %v4401
    %v5554 = vunpack.c.h.b16 %v4401
    %v5555 = vunpack.c.l.b16 %v4402
    %v5556 = vunpack.c.l.b16 %v4403
    %v5557 = vunpack.c.h.b16 %v4403
    %v5558 = vunpack.c.l.b16 %v4404
    %v5559 = vunpack.c.h.b16 %v4404
    %v5560 = vunpack.c.l.b16 %v4405
    %v5561 = vunpack.c.h.b16 %v4405
    %v5562 = vunpack.c.l.b16 %v4406
    %v5563 = vunpack.c.l.b16 %v4407
    %v5564 = vunpack.c.h.b16 %v4407
    %v5565 = vunpack.c.l.b16 %v4408
    %v5566 = vunpack.c.h.b16 %v4408
    %v5567 = vunpack.c.l.b16 %v4409
    %v5568 = vunpack.c.h.b16 %v4409
    %v5569 = vunpack.c.l.b16 %v4410
    %v5570 = vunpack.c.l.b16 %v4411
    %v5571 = vunpack.c.h.b16 %v4411
    %v5572 = vunpack.c.l.b16 %v4412
    %v5573 = vunpack.c.h.b16 %v4412
    %v5574 = vunpack.c.l.b16 %v4413
    %v5575 = vunpack.c.h.b16 %v4413
    %v5576 = vunpack.c.l.b16 %v4414
    %v5577 = vunpack.c.l.b16 %v4415
    %v5578 = vunpack.c.h.b16 %v4415
    %v5579 = vunpack.c.l.b16 %v4416
    %v5580 = vunpack.c.h.b16 %v4416
    %v5581 = vunpack.c.l.b16 %v4417
    %v5582 = vunpack.c.h.b16 %v4417
    %v5583 = vunpack.c.l.b16 %v4418
    %v5584 = vunpack.c.l.b16 %v4419
    %v5585 = vunpack.c.h.b16 %v4419
    %v5586 = vunpack.c.l.b16 %v4420
    %v5587 = vunpack.c.h.b16 %v4420
    %v5588 = vunpack.c.l.b16 %v4421
    %v5589 = vunpack.c.h.b16 %v4421
    %v5590 = vunpack.c.l.b16 %v4422
    %v5591 = vunpack.c.l.b16 %v4423
    %v5592 = vunpack.c.h.b16 %v4423
    %v5593 = vunpack.c.l.b16 %v4424
    %v5594 = vunpack.c.h.b16 %v4424
    %v5595 = vunpack.c.l.b16 %v4425
    %v5596 = vunpack.c.h.b16 %v4425
    %v5597 = vunpack.c.l.b16 %v4426
    %v5598 = vunpack.c.l.b16 %v4427
    %v5599 = vunpack.c.h.b16 %v4427
    %v5600 = vunpack.c.l.b16 %v4428
    %v5601 = vunpack.c.h.b16 %v4428
    %v5602 = vunpack.c.l.b16 %v4429
    %v5603 = vunpack.c.h.b16 %v4429
    %v5604 = vunpack.c.l.b16 %v4430
    %v5605 = vunpack.c.l.b16 %v4431
    %v5606 = vunpack.c.h.b16 %v4431
    %v5607 = vunpack.c.l.b16 %v4432
    %v5608 = vunpack.c.h.b16 %v4432
    %v5609 = vunpack.c.l.b16 %v4433
    %v5610 = vunpack.c.h.b16 %v4433
    %v5611 = vunpack.c.l.b16 %v4434
    %v5612 = vunpack.c.l.b16 %v4435
    %v5613 = vunpack.c.h.b16 %v4435
    %v5614 = vunpack.c.l.b16 %v4436
    %v5615 = vunpack.c.h.b16 %v4436
    %v5616 = vunpack.c.l.b16 %v4437
    %v5617 = vunpack.c.h.b16 %v4437
    %v5618 = vunpack.c.l.b16 %v4438
    %v5619 = vunpack.c.l.b16 %v4439
    %v5620 = vunpack.c.h.b16 %v4439
    %v5621 = vunpack.c.l.b16 %v4440
    %v5622 = vunpack.c.h.b16 %v4440
    %v5623 = vunpack.c.l.b16 %v4441
    %v5624 = vunpack.c.h.b16 %v4441
    %v5625 = vunpack.c.l.b16 %v4442
    %v5626 = vunpack.c.l.b16 %v4443
    %v5627 = vunpack.c.h.b16 %v4443
    %v5628 = vunpack.c.l.b16 %v4444
    %v5629 = vunpack.c.h.b16 %v4444
    %v5630 = vunpack.c.l.b16 %v4445
    %v5631 = vunpack.c.h.b16 %v4445
    %v5632 = vunpack.c.l.b16 %v4446
    %v5633 = vunpack.c.l.b16 %v4447
    %v5634 = vunpack.c.h.b16 %v4447
    %v5635 = vunpack.c.l.b16 %v4448
    %v5636 = vunpack.c.h.b16 %v4448
    %v5637 = vunpack.c.l.b16 %v4449
    %v5638 = vunpack.c.h.b16 %v4449
    %v5639 = vunpack.c.l.b16 %v4450
    %v5640 = vunpack.c.l.b16 %v4451
    %v5641 = vunpack.c.h.b16 %v4451
    %v5642 = vunpack.c.l.b16 %v4452
    %v5643 = vunpack.c.h.b16 %v4452
    %v5644 = vunpack.c.l.b16 %v4453
    %v5645 = vunpack.c.h.b16 %v4453
    %v5646 = vunpack.c.l.b16 %v4454
    %v5647 = vunpack.c.l.b16 %v4455
    %v5648 = vunpack.c.h.b16 %v4455
    %v5649 = vunpack.c.l.b16 %v4456
    %v5650 = vunpack.c.h.b16 %v4456
    %v5651 = vunpack.c.l.b16 %v4457
    %v5652 = vunpack.c.h.b16 %v4457
    %v5653 = vunpack.c.l.b16 %v4458
    %v5654 = vunpack.c.l.b16 %v4459
    %v5655 = vunpack.c.h.b16 %v4459
    %v5656 = vunpack.c.l.b16 %v4460
    %v5657 = vunpack.c.h.b16 %v4460
    %v5658 = vunpack.c.l.b16 %v4461
    %v5659 = vunpack.c.h.b16 %v4461
    %v5660 = vunpack.c.l.b16 %v4462
    %v5661 = vunpack.c.l.b16 %v4463
    %v5662 = vunpack.c.h.b16 %v4463
    %v5663 = vunpack.c.l.b16 %v4464
    %v5664 = vunpack.c.h.b16 %v4464
    %v5665 = vunpack.c.l.b16 %v4465
    %v5666 = vunpack.c.h.b16 %v4465
    %v5667 = vunpack.c.l.b16 %v4466
    %v5668 = vunpack.c.l.b16 %v4467
    %v5669 = vunpack.c.h.b16 %v4467
    %v5670 = vunpack.c.l.b16 %v4468
    %v5671 = vunpack.c.h.b16 %v4468
    %v5672 = vunpack.c.l.b16 %v4469
    %v5673 = vunpack.c.h.b16 %v4469
    %v5674 = vunpack.c.l.b16 %v4470
    %v5675 = vunpack.c.l.b16 %v4471
    %v5676 = vunpack.c.h.b16 %v4471
    %v5677 = vunpack.c.l.b16 %v4472
    %v5678 = vunpack.c.h.b16 %v4472
    %v5679 = vunpack.c.l.b16 %v4473
    %v5680 = vunpack.c.h.b16 %v4473
    %v5681 = vunpack.c.l.b16 %v4474
    %v5682 = vunpack.c.l.b16 %v4475
    %v5683 = vunpack.c.h.b16 %v4475
    %v5684 = vunpack.c.l.b16 %v4476
    %v5685 = vunpack.c.h.b16 %v4476
    %v5686 = vunpack.c.l.b16 %v4477
    %v5687 = vunpack.c.h.b16 %v4477
    %v5688 = vunpack.c.l.b16 %v4478
    %v5689 = vunpack.c.l.b16 %v4479
    %v5690 = vunpack.c.h.b16 %v4479
    %v5691 = vunpack.c.l.b16 %v4480
    %v5692 = vunpack.c.h.b16 %v4480
    %v5693 = vunpack.c.l.b16 %v4481
    %v5694 = vunpack.c.h.b16 %v4481
    %v5695 = vunpack.c.l.b16 %v4482
    %v5696 = vunpack.c.l.b16 %v4483
    %v5697 = vunpack.c.h.b16 %v4483
    %v5698 = vunpack.c.l.b16 %v4484
    %v5699 = vunpack.c.h.b16 %v4484
    %v5700 = vunpack.c.l.b16 %v4485
    %v5701 = vunpack.c.h.b16 %v4485
    %v5702 = vunpack.c.l.b16 %v4486
    %v5703 = vunpack.c.l.b16 %v4487
    %v5704 = vunpack.c.h.b16 %v4487
    %v5705 = vunpack.c.l.b16 %v4488
    %v5706 = vunpack.c.h.b16 %v4488
    %v5707 = vunpack.c.l.b16 %v4489
    %v5708 = vunpack.c.h.b16 %v4489
    %v5709 = vunpack.c.l.b16 %v4490
    %v5710 = vunpack.c.l.b16 %v4491
    %v5711 = vunpack.c.h.b16 %v4491
    %v5712 = vunpack.c.l.b16 %v4492
    %v5713 = vunpack.c.h.b16 %v4492
    %v5714 = vunpack.c.l.b16 %v4493
    %v5715 = vunpack.c.h.b16 %v4493
    %v5716 = vunpack.c.l.b16 %v4494
    %v5717 = vunpack.c.l.b16 %v4495
    %v5718 = vunpack.c.h.b16 %v4495
    %v5719 = vunpack.c.l.b16 %v4496
    %v5720 = vunpack.c.h.b16 %v4496
    %v5721 = vunpack.c.l.b16 %v4497
    %v5722 = vunpack.c.h.b16 %v4497
    %v5723 = vunpack.c.l.b16 %v4498
    %v5724 = vunpack.c.l.b16 %v4499
    %v5725 = vunpack.c.h.b16 %v4499
    %v5726 = vunpack.c.l.b16 %v4500
    %v5727 = vunpack.c.h.b16 %v4500
    %v5728 = vunpack.c.l.b16 %v4501
    %v5729 = vunpack.c.h.b16 %v4501
    %v5730 = vunpack.c.l.b16 %v4502
    %v5731 = vunpack.c.l.b16 %v4503
    %v5732 = vunpack.c.h.b16 %v4503
    %v5733 = vunpack.c.l.b16 %v4504
    %v5734 = vunpack.c.h.b16 %v4504
    %v5735 = vunpack.c.l.b16 %v4505
    %v5736 = vunpack.c.h.b16 %v4505
    %v5737 = vunpack.c.l.b16 %v4506
    %v5738 = vunpack.c.l.b16 %v4507
    %v5739 = vunpack.c.h.b16 %v4507
    %v5740 = vunpack.c.l.b16 %v4508
    %v5741 = vunpack.c.h.b16 %v4508
    %v5742 = vunpack.c.l.b16 %v4509
    %v5743 = vunpack.c.h.b16 %v4509
    %v5744 = vunpack.c.l.b16 %v4510
    %v5745 = vunpack.c.l.b16 %v4511
    %v5746 = vunpack.c.h.b16 %v4511
    %v5747 = vunpack.c.l.b16 %v4512
    %v5748 = vunpack.c.h.b16 %v4512
    %v5749 = vunpack.c.l.b16 %v4513
    %v5750 = vunpack.c.h.b16 %v4513
    %v5751 = vunpack.c.l.b16 %v4514
    %v5752 = vunpack.c.l.b16 %v4515
    %v5753 = vunpack.c.h.b16 %v4515
    %v5754 = vunpack.c.l.b16 %v4516
    %v5755 = vunpack.c.h.b16 %v4516
    %v5756 = vunpack.c.l.b16 %v4517
    %v5757 = vunpack.c.h.b16 %v4517
    %v5758 = vunpack.c.l.b16 %v4518
    %v5759 = vunpack.c.l.b16 %v4519
    %v5760 = vunpack.c.h.b16 %v4519
    %v5761 = vunpack.c.l.b16 %v4520
    %v5762 = vunpack.c.h.b16 %v4520
    %v5763 = vunpack.c.l.b16 %v4521
    %v5764 = vunpack.c.h.b16 %v4521
    %v5765 = vunpack.c.l.b16 %v4522
    %v5766 = vunpack.c.l.b16 %v4523
    %v5767 = vunpack.c.h.b16 %v4523
    %v5768 = vunpack.c.l.b16 %v4524
    %v5769 = vunpack.c.h.b16 %v4524
    %v5770 = vunpack.c.l.b16 %v4525
    %v5771 = vunpack.c.h.b16 %v4525
    %v5772 = vunpack.c.l.b16 %v4526
    %v5773 = vunpack.c.l.b16 %v4527
    %v5774 = vunpack.c.h.b16 %v4527
    %v5775 = vunpack.c.l.b16 %v4528
    %v5776 = vunpack.c.h.b16 %v4528
    %v5777 = vunpack.c.l.b16 %v4529
    %v5778 = vunpack.c.h.b16 %v4529
    %v5779 = vunpack.c.l.b16 %v4530
    %v5780 = vunpack.c.l.b16 %v4531
    %v5781 = vunpack.c.h.b16 %v4531
    %v5782 = vunpack.c.l.b16 %v4532
    %v5783 = vunpack.c.h.b16 %v4532
    %v5784 = vunpack.c.l.b16 %v4533
    %v5785 = vunpack.c.h.b16 %v4533
    %v5786 = vunpack.c.l.b16 %v4534
    %v5787 = vunpack.c.l.b16 %v4535
    %v5788 = vunpack.c.h.b16 %v4535
    %v5789 = vunpack.c.l.b16 %v4536
    %v5790 = vunpack.c.h.b16 %v4536
    %v5791 = vunpack.c.l.b16 %v4537
    %v5792 = vunpack.c.h.b16 %v4537
    %v5793 = vunpack.c.l.b16 %v4538
    %v5794 = vunpack.c.l.b16 %v4539
    %v5795 = vunpack.c.h.b16 %v4539
    %v5796 = vunpack.c.l.b16 %v4540
    %v5797 = vunpack.c.h.b16 %v4540
    %v5798 = vunpack.c.l.b16 %v4541
    %v5799 = vunpack.c.h.b16 %v4541
    %v5800 = vunpack.c.l.b16 %v4542
    %v5801 = vunpack.c.l.b16 %v4543
    %v5802 = vunpack.c.h.b16 %v4543
    %v5803 = vunpack.c.l.b16 %v4544
    %v5804 = vunpack.c.h.b16 %v4544
    %v5805 = vunpack.c.l.b16 %v4545
    %v5806 = vunpack.c.h.b16 %v4545
    %v5807 = vunpack.c.l.b16 %v4546
    %v5808 = vunpack.c.l.b16 %v4547
    %v5809 = vunpack.c.h.b16 %v4547
    %v5810 = vunpack.c.l.b16 %v4548
    %v5811 = vunpack.c.h.b16 %v4548
    %v5812 = vunpack.c.l.b16 %v4549
    %v5813 = vunpack.c.h.b16 %v4549
    %v5814 = vunpack.c.l.b16 %v4550
    %v5815 = vunpack.c.l.b16 %v4551
    %v5816 = vunpack.c.h.b16 %v4551
    %v5817 = vunpack.c.l.b16 %v4552
    %v5818 = vunpack.c.h.b16 %v4552
    %v5819 = vunpack.c.l.b16 %v4553
    %v5820 = vunpack.c.h.b16 %v4553
    %v5821 = vunpack.c.l.b16 %v4554
    %v5822 = vunpack.c.l.b16 %v4555
    %v5823 = vunpack.c.h.b16 %v4555
    %v5824 = vunpack.c.l.b16 %v4556
    %v5825 = vunpack.c.h.b16 %v4556
    %v5826 = vunpack.c.l.b16 %v4557
    %v5827 = vunpack.c.h.b16 %v4557
    %v5828 = vunpack.c.l.b16 %v4558
    %v5829 = vunpack.c.l.b16 %v4559
    %v5830 = vunpack.c.h.b16 %v4559
    %v5831 = vunpack.c.l.b16 %v4560
    %v5832 = vunpack.c.h.b16 %v4560
    %v5833 = vunpack.c.l.b16 %v4561
    %v5834 = vunpack.c.h.b16 %v4561
    %v5835 = vunpack.c.l.b16 %v4562
    %v5836 = vunpack.c.l.b16 %v4563
    %v5837 = vunpack.c.h.b16 %v4563
    %v5838 = vunpack.c.l.b16 %v4564
    %v5839 = vunpack.c.h.b16 %v4564
    %v5840 = vunpack.c.l.b16 %v4565
    %v5841 = vunpack.c.h.b16 %v4565
    %v5842 = vunpack.c.l.b16 %v4566
    %v5843 = vunpack.c.l.b16 %v4567
    %v5844 = vunpack.c.h.b16 %v4567
    %v5845 = vunpack.c.l.b16 %v4568
    %v5846 = vunpack.c.h.b16 %v4568
    %v5847 = vunpack.c.l.b16 %v4569
    %v5848 = vunpack.c.h.b16 %v4569
    %v5849 = vunpack.c.l.b16 %v4570
    %v5850 = vunpack.c.l.b16 %v4571
    %v5851 = vunpack.c.h.b16 %v4571
    %v5852 = vunpack.c.l.b16 %v4572
    %v5853 = vunpack.c.h.b16 %v4572
    %v5854 = vunpack.c.l.b16 %v4573
    %v5855 = vunpack.c.h.b16 %v4573
    %v5856 = vunpack.c.l.b16 %v4574
    %v5857 = vunpack.c.l.b16 %v4575
    %v5858 = vunpack.c.h.b16 %v4575
    %v5859 = vunpack.c.l.b16 %v4576
    %v5860 = vunpack.c.h.b16 %v4576
    %v5861 = vunpack.c.l.b16 %v4577
    %v5862 = vunpack.c.h.b16 %v4577
    %v5863 = vunpack.c.l.b16 %v4578
    %v5864 = vunpack.c.l.b16 %v4579
    %v5865 = vunpack.c.h.b16 %v4579
    %v5866 = vunpack.c.l.b16 %v4580
    %v5867 = vunpack.c.h.b16 %v4580
    %v5868 = vunpack.c.l.b16 %v4581
    %v5869 = vunpack.c.h.b16 %v4581
    %v5870 = vunpack.c.l.b16 %v4582
    %v5871 = vunpack.c.l.b16 %v4583
    %v5872 = vunpack.c.h.b16 %v4583
    %v5873 = vunpack.c.l.b16 %v4584
    %v5874 = vunpack.c.h.b16 %v4584
    %v5875 = vunpack.c.l.b16 %v4585
    %v5876 = vunpack.c.h.b16 %v4585
    %v5877 = vunpack.c.l.b16 %v4586
    %v5878 = vunpack.c.l.b16 %v4587
    %v5879 = vunpack.c.h.b16 %v4587
    %v5880 = vunpack.c.l.b16 %v4588
    %v5881 = vunpack.c.h.b16 %v4588
    %v5882 = vunpack.c.l.b16 %v4589
    %v5883 = vunpack.c.h.b16 %v4589
    %v5884 = vunpack.c.l.b16 %v4590
    %v5885 = vunpack.c.l.b16 %v4591
    %v5886 = vunpack.c.h.b16 %v4591
    %v5887 = vunpack.c.l.b16 %v4592
    %v5888 = vunpack.c.h.b16 %v4592
    %v5889 = vunpack.c.l.b16 %v4593
    %v5890 = vunpack.c.h.b16 %v4593
    %v5891 = vunpack.c.l.b16 %v4594
    %v5892 = vunpack.c.l.b16 %v4595
    %v5893 = vunpack.c.h.b16 %v4595
    %v5894 = vunpack.c.l.b16 %v4596
    %v5895 = vunpack.c.h.b16 %v4596
    %v5896 = vunpack.c.l.b16 %v4597
    %v5897 = vunpack.c.h.b16 %v4597
    %v5898 = vunpack.c.l.b16 %v4598
    %v5899 = vunpack.c.l.b16 %v4599
    %v5900 = vunpack.c.h.b16 %v4599
    %v5901 = vunpack.c.l.b16 %v4600
    %v5902 = vunpack.c.h.b16 %v4600
    %v5903 = vunpack.c.l.b16 %v4601
    %v5904 = vunpack.c.h.b16 %v4601
    %v5905 = vunpack.c.l.b16 %v4602
    %v5906 = vunpack.c.l.b16 %v4603
    %v5907 = vunpack.c.h.b16 %v4603
    %v5908 = vunpack.c.l.b16 %v4604
    %v5909 = vunpack.c.h.b16 %v4604
    %v5910 = vunpack.c.l.b16 %v4605
    %v5911 = vunpack.c.h.b16 %v4605
    %v5912 = vunpack.c.l.b16 %v4606
    %v5913 = vunpack.c.l.b16 %v4607
    %v5914 = vunpack.c.h.b16 %v4607
    %v5915 = vunpack.c.l.b16 %v4608
    %v5916 = vunpack.c.h.b16 %v4608
    %v5917 = vunpack.c.l.b16 %v4609
    %v5918 = vunpack.c.h.b16 %v4609
    %v5919 = vunpack.c.l.b16 %v4610
    %v5920 = vunpack.c.l.b16 %v4611
    %v5921 = vunpack.c.h.b16 %v4611
    %v5922 = vunpack.c.l.b16 %v4612
    %v5923 = vunpack.c.h.b16 %v4612
    %v5924 = vunpack.c.l.b16 %v4613
    %v5925 = vunpack.c.h.b16 %v4613
    %v5926 = vunpack.c.l.b16 %v4614
    %v5927 = vunpack.c.l.b16 %v4615
    %v5928 = vunpack.c.h.b16 %v4615
    %v5929 = vunpack.c.l.b16 %v4616
    %v5930 = vunpack.c.h.b16 %v4616
    %v5931 = vunpack.c.l.b16 %v4617
    %v5932 = vunpack.c.h.b16 %v4617
    %v5933 = vunpack.c.l.b16 %v4618
    %v5934 = vunpack.c.l.b16 %v4619
    %v5935 = vunpack.c.h.b16 %v4619
    %v5936 = vunpack.c.l.b16 %v4620
    %v5937 = vunpack.c.h.b16 %v4620
    %v5938 = vunpack.c.l.b16 %v4621
    %v5939 = vunpack.c.h.b16 %v4621
    %v5940 = vunpack.c.l.b16 %v4622
    %v5941 = vunpack.c.l.b16 %v4623
    %v5942 = vunpack.c.h.b16 %v4623
    %v5943 = vunpack.c.l.b16 %v4624
    %v5944 = vunpack.c.h.b16 %v4624
    %v5945 = vunpack.c.l.b16 %v4625
    %v5946 = vunpack.c.h.b16 %v4625
    %v5947 = vunpack.c.l.b16 %v4626
    %v5948 = vunpack.c.l.b16 %v4627
    %v5949 = vunpack.c.h.b16 %v4627
    %v5950 = vunpack.c.l.b16 %v4628
    %v5951 = vunpack.c.h.b16 %v4628
    %v5952 = vunpack.c.l.b16 %v4629
    %v5953 = vunpack.c.h.b16 %v4629
    %v5954 = vunpack.c.l.b16 %v4630
    %v5955 = vunpack.c.l.b16 %v4631
    %v5956 = vunpack.c.h.b16 %v4631
    %v5957 = vunpack.c.l.b16 %v4632
    %v5958 = vunpack.c.h.b16 %v4632
    %v5959 = vunpack.c.l.b16 %v4633
    %v5960 = vunpack.c.h.b16 %v4633
    %v5961 = vunpack.c.l.b16 %v4634
    %v5962 = vunpack.c.l.b16 %v4635
    %v5963 = vunpack.c.h.b16 %v4635
    %v5964 = vunpack.c.l.b16 %v4636
    %v5965 = vunpack.c.h.b16 %v4636
    %v5966 = vunpack.c.l.b16 %v4637
    %v5967 = vunpack.c.h.b16 %v4637
    %v5968 = vunpack.c.l.b16 %v4638
    %v5969 = vunpack.c.l.b16 %v4639
    %v5970 = vunpack.c.h.b16 %v4639
    %v5971 = vunpack.c.l.b16 %v4640
    %v5972 = vunpack.c.h.b16 %v4640
    %v5973 = vunpack.c.l.b16 %v4641
    %v5974 = vunpack.c.h.b16 %v4641
    %v5975 = vunpack.c.l.b16 %v4642
    %v5976 = vunpack.c.l.b16 %v4643
    %v5977 = vunpack.c.h.b16 %v4643
    %v5978 = vunpack.c.l.b16 %v4644
    %v5979 = vunpack.c.h.b16 %v4644
    %v5980 = vunpack.c.l.b16 %v4645
    %v5981 = vunpack.c.h.b16 %v4645
    %v5982 = vunpack.c.l.b16 %v4646
    %v5983 = vunpack.c.l.b16 %v4647
    %v5984 = vunpack.c.h.b16 %v4647
    %v5985 = vunpack.c.l.b16 %v4648
    %v5986 = vunpack.c.h.b16 %v4648
    %v5987 = vunpack.c.l.b16 %v4649
    %v5988 = vunpack.c.h.b16 %v4649
    %v5989 = vunpack.c.l.b16 %v4650
    %v5990 = vunpack.c.l.b16 %v4651
    %v5991 = vunpack.c.h.b16 %v4651
    %v5992 = vunpack.c.l.b16 %v4652
    %v5993 = vunpack.c.h.b16 %v4652
    %v5994 = vunpack.c.l.b16 %v4653
    %v5995 = vunpack.c.h.b16 %v4653
    %v5996 = vunpack.c.l.b16 %v4654
    %v5997 = vunpack.c.l.b16 %v4655
    %v5998 = vunpack.c.h.b16 %v4655
    %v5999 = vunpack.c.l.b16 %v4656
    %v6000 = vunpack.c.h.b16 %v4656
    %v6001 = vunpack.c.l.b16 %v4657
    %v6002 = vunpack.c.h.b16 %v4657
    %v6003 = vunpack.c.l.b16 %v4658
    %v6004 = vunpack.c.l.b16 %v4659
    %v6005 = vunpack.c.h.b16 %v4659
    %v6006 = vunpack.c.l.b16 %v4660
    %v6007 = vunpack.c.h.b16 %v4660
    %v6008 = vunpack.c.l.b16 %v4661
    %v6009 = vunpack.c.h.b16 %v4661
    %v6010 = vunpack.c.l.b16 %v4662
    %v6011 = vunpack.c.l.b16 %v4663
    %v6012 = vunpack.c.h.b16 %v4663
    %v6013 = vunpack.c.l.b16 %v4664
    %v6014 = vunpack.c.h.b16 %v4664
    %v6015 = vunpack.c.l.b16 %v4665
    %v6016 = vunpack.c.h.b16 %v4665
    %v6017 = vunpack.c.l.b16 %v4666
    %v6018 = vunpack.c.l.b16 %v4667
    %v6019 = vunpack.c.h.b16 %v4667
    %v6020 = vunpack.c.l.b16 %v4668
    %v6021 = vunpack.c.h.b16 %v4668
    %v6022 = vunpack.c.l.b16 %v4669
    %v6023 = vunpack.c.h.b16 %v4669
    %v6024 = vunpack.c.l.b16 %v4670
    %v6025 = vunpack.c.l.b16 %v4671
    %v6026 = vunpack.c.h.b16 %v4671
    %v6027 = vunpack.c.l.b16 %v4672
    %v6028 = vunpack.c.h.b16 %v4672
    %v6029 = vunpack.c.l.b16 %v4673
    %v6030 = vunpack.c.h.b16 %v4673
    %v6031 = vunpack.c.l.b16 %v4674
    %v6032 = vunpack.c.l.b16 %v4675
    %v6033 = vunpack.c.h.b16 %v4675
    %v6034 = vunpack.c.l.b16 %v4676
    %v6035 = vunpack.c.h.b16 %v4676
    %v6036 = vunpack.c.l.b16 %v4677
    %v6037 = vunpack.c.h.b16 %v4677
    %v6038 = vunpack.c.l.b16 %v4678
    %v6039 = vunpack.c.l.b16 %v4679
    %v6040 = vunpack.c.h.b16 %v4679
    %v6041 = vunpack.c.l.b16 %v4680
    %v6042 = vunpack.c.h.b16 %v4680
    %v6043 = vunpack.c.l.b16 %v4681
    %v6044 = vunpack.c.h.b16 %v4681
    %v6045 = vunpack.c.l.b16 %v4682
    %v6046 = vunpack.c.l.b16 %v4683
    %v6047 = vunpack.c.h.b16 %v4683
    %v6048 = vunpack.c.l.b16 %v4684
    %v6049 = vunpack.c.h.b16 %v4684
    %v6050 = vunpack.c.l.b16 %v4685
    %v6051 = vunpack.c.h.b16 %v4685
    %v6052 = vunpack.c.l.b16 %v4686
    %v6053 = vunpack.c.l.b16 %v4687
    %v6054 = vunpack.c.h.b16 %v4687
    %v6055 = vunpack.c.l.b16 %v4688
    %v6056 = vunpack.c.h.b16 %v4688
    %v6057 = vunpack.c.l.b16 %v4689
    %v6058 = vunpack.c.h.b16 %v4689
    %v6059 = vunpack.c.l.b16 %v4690
    %v6060 = vunpack.c.l.b16 %v4691
    %v6061 = vunpack.c.h.b16 %v4691
    %v6062 = vunpack.c.l.b16 %v4692
    %v6063 = vunpack.c.h.b16 %v4692
    %v6064 = vunpack.c.l.b16 %v4693
    %v6065 = vunpack.c.h.b16 %v4693
    %v6066 = vunpack.c.l.b16 %v4694
    %v6067 = vunpack.c.l.b16 %v4695
    %v6068 = vunpack.c.h.b16 %v4695
    %v6069 = vunpack.c.l.b16 %v4696
    %v6070 = vunpack.c.h.b16 %v4696
    %v6071 = vunpack.c.l.b16 %v4697
    %v6072 = vunpack.c.h.b16 %v4697
    %v6073 = vunpack.c.l.b16 %v4698
    %v6074 = vunpack.c.l.b16 %v4699
    %v6075 = vunpack.c.h.b16 %v4699
    %v6076 = vunpack.c.l.b16 %v4700
    %v6077 = vunpack.c.h.b16 %v4700
    %v6078 = vunpack.c.l.b16 %v4701
    %v6079 = vunpack.c.h.b16 %v4701
    %v6080 = vunpack.c.l.b16 %v4702
    %v6081 = vunpack.c.l.b16 %v4703
    %v6082 = vunpack.c.h.b16 %v4703
    %v6083 = vunpack.c.l.b16 %v4704
    %v6084 = vunpack.c.h.b16 %v4704
    %v6085 = vunpack.c.l.b16 %v4705
    %v6086 = vunpack.c.h.b16 %v4705
    %v6087 = vunpack.c.l.b16 %v4706
    %v6088 = vunpack.c.l.b16 %v4707
    %v6089 = vunpack.c.h.b16 %v4707
    %v6090 = vunpack.c.l.b16 %v4708
    %v6091 = vunpack.c.h.b16 %v4708
    %v6092 = vunpack.c.l.b16 %v4709
    %v6093 = vunpack.c.h.b16 %v4709
    %v6094 = vunpack.c.l.b16 %v4710
    %v6095 = vunpack.c.l.b16 %v4711
    %v6096 = vunpack.c.h.b16 %v4711
    %v6097 = vunpack.c.l.b16 %v4712
    %v6098 = vunpack.c.h.b16 %v4712
    %v6099 = vunpack.c.l.b16 %v4713
    %v6100 = vunpack.c.h.b16 %v4713
    %v6101 = vunpack.c.l.b16 %v4714
    %v6102 = vunpack.c.l.b16 %v4715
    %v6103 = vunpack.c.h.b16 %v4715
    %v6104 = vunpack.c.l.b16 %v4716
    %v6105 = vunpack.c.h.b16 %v4716
    %v6106 = vunpack.c.l.b16 %v4717
    %v6107 = vunpack.c.h.b16 %v4717
    %v6108 = vunpack.c.l.b16 %v4718
    %v6109 = vunpack.c.l.b16 %v4719
    %v6110 = vunpack.c.h.b16 %v4719
    %v6111 = vunpack.c.l.b16 %v4720
    %v6112 = vunpack.c.h.b16 %v4720
    %v6113 = vunpack.c.l.b16 %v4721
    %v6114 = vunpack.c.h.b16 %v4721
    %v6115 = vunpack.c.l.b16 %v4722
    %v6116 = vunpack.c.l.b16 %v4723
    %v6117 = vunpack.c.h.b16 %v4723
    %v6118 = vunpack.c.l.b16 %v4724
    %v6119 = vunpack.c.h.b16 %v4724
    %v6120 = vunpack.c.l.b16 %v4725
    %v6121 = vunpack.c.h.b16 %v4725
    %v6122 = vunpack.c.l.b16 %v4726
    %v6123 = vunpack.c.l.b16 %v4727
    %v6124 = vunpack.c.h.b16 %v4727
    %v6125 = vunpack.c.l.b16 %v4728
    %v6126 = vunpack.c.h.b16 %v4728
    %v6127 = vunpack.c.l.b16 %v4729
    %v6128 = vunpack.c.h.b16 %v4729
    %v6129 = vunpack.c.l.b16 %v4730
    %v6130 = vunpack.c.l.b16 %v4731
    %v6131 = vunpack.c.h.b16 %v4731
    %v6132 = vunpack.c.l.b16 %v4732
    %v6133 = vunpack.c.h.b16 %v4732
    %v6134 = vunpack.c.l.b16 %v4733
    %v6135 = vunpack.c.h.b16 %v4733
    %v6136 = vunpack.c.l.b16 %v4734
    %v6137 = vunpack.c.l.b16 %v4735
    %v6138 = vunpack.c.h.b16 %v4735
    %v6139 = vunpack.c.l.b16 %v4736
    %v6140 = vunpack.c.h.b16 %v4736
    %v6141 = vunpack.c.l.b16 %v4737
    %v6142 = vunpack.c.h.b16 %v4737
    %v6143 = vunpack.c.l.b16 %v4738
    %v6144 = vunpack.c.l.b16 %v4739
    %v6145 = vunpack.c.h.b16 %v4739
    %v6146 = vunpack.c.l.b16 %v4740
    %v6147 = vunpack.c.h.b16 %v4740
    %v6148 = vunpack.c.l.b16 %v4741
    %v6149 = vunpack.c.h.b16 %v4741
    %v6150 = vunpack.c.l.b16 %v4742
    %v6151 = vpack.c.b16 %v5262, %v5255
    %v6152 = vpack.c.b16 %v5263, %v5256
    %v6153 = vpack.c.b16 %v5264, %v5257
    %v6154 = vpack.c.b16 %v5265, %v5258
    %v6155 = vpack.c.b16 %v5266, %v5259
    %v6156 = vpack.c.b16 %v5267, %v5260
    %v6157 = vpack.c.b16 %v5268, %v5261
    %v6158 = vpack.c.b16 %v5276, %v5269
    %v6159 = vpack.c.b16 %v5277, %v5270
    %v6160 = vpack.c.b16 %v5278, %v5271
    %v6161 = vpack.c.b16 %v5279, %v5272
    %v6162 = vpack.c.b16 %v5280, %v5273
    %v6163 = vpack.c.b16 %v5281, %v5274
    %v6164 = vpack.c.b16 %v5282, %v5275
    %v6165 = vpack.c.b16 %v5290, %v5283
    %v6166 = vpack.c.b16 %v5291, %v5284
    %v6167 = vpack.c.b16 %v5292, %v5285
    %v6168 = vpack.c.b16 %v5293, %v5286
    %v6169 = vpack.c.b16 %v5294, %v5287
    %v6170 = vpack.c.b16 %v5295, %v5288
    %v6171 = vpack.c.b16 %v5296, %v5289
    %v6172 = vpack.c.b16 %v5304, %v5297
    %v6173 = vpack.c.b16 %v5305, %v5298
    %v6174 = vpack.c.b16 %v5306, %v5299
    %v6175 = vpack.c.b16 %v5307, %v5300
    %v6176 = vpack.c.b16 %v5308, %v5301
    %v6177 = vpack.c.b16 %v5309, %v5302
    %v6178 = vpack.c.b16 %v5310, %v5303
    %v6179 = vpack.c.b16 %v5318, %v5311
    %v6180 = vpack.c.b16 %v5319, %v5312
    %v6181 = vpack.c.b16 %v5320, %v5313
    %v6182 = vpack.c.b16 %v5321, %v5314
    %v6183 = vpack.c.b16 %v5322, %v5315
    %v6184 = vpack.c.b16 %v5323, %v5316
    %v6185 = vpack.c.b16 %v5324, %v5317
    %v6186 = vpack.c.b16 %v5332, %v5325
    %v6187 = vpack.c.b16 %v5333, %v5326
    %v6188 = vpack.c.b16 %v5334, %v5327
    %v6189 = vpack.c.b16 %v5335, %v5328
    %v6190 = vpack.c.b16 %v5336, %v5329
    %v6191 = vpack.c.b16 %v5337, %v5330
    %v6192 = vpack.c.b16 %v5338, %v5331
    %v6193 = vpack.c.b16 %v5346, %v5339
    %v6194 = vpack.c.b16 %v5347, %v5340
    %v6195 = vpack.c.b16 %v5348, %v5341
    %v6196 = vpack.c.b16 %v5349, %v5342
    %v6197 = vpack.c.b16 %v5350, %v5343
    %v6198 = vpack.c.b16 %v5351, %v5344
    %v6199 = vpack.c.b16 %v5352, %v5345
    %v6200 = vpack.c.b16 %v5360, %v5353
    %v6201 = vpack.c.b16 %v5361, %v5354
    %v6202 = vpack.c.b16 %v5362, %v5355
    %v6203 = vpack.c.b16 %v5363, %v5356
    %v6204 = vpack.c.b16 %v5364, %v5357
    %v6205 = vpack.c.b16 %v5365, %v5358
    %v6206 = vpack.c.b16 %v5366, %v5359
    %v6207 = vpack.c.b16 %v5374, %v5367
    %v6208 = vpack.c.b16 %v5375, %v5368
    %v6209 = vpack.c.b16 %v5376, %v5369
    %v6210 = vpack.c.b16 %v5377, %v5370
    %v6211 = vpack.c.b16 %v5378, %v5371
    %v6212 = vpack.c.b16 %v5379, %v5372
    %v6213 = vpack.c.b16 %v5380, %v5373
    %v6214 = vpack.c.b16 %v5388, %v5381
    %v6215 = vpack.c.b16 %v5389, %v5382
    %v6216 = vpack.c.b16 %v5390, %v5383
    %v6217 = vpack.c.b16 %v5391, %v5384
    %v6218 = vpack.c.b16 %v5392, %v5385
    %v6219 = vpack.c.b16 %v5393, %v5386
    %v6220 = vpack.c.b16 %v5394, %v5387
    %v6221 = vpack.c.b16 %v5402, %v5395
    %v6222 = vpack.c.b16 %v5403, %v5396
    %v6223 = vpack.c.b16 %v5404, %v5397
    %v6224 = vpack.c.b16 %v5405, %v5398
    %v6225 = vpack.c.b16 %v5406, %v5399
    %v6226 = vpack.c.b16 %v5407, %v5400
    %v6227 = vpack.c.b16 %v5408, %v5401
    %v6228 = vpack.c.b16 %v5416, %v5409
    %v6229 = vpack.c.b16 %v5417, %v5410
    %v6230 = vpack.c.b16 %v5418, %v5411
    %v6231 = vpack.c.b16 %v5419, %v5412
    %v6232 = vpack.c.b16 %v5420, %v5413
    %v6233 = vpack.c.b16 %v5421, %v5414
    %v6234 = vpack.c.b16 %v5422, %v5415
    %v6235 = vpack.c.b16 %v5430, %v5423
    %v6236 = vpack.c.b16 %v5431, %v5424
    %v6237 = vpack.c.b16 %v5432, %v5425
    %v6238 = vpack.c.b16 %v5433, %v5426
    %v6239 = vpack.c.b16 %v5434, %v5427
    %v6240 = vpack.c.b16 %v5435, %v5428
    %v6241 = vpack.c.b16 %v5436, %v5429
    %v6242 = vpack.c.b16 %v5444, %v5437
    %v6243 = vpack.c.b16 %v5445, %v5438
    %v6244 = vpack.c.b16 %v5446, %v5439
    %v6245 = vpack.c.b16 %v5447, %v5440
    %v6246 = vpack.c.b16 %v5448, %v5441
    %v6247 = vpack.c.b16 %v5449, %v5442
    %v6248 = vpack.c.b16 %v5450, %v5443
    %v6249 = vpack.c.b16 %v5458, %v5451
    %v6250 = vpack.c.b16 %v5459, %v5452
    %v6251 = vpack.c.b16 %v5460, %v5453
    %v6252 = vpack.c.b16 %v5461, %v5454
    %v6253 = vpack.c.b16 %v5462, %v5455
    %v6254 = vpack.c.b16 %v5463, %v5456
    %v6255 = vpack.c.b16 %v5464, %v5457
    %v6256 = vpack.c.b16 %v5472, %v5465
    %v6257 = vpack.c.b16 %v5473, %v5466
    %v6258 = vpack.c.b16 %v5474, %v5467
    %v6259 = vpack.c.b16 %v5475, %v5468
    %v6260 = vpack.c.b16 %v5476, %v5469
    %v6261 = vpack.c.b16 %v5477, %v5470
    %v6262 = vpack.c.b16 %v5478, %v5471
    %v6263 = vpack.c.b16 %v5486, %v5479
    %v6264 = vpack.c.b16 %v5487, %v5480
    %v6265 = vpack.c.b16 %v5488, %v5481
    %v6266 = vpack.c.b16 %v5489, %v5482
    %v6267 = vpack.c.b16 %v5490, %v5483
    %v6268 = vpack.c.b16 %v5491, %v5484
    %v6269 = vpack.c.b16 %v5492, %v5485
    %v6270 = vpack.c.b16 %v5500, %v5493
    %v6271 = vpack.c.b16 %v5501, %v5494
    %v6272 = vpack.c.b16 %v5502, %v5495
    %v6273 = vpack.c.b16 %v5503, %v5496
    %v6274 = vpack.c.b16 %v5504, %v5497
    %v6275 = vpack.c.b16 %v5505, %v5498
    %v6276 = vpack.c.b16 %v5506, %v5499
    %v6277 = vpack.c.b16 %v5514, %v5507
    %v6278 = vpack.c.b16 %v5515, %v5508
    %v6279 = vpack.c.b16 %v5516, %v5509
    %v6280 = vpack.c.b16 %v5517, %v5510
    %v6281 = vpack.c.b16 %v5518, %v5511
    %v6282 = vpack.c.b16 %v5519, %v5512
    %v6283 = vpack.c.b16 %v5520, %v5513
    %v6284 = vpack.c.b16 %v5528, %v5521
    %v6285 = vpack.c.b16 %v5529, %v5522
    %v6286 = vpack.c.b16 %v5530, %v5523
    %v6287 = vpack.c.b16 %v5531, %v5524
    %v6288 = vpack.c.b16 %v5532, %v5525
    %v6289 = vpack.c.b16 %v5533, %v5526
    %v6290 = vpack.c.b16 %v5534, %v5527
    %v6291 = vpack.c.b16 %v5542, %v5535
    %v6292 = vpack.c.b16 %v5543, %v5536
    %v6293 = vpack.c.b16 %v5544, %v5537
    %v6294 = vpack.c.b16 %v5545, %v5538
    %v6295 = vpack.c.b16 %v5546, %v5539
    %v6296 = vpack.c.b16 %v5547, %v5540
    %v6297 = vpack.c.b16 %v5548, %v5541
    %v6298 = vpack.c.b16 %v5556, %v5549
    %v6299 = vpack.c.b16 %v5557, %v5550
    %v6300 = vpack.c.b16 %v5558, %v5551
    %v6301 = vpack.c.b16 %v5559, %v5552
    %v6302 = vpack.c.b16 %v5560, %v5553
    %v6303 = vpack.c.b16 %v5561, %v5554
    %v6304 = vpack.c.b16 %v5562, %v5555
    %v6305 = vpack.c.b16 %v5570, %v5563
    %v6306 = vpack.c.b16 %v5571, %v5564
    %v6307 = vpack.c.b16 %v5572, %v5565
    %v6308 = vpack.c.b16 %v5573, %v5566
    %v6309 = vpack.c.b16 %v5574, %v5567
    %v6310 = vpack.c.b16 %v5575, %v5568
    %v6311 = vpack.c.b16 %v5576, %v5569
    %v6312 = vpack.c.b16 %v5584, %v5577
    %v6313 = vpack.c.b16 %v5585, %v5578
    %v6314 = vpack.c.b16 %v5586, %v5579
    %v6315 = vpack.c.b16 %v5587, %v5580
    %v6316 = vpack.c.b16 %v5588, %v5581
    %v6317 = vpack.c.b16 %v5589, %v5582
    %v6318 = vpack.c.b16 %v5590, %v5583
    %v6319 = vpack.c.b16 %v5598, %v5591
    %v6320 = vpack.c.b16 %v5599, %v5592
    %v6321 = vpack.c.b16 %v5600, %v5593
    %v6322 = vpack.c.b16 %v5601, %v5594
    %v6323 = vpack.c.b16 %v5602, %v5595
    %v6324 = vpack.c.b16 %v5603, %v5596
    %v6325 = vpack.c.b16 %v5604, %v5597
    %v6326 = vpack.c.b16 %v5612, %v5605
    %v6327 = vpack.c.b16 %v5613, %v5606
    %v6328 = vpack.c.b16 %v5614, %v5607
    %v6329 = vpack.c.b16 %v5615, %v5608
    %v6330 = vpack.c.b16 %v5616, %v5609
    %v6331 = vpack.c.b16 %v5617, %v5610
    %v6332 = vpack.c.b16 %v5618, %v5611
    %v6333 = vpack.c.b16 %v5626, %v5619
    %v6334 = vpack.c.b16 %v5627, %v5620
    %v6335 = vpack.c.b16 %v5628, %v5621
    %v6336 = vpack.c.b16 %v5629, %v5622
    %v6337 = vpack.c.b16 %v5630, %v5623
    %v6338 = vpack.c.b16 %v5631, %v5624
    %v6339 = vpack.c.b16 %v5632, %v5625
    %v6340 = vpack.c.b16 %v5640, %v5633
    %v6341 = vpack.c.b16 %v5641, %v5634
    %v6342 = vpack.c.b16 %v5642, %v5635
    %v6343 = vpack.c.b16 %v5643, %v5636
    %v6344 = vpack.c.b16 %v5644, %v5637
    %v6345 = vpack.c.b16 %v5645, %v5638
    %v6346 = vpack.c.b16 %v5646, %v5639
    %v6347 = vpack.c.b16 %v5654, %v5647
    %v6348 = vpack.c.b16 %v5655, %v5648
    %v6349 = vpack.c.b16 %v5656, %v5649
    %v6350 = vpack.c.b16 %v5657, %v5650
    %v6351 = vpack.c.b16 %v5658, %v5651
    %v6352 = vpack.c.b16 %v5659, %v5652
    %v6353 = vpack.c.b16 %v5660, %v5653
    %v6354 = vpack.c.b16 %v5668, %v5661
    %v6355 = vpack.c.b16 %v5669, %v5662
    %v6356 = vpack.c.b16 %v5670, %v5663
    %v6357 = vpack.c.b16 %v5671, %v5664
    %v6358 = vpack.c.b16 %v5672, %v5665
    %v6359 = vpack.c.b16 %v5673, %v5666
    %v6360 = vpack.c.b16 %v5674, %v5667
    %v6361 = vpack.c.b16 %v5682, %v5675
    %v6362 = vpack.c.b16 %v5683, %v5676
    %v6363 = vpack.c.b16 %v5684, %v5677
    %v6364 = vpack.c.b16 %v5685, %v5678
    %v6365 = vpack.c.b16 %v5686, %v5679
    %v6366 = vpack.c.b16 %v5687, %v5680
    %v6367 = vpack.c.b16 %v5688, %v5681
    %v6368 = vpack.c.b16 %v5696, %v5689
    %v6369 = vpack.c.b16 %v5697, %v5690
    %v6370 = vpack.c.b16 %v5698, %v5691
    %v6371 = vpack.c.b16 %v5699, %v5692
    %v6372 = vpack.c.b16 %v5700, %v5693
    %v6373 = vpack.c.b16 %v5701, %v5694
    %v6374 = vpack.c.b16 %v5702, %v5695
    %v6375 = vpack.c.b16 %v5710, %v5703
    %v6376 = vpack.c.b16 %v5711, %v5704
    %v6377 = vpack.c.b16 %v5712, %v5705
    %v6378 = vpack.c.b16 %v5713, %v5706
    %v6379 = vpack.c.b16 %v5714, %v5707
    %v6380 = vpack.c.b16 %v5715, %v5708
    %v6381 = vpack.c.b16 %v5716, %v5709
    %v6382 = vpack.c.b16 %v5724, %v5717
    %v6383 = vpack.c.b16 %v5725, %v5718
    %v6384 = vpack.c.b16 %v5726, %v5719
    %v6385 = vpack.c.b16 %v5727, %v5720
    %v6386 = vpack.c.b16 %v5728, %v5721
    %v6387 = vpack.c.b16 %v5729, %v5722
    %v6388 = vpack.c.b16 %v5730, %v5723
    %v6389 = vpack.c.b16 %v5738, %v5731
    %v6390 = vpack.c.b16 %v5739, %v5732
    %v6391 = vpack.c.b16 %v5740, %v5733
    %v6392 = vpack.c.b16 %v5741, %v5734
    %v6393 = vpack.c.b16 %v5742, %v5735
    %v6394 = vpack.c.b16 %v5743, %v5736
    %v6395 = vpack.c.b16 %v5744, %v5737
    %v6396 = vpack.c.b16 %v5752, %v5745
    %v6397 = vpack.c.b16 %v5753, %v5746
    %v6398 = vpack.c.b16 %v5754, %v5747
    %v6399 = vpack.c.b16 %v5755, %v5748
    %v6400 = vpack.c.b16 %v5756, %v5749
    %v6401 = vpack.c.b16 %v5757, %v5750
    %v6402 = vpack.c.b16 %v5758, %v5751
    %v6403 = vpack.c.b16 %v5766, %v5759
    %v6404 = vpack.c.b16 %v5767, %v5760
    %v6405 = vpack.c.b16 %v5768, %v5761
    %v6406 = vpack.c.b16 %v5769, %v5762
    %v6407 = vpack.c.b16 %v5770, %v5763
    %v6408 = vpack.c.b16 %v5771, %v5764
    %v6409 = vpack.c.b16 %v5772, %v5765
    %v6410 = vpack.c.b16 %v5780, %v5773
    %v6411 = vpack.c.b16 %v5781, %v5774
    %v6412 = vpack.c.b16 %v5782, %v5775
    %v6413 = vpack.c.b16 %v5783, %v5776
    %v6414 = vpack.c.b16 %v5784, %v5777
    %v6415 = vpack.c.b16 %v5785, %v5778
    %v6416 = vpack.c.b16 %v5786, %v5779
    %v6417 = vpack.c.b16 %v5794, %v5787
    %v6418 = vpack.c.b16 %v5795, %v5788
    %v6419 = vpack.c.b16 %v5796, %v5789
    %v6420 = vpack.c.b16 %v5797, %v5790
    %v6421 = vpack.c.b16 %v5798, %v5791
    %v6422 = vpack.c.b16 %v5799, %v5792
    %v6423 = vpack.c.b16 %v5800, %v5793
    %v6424 = vpack.c.b16 %v5808, %v5801
    %v6425 = vpack.c.b16 %v5809, %v5802
    %v6426 = vpack.c.b16 %v5810, %v5803
    %v6427 = vpack.c.b16 %v5811, %v5804
    %v6428 = vpack.c.b16 %v5812, %v5805
    %v6429 = vpack.c.b16 %v5813, %v5806
    %v6430 = vpack.c.b16 %v5814, %v5807
    %v6431 = vpack.c.b16 %v5822, %v5815
    %v6432 = vpack.c.b16 %v5823, %v5816
    %v6433 = vpack.c.b16 %v5824, %v5817
    %v6434 = vpack.c.b16 %v5825, %v5818
    %v6435 = vpack.c.b16 %v5826, %v5819
    %v6436 = vpack.c.b16 %v5827, %v5820
    %v6437 = vpack.c.b16 %v5828, %v5821
    %v6438 = vpack.c.b16 %v5836, %v5829
    %v6439 = vpack.c.b16 %v5837, %v5830
    %v6440 = vpack.c.b16 %v5838, %v5831
    %v6441 = vpack.c.b16 %v5839, %v5832
    %v6442 = vpack.c.b16 %v5840, %v5833
    %v6443 = vpack.c.b16 %v5841, %v5834
    %v6444 = vpack.c.b16 %v5842, %v5835
    %v6445 = vpack.c.b16 %v5850, %v5843
    %v6446 = vpack.c.b16 %v5851, %v5844
    %v6447 = vpack.c.b16 %v5852, %v5845
    %v6448 = vpack.c.b16 %v5853, %v5846
    %v6449 = vpack.c.b16 %v5854, %v5847
    %v6450 = vpack.c.b16 %v5855, %v5848
    %v6451 = vpack.c.b16 %v5856, %v5849
    %v6452 = vpack.c.b16 %v5864, %v5857
    %v6453 = vpack.c.b16 %v5865, %v5858
    %v6454 = vpack.c.b16 %v5866, %v5859
    %v6455 = vpack.c.b16 %v5867, %v5860
    %v6456 = vpack.c.b16 %v5868, %v5861
    %v6457 = vpack.c.b16 %v5869, %v5862
    %v6458 = vpack.c.b16 %v5870, %v5863
    %v6459 = vpack.c.b16 %v5878, %v5871
    %v6460 = vpack.c.b16 %v5879, %v5872
    %v6461 = vpack.c.b16 %v5880, %v5873
    %v6462 = vpack.c.b16 %v5881, %v5874
    %v6463 = vpack.c.b16 %v5882, %v5875
    %v6464 = vpack.c.b16 %v5883, %v5876
    %v6465 = vpack.c.b16 %v5884, %v5877
    %v6466 = vpack.c.b16 %v5892, %v5885
    %v6467 = vpack.c.b16 %v5893, %v5886
    %v6468 = vpack.c.b16 %v5894, %v5887
    %v6469 = vpack.c.b16 %v5895, %v5888
    %v6470 = vpack.c.b16 %v5896, %v5889
    %v6471 = vpack.c.b16 %v5897, %v5890
    %v6472 = vpack.c.b16 %v5898, %v5891
    %v6473 = vpack.c.b16 %v5906, %v5899
    %v6474 = vpack.c.b16 %v5907, %v5900
    %v6475 = vpack.c.b16 %v5908, %v5901
    %v6476 = vpack.c.b16 %v5909, %v5902
    %v6477 = vpack.c.b16 %v5910, %v5903
    %v6478 = vpack.c.b16 %v5911, %v5904
    %v6479 = vpack.c.b16 %v5912, %v5905
    %v6480 = vpack.c.b16 %v5920, %v5913
    %v6481 = vpack.c.b16 %v5921, %v5914
    %v6482 = vpack.c.b16 %v5922, %v5915
    %v6483 = vpack.c.b16 %v5923, %v5916
    %v6484 = vpack.c.b16 %v5924, %v5917
    %v6485 = vpack.c.b16 %v5925, %v5918
    %v6486 = vpack.c.b16 %v5926, %v5919
    %v6487 = vpack.c.b16 %v5934, %v5927
    %v6488 = vpack.c.b16 %v5935, %v5928
    %v6489 = vpack.c.b16 %v5936, %v5929
    %v6490 = vpack.c.b16 %v5937, %v5930
    %v6491 = vpack.c.b16 %v5938, %v5931
    %v6492 = vpack.c.b16 %v5939, %v5932
    %v6493 = vpack.c.b16 %v5940, %v5933
    %v6494 = vpack.c.b16 %v5948, %v5941
    %v6495 = vpack.c.b16 %v5949, %v5942
    %v6496 = vpack.c.b16 %v5950, %v5943
    %v6497 = vpack.c.b16 %v5951, %v5944
    %v6498 = vpack.c.b16 %v5952, %v5945
    %v6499 = vpack.c.b16 %v5953, %v5946
    %v6500 = vpack.c.b16 %v5954, %v5947
    %v6501 = vpack.c.b16 %v5962, %v5955
    %v6502 = vpack.c.b16 %v5963, %v5956
    %v6503 = vpack.c.b16 %v5964, %v5957
    %v6504 = vpack.c.b16 %v5965, %v5958
    %v6505 = vpack.c.b16 %v5966, %v5959
    %v6506 = vpack.c.b16 %v5967, %v5960
    %v6507 = vpack.c.b16 %v5968, %v5961
    %v6508 = vpack.c.b16 %v5976, %v5969
    %v6509 = vpack.c.b16 %v5977, %v5970
    %v6510 = vpack.c.b16 %v5978, %v5971
    %v6511 = vpack.c.b16 %v5979, %v5972
    %v6512 = vpack.c.b16 %v5980, %v5973
    %v6513 = vpack.c.b16 %v5981, %v5974
    %v6514 = vpack.c.b16 %v5982, %v5975
    %v6515 = vpack.c.b16 %v5990, %v5983
    %v6516 = vpack.c.b16 %v5991, %v5984
    %v6517 = vpack.c.b16 %v5992, %v5985
    %v6518 = vpack.c.b16 %v5993, %v5986
    %v6519 = vpack.c.b16 %v5994, %v5987
    %v6520 = vpack.c.b16 %v5995, %v5988
    %v6521 = vpack.c.b16 %v5996, %v5989
    %v6522 = vpack.c.b16 %v6004, %v5997
    %v6523 = vpack.c.b16 %v6005, %v5998
    %v6524 = vpack.c.b16 %v6006, %v5999
    %v6525 = vpack.c.b16 %v6007, %v6000
    %v6526 = vpack.c.b16 %v6008, %v6001
    %v6527 = vpack.c.b16 %v6009, %v6002
    %v6528 = vpack.c.b16 %v6010, %v6003
    %v6529 = vpack.c.b16 %v6018, %v6011
    %v6530 = vpack.c.b16 %v6019, %v6012
    %v6531 = vpack.c.b16 %v6020, %v6013
    %v6532 = vpack.c.b16 %v6021, %v6014
    %v6533 = vpack.c.b16 %v6022, %v6015
    %v6534 = vpack.c.b16 %v6023, %v6016
    %v6535 = vpack.c.b16 %v6024, %v6017
    %v6536 = vpack.c.b16 %v6032, %v6025
    %v6537 = vpack.c.b16 %v6033, %v6026
    %v6538 = vpack.c.b16 %v6034, %v6027
    %v6539 = vpack.c.b16 %v6035, %v6028
    %v6540 = vpack.c.b16 %v6036, %v6029
    %v6541 = vpack.c.b16 %v6037, %v6030
    %v6542 = vpack.c.b16 %v6038, %v6031
    %v6543 = vpack.c.b16 %v6046, %v6039
    %v6544 = vpack.c.b16 %v6047, %v6040
    %v6545 = vpack.c.b16 %v6048, %v6041
    %v6546 = vpack.c.b16 %v6049, %v6042
    %v6547 = vpack.c.b16 %v6050, %v6043
    %v6548 = vpack.c.b16 %v6051, %v6044
    %v6549 = vpack.c.b16 %v6052, %v6045
    %v6550 = vpack.c.b16 %v6060, %v6053
    %v6551 = vpack.c.b16 %v6061, %v6054
    %v6552 = vpack.c.b16 %v6062, %v6055
    %v6553 = vpack.c.b16 %v6063, %v6056
    %v6554 = vpack.c.b16 %v6064, %v6057
    %v6555 = vpack.c.b16 %v6065, %v6058
    %v6556 = vpack.c.b16 %v6066, %v6059
    %v6557 = vpack.c.b16 %v6074, %v6067
    %v6558 = vpack.c.b16 %v6075, %v6068
    %v6559 = vpack.c.b16 %v6076, %v6069
    %v6560 = vpack.c.b16 %v6077, %v6070
    %v6561 = vpack.c.b16 %v6078, %v6071
    %v6562 = vpack.c.b16 %v6079, %v6072
    %v6563 = vpack.c.b16 %v6080, %v6073
    %v6564 = vpack.c.b16 %v6088, %v6081
    %v6565 = vpack.c.b16 %v6089, %v6082
    %v6566 = vpack.c.b16 %v6090, %v6083
    %v6567 = vpack.c.b16 %v6091, %v6084
    %v6568 = vpack.c.b16 %v6092, %v6085
    %v6569 = vpack.c.b16 %v6093, %v6086
    %v6570 = vpack.c.b16 %v6094, %v6087
    %v6571 = vpack.c.b16 %v6102, %v6095
    %v6572 = vpack.c.b16 %v6103, %v6096
    %v6573 = vpack.c.b16 %v6104, %v6097
    %v6574 = vpack.c.b16 %v6105, %v6098
    %v6575 = vpack.c.b16 %v6106, %v6099
    %v6576 = vpack.c.b16 %v6107, %v6100
    %v6577 = vpack.c.b16 %v6108, %v6101
    %v6578 = vpack.c.b16 %v6116, %v6109
    %v6579 = vpack.c.b16 %v6117, %v6110
    %v6580 = vpack.c.b16 %v6118, %v6111
    %v6581 = vpack.c.b16 %v6119, %v6112
    %v6582 = vpack.c.b16 %v6120, %v6113
    %v6583 = vpack.c.b16 %v6121, %v6114
    %v6584 = vpack.c.b16 %v6122, %v6115
    %v6585 = vpack.c.b16 %v6130, %v6123
    %v6586 = vpack.c.b16 %v6131, %v6124
    %v6587 = vpack.c.b16 %v6132, %v6125
    %v6588 = vpack.c.b16 %v6133, %v6126
    %v6589 = vpack.c.b16 %v6134, %v6127
    %v6590 = vpack.c.b16 %v6135, %v6128
    %v6591 = vpack.c.b16 %v6136, %v6129
    %v6592 = vpack.c.b16 %v6144, %v6137
    %v6593 = vpack.c.b16 %v6145, %v6138
    %v6594 = vpack.c.b16 %v6146, %v6139
    %v6595 = vpack.c.b16 %v6147, %v6140
    %v6596 = vpack.c.b16 %v6148, %v6141
    %v6597 = vpack.c.b16 %v6149, %v6142
    %v6598 = vpack.c.b16 %v6150, %v6143
    %7047 = vmatprep.subr.bf16.mxu0 %v6152
    %7048 = vmatpush1.bf16.msra.mxu0 %v6151
    %7049 = vmatprep.subr.bf16.mxu0 %v6159
    %7050 = vmatpush1.bf16.msra.mxu0 %v6158
    %7051 = vmatprep.subr.bf16.mxu0 %v6166
    %7052 = vmatpush1.bf16.msra.mxu0 %v6165
    %7053 = vmatprep.subr.bf16.mxu0 %v6173
    %7054 = vmatpush1.bf16.msra.mxu0 %v6172
    %7055 = vmatprep.subr.bf16.mxu0 %v6180
    %7056 = vmatpush1.bf16.msra.mxu0 %v6179
    %7057 = vmatprep.subr.bf16.mxu0 %v6187
    %7058 = vmatpush1.bf16.msra.mxu0 %v6186
    %7059 = vmatprep.subr.bf16.mxu0 %v6194
    %7060 = vmatpush1.bf16.msra.mxu0 %v6193
    %7061 = vmatprep.subr.bf16.mxu0 %v6201
    %7062 = vmatpush1.bf16.msra.mxu0 %v6200
    %7063 = vmatprep.subr.bf16.mxu0 %v6208
    %7064 = vmatpush1.bf16.msra.mxu0 %v6207
    %7065 = vmatprep.subr.bf16.mxu0 %v6215
    %7066 = vmatpush1.bf16.msra.mxu0 %v6214
    %7067 = vmatprep.subr.bf16.mxu0 %v6222
    %7068 = vmatpush1.bf16.msra.mxu0 %v6221
    %7069 = vmatprep.subr.bf16.mxu0 %v6229
    %7070 = vmatpush1.bf16.msra.mxu0 %v6228
    %7071 = vmatprep.subr.bf16.mxu0 %v6236
    %7072 = vmatpush1.bf16.msra.mxu0 %v6235
    %7073 = vmatprep.subr.bf16.mxu0 %v6243
    %7074 = vmatpush1.bf16.msra.mxu0 %v6242
    %7075 = vmatprep.subr.bf16.mxu0 %v6250
    %7076 = vmatpush1.bf16.msra.mxu0 %v6249
    %7077 = vmatprep.subr.bf16.mxu0 %v6257
    %7078 = vmatpush1.bf16.msra.mxu0 %v6256
    %7079 = vmatprep.mubr.bf16.mxu0 %v4168
    %7080 = vmatmul.mubr.bf16.gmra.mrb[0].mxu0 %v4167
    %v7081 = vpop.f32.mrb[0].mxu0
    %v7082 = vadd.f32 0.0, %v7081
    %v7083 = vpop.f32.mrb[0].mxu0
    %v7084 = vadd.f32 0.0, %v7083
    %v7085 = vpop.f32.mrb[0].mxu0
    %v7086 = vadd.f32 0.0, %v7085
    %v7087 = vpop.f32.mrb[0].mxu0
    %v7088 = vadd.f32 0.0, %v7087
    %7089 = vmatprep.mubr.bf16.mxu0 %v4176
    %7090 = vmatmul.mubr.bf16.gmra.mrb[0].mxu0 %v4175
    %v7091 = vpop.f32.mrb[0].mxu0
    %v7092 = vadd.f32 0.0, %v7091
    %v7093 = vpop.f32.mrb[0].mxu0
    %v7094 = vadd.f32 0.0, %v7093
    %v7095 = vpop.f32.mrb[0].mxu0
    %v7096 = vadd.f32 0.0, %v7095
    %v7097 = vpop.f32.mrb[0].mxu0
    %v7098 = vadd.f32 0.0, %v7097
    %7099 = vmatprep.mubr.bf16.mxu0 %v4184
    %7100 = vmatmul.mubr.bf16.gmra.mrb[0].mxu0 %v4183
    %v7101 = vpop.f32.mrb[0].mxu0
    %v7102 = vadd.f32 0.0, %v7101
    %v7103 = vpop.f32.mrb[0].mxu0
    %v7104 = vadd.f32 0.0, %v7103
    %v7105 = vpop.f32.mrb[0].mxu0
    %v7106 = vadd.f32 0.0, %v7105
    %v7107 = vpop.f32.mrb[0].mxu0
    %v7108 = vadd.f32 0.0, %v7107
    %7109 = vmatprep.mubr.bf16.mxu0 %v4192
    %7110 = vmatmul.mubr.bf16.gmra.mrb[0].mxu0 %v4191
    %v7111 = vpop.f32.mrb[0].mxu0
    %v7112 = vadd.f32 0.0, %v7111
    %v7113 = vpop.f32.mrb[0].mxu0
    %v7114 = vadd.f32 0.0, %v7113
    %v7115 = vpop.f32.mrb[0].mxu0
    %v7116 = vadd.f32 0.0, %v7115
    %v7117 = vpop.f32.mrb[0].mxu0
    %v7118 = vadd.f32 0.0, %v7117
    %7119 = vmatprep.mubr.bf16.mxu0 %v4200
    %7120 = vmatmul.mubr.bf16.gmra.mrb[0].mxu0 %v4199
    %v7121 = vpop.f32.mrb[0].mxu0
    %v7122 = vadd.f32 0.0, %v7121
    %v7123 = vpop.f32.mrb[0].mxu0
    %v7124 = vadd.f32 0.0, %v7123
    %v7125 = vpop.f32.mrb[0].mxu0
    %v7126 = vadd.f32 0.0, %v7125
    %v7127 = vpop.f32.mrb[0].mxu0
    %v7128 = vadd.f32 0.0, %v7127
    %7129 = vmatprep.mubr.bf16.mxu0 %v4208
    %7130 = vmatmul.mubr.bf16.gmra.mrb[0].mxu0 %v4207
    %v7131 = vpop.f32.mrb[0].mxu0
    %v7132 = vadd.f32 0.0, %v7131
    %v7133 = vpop.f32.mrb[0].mxu0
    %v7134 = vadd.f32 0.0, %v7133
    %v7135 = vpop.f32.mrb[0].mxu0
    %v7136 = vadd.f32 0.0, %v7135
    %v7137 = vpop.f32.mrb[0].mxu0
    %v7138 = vadd.f32 0.0, %v7137
    %7139 = vmatprep.mubr.bf16.mxu0 %v4216
    %7140 = vmatmul.mubr.bf16.gmra.mrb[0].mxu0 %v4215
    %v7141 = vpop.f32.mrb[0].mxu0
    %v7142 = vadd.f32 0.0, %v7141
    %v7143 = vpop.f32.mrb[0].mxu0
    %v7144 = vadd.f32 0.0, %v7143
    %v7145 = vpop.f32.mrb[0].mxu0
    %v7146 = vadd.f32 0.0, %v7145
    %v7147 = vpop.f32.mrb[0].mxu0
    %v7148 = vadd.f32 0.0, %v7147
    %7149 = vmatprep.mubr.bf16.mxu0 %v4224
    %7150 = vmatmul.mubr.bf16.gmra.mrb[0].mxu0 %v4223
    %v7151 = vpop.f32.mrb[0].mxu0
    %v7152 = vadd.f32 0.0, %v7151
    %v7153 = vpop.f32.mrb[0].mxu0
    %v7154 = vadd.f32 0.0, %v7153
    %v7155 = vpop.f32.mrb[0].mxu0
    %v7156 = vadd.f32 0.0, %v7155
    %v7157 = vpop.f32.mrb[0].mxu0
    %v7158 = vadd.f32 0.0, %v7157
    %7159 = vdwg.mxu0
    %7160 = vmatprep.subr.bf16.mxu0 %v6264
    %7161 = vmatpush1.bf16.msra.mxu0 %v6263
    %7162 = vmatprep.subr.bf16.mxu0 %v6271
    %7163 = vmatpush1.bf16.msra.mxu0 %v6270
    %7164 = vmatprep.subr.bf16.mxu0 %v6278
    %7165 = vmatpush1.bf16.msra.mxu0 %v6277
    %7166 = vmatprep.subr.bf16.mxu0 %v6285
    %7167 = vmatpush1.bf16.msra.mxu0 %v6284
    %7168 = vmatprep.subr.bf16.mxu0 %v6292
    %7169 = vmatpush1.bf16.msra.mxu0 %v6291
    %7170 = vmatprep.subr.bf16.mxu0 %v6299
    %7171 = vmatpush1.bf16.msra.mxu0 %v6298
    %7172 = vmatprep.subr.bf16.mxu0 %v6306
    %7173 = vmatpush1.bf16.msra.mxu0 %v6305
    %7174 = vmatprep.subr.bf16.mxu0 %v6313
    %7175 = vmatpush1.bf16.msra.mxu0 %v6312
    %7176 = vmatprep.subr.bf16.mxu0 %v6320
    %7177 = vmatpush1.bf16.msra.mxu0 %v6319
    %7178 = vmatprep.subr.bf16.mxu0 %v6327
    %7179 = vmatpush1.bf16.msra.mxu0 %v6326
    %7180 = vmatprep.subr.bf16.mxu0 %v6334
    %7181 = vmatpush1.bf16.msra.mxu0 %v6333
    %7182 = vmatprep.subr.bf16.mxu0 %v6341
    %7183 = vmatpush1.bf16.msra.mxu0 %v6340
    %7184 = vmatprep.subr.bf16.mxu0 %v6348
    %7185 = vmatpush1.bf16.msra.mxu0 %v6347
    %7186 = vmatprep.subr.bf16.mxu0 %v6355
    %7187 = vmatpush1.bf16.msra.mxu0 %v6354
    %7188 = vmatprep.subr.bf16.mxu0 %v6362
    %7189 = vmatpush1.bf16.msra.mxu0 %v6361
    %7190 = vmatprep.subr.bf16.mxu0 %v6369
    %7191 = vmatpush1.bf16.msra.mxu0 %v6368
    %7192 = vmatprep.mubr.bf16.mxu0 %v4170
    %7193 = vmatmul.mubr.bf16.gmra.mrb[0].mxu0 %v4169
    %v7194 = vpop.f32.mrb[0].mxu0
    %v7195 = vadd.f32 %v7082, %v7194
    %v7196 = vpop.f32.mrb[0].mxu0
    %v7197 = vadd.f32 %v7084, %v7196
    %v7198 = vpop.f32.mrb[0].mxu0
    %v7199 = vadd.f32 %v7086, %v7198
    %v7200 = vpop.f32.mrb[0].mxu0
    %v7201 = vadd.f32 %v7088, %v7200
    %7202 = vmatprep.mubr.bf16.mxu0 %v4178
    %7203 = vmatmul.mubr.bf16.gmra.mrb[0].mxu0 %v4177
    %v7204 = vpop.f32.mrb[0].mxu0
    %v7205 = vadd.f32 %v7092, %v7204
    %v7206 = vpop.f32.mrb[0].mxu0
    %v7207 = vadd.f32 %v7094, %v7206
    %v7208 = vpop.f32.mrb[0].mxu0
    %v7209 = vadd.f32 %v7096, %v7208
    %v7210 = vpop.f32.mrb[0].mxu0
    %v7211 = vadd.f32 %v7098, %v7210
    %7212 = vmatprep.mubr.bf16.mxu0 %v4186
    %7213 = vmatmul.mubr.bf16.gmra.mrb[0].mxu0 %v4185
    %v7214 = vpop.f32.mrb[0].mxu0
    %v7215 = vadd.f32 %v7102, %v7214
    %v7216 = vpop.f32.mrb[0].mxu0
    %v7217 = vadd.f32 %v7104, %v7216
    %v7218 = vpop.f32.mrb[0].mxu0
    %v7219 = vadd.f32 %v7106, %v7218
    %v7220 = vpop.f32.mrb[0].mxu0
    %v7221 = vadd.f32 %v7108, %v7220
    %7222 = vmatprep.mubr.bf16.mxu0 %v4194
    %7223 = vmatmul.mubr.bf16.gmra.mrb[0].mxu0 %v4193
    %v7224 = vpop.f32.mrb[0].mxu0
    %v7225 = vadd.f32 %v7112, %v7224
    %v7226 = vpop.f32.mrb[0].mxu0
    %v7227 = vadd.f32 %v7114, %v7226
    %v7228 = vpop.f32.mrb[0].mxu0
    %v7229 = vadd.f32 %v7116, %v7228
    %v7230 = vpop.f32.mrb[0].mxu0
    %v7231 = vadd.f32 %v7118, %v7230
    %7232 = vmatprep.mubr.bf16.mxu0 %v4202
    %7233 = vmatmul.mubr.bf16.gmra.mrb[0].mxu0 %v4201
    %v7234 = vpop.f32.mrb[0].mxu0
    %v7235 = vadd.f32 %v7122, %v7234
    %v7236 = vpop.f32.mrb[0].mxu0
    %v7237 = vadd.f32 %v7124, %v7236
    %v7238 = vpop.f32.mrb[0].mxu0
    %v7239 = vadd.f32 %v7126, %v7238
    %v7240 = vpop.f32.mrb[0].mxu0
    %v7241 = vadd.f32 %v7128, %v7240
    %7242 = vmatprep.mubr.bf16.mxu0 %v4210
    %7243 = vmatmul.mubr.bf16.gmra.mrb[0].mxu0 %v4209
    %v7244 = vpop.f32.mrb[0].mxu0
    %v7245 = vadd.f32 %v7132, %v7244
    %v7246 = vpop.f32.mrb[0].mxu0
    %v7247 = vadd.f32 %v7134, %v7246
    %v7248 = vpop.f32.mrb[0].mxu0
    %v7249 = vadd.f32 %v7136, %v7248
    %v7250 = vpop.f32.mrb[0].mxu0
    %v7251 = vadd.f32 %v7138, %v7250
    %7252 = vmatprep.mubr.bf16.mxu0 %v4218
    %7253 = vmatmul.mubr.bf16.gmra.mrb[0].mxu0 %v4217
    %v7254 = vpop.f32.mrb[0].mxu0
    %v7255 = vadd.f32 %v7142, %v7254
    %v7256 = vpop.f32.mrb[0].mxu0
    %v7257 = vadd.f32 %v7144, %v7256
    %v7258 = vpop.f32.mrb[0].mxu0
    %v7259 = vadd.f32 %v7146, %v7258
    %v7260 = vpop.f32.mrb[0].mxu0
    %v7261 = vadd.f32 %v7148, %v7260
    %7262 = vmatprep.mubr.bf16.mxu0 %v4226
    %7263 = vmatmul.mubr.bf16.gmra.mrb[0].mxu0 %v4225
    %v7264 = vpop.f32.mrb[0].mxu0
    %v7265 = vadd.f32 %v7152, %v7264
    %v7266 = vpop.f32.mrb[0].mxu0
    %v7267 = vadd.f32 %v7154, %v7266
    %v7268 = vpop.f32.mrb[0].mxu0
    %v7269 = vadd.f32 %v7156, %v7268
    %v7270 = vpop.f32.mrb[0].mxu0
    %v7271 = vadd.f32 %v7158, %v7270
    %7272 = vdwg.mxu0
    %7273 = vmatprep.subr.bf16.mxu0 %v6376
    %7274 = vmatpush1.bf16.msra.mxu0 %v6375
    %7275 = vmatprep.subr.bf16.mxu0 %v6383
    %7276 = vmatpush1.bf16.msra.mxu0 %v6382
    %7277 = vmatprep.subr.bf16.mxu0 %v6390
    %7278 = vmatpush1.bf16.msra.mxu0 %v6389
    %7279 = vmatprep.subr.bf16.mxu0 %v6397
    %7280 = vmatpush1.bf16.msra.mxu0 %v6396
    %7281 = vmatprep.subr.bf16.mxu0 %v6404
    %7282 = vmatpush1.bf16.msra.mxu0 %v6403
    %7283 = vmatprep.subr.bf16.mxu0 %v6411
    %7284 = vmatpush1.bf16.msra.mxu0 %v6410
    %7285 = vmatprep.subr.bf16.mxu0 %v6418
    %7286 = vmatpush1.bf16.msra.mxu0 %v6417
    %7287 = vmatprep.subr.bf16.mxu0 %v6425
    %7288 = vmatpush1.bf16.msra.mxu0 %v6424
    %7289 = vmatprep.subr.bf16.mxu0 %v6432
    %7290 = vmatpush1.bf16.msra.mxu0 %v6431
    %7291 = vmatprep.subr.bf16.mxu0 %v6439
    %7292 = vmatpush1.bf16.msra.mxu0 %v6438
    %7293 = vmatprep.subr.bf16.mxu0 %v6446
    %7294 = vmatpush1.bf16.msra.mxu0 %v6445
    %7295 = vmatprep.subr.bf16.mxu0 %v6453
    %7296 = vmatpush1.bf16.msra.mxu0 %v6452
    %7297 = vmatprep.subr.bf16.mxu0 %v6460
    %7298 = vmatpush1.bf16.msra.mxu0 %v6459
    %7299 = vmatprep.subr.bf16.mxu0 %v6467
    %7300 = vmatpush1.bf16.msra.mxu0 %v6466
    %7301 = vmatprep.subr.bf16.mxu0 %v6474
    %7302 = vmatpush1.bf16.msra.mxu0 %v6473
    %7303 = vmatprep.subr.bf16.mxu0 %v6481
    %7304 = vmatpush1.bf16.msra.mxu0 %v6480
    %7305 = vmatprep.mubr.bf16.mxu0 %v4172
    %7306 = vmatmul.mubr.bf16.gmra.mrb[0].mxu0 %v4171
    %v7307 = vpop.f32.mrb[0].mxu0
    %v7308 = vadd.f32 %v7195, %v7307
    %v7309 = vpop.f32.mrb[0].mxu0
    %v7310 = vadd.f32 %v7197, %v7309
    %v7311 = vpop.f32.mrb[0].mxu0
    %v7312 = vadd.f32 %v7199, %v7311
    %v7313 = vpop.f32.mrb[0].mxu0
    %v7314 = vadd.f32 %v7201, %v7313
    %7315 = vmatprep.mubr.bf16.mxu0 %v4180
    %7316 = vmatmul.mubr.bf16.gmra.mrb[0].mxu0 %v4179
    %v7317 = vpop.f32.mrb[0].mxu0
    %v7318 = vadd.f32 %v7205, %v7317
    %v7319 = vpop.f32.mrb[0].mxu0
    %v7320 = vadd.f32 %v7207, %v7319
    %v7321 = vpop.f32.mrb[0].mxu0
    %v7322 = vadd.f32 %v7209, %v7321
    %v7323 = vpop.f32.mrb[0].mxu0
    %v7324 = vadd.f32 %v7211, %v7323
    %7325 = vmatprep.mubr.bf16.mxu0 %v4188
    %7326 = vmatmul.mubr.bf16.gmra.mrb[0].mxu0 %v4187
    %v7327 = vpop.f32.mrb[0].mxu0
    %v7328 = vadd.f32 %v7215, %v7327
    %v7329 = vpop.f32.mrb[0].mxu0
    %v7330 = vadd.f32 %v7217, %v7329
    %v7331 = vpop.f32.mrb[0].mxu0
    %v7332 = vadd.f32 %v7219, %v7331
    %v7333 = vpop.f32.mrb[0].mxu0
    %v7334 = vadd.f32 %v7221, %v7333
    %7335 = vmatprep.mubr.bf16.mxu0 %v4196
    %7336 = vmatmul.mubr.bf16.gmra.mrb[0].mxu0 %v4195
    %v7337 = vpop.f32.mrb[0].mxu0
    %v7338 = vadd.f32 %v7225, %v7337
    %v7339 = vpop.f32.mrb[0].mxu0
    %v7340 = vadd.f32 %v7227, %v7339
    %v7341 = vpop.f32.mrb[0].mxu0
    %v7342 = vadd.f32 %v7229, %v7341
    %v7343 = vpop.f32.mrb[0].mxu0
    %v7344 = vadd.f32 %v7231, %v7343
    %7345 = vmatprep.mubr.bf16.mxu0 %v4204
    %7346 = vmatmul.mubr.bf16.gmra.mrb[0].mxu0 %v4203
    %v7347 = vpop.f32.mrb[0].mxu0
    %v7348 = vadd.f32 %v7235, %v7347
    %v7349 = vpop.f32.mrb[0].mxu0
    %v7350 = vadd.f32 %v7237, %v7349
    %v7351 = vpop.f32.mrb[0].mxu0
    %v7352 = vadd.f32 %v7239, %v7351
    %v7353 = vpop.f32.mrb[0].mxu0
    %v7354 = vadd.f32 %v7241, %v7353
    %7355 = vmatprep.mubr.bf16.mxu0 %v4212
    %7356 = vmatmul.mubr.bf16.gmra.mrb[0].mxu0 %v4211
    %v7357 = vpop.f32.mrb[0].mxu0
    %v7358 = vadd.f32 %v7245, %v7357
    %v7359 = vpop.f32.mrb[0].mxu0
    %v7360 = vadd.f32 %v7247, %v7359
    %v7361 = vpop.f32.mrb[0].mxu0
    %v7362 = vadd.f32 %v7249, %v7361
    %v7363 = vpop.f32.mrb[0].mxu0
    %v7364 = vadd.f32 %v7251, %v7363
    %7365 = vmatprep.mubr.bf16.mxu0 %v4220
    %7366 = vmatmul.mubr.bf16.gmra.mrb[0].mxu0 %v4219
    %v7367 = vpop.f32.mrb[0].mxu0
    %v7368 = vadd.f32 %v7255, %v7367
    %v7369 = vpop.f32.mrb[0].mxu0
    %v7370 = vadd.f32 %v7257, %v7369
    %v7371 = vpop.f32.mrb[0].mxu0
    %v7372 = vadd.f32 %v7259, %v7371
    %v7373 = vpop.f32.mrb[0].mxu0
    %v7374 = vadd.f32 %v7261, %v7373
    %7375 = vmatprep.mubr.bf16.mxu0 %v4228
    %7376 = vmatmul.mubr.bf16.gmra.mrb[0].mxu0 %v4227
    %v7377 = vpop.f32.mrb[0].mxu0
    %v7378 = vadd.f32 %v7265, %v7377
    %v7379 = vpop.f32.mrb[0].mxu0
    %v7380 = vadd.f32 %v7267, %v7379
    %v7381 = vpop.f32.mrb[0].mxu0
    %v7382 = vadd.f32 %v7269, %v7381
    %v7383 = vpop.f32.mrb[0].mxu0
    %v7384 = vadd.f32 %v7271, %v7383
    %7385 = vdwg.mxu0
    %7386 = vmatprep.subr.bf16.mxu0 %v6488
    %7387 = vmatpush1.bf16.msra.mxu0 %v6487
    %7388 = vmatprep.subr.bf16.mxu0 %v6495
    %7389 = vmatpush1.bf16.msra.mxu0 %v6494
    %7390 = vmatprep.subr.bf16.mxu0 %v6502
    %7391 = vmatpush1.bf16.msra.mxu0 %v6501
    %7392 = vmatprep.subr.bf16.mxu0 %v6509
    %7393 = vmatpush1.bf16.msra.mxu0 %v6508
    %7394 = vmatprep.subr.bf16.mxu0 %v6516
    %7395 = vmatpush1.bf16.msra.mxu0 %v6515
    %7396 = vmatprep.subr.bf16.mxu0 %v6523
    %7397 = vmatpush1.bf16.msra.mxu0 %v6522
    %7398 = vmatprep.subr.bf16.mxu0 %v6530
    %7399 = vmatpush1.bf16.msra.mxu0 %v6529
    %7400 = vmatprep.subr.bf16.mxu0 %v6537
    %7401 = vmatpush1.bf16.msra.mxu0 %v6536
    %7402 = vmatprep.subr.bf16.mxu0 %v6544
    %7403 = vmatpush1.bf16.msra.mxu0 %v6543
    %7404 = vmatprep.subr.bf16.mxu0 %v6551
    %7405 = vmatpush1.bf16.msra.mxu0 %v6550
    %7406 = vmatprep.subr.bf16.mxu0 %v6558
    %7407 = vmatpush1.bf16.msra.mxu0 %v6557
    %7408 = vmatprep.subr.bf16.mxu0 %v6565
    %7409 = vmatpush1.bf16.msra.mxu0 %v6564
    %7410 = vmatprep.subr.bf16.mxu0 %v6572
    %7411 = vmatpush1.bf16.msra.mxu0 %v6571
    %7412 = vmatprep.subr.bf16.mxu0 %v6579
    %7413 = vmatpush1.bf16.msra.mxu0 %v6578
    %7414 = vmatprep.subr.bf16.mxu0 %v6586
    %7415 = vmatpush1.bf16.msra.mxu0 %v6585
    %7416 = vmatprep.subr.bf16.mxu0 %v6593
    %7417 = vmatpush1.bf16.msra.mxu0 %v6592
    %7418 = vmatprep.mubr.bf16.mxu0 %v4174
    %7419 = vmatmul.mubr.bf16.gmra.mrb[0].mxu0 %v4173
    %v7420 = vpop.f32.mrb[0].mxu0
    %v7421 = vadd.f32 %v7308, %v7420
    %v7422 = vpop.f32.mrb[0].mxu0
    %v7423 = vadd.f32 %v7310, %v7422
    %v7424 = vpop.f32.mrb[0].mxu0
    %v7425 = vadd.f32 %v7312, %v7424
    %v7426 = vpop.f32.mrb[0].mxu0
    %v7427 = vadd.f32 %v7314, %v7426
    %7428 = vmatprep.mubr.bf16.mxu0 %v4182
    %7429 = vmatmul.mubr.bf16.gmra.mrb[0].mxu0 %v4181
    %v7430 = vpop.f32.mrb[0].mxu0
    %v7431 = vadd.f32 %v7318, %v7430
    %v7432 = vpop.f32.mrb[0].mxu0
    %v7433 = vadd.f32 %v7320, %v7432
    %v7434 = vpop.f32.mrb[0].mxu0
    %v7435 = vadd.f32 %v7322, %v7434
    %v7436 = vpop.f32.mrb[0].mxu0
    %v7437 = vadd.f32 %v7324, %v7436
    %7438 = vmatprep.mubr.bf16.mxu0 %v4190
    %7439 = vmatmul.mubr.bf16.gmra.mrb[0].mxu0 %v4189
    %v7440 = vpop.f32.mrb[0].mxu0
    %v7441 = vadd.f32 %v7328, %v7440
    %v7442 = vpop.f32.mrb[0].mxu0
    %v7443 = vadd.f32 %v7330, %v7442
    %v7444 = vpop.f32.mrb[0].mxu0
    %v7445 = vadd.f32 %v7332, %v7444
    %v7446 = vpop.f32.mrb[0].mxu0
    %v7447 = vadd.f32 %v7334, %v7446
    %7448 = vmatprep.mubr.bf16.mxu0 %v4198
    %7449 = vmatmul.mubr.bf16.gmra.mrb[0].mxu0 %v4197
    %v7450 = vpop.f32.mrb[0].mxu0
    %v7451 = vadd.f32 %v7338, %v7450
    %v7452 = vpop.f32.mrb[0].mxu0
    %v7453 = vadd.f32 %v7340, %v7452
    %v7454 = vpop.f32.mrb[0].mxu0
    %v7455 = vadd.f32 %v7342, %v7454
    %v7456 = vpop.f32.mrb[0].mxu0
    %v7457 = vadd.f32 %v7344, %v7456
    %7458 = vmatprep.mubr.bf16.mxu0 %v4206
    %7459 = vmatmul.mubr.bf16.gmra.mrb[0].mxu0 %v4205
    %v7460 = vpop.f32.mrb[0].mxu0
    %v7461 = vadd.f32 %v7348, %v7460
    %v7462 = vpop.f32.mrb[0].mxu0
    %v7463 = vadd.f32 %v7350, %v7462
    %v7464 = vpop.f32.mrb[0].mxu0
    %v7465 = vadd.f32 %v7352, %v7464
    %v7466 = vpop.f32.mrb[0].mxu0
    %v7467 = vadd.f32 %v7354, %v7466
    %7468 = vmatprep.mubr.bf16.mxu0 %v4214
    %7469 = vmatmul.mubr.bf16.gmra.mrb[0].mxu0 %v4213
    %v7470 = vpop.f32.mrb[0].mxu0
    %v7471 = vadd.f32 %v7358, %v7470
    %v7472 = vpop.f32.mrb[0].mxu0
    %v7473 = vadd.f32 %v7360, %v7472
    %v7474 = vpop.f32.mrb[0].mxu0
    %v7475 = vadd.f32 %v7362, %v7474
    %v7476 = vpop.f32.mrb[0].mxu0
    %v7477 = vadd.f32 %v7364, %v7476
    %7478 = vmatprep.mubr.bf16.mxu0 %v4222
    %7479 = vmatmul.mubr.bf16.gmra.mrb[0].mxu0 %v4221
    %v7480 = vpop.f32.mrb[0].mxu0
    %v7481 = vadd.f32 %v7368, %v7480
    %v7482 = vpop.f32.mrb[0].mxu0
    %v7483 = vadd.f32 %v7370, %v7482
    %v7484 = vpop.f32.mrb[0].mxu0
    %v7485 = vadd.f32 %v7372, %v7484
    %v7486 = vpop.f32.mrb[0].mxu0
    %v7487 = vadd.f32 %v7374, %v7486
    %7488 = vmatprep.mubr.bf16.mxu0 %v4230
    %7489 = vmatmul.mubr.bf16.gmra.mrb[0].mxu0 %v4229
    %v7490 = vpop.f32.mrb[0].mxu0
    %v7491 = vadd.f32 %v7378, %v7490
    %v7492 = vpop.f32.mrb[0].mxu0
    %v7493 = vadd.f32 %v7380, %v7492
    %v7494 = vpop.f32.mrb[0].mxu0
    %v7495 = vadd.f32 %v7382, %v7494
    %v7496 = vpop.f32.mrb[0].mxu0
    %v7497 = vadd.f32 %v7384, %v7496
    %7498 = vdwg.mxu0
    %7499 = vmatprep.subr.bf16.mxu0 %v6154
    %7500 = vmatpush1.bf16.msra.mxu0 %v6153
    %7501 = vmatprep.subr.bf16.mxu0 %v6161
    %7502 = vmatpush1.bf16.msra.mxu0 %v6160
    %7503 = vmatprep.subr.bf16.mxu0 %v6168
    %7504 = vmatpush1.bf16.msra.mxu0 %v6167
    %7505 = vmatprep.subr.bf16.mxu0 %v6175
    %7506 = vmatpush1.bf16.msra.mxu0 %v6174
    %7507 = vmatprep.subr.bf16.mxu0 %v6182
    %7508 = vmatpush1.bf16.msra.mxu0 %v6181
    %7509 = vmatprep.subr.bf16.mxu0 %v6189
    %7510 = vmatpush1.bf16.msra.mxu0 %v6188
    %7511 = vmatprep.subr.bf16.mxu0 %v6196
    %7512 = vmatpush1.bf16.msra.mxu0 %v6195
    %7513 = vmatprep.subr.bf16.mxu0 %v6203
    %7514 = vmatpush1.bf16.msra.mxu0 %v6202
    %7515 = vmatprep.subr.bf16.mxu0 %v6210
    %7516 = vmatpush1.bf16.msra.mxu0 %v6209
    %7517 = vmatprep.subr.bf16.mxu0 %v6217
    %7518 = vmatpush1.bf16.msra.mxu0 %v6216
    %7519 = vmatprep.subr.bf16.mxu0 %v6224
    %7520 = vmatpush1.bf16.msra.mxu0 %v6223
    %7521 = vmatprep.subr.bf16.mxu0 %v6231
    %7522 = vmatpush1.bf16.msra.mxu0 %v6230
    %7523 = vmatprep.subr.bf16.mxu0 %v6238
    %7524 = vmatpush1.bf16.msra.mxu0 %v6237
    %7525 = vmatprep.subr.bf16.mxu0 %v6245
    %7526 = vmatpush1.bf16.msra.mxu0 %v6244
    %7527 = vmatprep.subr.bf16.mxu0 %v6252
    %7528 = vmatpush1.bf16.msra.mxu0 %v6251
    %7529 = vmatprep.subr.bf16.mxu0 %v6259
    %7530 = vmatpush1.bf16.msra.mxu0 %v6258
    %7531 = vmatprep.mubr.bf16.mxu0 %v4168
    %7532 = vmatmul.mubr.bf16.gmra.mrb[0].mxu0 %v4167
    %v7533 = vpop.f32.mrb[0].mxu0
    %v7534 = vadd.f32 0.0, %v7533
    %v7535 = vpop.f32.mrb[0].mxu0
    %v7536 = vadd.f32 0.0, %v7535
    %v7537 = vpop.f32.mrb[0].mxu0
    %v7538 = vadd.f32 0.0, %v7537
    %v7539 = vpop.f32.mrb[0].mxu0
    %v7540 = vadd.f32 0.0, %v7539
    %7541 = vmatprep.mubr.bf16.mxu0 %v4176
    %7542 = vmatmul.mubr.bf16.gmra.mrb[0].mxu0 %v4175
    %v7543 = vpop.f32.mrb[0].mxu0
    %v7544 = vadd.f32 0.0, %v7543
    %v7545 = vpop.f32.mrb[0].mxu0
    %v7546 = vadd.f32 0.0, %v7545
    %v7547 = vpop.f32.mrb[0].mxu0
    %v7548 = vadd.f32 0.0, %v7547
    %v7549 = vpop.f32.mrb[0].mxu0
    %v7550 = vadd.f32 0.0, %v7549
    %7551 = vmatprep.mubr.bf16.mxu0 %v4184
    %7552 = vmatmul.mubr.bf16.gmra.mrb[0].mxu0 %v4183
    %v7553 = vpop.f32.mrb[0].mxu0
    %v7554 = vadd.f32 0.0, %v7553
    %v7555 = vpop.f32.mrb[0].mxu0
    %v7556 = vadd.f32 0.0, %v7555
    %v7557 = vpop.f32.mrb[0].mxu0
    %v7558 = vadd.f32 0.0, %v7557
    %v7559 = vpop.f32.mrb[0].mxu0
    %v7560 = vadd.f32 0.0, %v7559
    %7561 = vmatprep.mubr.bf16.mxu0 %v4192
    %7562 = vmatmul.mubr.bf16.gmra.mrb[0].mxu0 %v4191
    %v7563 = vpop.f32.mrb[0].mxu0
    %v7564 = vadd.f32 0.0, %v7563
    %v7565 = vpop.f32.mrb[0].mxu0
    %v7566 = vadd.f32 0.0, %v7565
    %v7567 = vpop.f32.mrb[0].mxu0
    %v7568 = vadd.f32 0.0, %v7567
    %v7569 = vpop.f32.mrb[0].mxu0
    %v7570 = vadd.f32 0.0, %v7569
    %7571 = vmatprep.mubr.bf16.mxu0 %v4200
    %7572 = vmatmul.mubr.bf16.gmra.mrb[0].mxu0 %v4199
    %v7573 = vpop.f32.mrb[0].mxu0
    %v7574 = vadd.f32 0.0, %v7573
    %v7575 = vpop.f32.mrb[0].mxu0
    %v7576 = vadd.f32 0.0, %v7575
    %v7577 = vpop.f32.mrb[0].mxu0
    %v7578 = vadd.f32 0.0, %v7577
    %v7579 = vpop.f32.mrb[0].mxu0
    %v7580 = vadd.f32 0.0, %v7579
    %7581 = vmatprep.mubr.bf16.mxu0 %v4208
    %7582 = vmatmul.mubr.bf16.gmra.mrb[0].mxu0 %v4207
    %v7583 = vpop.f32.mrb[0].mxu0
    %v7584 = vadd.f32 0.0, %v7583
    %v7585 = vpop.f32.mrb[0].mxu0
    %v7586 = vadd.f32 0.0, %v7585
    %v7587 = vpop.f32.mrb[0].mxu0
    %v7588 = vadd.f32 0.0, %v7587
    %v7589 = vpop.f32.mrb[0].mxu0
    %v7590 = vadd.f32 0.0, %v7589
    %7591 = vmatprep.mubr.bf16.mxu0 %v4216
    %7592 = vmatmul.mubr.bf16.gmra.mrb[0].mxu0 %v4215
    %v7593 = vpop.f32.mrb[0].mxu0
    %v7594 = vadd.f32 0.0, %v7593
    %v7595 = vpop.f32.mrb[0].mxu0
    %v7596 = vadd.f32 0.0, %v7595
    %v7597 = vpop.f32.mrb[0].mxu0
    %v7598 = vadd.f32 0.0, %v7597
    %v7599 = vpop.f32.mrb[0].mxu0
    %v7600 = vadd.f32 0.0, %v7599
    %7601 = vmatprep.mubr.bf16.mxu0 %v4224
    %7602 = vmatmul.mubr.bf16.gmra.mrb[0].mxu0 %v4223
    %v7603 = vpop.f32.mrb[0].mxu0
    %v7604 = vadd.f32 0.0, %v7603
    %v7605 = vpop.f32.mrb[0].mxu0
    %v7606 = vadd.f32 0.0, %v7605
    %v7607 = vpop.f32.mrb[0].mxu0
    %v7608 = vadd.f32 0.0, %v7607
    %v7609 = vpop.f32.mrb[0].mxu0
    %v7610 = vadd.f32 0.0, %v7609
    %7611 = vdwg.mxu0
    %7612 = vmatprep.subr.bf16.mxu0 %v6266
    %7613 = vmatpush1.bf16.msra.mxu0 %v6265
    %7614 = vmatprep.subr.bf16.mxu0 %v6273
    %7615 = vmatpush1.bf16.msra.mxu0 %v6272
    %7616 = vmatprep.subr.bf16.mxu0 %v6280
    %7617 = vmatpush1.bf16.msra.mxu0 %v6279
    %7618 = vmatprep.subr.bf16.mxu0 %v6287
    %7619 = vmatpush1.bf16.msra.mxu0 %v6286
    %7620 = vmatprep.subr.bf16.mxu0 %v6294
    %7621 = vmatpush1.bf16.msra.mxu0 %v6293
    %7622 = vmatprep.subr.bf16.mxu0 %v6301
    %7623 = vmatpush1.bf16.msra.mxu0 %v6300
    %7624 = vmatprep.subr.bf16.mxu0 %v6308
    %7625 = vmatpush1.bf16.msra.mxu0 %v6307
    %7626 = vmatprep.subr.bf16.mxu0 %v6315
    %7627 = vmatpush1.bf16.msra.mxu0 %v6314
    %7628 = vmatprep.subr.bf16.mxu0 %v6322
    %7629 = vmatpush1.bf16.msra.mxu0 %v6321
    %7630 = vmatprep.subr.bf16.mxu0 %v6329
    %7631 = vmatpush1.bf16.msra.mxu0 %v6328
    %7632 = vmatprep.subr.bf16.mxu0 %v6336
    %7633 = vmatpush1.bf16.msra.mxu0 %v6335
    %7634 = vmatprep.subr.bf16.mxu0 %v6343
    %7635 = vmatpush1.bf16.msra.mxu0 %v6342
    %7636 = vmatprep.subr.bf16.mxu0 %v6350
    %7637 = vmatpush1.bf16.msra.mxu0 %v6349
    %7638 = vmatprep.subr.bf16.mxu0 %v6357
    %7639 = vmatpush1.bf16.msra.mxu0 %v6356
    %7640 = vmatprep.subr.bf16.mxu0 %v6364
    %7641 = vmatpush1.bf16.msra.mxu0 %v6363
    %7642 = vmatprep.subr.bf16.mxu0 %v6371
    %7643 = vmatpush1.bf16.msra.mxu0 %v6370
    %7644 = vmatprep.mubr.bf16.mxu0 %v4170
    %7645 = vmatmul.mubr.bf16.gmra.mrb[0].mxu0 %v4169
    %v7646 = vpop.f32.mrb[0].mxu0
    %v7647 = vadd.f32 %v7534, %v7646
    %v7648 = vpop.f32.mrb[0].mxu0
    %v7649 = vadd.f32 %v7536, %v7648
    %v7650 = vpop.f32.mrb[0].mxu0
    %v7651 = vadd.f32 %v7538, %v7650
    %v7652 = vpop.f32.mrb[0].mxu0
    %v7653 = vadd.f32 %v7540, %v7652
    %7654 = vmatprep.mubr.bf16.mxu0 %v4178
    %7655 = vmatmul.mubr.bf16.gmra.mrb[0].mxu0 %v4177
    %v7656 = vpop.f32.mrb[0].mxu0
    %v7657 = vadd.f32 %v7544, %v7656
    %v7658 = vpop.f32.mrb[0].mxu0
    %v7659 = vadd.f32 %v7546, %v7658
    %v7660 = vpop.f32.mrb[0].mxu0
    %v7661 = vadd.f32 %v7548, %v7660
    %v7662 = vpop.f32.mrb[0].mxu0
    %v7663 = vadd.f32 %v7550, %v7662
    %7664 = vmatprep.mubr.bf16.mxu0 %v4186
    %7665 = vmatmul.mubr.bf16.gmra.mrb[0].mxu0 %v4185
    %v7666 = vpop.f32.mrb[0].mxu0
    %v7667 = vadd.f32 %v7554, %v7666
    %v7668 = vpop.f32.mrb[0].mxu0
    %v7669 = vadd.f32 %v7556, %v7668
    %v7670 = vpop.f32.mrb[0].mxu0
    %v7671 = vadd.f32 %v7558, %v7670
    %v7672 = vpop.f32.mrb[0].mxu0
    %v7673 = vadd.f32 %v7560, %v7672
    %7674 = vmatprep.mubr.bf16.mxu0 %v4194
    %7675 = vmatmul.mubr.bf16.gmra.mrb[0].mxu0 %v4193
    %v7676 = vpop.f32.mrb[0].mxu0
    %v7677 = vadd.f32 %v7564, %v7676
    %v7678 = vpop.f32.mrb[0].mxu0
    %v7679 = vadd.f32 %v7566, %v7678
    %v7680 = vpop.f32.mrb[0].mxu0
    %v7681 = vadd.f32 %v7568, %v7680
    %v7682 = vpop.f32.mrb[0].mxu0
    %v7683 = vadd.f32 %v7570, %v7682
    %7684 = vmatprep.mubr.bf16.mxu0 %v4202
    %7685 = vmatmul.mubr.bf16.gmra.mrb[0].mxu0 %v4201
    %v7686 = vpop.f32.mrb[0].mxu0
    %v7687 = vadd.f32 %v7574, %v7686
    %v7688 = vpop.f32.mrb[0].mxu0
    %v7689 = vadd.f32 %v7576, %v7688
    %v7690 = vpop.f32.mrb[0].mxu0
    %v7691 = vadd.f32 %v7578, %v7690
    %v7692 = vpop.f32.mrb[0].mxu0
    %v7693 = vadd.f32 %v7580, %v7692
    %7694 = vmatprep.mubr.bf16.mxu0 %v4210
    %7695 = vmatmul.mubr.bf16.gmra.mrb[0].mxu0 %v4209
    %v7696 = vpop.f32.mrb[0].mxu0
    %v7697 = vadd.f32 %v7584, %v7696
    %v7698 = vpop.f32.mrb[0].mxu0
    %v7699 = vadd.f32 %v7586, %v7698
    %v7700 = vpop.f32.mrb[0].mxu0
    %v7701 = vadd.f32 %v7588, %v7700
    %v7702 = vpop.f32.mrb[0].mxu0
    %v7703 = vadd.f32 %v7590, %v7702
    %7704 = vmatprep.mubr.bf16.mxu0 %v4218
    %7705 = vmatmul.mubr.bf16.gmra.mrb[0].mxu0 %v4217
    %v7706 = vpop.f32.mrb[0].mxu0
    %v7707 = vadd.f32 %v7594, %v7706
    %v7708 = vpop.f32.mrb[0].mxu0
    %v7709 = vadd.f32 %v7596, %v7708
    %v7710 = vpop.f32.mrb[0].mxu0
    %v7711 = vadd.f32 %v7598, %v7710
    %v7712 = vpop.f32.mrb[0].mxu0
    %v7713 = vadd.f32 %v7600, %v7712
    %7714 = vmatprep.mubr.bf16.mxu0 %v4226
    %7715 = vmatmul.mubr.bf16.gmra.mrb[0].mxu0 %v4225
    %v7716 = vpop.f32.mrb[0].mxu0
    %v7717 = vadd.f32 %v7604, %v7716
    %v7718 = vpop.f32.mrb[0].mxu0
    %v7719 = vadd.f32 %v7606, %v7718
    %v7720 = vpop.f32.mrb[0].mxu0
    %v7721 = vadd.f32 %v7608, %v7720
    %v7722 = vpop.f32.mrb[0].mxu0
    %v7723 = vadd.f32 %v7610, %v7722
    %7724 = vdwg.mxu0
    %7725 = vmatprep.subr.bf16.mxu0 %v6378
    %7726 = vmatpush1.bf16.msra.mxu0 %v6377
    %7727 = vmatprep.subr.bf16.mxu0 %v6385
    %7728 = vmatpush1.bf16.msra.mxu0 %v6384
    %7729 = vmatprep.subr.bf16.mxu0 %v6392
    %7730 = vmatpush1.bf16.msra.mxu0 %v6391
    %7731 = vmatprep.subr.bf16.mxu0 %v6399
    %7732 = vmatpush1.bf16.msra.mxu0 %v6398
    %7733 = vmatprep.subr.bf16.mxu0 %v6406
    %7734 = vmatpush1.bf16.msra.mxu0 %v6405
    %7735 = vmatprep.subr.bf16.mxu0 %v6413
    %7736 = vmatpush1.bf16.msra.mxu0 %v6412
    %7737 = vmatprep.subr.bf16.mxu0 %v6420
    %7738 = vmatpush1.bf16.msra.mxu0 %v6419
    %7739 = vmatprep.subr.bf16.mxu0 %v6427
    %7740 = vmatpush1.bf16.msra.mxu0 %v6426
    %7741 = vmatprep.subr.bf16.mxu0 %v6434
    %7742 = vmatpush1.bf16.msra.mxu0 %v6433
    %7743 = vmatprep.subr.bf16.mxu0 %v6441
    %7744 = vmatpush1.bf16.msra.mxu0 %v6440
    %7745 = vmatprep.subr.bf16.mxu0 %v6448
    %7746 = vmatpush1.bf16.msra.mxu0 %v6447
    %7747 = vmatprep.subr.bf16.mxu0 %v6455
    %7748 = vmatpush1.bf16.msra.mxu0 %v6454
    %7749 = vmatprep.subr.bf16.mxu0 %v6462
    %7750 = vmatpush1.bf16.msra.mxu0 %v6461
    %7751 = vmatprep.subr.bf16.mxu0 %v6469
    %7752 = vmatpush1.bf16.msra.mxu0 %v6468
    %7753 = vmatprep.subr.bf16.mxu0 %v6476
    %7754 = vmatpush1.bf16.msra.mxu0 %v6475
    %7755 = vmatprep.subr.bf16.mxu0 %v6483
    %7756 = vmatpush1.bf16.msra.mxu0 %v6482
    %7757 = vmatprep.mubr.bf16.mxu0 %v4172
    %7758 = vmatmul.mubr.bf16.gmra.mrb[0].mxu0 %v4171
    %v7759 = vpop.f32.mrb[0].mxu0
    %v7760 = vadd.f32 %v7647, %v7759
    %v7761 = vpop.f32.mrb[0].mxu0
    %v7762 = vadd.f32 %v7649, %v7761
    %v7763 = vpop.f32.mrb[0].mxu0
    %v7764 = vadd.f32 %v7651, %v7763
    %v7765 = vpop.f32.mrb[0].mxu0
    %v7766 = vadd.f32 %v7653, %v7765
    %7767 = vmatprep.mubr.bf16.mxu0 %v4180
    %7768 = vmatmul.mubr.bf16.gmra.mrb[0].mxu0 %v4179
    %v7769 = vpop.f32.mrb[0].mxu0
    %v7770 = vadd.f32 %v7657, %v7769
    %v7771 = vpop.f32.mrb[0].mxu0
    %v7772 = vadd.f32 %v7659, %v7771
    %v7773 = vpop.f32.mrb[0].mxu0
    %v7774 = vadd.f32 %v7661, %v7773
    %v7775 = vpop.f32.mrb[0].mxu0
    %v7776 = vadd.f32 %v7663, %v7775
    %7777 = vmatprep.mubr.bf16.mxu0 %v4188
    %7778 = vmatmul.mubr.bf16.gmra.mrb[0].mxu0 %v4187
    %v7779 = vpop.f32.mrb[0].mxu0
    %v7780 = vadd.f32 %v7667, %v7779
    %v7781 = vpop.f32.mrb[0].mxu0
    %v7782 = vadd.f32 %v7669, %v7781
    %v7783 = vpop.f32.mrb[0].mxu0
    %v7784 = vadd.f32 %v7671, %v7783
    %v7785 = vpop.f32.mrb[0].mxu0
    %v7786 = vadd.f32 %v7673, %v7785
    %7787 = vmatprep.mubr.bf16.mxu0 %v4196
    %7788 = vmatmul.mubr.bf16.gmra.mrb[0].mxu0 %v4195
    %v7789 = vpop.f32.mrb[0].mxu0
    %v7790 = vadd.f32 %v7677, %v7789
    %v7791 = vpop.f32.mrb[0].mxu0
    %v7792 = vadd.f32 %v7679, %v7791
    %v7793 = vpop.f32.mrb[0].mxu0
    %v7794 = vadd.f32 %v7681, %v7793
    %v7795 = vpop.f32.mrb[0].mxu0
    %v7796 = vadd.f32 %v7683, %v7795
    %7797 = vmatprep.mubr.bf16.mxu0 %v4204
    %7798 = vmatmul.mubr.bf16.gmra.mrb[0].mxu0 %v4203
    %v7799 = vpop.f32.mrb[0].mxu0
    %v7800 = vadd.f32 %v7687, %v7799
    %v7801 = vpop.f32.mrb[0].mxu0
    %v7802 = vadd.f32 %v7689, %v7801
    %v7803 = vpop.f32.mrb[0].mxu0
    %v7804 = vadd.f32 %v7691, %v7803
    %v7805 = vpop.f32.mrb[0].mxu0
    %v7806 = vadd.f32 %v7693, %v7805
    %7807 = vmatprep.mubr.bf16.mxu0 %v4212
    %7808 = vmatmul.mubr.bf16.gmra.mrb[0].mxu0 %v4211
    %v7809 = vpop.f32.mrb[0].mxu0
    %v7810 = vadd.f32 %v7697, %v7809
    %v7811 = vpop.f32.mrb[0].mxu0
    %v7812 = vadd.f32 %v7699, %v7811
    %v7813 = vpop.f32.mrb[0].mxu0
    %v7814 = vadd.f32 %v7701, %v7813
    %v7815 = vpop.f32.mrb[0].mxu0
    %v7816 = vadd.f32 %v7703, %v7815
    %7817 = vmatprep.mubr.bf16.mxu0 %v4220
    %7818 = vmatmul.mubr.bf16.gmra.mrb[0].mxu0 %v4219
    %v7819 = vpop.f32.mrb[0].mxu0
    %v7820 = vadd.f32 %v7707, %v7819
    %v7821 = vpop.f32.mrb[0].mxu0
    %v7822 = vadd.f32 %v7709, %v7821
    %v7823 = vpop.f32.mrb[0].mxu0
    %v7824 = vadd.f32 %v7711, %v7823
    %v7825 = vpop.f32.mrb[0].mxu0
    %v7826 = vadd.f32 %v7713, %v7825
    %7827 = vmatprep.mubr.bf16.mxu0 %v4228
    %7828 = vmatmul.mubr.bf16.gmra.mrb[0].mxu0 %v4227
    %v7829 = vpop.f32.mrb[0].mxu0
    %v7830 = vadd.f32 %v7717, %v7829
    %v7831 = vpop.f32.mrb[0].mxu0
    %v7832 = vadd.f32 %v7719, %v7831
    %v7833 = vpop.f32.mrb[0].mxu0
    %v7834 = vadd.f32 %v7721, %v7833
    %v7835 = vpop.f32.mrb[0].mxu0
    %v7836 = vadd.f32 %v7723, %v7835
    %7837 = vdwg.mxu0
    %7838 = vmatprep.subr.bf16.mxu0 %v6490
    %7839 = vmatpush1.bf16.msra.mxu0 %v6489
    %7840 = vmatprep.subr.bf16.mxu0 %v6497
    %7841 = vmatpush1.bf16.msra.mxu0 %v6496
    %7842 = vmatprep.subr.bf16.mxu0 %v6504
    %7843 = vmatpush1.bf16.msra.mxu0 %v6503
    %7844 = vmatprep.subr.bf16.mxu0 %v6511
    %7845 = vmatpush1.bf16.msra.mxu0 %v6510
    %7846 = vmatprep.subr.bf16.mxu0 %v6518
    %7847 = vmatpush1.bf16.msra.mxu0 %v6517
    %7848 = vmatprep.subr.bf16.mxu0 %v6525
    %7849 = vmatpush1.bf16.msra.mxu0 %v6524
    %7850 = vmatprep.subr.bf16.mxu0 %v6532
    %7851 = vmatpush1.bf16.msra.mxu0 %v6531
    %7852 = vmatprep.subr.bf16.mxu0 %v6539
    %7853 = vmatpush1.bf16.msra.mxu0 %v6538
    %7854 = vmatprep.subr.bf16.mxu0 %v6546
    %7855 = vmatpush1.bf16.msra.mxu0 %v6545
    %7856 = vmatprep.subr.bf16.mxu0 %v6553
    %7857 = vmatpush1.bf16.msra.mxu0 %v6552
    %7858 = vmatprep.subr.bf16.mxu0 %v6560
    %7859 = vmatpush1.bf16.msra.mxu0 %v6559
    %7860 = vmatprep.subr.bf16.mxu0 %v6567
    %7861 = vmatpush1.bf16.msra.mxu0 %v6566
    %7862 = vmatprep.subr.bf16.mxu0 %v6574
    %7863 = vmatpush1.bf16.msra.mxu0 %v6573
    %7864 = vmatprep.subr.bf16.mxu0 %v6581
    %7865 = vmatpush1.bf16.msra.mxu0 %v6580
    %7866 = vmatprep.subr.bf16.mxu0 %v6588
    %7867 = vmatpush1.bf16.msra.mxu0 %v6587
    %7868 = vmatprep.subr.bf16.mxu0 %v6595
    %7869 = vmatpush1.bf16.msra.mxu0 %v6594
    %7870 = vmatprep.mubr.bf16.mxu0 %v4174
    %7871 = vmatmul.mubr.bf16.gmra.mrb[0].mxu0 %v4173
    %v7872 = vpop.f32.mrb[0].mxu0
    %v7873 = vadd.f32 %v7760, %v7872
    %v7874 = vpop.f32.mrb[0].mxu0
    %v7875 = vadd.f32 %v7762, %v7874
    %v7876 = vpop.f32.mrb[0].mxu0
    %v7877 = vadd.f32 %v7764, %v7876
    %v7878 = vpop.f32.mrb[0].mxu0
    %v7879 = vadd.f32 %v7766, %v7878
    %7880 = vmatprep.mubr.bf16.mxu0 %v4182
    %7881 = vmatmul.mubr.bf16.gmra.mrb[0].mxu0 %v4181
    %v7882 = vpop.f32.mrb[0].mxu0
    %v7883 = vadd.f32 %v7770, %v7882
    %v7884 = vpop.f32.mrb[0].mxu0
    %v7885 = vadd.f32 %v7772, %v7884
    %v7886 = vpop.f32.mrb[0].mxu0
    %v7887 = vadd.f32 %v7774, %v7886
    %v7888 = vpop.f32.mrb[0].mxu0
    %v7889 = vadd.f32 %v7776, %v7888
    %7890 = vmatprep.mubr.bf16.mxu0 %v4190
    %7891 = vmatmul.mubr.bf16.gmra.mrb[0].mxu0 %v4189
    %v7892 = vpop.f32.mrb[0].mxu0
    %v7893 = vadd.f32 %v7780, %v7892
    %v7894 = vpop.f32.mrb[0].mxu0
    %v7895 = vadd.f32 %v7782, %v7894
    %v7896 = vpop.f32.mrb[0].mxu0
    %v7897 = vadd.f32 %v7784, %v7896
    %v7898 = vpop.f32.mrb[0].mxu0
    %v7899 = vadd.f32 %v7786, %v7898
    %7900 = vmatprep.mubr.bf16.mxu0 %v4198
    %7901 = vmatmul.mubr.bf16.gmra.mrb[0].mxu0 %v4197
    %v7902 = vpop.f32.mrb[0].mxu0
    %v7903 = vadd.f32 %v7790, %v7902
    %v7904 = vpop.f32.mrb[0].mxu0
    %v7905 = vadd.f32 %v7792, %v7904
    %v7906 = vpop.f32.mrb[0].mxu0
    %v7907 = vadd.f32 %v7794, %v7906
    %v7908 = vpop.f32.mrb[0].mxu0
    %v7909 = vadd.f32 %v7796, %v7908
    %7910 = vmatprep.mubr.bf16.mxu0 %v4206
    %7911 = vmatmul.mubr.bf16.gmra.mrb[0].mxu0 %v4205
    %v7912 = vpop.f32.mrb[0].mxu0
    %v7913 = vadd.f32 %v7800, %v7912
    %v7914 = vpop.f32.mrb[0].mxu0
    %v7915 = vadd.f32 %v7802, %v7914
    %v7916 = vpop.f32.mrb[0].mxu0
    %v7917 = vadd.f32 %v7804, %v7916
    %v7918 = vpop.f32.mrb[0].mxu0
    %v7919 = vadd.f32 %v7806, %v7918
    %7920 = vmatprep.mubr.bf16.mxu0 %v4214
    %7921 = vmatmul.mubr.bf16.gmra.mrb[0].mxu0 %v4213
    %v7922 = vpop.f32.mrb[0].mxu0
    %v7923 = vadd.f32 %v7810, %v7922
    %v7924 = vpop.f32.mrb[0].mxu0
    %v7925 = vadd.f32 %v7812, %v7924
    %v7926 = vpop.f32.mrb[0].mxu0
    %v7927 = vadd.f32 %v7814, %v7926
    %v7928 = vpop.f32.mrb[0].mxu0
    %v7929 = vadd.f32 %v7816, %v7928
    %7930 = vmatprep.mubr.bf16.mxu0 %v4222
    %7931 = vmatmul.mubr.bf16.gmra.mrb[0].mxu0 %v4221
    %v7932 = vpop.f32.mrb[0].mxu0
    %v7933 = vadd.f32 %v7820, %v7932
    %v7934 = vpop.f32.mrb[0].mxu0
    %v7935 = vadd.f32 %v7822, %v7934
    %v7936 = vpop.f32.mrb[0].mxu0
    %v7937 = vadd.f32 %v7824, %v7936
    %v7938 = vpop.f32.mrb[0].mxu0
    %v7939 = vadd.f32 %v7826, %v7938
    %7940 = vmatprep.mubr.bf16.mxu0 %v4230
    %7941 = vmatmul.mubr.bf16.gmra.mrb[0].mxu0 %v4229
    %v7942 = vpop.f32.mrb[0].mxu0
    %v7943 = vadd.f32 %v7830, %v7942
    %v7944 = vpop.f32.mrb[0].mxu0
    %v7945 = vadd.f32 %v7832, %v7944
    %v7946 = vpop.f32.mrb[0].mxu0
    %v7947 = vadd.f32 %v7834, %v7946
    %v7948 = vpop.f32.mrb[0].mxu0
    %v7949 = vadd.f32 %v7836, %v7948
    %7950 = vdwg.mxu0
    %7951 = vmatprep.subr.bf16.mxu0 %v6156
    %7952 = vmatpush1.bf16.msra.mxu0 %v6155
    %7953 = vmatprep.subr.bf16.mxu0 %v6163
    %7954 = vmatpush1.bf16.msra.mxu0 %v6162
    %7955 = vmatprep.subr.bf16.mxu0 %v6170
    %7956 = vmatpush1.bf16.msra.mxu0 %v6169
    %7957 = vmatprep.subr.bf16.mxu0 %v6177
    %7958 = vmatpush1.bf16.msra.mxu0 %v6176
    %7959 = vmatprep.subr.bf16.mxu0 %v6184
    %7960 = vmatpush1.bf16.msra.mxu0 %v6183
    %7961 = vmatprep.subr.bf16.mxu0 %v6191
    %7962 = vmatpush1.bf16.msra.mxu0 %v6190
    %7963 = vmatprep.subr.bf16.mxu0 %v6198
    %7964 = vmatpush1.bf16.msra.mxu0 %v6197
    %7965 = vmatprep.subr.bf16.mxu0 %v6205
    %7966 = vmatpush1.bf16.msra.mxu0 %v6204
    %7967 = vmatprep.subr.bf16.mxu0 %v6212
    %7968 = vmatpush1.bf16.msra.mxu0 %v6211
    %7969 = vmatprep.subr.bf16.mxu0 %v6219
    %7970 = vmatpush1.bf16.msra.mxu0 %v6218
    %7971 = vmatprep.subr.bf16.mxu0 %v6226
    %7972 = vmatpush1.bf16.msra.mxu0 %v6225
    %7973 = vmatprep.subr.bf16.mxu0 %v6233
    %7974 = vmatpush1.bf16.msra.mxu0 %v6232
    %7975 = vmatprep.subr.bf16.mxu0 %v6240
    %7976 = vmatpush1.bf16.msra.mxu0 %v6239
    %7977 = vmatprep.subr.bf16.mxu0 %v6247
    %7978 = vmatpush1.bf16.msra.mxu0 %v6246
    %7979 = vmatprep.subr.bf16.mxu0 %v6254
    %7980 = vmatpush1.bf16.msra.mxu0 %v6253
    %7981 = vmatprep.subr.bf16.mxu0 %v6261
    %7982 = vmatpush1.bf16.msra.mxu0 %v6260
    %7983 = vmatprep.mubr.bf16.mxu0 %v4168
    %7984 = vmatmul.mubr.bf16.gmra.mrb[0].mxu0 %v4167
    %v7985 = vpop.f32.mrb[0].mxu0
    %v7986 = vadd.f32 0.0, %v7985
    %v7987 = vpop.f32.mrb[0].mxu0
    %v7988 = vadd.f32 0.0, %v7987
    %v7989 = vpop.f32.mrb[0].mxu0
    %v7990 = vadd.f32 0.0, %v7989
    %v7991 = vpop.f32.mrb[0].mxu0
    %v7992 = vadd.f32 0.0, %v7991
    %7993 = vmatprep.mubr.bf16.mxu0 %v4176
    %7994 = vmatmul.mubr.bf16.gmra.mrb[0].mxu0 %v4175
    %v7995 = vpop.f32.mrb[0].mxu0
    %v7996 = vadd.f32 0.0, %v7995
    %v7997 = vpop.f32.mrb[0].mxu0
    %v7998 = vadd.f32 0.0, %v7997
    %v7999 = vpop.f32.mrb[0].mxu0
    %v8000 = vadd.f32 0.0, %v7999
    %v8001 = vpop.f32.mrb[0].mxu0
    %v8002 = vadd.f32 0.0, %v8001
    %8003 = vmatprep.mubr.bf16.mxu0 %v4184
    %8004 = vmatmul.mubr.bf16.gmra.mrb[0].mxu0 %v4183
    %v8005 = vpop.f32.mrb[0].mxu0
    %v8006 = vadd.f32 0.0, %v8005
    %v8007 = vpop.f32.mrb[0].mxu0
    %v8008 = vadd.f32 0.0, %v8007
    %v8009 = vpop.f32.mrb[0].mxu0
    %v8010 = vadd.f32 0.0, %v8009
    %v8011 = vpop.f32.mrb[0].mxu0
    %v8012 = vadd.f32 0.0, %v8011
    %8013 = vmatprep.mubr.bf16.mxu0 %v4192
    %8014 = vmatmul.mubr.bf16.gmra.mrb[0].mxu0 %v4191
    %v8015 = vpop.f32.mrb[0].mxu0
    %v8016 = vadd.f32 0.0, %v8015
    %v8017 = vpop.f32.mrb[0].mxu0
    %v8018 = vadd.f32 0.0, %v8017
    %v8019 = vpop.f32.mrb[0].mxu0
    %v8020 = vadd.f32 0.0, %v8019
    %v8021 = vpop.f32.mrb[0].mxu0
    %v8022 = vadd.f32 0.0, %v8021
    %8023 = vmatprep.mubr.bf16.mxu0 %v4200
    %8024 = vmatmul.mubr.bf16.gmra.mrb[0].mxu0 %v4199
    %v8025 = vpop.f32.mrb[0].mxu0
    %v8026 = vadd.f32 0.0, %v8025
    %v8027 = vpop.f32.mrb[0].mxu0
    %v8028 = vadd.f32 0.0, %v8027
    %v8029 = vpop.f32.mrb[0].mxu0
    %v8030 = vadd.f32 0.0, %v8029
    %v8031 = vpop.f32.mrb[0].mxu0
    %v8032 = vadd.f32 0.0, %v8031
    %8033 = vmatprep.mubr.bf16.mxu0 %v4208
    %8034 = vmatmul.mubr.bf16.gmra.mrb[0].mxu0 %v4207
    %v8035 = vpop.f32.mrb[0].mxu0
    %v8036 = vadd.f32 0.0, %v8035
    %v8037 = vpop.f32.mrb[0].mxu0
    %v8038 = vadd.f32 0.0, %v8037
    %v8039 = vpop.f32.mrb[0].mxu0
    %v8040 = vadd.f32 0.0, %v8039
    %v8041 = vpop.f32.mrb[0].mxu0
    %v8042 = vadd.f32 0.0, %v8041
    %8043 = vmatprep.mubr.bf16.mxu0 %v4216
    %8044 = vmatmul.mubr.bf16.gmra.mrb[0].mxu0 %v4215
    %v8045 = vpop.f32.mrb[0].mxu0
    %v8046 = vadd.f32 0.0, %v8045
    %v8047 = vpop.f32.mrb[0].mxu0
    %v8048 = vadd.f32 0.0, %v8047
    %v8049 = vpop.f32.mrb[0].mxu0
    %v8050 = vadd.f32 0.0, %v8049
    %v8051 = vpop.f32.mrb[0].mxu0
    %v8052 = vadd.f32 0.0, %v8051
    %8053 = vmatprep.mubr.bf16.mxu0 %v4224
    %8054 = vmatmul.mubr.bf16.gmra.mrb[0].mxu0 %v4223
    %v8055 = vpop.f32.mrb[0].mxu0
    %v8056 = vadd.f32 0.0, %v8055
    %v8057 = vpop.f32.mrb[0].mxu0
    %v8058 = vadd.f32 0.0, %v8057
    %v8059 = vpop.f32.mrb[0].mxu0
    %v8060 = vadd.f32 0.0, %v8059
    %v8061 = vpop.f32.mrb[0].mxu0
    %v8062 = vadd.f32 0.0, %v8061
    %8063 = vdwg.mxu0
    %8064 = vmatprep.subr.bf16.mxu0 %v6268
    %8065 = vmatpush1.bf16.msra.mxu0 %v6267
    %8066 = vmatprep.subr.bf16.mxu0 %v6275
    %8067 = vmatpush1.bf16.msra.mxu0 %v6274
    %8068 = vmatprep.subr.bf16.mxu0 %v6282
    %8069 = vmatpush1.bf16.msra.mxu0 %v6281
    %8070 = vmatprep.subr.bf16.mxu0 %v6289
    %8071 = vmatpush1.bf16.msra.mxu0 %v6288
    %8072 = vmatprep.subr.bf16.mxu0 %v6296
    %8073 = vmatpush1.bf16.msra.mxu0 %v6295
    %8074 = vmatprep.subr.bf16.mxu0 %v6303
    %8075 = vmatpush1.bf16.msra.mxu0 %v6302
    %8076 = vmatprep.subr.bf16.mxu0 %v6310
    %8077 = vmatpush1.bf16.msra.mxu0 %v6309
    %8078 = vmatprep.subr.bf16.mxu0 %v6317
    %8079 = vmatpush1.bf16.msra.mxu0 %v6316
    %8080 = vmatprep.subr.bf16.mxu0 %v6324
    %8081 = vmatpush1.bf16.msra.mxu0 %v6323
    %8082 = vmatprep.subr.bf16.mxu0 %v6331
    %8083 = vmatpush1.bf16.msra.mxu0 %v6330
    %8084 = vmatprep.subr.bf16.mxu0 %v6338
    %8085 = vmatpush1.bf16.msra.mxu0 %v6337
    %8086 = vmatprep.subr.bf16.mxu0 %v6345
    %8087 = vmatpush1.bf16.msra.mxu0 %v6344
    %8088 = vmatprep.subr.bf16.mxu0 %v6352
    %8089 = vmatpush1.bf16.msra.mxu0 %v6351
    %8090 = vmatprep.subr.bf16.mxu0 %v6359
    %8091 = vmatpush1.bf16.msra.mxu0 %v6358
    %8092 = vmatprep.subr.bf16.mxu0 %v6366
    %8093 = vmatpush1.bf16.msra.mxu0 %v6365
    %8094 = vmatprep.subr.bf16.mxu0 %v6373
    %8095 = vmatpush1.bf16.msra.mxu0 %v6372
    %8096 = vmatprep.mubr.bf16.mxu0 %v4170
    %8097 = vmatmul.mubr.bf16.gmra.mrb[0].mxu0 %v4169
    %v8098 = vpop.f32.mrb[0].mxu0
    %v8099 = vadd.f32 %v7986, %v8098
    %v8100 = vpop.f32.mrb[0].mxu0
    %v8101 = vadd.f32 %v7988, %v8100
    %v8102 = vpop.f32.mrb[0].mxu0
    %v8103 = vadd.f32 %v7990, %v8102
    %v8104 = vpop.f32.mrb[0].mxu0
    %v8105 = vadd.f32 %v7992, %v8104
    %8106 = vmatprep.mubr.bf16.mxu0 %v4178
    %8107 = vmatmul.mubr.bf16.gmra.mrb[0].mxu0 %v4177
    %v8108 = vpop.f32.mrb[0].mxu0
    %v8109 = vadd.f32 %v7996, %v8108
    %v8110 = vpop.f32.mrb[0].mxu0
    %v8111 = vadd.f32 %v7998, %v8110
    %v8112 = vpop.f32.mrb[0].mxu0
    %v8113 = vadd.f32 %v8000, %v8112
    %v8114 = vpop.f32.mrb[0].mxu0
    %v8115 = vadd.f32 %v8002, %v8114
    %8116 = vmatprep.mubr.bf16.mxu0 %v4186
    %8117 = vmatmul.mubr.bf16.gmra.mrb[0].mxu0 %v4185
    %v8118 = vpop.f32.mrb[0].mxu0
    %v8119 = vadd.f32 %v8006, %v8118
    %v8120 = vpop.f32.mrb[0].mxu0
    %v8121 = vadd.f32 %v8008, %v8120
    %v8122 = vpop.f32.mrb[0].mxu0
    %v8123 = vadd.f32 %v8010, %v8122
    %v8124 = vpop.f32.mrb[0].mxu0
    %v8125 = vadd.f32 %v8012, %v8124
    %8126 = vmatprep.mubr.bf16.mxu0 %v4194
    %8127 = vmatmul.mubr.bf16.gmra.mrb[0].mxu0 %v4193
    %v8128 = vpop.f32.mrb[0].mxu0
    %v8129 = vadd.f32 %v8016, %v8128
    %v8130 = vpop.f32.mrb[0].mxu0
    %v8131 = vadd.f32 %v8018, %v8130
    %v8132 = vpop.f32.mrb[0].mxu0
    %v8133 = vadd.f32 %v8020, %v8132
    %v8134 = vpop.f32.mrb[0].mxu0
    %v8135 = vadd.f32 %v8022, %v8134
    %8136 = vmatprep.mubr.bf16.mxu0 %v4202
    %8137 = vmatmul.mubr.bf16.gmra.mrb[0].mxu0 %v4201
    %v8138 = vpop.f32.mrb[0].mxu0
    %v8139 = vadd.f32 %v8026, %v8138
    %v8140 = vpop.f32.mrb[0].mxu0
    %v8141 = vadd.f32 %v8028, %v8140
    %v8142 = vpop.f32.mrb[0].mxu0
    %v8143 = vadd.f32 %v8030, %v8142
    %v8144 = vpop.f32.mrb[0].mxu0
    %v8145 = vadd.f32 %v8032, %v8144
    %8146 = vmatprep.mubr.bf16.mxu0 %v4210
    %8147 = vmatmul.mubr.bf16.gmra.mrb[0].mxu0 %v4209
    %v8148 = vpop.f32.mrb[0].mxu0
    %v8149 = vadd.f32 %v8036, %v8148
    %v8150 = vpop.f32.mrb[0].mxu0
    %v8151 = vadd.f32 %v8038, %v8150
    %v8152 = vpop.f32.mrb[0].mxu0
    %v8153 = vadd.f32 %v8040, %v8152
    %v8154 = vpop.f32.mrb[0].mxu0
    %v8155 = vadd.f32 %v8042, %v8154
    %8156 = vmatprep.mubr.bf16.mxu0 %v4218
    %8157 = vmatmul.mubr.bf16.gmra.mrb[0].mxu0 %v4217
    %v8158 = vpop.f32.mrb[0].mxu0
    %v8159 = vadd.f32 %v8046, %v8158
    %v8160 = vpop.f32.mrb[0].mxu0
    %v8161 = vadd.f32 %v8048, %v8160
    %v8162 = vpop.f32.mrb[0].mxu0
    %v8163 = vadd.f32 %v8050, %v8162
    %v8164 = vpop.f32.mrb[0].mxu0
    %v8165 = vadd.f32 %v8052, %v8164
    %8166 = vmatprep.mubr.bf16.mxu0 %v4226
    %8167 = vmatmul.mubr.bf16.gmra.mrb[0].mxu0 %v4225
    %v8168 = vpop.f32.mrb[0].mxu0
    %v8169 = vadd.f32 %v8056, %v8168
    %v8170 = vpop.f32.mrb[0].mxu0
    %v8171 = vadd.f32 %v8058, %v8170
    %v8172 = vpop.f32.mrb[0].mxu0
    %v8173 = vadd.f32 %v8060, %v8172
    %v8174 = vpop.f32.mrb[0].mxu0
    %v8175 = vadd.f32 %v8062, %v8174
    %8176 = vdwg.mxu0
    %8177 = vmatprep.subr.bf16.mxu0 %v6380
    %8178 = vmatpush1.bf16.msra.mxu0 %v6379
    %8179 = vmatprep.subr.bf16.mxu0 %v6387
    %8180 = vmatpush1.bf16.msra.mxu0 %v6386
    %8181 = vmatprep.subr.bf16.mxu0 %v6394
    %8182 = vmatpush1.bf16.msra.mxu0 %v6393
    %8183 = vmatprep.subr.bf16.mxu0 %v6401
    %8184 = vmatpush1.bf16.msra.mxu0 %v6400
    %8185 = vmatprep.subr.bf16.mxu0 %v6408
    %8186 = vmatpush1.bf16.msra.mxu0 %v6407
    %8187 = vmatprep.subr.bf16.mxu0 %v6415
    %8188 = vmatpush1.bf16.msra.mxu0 %v6414
    %8189 = vmatprep.subr.bf16.mxu0 %v6422
    %8190 = vmatpush1.bf16.msra.mxu0 %v6421
    %8191 = vmatprep.subr.bf16.mxu0 %v6429
    %8192 = vmatpush1.bf16.msra.mxu0 %v6428
    %8193 = vmatprep.subr.bf16.mxu0 %v6436
    %8194 = vmatpush1.bf16.msra.mxu0 %v6435
    %8195 = vmatprep.subr.bf16.mxu0 %v6443
    %8196 = vmatpush1.bf16.msra.mxu0 %v6442
    %8197 = vmatprep.subr.bf16.mxu0 %v6450
    %8198 = vmatpush1.bf16.msra.mxu0 %v6449
    %8199 = vmatprep.subr.bf16.mxu0 %v6457
    %8200 = vmatpush1.bf16.msra.mxu0 %v6456
    %8201 = vmatprep.subr.bf16.mxu0 %v6464
    %8202 = vmatpush1.bf16.msra.mxu0 %v6463
    %8203 = vmatprep.subr.bf16.mxu0 %v6471
    %8204 = vmatpush1.bf16.msra.mxu0 %v6470
    %8205 = vmatprep.subr.bf16.mxu0 %v6478
    %8206 = vmatpush1.bf16.msra.mxu0 %v6477
    %8207 = vmatprep.subr.bf16.mxu0 %v6485
    %8208 = vmatpush1.bf16.msra.mxu0 %v6484
    %8209 = vmatprep.mubr.bf16.mxu0 %v4172
    %8210 = vmatmul.mubr.bf16.gmra.mrb[0].mxu0 %v4171
    %v8211 = vpop.f32.mrb[0].mxu0
    %v8212 = vadd.f32 %v8099, %v8211
    %v8213 = vpop.f32.mrb[0].mxu0
    %v8214 = vadd.f32 %v8101, %v8213
    %v8215 = vpop.f32.mrb[0].mxu0
    %v8216 = vadd.f32 %v8103, %v8215
    %v8217 = vpop.f32.mrb[0].mxu0
    %v8218 = vadd.f32 %v8105, %v8217
    %8219 = vmatprep.mubr.bf16.mxu0 %v4180
    %8220 = vmatmul.mubr.bf16.gmra.mrb[0].mxu0 %v4179
    %v8221 = vpop.f32.mrb[0].mxu0
    %v8222 = vadd.f32 %v8109, %v8221
    %v8223 = vpop.f32.mrb[0].mxu0
    %v8224 = vadd.f32 %v8111, %v8223
    %v8225 = vpop.f32.mrb[0].mxu0
    %v8226 = vadd.f32 %v8113, %v8225
    %v8227 = vpop.f32.mrb[0].mxu0
    %v8228 = vadd.f32 %v8115, %v8227
    %8229 = vmatprep.mubr.bf16.mxu0 %v4188
    %8230 = vmatmul.mubr.bf16.gmra.mrb[0].mxu0 %v4187
    %v8231 = vpop.f32.mrb[0].mxu0
    %v8232 = vadd.f32 %v8119, %v8231
    %v8233 = vpop.f32.mrb[0].mxu0
    %v8234 = vadd.f32 %v8121, %v8233
    %v8235 = vpop.f32.mrb[0].mxu0
    %v8236 = vadd.f32 %v8123, %v8235
    %v8237 = vpop.f32.mrb[0].mxu0
    %v8238 = vadd.f32 %v8125, %v8237
    %8239 = vmatprep.mubr.bf16.mxu0 %v4196
    %8240 = vmatmul.mubr.bf16.gmra.mrb[0].mxu0 %v4195
    %v8241 = vpop.f32.mrb[0].mxu0
    %v8242 = vadd.f32 %v8129, %v8241
    %v8243 = vpop.f32.mrb[0].mxu0
    %v8244 = vadd.f32 %v8131, %v8243
    %v8245 = vpop.f32.mrb[0].mxu0
    %v8246 = vadd.f32 %v8133, %v8245
    %v8247 = vpop.f32.mrb[0].mxu0
    %v8248 = vadd.f32 %v8135, %v8247
    %8249 = vmatprep.mubr.bf16.mxu0 %v4204
    %8250 = vmatmul.mubr.bf16.gmra.mrb[0].mxu0 %v4203
    %v8251 = vpop.f32.mrb[0].mxu0
    %v8252 = vadd.f32 %v8139, %v8251
    %v8253 = vpop.f32.mrb[0].mxu0
    %v8254 = vadd.f32 %v8141, %v8253
    %v8255 = vpop.f32.mrb[0].mxu0
    %v8256 = vadd.f32 %v8143, %v8255
    %v8257 = vpop.f32.mrb[0].mxu0
    %v8258 = vadd.f32 %v8145, %v8257
    %8259 = vmatprep.mubr.bf16.mxu0 %v4212
    %8260 = vmatmul.mubr.bf16.gmra.mrb[0].mxu0 %v4211
    %v8261 = vpop.f32.mrb[0].mxu0
    %v8262 = vadd.f32 %v8149, %v8261
    %v8263 = vpop.f32.mrb[0].mxu0
    %v8264 = vadd.f32 %v8151, %v8263
    %v8265 = vpop.f32.mrb[0].mxu0
    %v8266 = vadd.f32 %v8153, %v8265
    %v8267 = vpop.f32.mrb[0].mxu0
    %v8268 = vadd.f32 %v8155, %v8267
    %8269 = vmatprep.mubr.bf16.mxu0 %v4220
    %8270 = vmatmul.mubr.bf16.gmra.mrb[0].mxu0 %v4219
    %v8271 = vpop.f32.mrb[0].mxu0
    %v8272 = vadd.f32 %v8159, %v8271
    %v8273 = vpop.f32.mrb[0].mxu0
    %v8274 = vadd.f32 %v8161, %v8273
    %v8275 = vpop.f32.mrb[0].mxu0
    %v8276 = vadd.f32 %v8163, %v8275
    %v8277 = vpop.f32.mrb[0].mxu0
    %v8278 = vadd.f32 %v8165, %v8277
    %8279 = vmatprep.mubr.bf16.mxu0 %v4228
    %8280 = vmatmul.mubr.bf16.gmra.mrb[0].mxu0 %v4227
    %v8281 = vpop.f32.mrb[0].mxu0
    %v8282 = vadd.f32 %v8169, %v8281
    %v8283 = vpop.f32.mrb[0].mxu0
    %v8284 = vadd.f32 %v8171, %v8283
    %v8285 = vpop.f32.mrb[0].mxu0
    %v8286 = vadd.f32 %v8173, %v8285
    %v8287 = vpop.f32.mrb[0].mxu0
    %v8288 = vadd.f32 %v8175, %v8287
    %8289 = vdwg.mxu0
    %8290 = vmatprep.subr.bf16.mxu0 %v6492
    %8291 = vmatpush1.bf16.msra.mxu0 %v6491
    %8292 = vmatprep.subr.bf16.mxu0 %v6499
    %8293 = vmatpush1.bf16.msra.mxu0 %v6498
    %8294 = vmatprep.subr.bf16.mxu0 %v6506
    %8295 = vmatpush1.bf16.msra.mxu0 %v6505
    %8296 = vmatprep.subr.bf16.mxu0 %v6513
    %8297 = vmatpush1.bf16.msra.mxu0 %v6512
    %8298 = vmatprep.subr.bf16.mxu0 %v6520
    %8299 = vmatpush1.bf16.msra.mxu0 %v6519
    %8300 = vmatprep.subr.bf16.mxu0 %v6527
    %8301 = vmatpush1.bf16.msra.mxu0 %v6526
    %8302 = vmatprep.subr.bf16.mxu0 %v6534
    %8303 = vmatpush1.bf16.msra.mxu0 %v6533
    %8304 = vmatprep.subr.bf16.mxu0 %v6541
    %8305 = vmatpush1.bf16.msra.mxu0 %v6540
    %8306 = vmatprep.subr.bf16.mxu0 %v6548
    %8307 = vmatpush1.bf16.msra.mxu0 %v6547
    %8308 = vmatprep.subr.bf16.mxu0 %v6555
    %8309 = vmatpush1.bf16.msra.mxu0 %v6554
    %8310 = vmatprep.subr.bf16.mxu0 %v6562
    %8311 = vmatpush1.bf16.msra.mxu0 %v6561
    %8312 = vmatprep.subr.bf16.mxu0 %v6569
    %8313 = vmatpush1.bf16.msra.mxu0 %v6568
    %8314 = vmatprep.subr.bf16.mxu0 %v6576
    %8315 = vmatpush1.bf16.msra.mxu0 %v6575
    %8316 = vmatprep.subr.bf16.mxu0 %v6583
    %8317 = vmatpush1.bf16.msra.mxu0 %v6582
    %8318 = vmatprep.subr.bf16.mxu0 %v6590
    %8319 = vmatpush1.bf16.msra.mxu0 %v6589
    %8320 = vmatprep.subr.bf16.mxu0 %v6597
    %8321 = vmatpush1.bf16.msra.mxu0 %v6596
    %8322 = vmatprep.mubr.bf16.mxu0 %v4174
    %8323 = vmatmul.mubr.bf16.gmra.mrb[0].mxu0 %v4173
    %v8324 = vpop.f32.mrb[0].mxu0
    %v8325 = vadd.f32 %v8212, %v8324
    %v8326 = vpop.f32.mrb[0].mxu0
    %v8327 = vadd.f32 %v8214, %v8326
    %v8328 = vpop.f32.mrb[0].mxu0
    %v8329 = vadd.f32 %v8216, %v8328
    %v8330 = vpop.f32.mrb[0].mxu0
    %v8331 = vadd.f32 %v8218, %v8330
    %8332 = vmatprep.mubr.bf16.mxu0 %v4182
    %8333 = vmatmul.mubr.bf16.gmra.mrb[0].mxu0 %v4181
    %v8334 = vpop.f32.mrb[0].mxu0
    %v8335 = vadd.f32 %v8222, %v8334
    %v8336 = vpop.f32.mrb[0].mxu0
    %v8337 = vadd.f32 %v8224, %v8336
    %v8338 = vpop.f32.mrb[0].mxu0
    %v8339 = vadd.f32 %v8226, %v8338
    %v8340 = vpop.f32.mrb[0].mxu0
    %v8341 = vadd.f32 %v8228, %v8340
    %8342 = vmatprep.mubr.bf16.mxu0 %v4190
    %8343 = vmatmul.mubr.bf16.gmra.mrb[0].mxu0 %v4189
    %v8344 = vpop.f32.mrb[0].mxu0
    %v8345 = vadd.f32 %v8232, %v8344
    %v8346 = vpop.f32.mrb[0].mxu0
    %v8347 = vadd.f32 %v8234, %v8346
    %v8348 = vpop.f32.mrb[0].mxu0
    %v8349 = vadd.f32 %v8236, %v8348
    %v8350 = vpop.f32.mrb[0].mxu0
    %v8351 = vadd.f32 %v8238, %v8350
    %8352 = vmatprep.mubr.bf16.mxu0 %v4198
    %8353 = vmatmul.mubr.bf16.gmra.mrb[0].mxu0 %v4197
    %v8354 = vpop.f32.mrb[0].mxu0
    %v8355 = vadd.f32 %v8242, %v8354
    %v8356 = vpop.f32.mrb[0].mxu0
    %v8357 = vadd.f32 %v8244, %v8356
    %v8358 = vpop.f32.mrb[0].mxu0
    %v8359 = vadd.f32 %v8246, %v8358
    %v8360 = vpop.f32.mrb[0].mxu0
    %v8361 = vadd.f32 %v8248, %v8360
    %8362 = vmatprep.mubr.bf16.mxu0 %v4206
    %8363 = vmatmul.mubr.bf16.gmra.mrb[0].mxu0 %v4205
    %v8364 = vpop.f32.mrb[0].mxu0
    %v8365 = vadd.f32 %v8252, %v8364
    %v8366 = vpop.f32.mrb[0].mxu0
    %v8367 = vadd.f32 %v8254, %v8366
    %v8368 = vpop.f32.mrb[0].mxu0
    %v8369 = vadd.f32 %v8256, %v8368
    %v8370 = vpop.f32.mrb[0].mxu0
    %v8371 = vadd.f32 %v8258, %v8370
    %8372 = vmatprep.mubr.bf16.mxu0 %v4214
    %8373 = vmatmul.mubr.bf16.gmra.mrb[0].mxu0 %v4213
    %v8374 = vpop.f32.mrb[0].mxu0
    %v8375 = vadd.f32 %v8262, %v8374
    %v8376 = vpop.f32.mrb[0].mxu0
    %v8377 = vadd.f32 %v8264, %v8376
    %v8378 = vpop.f32.mrb[0].mxu0
    %v8379 = vadd.f32 %v8266, %v8378
    %v8380 = vpop.f32.mrb[0].mxu0
    %v8381 = vadd.f32 %v8268, %v8380
    %8382 = vmatprep.mubr.bf16.mxu0 %v4222
    %8383 = vmatmul.mubr.bf16.gmra.mrb[0].mxu0 %v4221
    %v8384 = vpop.f32.mrb[0].mxu0
    %v8385 = vadd.f32 %v8272, %v8384
    %v8386 = vpop.f32.mrb[0].mxu0
    %v8387 = vadd.f32 %v8274, %v8386
    %v8388 = vpop.f32.mrb[0].mxu0
    %v8389 = vadd.f32 %v8276, %v8388
    %v8390 = vpop.f32.mrb[0].mxu0
    %v8391 = vadd.f32 %v8278, %v8390
    %8392 = vmatprep.mubr.bf16.mxu0 %v4230
    %8393 = vmatmul.mubr.bf16.gmra.mrb[0].mxu0 %v4229
    %v8394 = vpop.f32.mrb[0].mxu0
    %v8395 = vadd.f32 %v8282, %v8394
    %v8396 = vpop.f32.mrb[0].mxu0
    %v8397 = vadd.f32 %v8284, %v8396
    %v8398 = vpop.f32.mrb[0].mxu0
    %v8399 = vadd.f32 %v8286, %v8398
    %v8400 = vpop.f32.mrb[0].mxu0
    %v8401 = vadd.f32 %v8288, %v8400
    %8402 = vdwg.mxu0
    %8403 = vmatprep.subr.bf16.mxu0 0
    %8404 = vmatpush1.bf16.msra.mxu0 %v6157
    %8405 = vmatprep.subr.bf16.mxu0 0
    %8406 = vmatpush1.bf16.msra.mxu0 %v6164
    %8407 = vmatprep.subr.bf16.mxu0 0
    %8408 = vmatpush1.bf16.msra.mxu0 %v6171
    %8409 = vmatprep.subr.bf16.mxu0 0
    %8410 = vmatpush1.bf16.msra.mxu0 %v6178
    %8411 = vmatprep.subr.bf16.mxu0 0
    %8412 = vmatpush1.bf16.msra.mxu0 %v6185
    %8413 = vmatprep.subr.bf16.mxu0 0
    %8414 = vmatpush1.bf16.msra.mxu0 %v6192
    %8415 = vmatprep.subr.bf16.mxu0 0
    %8416 = vmatpush1.bf16.msra.mxu0 %v6199
    %8417 = vmatprep.subr.bf16.mxu0 0
    %8418 = vmatpush1.bf16.msra.mxu0 %v6206
    %8419 = vmatprep.subr.bf16.mxu0 0
    %8420 = vmatpush1.bf16.msra.mxu0 %v6213
    %8421 = vmatprep.subr.bf16.mxu0 0
    %8422 = vmatpush1.bf16.msra.mxu0 %v6220
    %8423 = vmatprep.subr.bf16.mxu0 0
    %8424 = vmatpush1.bf16.msra.mxu0 %v6227
    %8425 = vmatprep.subr.bf16.mxu0 0
    %8426 = vmatpush1.bf16.msra.mxu0 %v6234
    %8427 = vmatprep.subr.bf16.mxu0 0
    %8428 = vmatpush1.bf16.msra.mxu0 %v6241
    %8429 = vmatprep.subr.bf16.mxu0 0
    %8430 = vmatpush1.bf16.msra.mxu0 %v6248
    %8431 = vmatprep.subr.bf16.mxu0 0
    %8432 = vmatpush1.bf16.msra.mxu0 %v6255
    %8433 = vmatprep.subr.bf16.mxu0 0
    %8434 = vmatpush1.bf16.msra.mxu0 %v6262
    %8435 = vmatprep.mubr.bf16.mxu0 %v4168
    %8436 = vmatmul.mubr.bf16.gmra.mrb[0].mxu0 %v4167
    %v8437 = vpop.f32.mrb[0].mxu0
    %v8438 = vadd.f32 0.0, %v8437
    %v8439 = vpop.f32.mrb[0].mxu0
    %v8440 = vpop.f32.mrb[0].mxu0
    %v8441 = vadd.f32 0.0, %v8440
    %v8442 = vpop.f32.mrb[0].mxu0
    %8443 = vmatprep.mubr.bf16.mxu0 %v4176
    %8444 = vmatmul.mubr.bf16.gmra.mrb[0].mxu0 %v4175
    %v8445 = vpop.f32.mrb[0].mxu0
    %v8446 = vadd.f32 0.0, %v8445
    %v8447 = vpop.f32.mrb[0].mxu0
    %v8448 = vpop.f32.mrb[0].mxu0
    %v8449 = vadd.f32 0.0, %v8448
    %v8450 = vpop.f32.mrb[0].mxu0
    %8451 = vmatprep.mubr.bf16.mxu0 %v4184
    %8452 = vmatmul.mubr.bf16.gmra.mrb[0].mxu0 %v4183
    %v8453 = vpop.f32.mrb[0].mxu0
    %v8454 = vadd.f32 0.0, %v8453
    %v8455 = vpop.f32.mrb[0].mxu0
    %v8456 = vpop.f32.mrb[0].mxu0
    %v8457 = vadd.f32 0.0, %v8456
    %v8458 = vpop.f32.mrb[0].mxu0
    %8459 = vmatprep.mubr.bf16.mxu0 %v4192
    %8460 = vmatmul.mubr.bf16.gmra.mrb[0].mxu0 %v4191
    %v8461 = vpop.f32.mrb[0].mxu0
    %v8462 = vadd.f32 0.0, %v8461
    %v8463 = vpop.f32.mrb[0].mxu0
    %v8464 = vpop.f32.mrb[0].mxu0
    %v8465 = vadd.f32 0.0, %v8464
    %v8466 = vpop.f32.mrb[0].mxu0
    %8467 = vmatprep.mubr.bf16.mxu0 %v4200
    %8468 = vmatmul.mubr.bf16.gmra.mrb[0].mxu0 %v4199
    %v8469 = vpop.f32.mrb[0].mxu0
    %v8470 = vadd.f32 0.0, %v8469
    %v8471 = vpop.f32.mrb[0].mxu0
    %v8472 = vpop.f32.mrb[0].mxu0
    %v8473 = vadd.f32 0.0, %v8472
    %v8474 = vpop.f32.mrb[0].mxu0
    %8475 = vmatprep.mubr.bf16.mxu0 %v4208
    %8476 = vmatmul.mubr.bf16.gmra.mrb[0].mxu0 %v4207
    %v8477 = vpop.f32.mrb[0].mxu0
    %v8478 = vadd.f32 0.0, %v8477
    %v8479 = vpop.f32.mrb[0].mxu0
    %v8480 = vpop.f32.mrb[0].mxu0
    %v8481 = vadd.f32 0.0, %v8480
    %v8482 = vpop.f32.mrb[0].mxu0
    %8483 = vmatprep.mubr.bf16.mxu0 %v4216
    %8484 = vmatmul.mubr.bf16.gmra.mrb[0].mxu0 %v4215
    %v8485 = vpop.f32.mrb[0].mxu0
    %v8486 = vadd.f32 0.0, %v8485
    %v8487 = vpop.f32.mrb[0].mxu0
    %v8488 = vpop.f32.mrb[0].mxu0
    %v8489 = vadd.f32 0.0, %v8488
    %v8490 = vpop.f32.mrb[0].mxu0
    %8491 = vmatprep.mubr.bf16.mxu0 %v4224
    %8492 = vmatmul.mubr.bf16.gmra.mrb[0].mxu0 %v4223
    %v8493 = vpop.f32.mrb[0].mxu0
    %v8494 = vadd.f32 0.0, %v8493
    %v8495 = vpop.f32.mrb[0].mxu0
    %v8496 = vpop.f32.mrb[0].mxu0
    %v8497 = vadd.f32 0.0, %v8496
    %v8498 = vpop.f32.mrb[0].mxu0
    %8499 = vdwg.mxu0
    %8500 = vmatprep.subr.bf16.mxu0 0
    %8501 = vmatpush1.bf16.msra.mxu0 %v6269
    %8502 = vmatprep.subr.bf16.mxu0 0
    %8503 = vmatpush1.bf16.msra.mxu0 %v6276
    %8504 = vmatprep.subr.bf16.mxu0 0
    %8505 = vmatpush1.bf16.msra.mxu0 %v6283
    %8506 = vmatprep.subr.bf16.mxu0 0
    %8507 = vmatpush1.bf16.msra.mxu0 %v6290
    %8508 = vmatprep.subr.bf16.mxu0 0
    %8509 = vmatpush1.bf16.msra.mxu0 %v6297
    %8510 = vmatprep.subr.bf16.mxu0 0
    %8511 = vmatpush1.bf16.msra.mxu0 %v6304
    %8512 = vmatprep.subr.bf16.mxu0 0
    %8513 = vmatpush1.bf16.msra.mxu0 %v6311
    %8514 = vmatprep.subr.bf16.mxu0 0
    %8515 = vmatpush1.bf16.msra.mxu0 %v6318
    %8516 = vmatprep.subr.bf16.mxu0 0
    %8517 = vmatpush1.bf16.msra.mxu0 %v6325
    %8518 = vmatprep.subr.bf16.mxu0 0
    %8519 = vmatpush1.bf16.msra.mxu0 %v6332
    %8520 = vmatprep.subr.bf16.mxu0 0
    %8521 = vmatpush1.bf16.msra.mxu0 %v6339
    %8522 = vmatprep.subr.bf16.mxu0 0
    %8523 = vmatpush1.bf16.msra.mxu0 %v6346
    %8524 = vmatprep.subr.bf16.mxu0 0
    %8525 = vmatpush1.bf16.msra.mxu0 %v6353
    %8526 = vmatprep.subr.bf16.mxu0 0
    %8527 = vmatpush1.bf16.msra.mxu0 %v6360
    %8528 = vmatprep.subr.bf16.mxu0 0
    %8529 = vmatpush1.bf16.msra.mxu0 %v6367
    %8530 = vmatprep.subr.bf16.mxu0 0
    %8531 = vmatpush1.bf16.msra.mxu0 %v6374
    %8532 = vmatprep.mubr.bf16.mxu0 %v4170
    %8533 = vmatmul.mubr.bf16.gmra.mrb[0].mxu0 %v4169
    %v8534 = vpop.f32.mrb[0].mxu0
    %v8535 = vadd.f32 %v8438, %v8534
    %v8536 = vpop.f32.mrb[0].mxu0
    %v8537 = vpop.f32.mrb[0].mxu0
    %v8538 = vadd.f32 %v8441, %v8537
    %v8539 = vpop.f32.mrb[0].mxu0
    %8540 = vmatprep.mubr.bf16.mxu0 %v4178
    %8541 = vmatmul.mubr.bf16.gmra.mrb[0].mxu0 %v4177
    %v8542 = vpop.f32.mrb[0].mxu0
    %v8543 = vadd.f32 %v8446, %v8542
    %v8544 = vpop.f32.mrb[0].mxu0
    %v8545 = vpop.f32.mrb[0].mxu0
    %v8546 = vadd.f32 %v8449, %v8545
    %v8547 = vpop.f32.mrb[0].mxu0
    %8548 = vmatprep.mubr.bf16.mxu0 %v4186
    %8549 = vmatmul.mubr.bf16.gmra.mrb[0].mxu0 %v4185
    %v8550 = vpop.f32.mrb[0].mxu0
    %v8551 = vadd.f32 %v8454, %v8550
    %v8552 = vpop.f32.mrb[0].mxu0
    %v8553 = vpop.f32.mrb[0].mxu0
    %v8554 = vadd.f32 %v8457, %v8553
    %v8555 = vpop.f32.mrb[0].mxu0
    %8556 = vmatprep.mubr.bf16.mxu0 %v4194
    %8557 = vmatmul.mubr.bf16.gmra.mrb[0].mxu0 %v4193
    %v8558 = vpop.f32.mrb[0].mxu0
    %v8559 = vadd.f32 %v8462, %v8558
    %v8560 = vpop.f32.mrb[0].mxu0
    %v8561 = vpop.f32.mrb[0].mxu0
    %v8562 = vadd.f32 %v8465, %v8561
    %v8563 = vpop.f32.mrb[0].mxu0
    %8564 = vmatprep.mubr.bf16.mxu0 %v4202
    %8565 = vmatmul.mubr.bf16.gmra.mrb[0].mxu0 %v4201
    %v8566 = vpop.f32.mrb[0].mxu0
    %v8567 = vadd.f32 %v8470, %v8566
    %v8568 = vpop.f32.mrb[0].mxu0
    %v8569 = vpop.f32.mrb[0].mxu0
    %v8570 = vadd.f32 %v8473, %v8569
    %v8571 = vpop.f32.mrb[0].mxu0
    %8572 = vmatprep.mubr.bf16.mxu0 %v4210
    %8573 = vmatmul.mubr.bf16.gmra.mrb[0].mxu0 %v4209
    %v8574 = vpop.f32.mrb[0].mxu0
    %v8575 = vadd.f32 %v8478, %v8574
    %v8576 = vpop.f32.mrb[0].mxu0
    %v8577 = vpop.f32.mrb[0].mxu0
    %v8578 = vadd.f32 %v8481, %v8577
    %v8579 = vpop.f32.mrb[0].mxu0
    %8580 = vmatprep.mubr.bf16.mxu0 %v4218
    %8581 = vmatmul.mubr.bf16.gmra.mrb[0].mxu0 %v4217
    %v8582 = vpop.f32.mrb[0].mxu0
    %v8583 = vadd.f32 %v8486, %v8582
    %v8584 = vpop.f32.mrb[0].mxu0
    %v8585 = vpop.f32.mrb[0].mxu0
    %v8586 = vadd.f32 %v8489, %v8585
    %v8587 = vpop.f32.mrb[0].mxu0
    %8588 = vmatprep.mubr.bf16.mxu0 %v4226
    %8589 = vmatmul.mubr.bf16.gmra.mrb[0].mxu0 %v4225
    %v8590 = vpop.f32.mrb[0].mxu0
    %v8591 = vadd.f32 %v8494, %v8590
    %v8592 = vpop.f32.mrb[0].mxu0
    %v8593 = vpop.f32.mrb[0].mxu0
    %v8594 = vadd.f32 %v8497, %v8593
    %v8595 = vpop.f32.mrb[0].mxu0
    %8596 = vdwg.mxu0
    %8597 = vmatprep.subr.bf16.mxu0 0
    %8598 = vmatpush1.bf16.msra.mxu0 %v6381
    %8599 = vmatprep.subr.bf16.mxu0 0
    %8600 = vmatpush1.bf16.msra.mxu0 %v6388
    %8601 = vmatprep.subr.bf16.mxu0 0
    %8602 = vmatpush1.bf16.msra.mxu0 %v6395
    %8603 = vmatprep.subr.bf16.mxu0 0
    %8604 = vmatpush1.bf16.msra.mxu0 %v6402
    %8605 = vmatprep.subr.bf16.mxu0 0
    %8606 = vmatpush1.bf16.msra.mxu0 %v6409
    %8607 = vmatprep.subr.bf16.mxu0 0
    %8608 = vmatpush1.bf16.msra.mxu0 %v6416
    %8609 = vmatprep.subr.bf16.mxu0 0
    %8610 = vmatpush1.bf16.msra.mxu0 %v6423
    %8611 = vmatprep.subr.bf16.mxu0 0
    %8612 = vmatpush1.bf16.msra.mxu0 %v6430
    %8613 = vmatprep.subr.bf16.mxu0 0
    %8614 = vmatpush1.bf16.msra.mxu0 %v6437
    %8615 = vmatprep.subr.bf16.mxu0 0
    %8616 = vmatpush1.bf16.msra.mxu0 %v6444
    %8617 = vmatprep.subr.bf16.mxu0 0
    %8618 = vmatpush1.bf16.msra.mxu0 %v6451
    %8619 = vmatprep.subr.bf16.mxu0 0
    %8620 = vmatpush1.bf16.msra.mxu0 %v6458
    %8621 = vmatprep.subr.bf16.mxu0 0
    %8622 = vmatpush1.bf16.msra.mxu0 %v6465
    %8623 = vmatprep.subr.bf16.mxu0 0
    %8624 = vmatpush1.bf16.msra.mxu0 %v6472
    %8625 = vmatprep.subr.bf16.mxu0 0
    %8626 = vmatpush1.bf16.msra.mxu0 %v6479
    %8627 = vmatprep.subr.bf16.mxu0 0
    %8628 = vmatpush1.bf16.msra.mxu0 %v6486
    %8629 = vmatprep.mubr.bf16.mxu0 %v4172
    %8630 = vmatmul.mubr.bf16.gmra.mrb[0].mxu0 %v4171
    %v8631 = vpop.f32.mrb[0].mxu0
    %v8632 = vadd.f32 %v8535, %v8631
    %v8633 = vpop.f32.mrb[0].mxu0
    %v8634 = vpop.f32.mrb[0].mxu0
    %v8635 = vadd.f32 %v8538, %v8634
    %v8636 = vpop.f32.mrb[0].mxu0
    %8637 = vmatprep.mubr.bf16.mxu0 %v4180
    %8638 = vmatmul.mubr.bf16.gmra.mrb[0].mxu0 %v4179
    %v8639 = vpop.f32.mrb[0].mxu0
    %v8640 = vadd.f32 %v8543, %v8639
    %v8641 = vpop.f32.mrb[0].mxu0
    %v8642 = vpop.f32.mrb[0].mxu0
    %v8643 = vadd.f32 %v8546, %v8642
    %v8644 = vpop.f32.mrb[0].mxu0
    %8645 = vmatprep.mubr.bf16.mxu0 %v4188
    %8646 = vmatmul.mubr.bf16.gmra.mrb[0].mxu0 %v4187
    %v8647 = vpop.f32.mrb[0].mxu0
    %v8648 = vadd.f32 %v8551, %v8647
    %v8649 = vpop.f32.mrb[0].mxu0
    %v8650 = vpop.f32.mrb[0].mxu0
    %v8651 = vadd.f32 %v8554, %v8650
    %v8652 = vpop.f32.mrb[0].mxu0
    %8653 = vmatprep.mubr.bf16.mxu0 %v4196
    %8654 = vmatmul.mubr.bf16.gmra.mrb[0].mxu0 %v4195
    %v8655 = vpop.f32.mrb[0].mxu0
    %v8656 = vadd.f32 %v8559, %v8655
    %v8657 = vpop.f32.mrb[0].mxu0
    %v8658 = vpop.f32.mrb[0].mxu0
    %v8659 = vadd.f32 %v8562, %v8658
    %v8660 = vpop.f32.mrb[0].mxu0
    %8661 = vmatprep.mubr.bf16.mxu0 %v4204
    %8662 = vmatmul.mubr.bf16.gmra.mrb[0].mxu0 %v4203
    %v8663 = vpop.f32.mrb[0].mxu0
    %v8664 = vadd.f32 %v8567, %v8663
    %v8665 = vpop.f32.mrb[0].mxu0
    %v8666 = vpop.f32.mrb[0].mxu0
    %v8667 = vadd.f32 %v8570, %v8666
    %v8668 = vpop.f32.mrb[0].mxu0
    %8669 = vmatprep.mubr.bf16.mxu0 %v4212
    %8670 = vmatmul.mubr.bf16.gmra.mrb[0].mxu0 %v4211
    %v8671 = vpop.f32.mrb[0].mxu0
    %v8672 = vadd.f32 %v8575, %v8671
    %v8673 = vpop.f32.mrb[0].mxu0
    %v8674 = vpop.f32.mrb[0].mxu0
    %v8675 = vadd.f32 %v8578, %v8674
    %v8676 = vpop.f32.mrb[0].mxu0
    %8677 = vmatprep.mubr.bf16.mxu0 %v4220
    %8678 = vmatmul.mubr.bf16.gmra.mrb[0].mxu0 %v4219
    %v8679 = vpop.f32.mrb[0].mxu0
    %v8680 = vadd.f32 %v8583, %v8679
    %v8681 = vpop.f32.mrb[0].mxu0
    %v8682 = vpop.f32.mrb[0].mxu0
    %v8683 = vadd.f32 %v8586, %v8682
    %v8684 = vpop.f32.mrb[0].mxu0
    %8685 = vmatprep.mubr.bf16.mxu0 %v4228
    %8686 = vmatmul.mubr.bf16.gmra.mrb[0].mxu0 %v4227
    %v8687 = vpop.f32.mrb[0].mxu0
    %v8688 = vadd.f32 %v8591, %v8687
    %v8689 = vpop.f32.mrb[0].mxu0
    %v8690 = vpop.f32.mrb[0].mxu0
    %v8691 = vadd.f32 %v8594, %v8690
    %v8692 = vpop.f32.mrb[0].mxu0
    %8693 = vdwg.mxu0
    %8694 = vmatprep.subr.bf16.mxu0 0
    %8695 = vmatpush1.bf16.msra.mxu0 %v6493
    %8696 = vmatprep.subr.bf16.mxu0 0
    %8697 = vmatpush1.bf16.msra.mxu0 %v6500
    %8698 = vmatprep.subr.bf16.mxu0 0
    %8699 = vmatpush1.bf16.msra.mxu0 %v6507
    %8700 = vmatprep.subr.bf16.mxu0 0
    %8701 = vmatpush1.bf16.msra.mxu0 %v6514
    %8702 = vmatprep.subr.bf16.mxu0 0
    %8703 = vmatpush1.bf16.msra.mxu0 %v6521
    %8704 = vmatprep.subr.bf16.mxu0 0
    %8705 = vmatpush1.bf16.msra.mxu0 %v6528
    %8706 = vmatprep.subr.bf16.mxu0 0
    %8707 = vmatpush1.bf16.msra.mxu0 %v6535
    %8708 = vmatprep.subr.bf16.mxu0 0
    %8709 = vmatpush1.bf16.msra.mxu0 %v6542
    %8710 = vmatprep.subr.bf16.mxu0 0
    %8711 = vmatpush1.bf16.msra.mxu0 %v6549
    %8712 = vmatprep.subr.bf16.mxu0 0
    %8713 = vmatpush1.bf16.msra.mxu0 %v6556
    %8714 = vmatprep.subr.bf16.mxu0 0
    %8715 = vmatpush1.bf16.msra.mxu0 %v6563
    %8716 = vmatprep.subr.bf16.mxu0 0
    %8717 = vmatpush1.bf16.msra.mxu0 %v6570
    %8718 = vmatprep.subr.bf16.mxu0 0
    %8719 = vmatpush1.bf16.msra.mxu0 %v6577
    %8720 = vmatprep.subr.bf16.mxu0 0
    %8721 = vmatpush1.bf16.msra.mxu0 %v6584
    %8722 = vmatprep.subr.bf16.mxu0 0
    %8723 = vmatpush1.bf16.msra.mxu0 %v6591
    %8724 = vmatprep.subr.bf16.mxu0 0
    %8725 = vmatpush1.bf16.msra.mxu0 %v6598
    %8726 = vmatprep.mubr.bf16.mxu0 %v4174
    %8727 = vmatmul.mubr.bf16.gmra.mrb[0].mxu0 %v4173
    %v8728 = vpop.f32.mrb[0].mxu0
    %v8729 = vadd.f32 %v8632, %v8728
    %v8730 = vpop.f32.mrb[0].mxu0
    %v8731 = vpop.f32.mrb[0].mxu0
    %v8732 = vadd.f32 %v8635, %v8731
    %v8733 = vpop.f32.mrb[0].mxu0
    %8734 = vmatprep.mubr.bf16.mxu0 %v4182
    %8735 = vmatmul.mubr.bf16.gmra.mrb[0].mxu0 %v4181
    %v8736 = vpop.f32.mrb[0].mxu0
    %v8737 = vadd.f32 %v8640, %v8736
    %v8738 = vpop.f32.mrb[0].mxu0
    %v8739 = vpop.f32.mrb[0].mxu0
    %v8740 = vadd.f32 %v8643, %v8739
    %v8741 = vpop.f32.mrb[0].mxu0
    %8742 = vmatprep.mubr.bf16.mxu0 %v4190
    %8743 = vmatmul.mubr.bf16.gmra.mrb[0].mxu0 %v4189
    %v8744 = vpop.f32.mrb[0].mxu0
    %v8745 = vadd.f32 %v8648, %v8744
    %v8746 = vpop.f32.mrb[0].mxu0
    %v8747 = vpop.f32.mrb[0].mxu0
    %v8748 = vadd.f32 %v8651, %v8747
    %v8749 = vpop.f32.mrb[0].mxu0
    %8750 = vmatprep.mubr.bf16.mxu0 %v4198
    %8751 = vmatmul.mubr.bf16.gmra.mrb[0].mxu0 %v4197
    %v8752 = vpop.f32.mrb[0].mxu0
    %v8753 = vadd.f32 %v8656, %v8752
    %v8754 = vpop.f32.mrb[0].mxu0
    %v8755 = vpop.f32.mrb[0].mxu0
    %v8756 = vadd.f32 %v8659, %v8755
    %v8757 = vpop.f32.mrb[0].mxu0
    %8758 = vmatprep.mubr.bf16.mxu0 %v4206
    %8759 = vmatmul.mubr.bf16.gmra.mrb[0].mxu0 %v4205
    %v8760 = vpop.f32.mrb[0].mxu0
    %v8761 = vadd.f32 %v8664, %v8760
    %v8762 = vpop.f32.mrb[0].mxu0
    %v8763 = vpop.f32.mrb[0].mxu0
    %v8764 = vadd.f32 %v8667, %v8763
    %v8765 = vpop.f32.mrb[0].mxu0
    %8766 = vmatprep.mubr.bf16.mxu0 %v4214
    %8767 = vmatmul.mubr.bf16.gmra.mrb[0].mxu0 %v4213
    %v8768 = vpop.f32.mrb[0].mxu0
    %v8769 = vadd.f32 %v8672, %v8768
    %v8770 = vpop.f32.mrb[0].mxu0
    %v8771 = vpop.f32.mrb[0].mxu0
    %v8772 = vadd.f32 %v8675, %v8771
    %v8773 = vpop.f32.mrb[0].mxu0
    %8774 = vmatprep.mubr.bf16.mxu0 %v4222
    %8775 = vmatmul.mubr.bf16.gmra.mrb[0].mxu0 %v4221
    %v8776 = vpop.f32.mrb[0].mxu0
    %v8777 = vadd.f32 %v8680, %v8776
    %v8778 = vpop.f32.mrb[0].mxu0
    %v8779 = vpop.f32.mrb[0].mxu0
    %v8780 = vadd.f32 %v8683, %v8779
    %v8781 = vpop.f32.mrb[0].mxu0
    %8782 = vmatprep.mubr.bf16.mxu0 %v4230
    %8783 = vmatmul.mubr.bf16.gmra.mrb[0].mxu0 %v4229
    %v8784 = vpop.f32.mrb[0].mxu0
    %v8785 = vadd.f32 %v8688, %v8784
    %v8786 = vpop.f32.mrb[0].mxu0
    %v8787 = vpop.f32.mrb[0].mxu0
    %v8788 = vadd.f32 %v8691, %v8787
    %v8789 = vpop.f32.mrb[0].mxu0
    %8790 = vdwg.mxu0
    %v8791 = vpack.c.bf16 %v7425, %v7421
    %v8792 = vpack.c.bf16 %v7427, %v7423
    %v8793 = vpack.c.bf16 %v7877, %v7873
    %v8794 = vpack.c.bf16 %v7879, %v7875
    %v8795 = vpack.c.bf16 %v8329, %v8325
    %v8796 = vpack.c.bf16 %v8331, %v8327
    %v8797 = vpack.c.bf16 %v8732, %v8729
    %v8798 = vpack.c.bf16 %v7435, %v7431
    %v8799 = vpack.c.bf16 %v7437, %v7433
    %v8800 = vpack.c.bf16 %v7887, %v7883
    %v8801 = vpack.c.bf16 %v7889, %v7885
    %v8802 = vpack.c.bf16 %v8339, %v8335
    %v8803 = vpack.c.bf16 %v8341, %v8337
    %v8804 = vpack.c.bf16 %v8740, %v8737
    %v8805 = vpack.c.bf16 %v7445, %v7441
    %v8806 = vpack.c.bf16 %v7447, %v7443
    %v8807 = vpack.c.bf16 %v7897, %v7893
    %v8808 = vpack.c.bf16 %v7899, %v7895
    %v8809 = vpack.c.bf16 %v8349, %v8345
    %v8810 = vpack.c.bf16 %v8351, %v8347
    %v8811 = vpack.c.bf16 %v8748, %v8745
    %v8812 = vpack.c.bf16 %v7455, %v7451
    %v8813 = vpack.c.bf16 %v7457, %v7453
    %v8814 = vpack.c.bf16 %v7907, %v7903
    %v8815 = vpack.c.bf16 %v7909, %v7905
    %v8816 = vpack.c.bf16 %v8359, %v8355
    %v8817 = vpack.c.bf16 %v8361, %v8357
    %v8818 = vpack.c.bf16 %v8756, %v8753
    %v8819 = vpack.c.bf16 %v7465, %v7461
    %v8820 = vpack.c.bf16 %v7467, %v7463
    %v8821 = vpack.c.bf16 %v7917, %v7913
    %v8822 = vpack.c.bf16 %v7919, %v7915
    %v8823 = vpack.c.bf16 %v8369, %v8365
    %v8824 = vpack.c.bf16 %v8371, %v8367
    %v8825 = vpack.c.bf16 %v8764, %v8761
    %v8826 = vpack.c.bf16 %v7475, %v7471
    %v8827 = vpack.c.bf16 %v7477, %v7473
    %v8828 = vpack.c.bf16 %v7927, %v7923
    %v8829 = vpack.c.bf16 %v7929, %v7925
    %v8830 = vpack.c.bf16 %v8379, %v8375
    %v8831 = vpack.c.bf16 %v8381, %v8377
    %v8832 = vpack.c.bf16 %v8772, %v8769
    %v8833 = vpack.c.bf16 %v7485, %v7481
    %v8834 = vpack.c.bf16 %v7487, %v7483
    %v8835 = vpack.c.bf16 %v7937, %v7933
    %v8836 = vpack.c.bf16 %v7939, %v7935
    %v8837 = vpack.c.bf16 %v8389, %v8385
    %v8838 = vpack.c.bf16 %v8391, %v8387
    %v8839 = vpack.c.bf16 %v8780, %v8777
    %v8840 = vpack.c.bf16 %v7495, %v7491
    %v8841 = vpack.c.bf16 %v7497, %v7493
    %v8842 = vpack.c.bf16 %v7947, %v7943
    %v8843 = vpack.c.bf16 %v7949, %v7945
    %v8844 = vpack.c.bf16 %v8399, %v8395
    %v8845 = vpack.c.bf16 %v8401, %v8397
    %v8846 = vpack.c.bf16 %v8788, %v8785
    %v8847 = vld [vmem:[#allocation16] sm:$0x7f]
    %v8849 = vcombine.high %v8847, %v8847
    %v8851 = vunpack.c.l.s4 1966171168
    %v8852 = vunpack.c.0.s8 %v8851
    %v8853 = vlaneseq
    %v8854 = vshrl.u32 %v8853, 7
    %v8855 = vsub.s32 %v8852, %v8854
    %v8856 = vrot.slane %v8847, %v8855
    %v8858 = vunpack.c.l.s4 1966171168
    %v8859 = vunpack.c.0.s8 %v8858
    %v8860 = vlaneseq
    %v8861 = vshrl.u32 %v8860, 7
    %v8862 = vsub.s32 %v8859, %v8861
    %v8863 = vrot.slane %v8849, %v8862
    %v8864 = vcombine.high %v8856, %v8856
    %v8865 = vcombine.high %v8863, %v8863
    %v8867 = vunpack.c.l.s4 1966171168
    %v8868 = vunpack.c.0.s8 %v8867
    %v8869 = vlaneseq
    %v8870 = vshrl.u32 %v8869, 7
    %v8871 = vsub.s32 %v8868, %v8870
    %v8872 = vrot.slane %v8856, %v8871
    %v8874 = vunpack.c.l.s4 1966171168
    %v8875 = vunpack.c.0.s8 %v8874
    %v8876 = vlaneseq
    %v8877 = vshrl.u32 %v8876, 7
    %v8878 = vsub.s32 %v8875, %v8877
    %v8879 = vrot.slane %v8863, %v8878
    %v8881 = vunpack.c.l.s4 1966171168
    %v8882 = vunpack.c.0.s8 %v8881
    %v8883 = vlaneseq
    %v8884 = vshrl.u32 %v8883, 7
    %v8885 = vsub.s32 %v8882, %v8884
    %v8886 = vrot.slane %v8864, %v8885
    %v8888 = vunpack.c.l.s4 1966171168
    %v8889 = vunpack.c.0.s8 %v8888
    %v8890 = vlaneseq
    %v8891 = vshrl.u32 %v8890, 7
    %v8892 = vsub.s32 %v8889, %v8891
    %v8893 = vrot.slane %v8865, %v8892
    %v8894 = vcombine.high %v8872, %v8872
    %v8895 = vcombine.high %v8879, %v8879
    %v8896 = vcombine.high %v8886, %v8886
    %v8898 = vpack.i.b16 %v8872, %v8872
    %v8900 = vlaneseq
    %v8901 = vshrl.u32 %v8900, 7
    %v8902 = vsub.s32 0, %v8901
    %v8903 = vrot.slane %v8898, %v8902
    %v8905 = vpack.i.b16 %v8886, %v8886
    %v8907 = vlaneseq
    %v8908 = vshrl.u32 %v8907, 7
    %v8909 = vsub.s32 0, %v8908
    %v8910 = vrot.slane %v8905, %v8909
    %v8912 = vpack.i.b16 %v8894, %v8894
    %v8914 = vlaneseq
    %v8915 = vshrl.u32 %v8914, 7
    %v8916 = vsub.s32 0, %v8915
    %v8917 = vrot.slane %v8912, %v8916
    %v8919 = vpack.i.b16 %v8896, %v8896
    %v8921 = vlaneseq
    %v8922 = vshrl.u32 %v8921, 7
    %v8923 = vsub.s32 0, %v8922
    %v8924 = vrot.slane %v8919, %v8923
    %v8926 = vpack.i.b16 %v8879, %v8879
    %v8928 = vlaneseq
    %v8929 = vshrl.u32 %v8928, 7
    %v8930 = vsub.s32 0, %v8929
    %v8931 = vrot.slane %v8926, %v8930
    %v8933 = vpack.i.b16 %v8893, %v8893
    %v8935 = vlaneseq
    %v8936 = vshrl.u32 %v8935, 7
    %v8937 = vsub.s32 0, %v8936
    %v8938 = vrot.slane %v8933, %v8937
    %v8940 = vpack.i.b16 %v8895, %v8895
    %v8942 = vlaneseq
    %v8943 = vshrl.u32 %v8942, 7
    %v8944 = vsub.s32 0, %v8943
    %v8945 = vrot.slane %v8940, %v8944
    %v8946 = vadd.bf16 %v8791, %v8903
    %v8947 = vadd.bf16 %v8792, %v8910
    %v8948 = vadd.bf16 %v8793, %v8917
    %v8949 = vadd.bf16 %v8794, %v8924
    %v8950 = vadd.bf16 %v8795, %v8931
    %v8951 = vadd.bf16 %v8796, %v8938
    %v8952 = vadd.bf16 %v8797, %v8945
    %v8953 = vadd.bf16 %v8798, %v8903
    %v8954 = vadd.bf16 %v8799, %v8910
    %v8955 = vadd.bf16 %v8800, %v8917
    %v8956 = vadd.bf16 %v8801, %v8924
    %v8957 = vadd.bf16 %v8802, %v8931
    %v8958 = vadd.bf16 %v8803, %v8938
    %v8959 = vadd.bf16 %v8804, %v8945
    %v8960 = vadd.bf16 %v8805, %v8903
    %v8961 = vadd.bf16 %v8806, %v8910
    %v8962 = vadd.bf16 %v8807, %v8917
    %v8963 = vadd.bf16 %v8808, %v8924
    %v8964 = vadd.bf16 %v8809, %v8931
    %v8965 = vadd.bf16 %v8810, %v8938
    %v8966 = vadd.bf16 %v8811, %v8945
    %v8967 = vadd.bf16 %v8812, %v8903
    %v8968 = vadd.bf16 %v8813, %v8910
    %v8969 = vadd.bf16 %v8814, %v8917
    %v8970 = vadd.bf16 %v8815, %v8924
    %v8971 = vadd.bf16 %v8816, %v8931
    %v8972 = vadd.bf16 %v8817, %v8938
    %v8973 = vadd.bf16 %v8818, %v8945
    %v8974 = vadd.bf16 %v8819, %v8903
    %v8975 = vadd.bf16 %v8820, %v8910
    %v8976 = vadd.bf16 %v8821, %v8917
    %v8977 = vadd.bf16 %v8822, %v8924
    %v8978 = vadd.bf16 %v8823, %v8931
    %v8979 = vadd.bf16 %v8824, %v8938
    %v8980 = vadd.bf16 %v8825, %v8945
    %v8981 = vadd.bf16 %v8826, %v8903
    %v8982 = vadd.bf16 %v8827, %v8910
    %v8983 = vadd.bf16 %v8828, %v8917
    %v8984 = vadd.bf16 %v8829, %v8924
    %v8985 = vadd.bf16 %v8830, %v8931
    %v8986 = vadd.bf16 %v8831, %v8938
    %v8987 = vadd.bf16 %v8832, %v8945
    %v8988 = vadd.bf16 %v8833, %v8903
    %v8989 = vadd.bf16 %v8834, %v8910
    %v8990 = vadd.bf16 %v8835, %v8917
    %v8991 = vadd.bf16 %v8836, %v8924
    %v8992 = vadd.bf16 %v8837, %v8931
    %v8993 = vadd.bf16 %v8838, %v8938
    %v8994 = vadd.bf16 %v8839, %v8945
    %v8995 = vadd.bf16 %v8840, %v8903
    %v8996 = vadd.bf16 %v8841, %v8910
    %v8997 = vadd.bf16 %v8842, %v8917
    %v8998 = vadd.bf16 %v8843, %v8924
    %v8999 = vadd.bf16 %v8844, %v8931
    %v9000 = vadd.bf16 %v8845, %v8938
    %v9001 = vadd.bf16 %v8846, %v8945
    %v9002 = vtanh.bf16.pop %v8946
    %v9003 = vtanh.bf16.pop %v8947
    %v9004 = vtanh.bf16.pop %v8948
    %v9005 = vtanh.bf16.pop %v8949
    %v9006 = vtanh.bf16.pop %v8950
    %v9007 = vtanh.bf16.pop %v8951
    %v9008 = vtanh.bf16.pop %v8952
    %v9009 = vtanh.bf16.pop %v8953
    %v9010 = vtanh.bf16.pop %v8954
    %v9011 = vtanh.bf16.pop %v8955
    %v9012 = vtanh.bf16.pop %v8956
    %v9013 = vtanh.bf16.pop %v8957
    %v9014 = vtanh.bf16.pop %v8958
    %v9015 = vtanh.bf16.pop %v8959
    %v9016 = vtanh.bf16.pop %v8960
    %v9017 = vtanh.bf16.pop %v8961
    %v9018 = vtanh.bf16.pop %v8962
    %v9019 = vtanh.bf16.pop %v8963
    %v9020 = vtanh.bf16.pop %v8964
    %v9021 = vtanh.bf16.pop %v8965
    %v9022 = vtanh.bf16.pop %v8966
    %v9023 = vtanh.bf16.pop %v8967
    %v9024 = vtanh.bf16.pop %v8968
    %v9025 = vtanh.bf16.pop %v8969
    %v9026 = vtanh.bf16.pop %v8970
    %v9027 = vtanh.bf16.pop %v8971
    %v9028 = vtanh.bf16.pop %v8972
    %v9029 = vtanh.bf16.pop %v8973
    %v9030 = vtanh.bf16.pop %v8974
    %v9031 = vtanh.bf16.pop %v8975
    %v9032 = vtanh.bf16.pop %v8976
    %v9033 = vtanh.bf16.pop %v8977
    %v9034 = vtanh.bf16.pop %v8978
    %v9035 = vtanh.bf16.pop %v8979
    %v9036 = vtanh.bf16.pop %v8980
    %v9037 = vtanh.bf16.pop %v8981
    %v9038 = vtanh.bf16.pop %v8982
    %v9039 = vtanh.bf16.pop %v8983
    %v9040 = vtanh.bf16.pop %v8984
    %v9041 = vtanh.bf16.pop %v8985
    %v9042 = vtanh.bf16.pop %v8986
    %v9043 = vtanh.bf16.pop %v8987
    %v9044 = vtanh.bf16.pop %v8988
    %v9045 = vtanh.bf16.pop %v8989
    %v9046 = vtanh.bf16.pop %v8990
    %v9047 = vtanh.bf16.pop %v8991
    %v9048 = vtanh.bf16.pop %v8992
    %v9049 = vtanh.bf16.pop %v8993
    %v9050 = vtanh.bf16.pop %v8994
    %v9051 = vtanh.bf16.pop %v8995
    %v9052 = vtanh.bf16.pop %v8996
    %v9053 = vtanh.bf16.pop %v8997
    %v9054 = vtanh.bf16.pop %v8998
    %v9055 = vtanh.bf16.pop %v8999
    %v9056 = vtanh.bf16.pop %v9000
    %v9057 = vtanh.bf16.pop %v9001
    %v9114 = vunpack.c.l.b16 %v9002
    %v9115 = vunpack.c.l.b16 %v9003
    %v9116 = vunpack.c.l.b16 %v9004
    %v9117 = vunpack.c.l.b16 %v9005
    %v9118 = vunpack.c.l.b16 %v9006
    %v9119 = vunpack.c.l.b16 %v9007
    %v9120 = vunpack.c.l.b16 %v9008
    %v9121 = vunpack.c.h.b16 %v9002
    %v9122 = vunpack.c.h.b16 %v9003
    %v9123 = vunpack.c.h.b16 %v9004
    %v9124 = vunpack.c.h.b16 %v9005
    %v9125 = vunpack.c.h.b16 %v9006
    %v9126 = vunpack.c.h.b16 %v9007
    %v9127 = vunpack.c.h.b16 %v9008
    %v9128 = vunpack.c.l.b16 %v9009
    %v9129 = vunpack.c.l.b16 %v9010
    %v9130 = vunpack.c.l.b16 %v9011
    %v9131 = vunpack.c.l.b16 %v9012
    %v9132 = vunpack.c.l.b16 %v9013
    %v9133 = vunpack.c.l.b16 %v9014
    %v9134 = vunpack.c.l.b16 %v9015
    %v9135 = vunpack.c.h.b16 %v9009
    %v9136 = vunpack.c.h.b16 %v9010
    %v9137 = vunpack.c.h.b16 %v9011
    %v9138 = vunpack.c.h.b16 %v9012
    %v9139 = vunpack.c.h.b16 %v9013
    %v9140 = vunpack.c.h.b16 %v9014
    %v9141 = vunpack.c.h.b16 %v9015
    %v9142 = vunpack.c.l.b16 %v9016
    %v9143 = vunpack.c.l.b16 %v9017
    %v9144 = vunpack.c.l.b16 %v9018
    %v9145 = vunpack.c.l.b16 %v9019
    %v9146 = vunpack.c.l.b16 %v9020
    %v9147 = vunpack.c.l.b16 %v9021
    %v9148 = vunpack.c.l.b16 %v9022
    %v9149 = vunpack.c.h.b16 %v9016
    %v9150 = vunpack.c.h.b16 %v9017
    %v9151 = vunpack.c.h.b16 %v9018
    %v9152 = vunpack.c.h.b16 %v9019
    %v9153 = vunpack.c.h.b16 %v9020
    %v9154 = vunpack.c.h.b16 %v9021
    %v9155 = vunpack.c.h.b16 %v9022
    %v9156 = vunpack.c.l.b16 %v9023
    %v9157 = vunpack.c.l.b16 %v9024
    %v9158 = vunpack.c.l.b16 %v9025
    %v9159 = vunpack.c.l.b16 %v9026
    %v9160 = vunpack.c.l.b16 %v9027
    %v9161 = vunpack.c.l.b16 %v9028
    %v9162 = vunpack.c.l.b16 %v9029
    %v9163 = vunpack.c.h.b16 %v9023
    %v9164 = vunpack.c.h.b16 %v9024
    %v9165 = vunpack.c.h.b16 %v9025
    %v9166 = vunpack.c.h.b16 %v9026
    %v9167 = vunpack.c.h.b16 %v9027
    %v9168 = vunpack.c.h.b16 %v9028
    %v9169 = vunpack.c.h.b16 %v9029
    %v9170 = vunpack.c.l.b16 %v9030
    %v9171 = vunpack.c.l.b16 %v9031
    %v9172 = vunpack.c.l.b16 %v9032
    %v9173 = vunpack.c.l.b16 %v9033
    %v9174 = vunpack.c.l.b16 %v9034
    %v9175 = vunpack.c.l.b16 %v9035
    %v9176 = vunpack.c.l.b16 %v9036
    %v9177 = vunpack.c.h.b16 %v9030
    %v9178 = vunpack.c.h.b16 %v9031
    %v9179 = vunpack.c.h.b16 %v9032
    %v9180 = vunpack.c.h.b16 %v9033
    %v9181 = vunpack.c.h.b16 %v9034
    %v9182 = vunpack.c.h.b16 %v9035
    %v9183 = vunpack.c.h.b16 %v9036
    %v9184 = vunpack.c.l.b16 %v9037
    %v9185 = vunpack.c.l.b16 %v9038
    %v9186 = vunpack.c.l.b16 %v9039
    %v9187 = vunpack.c.l.b16 %v9040
    %v9188 = vunpack.c.l.b16 %v9041
    %v9189 = vunpack.c.l.b16 %v9042
    %v9190 = vunpack.c.l.b16 %v9043
    %v9191 = vunpack.c.h.b16 %v9037
    %v9192 = vunpack.c.h.b16 %v9038
    %v9193 = vunpack.c.h.b16 %v9039
    %v9194 = vunpack.c.h.b16 %v9040
    %v9195 = vunpack.c.h.b16 %v9041
    %v9196 = vunpack.c.h.b16 %v9042
    %v9197 = vunpack.c.h.b16 %v9043
    %v9198 = vunpack.c.l.b16 %v9044
    %v9199 = vunpack.c.l.b16 %v9045
    %v9200 = vunpack.c.l.b16 %v9046
    %v9201 = vunpack.c.l.b16 %v9047
    %v9202 = vunpack.c.l.b16 %v9048
    %v9203 = vunpack.c.l.b16 %v9049
    %v9204 = vunpack.c.l.b16 %v9050
    %v9205 = vunpack.c.h.b16 %v9044
    %v9206 = vunpack.c.h.b16 %v9045
    %v9207 = vunpack.c.h.b16 %v9046
    %v9208 = vunpack.c.h.b16 %v9047
    %v9209 = vunpack.c.h.b16 %v9048
    %v9210 = vunpack.c.h.b16 %v9049
    %v9211 = vunpack.c.h.b16 %v9050
    %v9212 = vunpack.c.l.b16 %v9051
    %v9213 = vunpack.c.l.b16 %v9052
    %v9214 = vunpack.c.l.b16 %v9053
    %v9215 = vunpack.c.l.b16 %v9054
    %v9216 = vunpack.c.l.b16 %v9055
    %v9217 = vunpack.c.l.b16 %v9056
    %v9218 = vunpack.c.l.b16 %v9057
    %v9219 = vunpack.c.h.b16 %v9051
    %v9220 = vunpack.c.h.b16 %v9052
    %v9221 = vunpack.c.h.b16 %v9053
    %v9222 = vunpack.c.h.b16 %v9054
    %v9223 = vunpack.c.h.b16 %v9055
    %v9224 = vunpack.c.h.b16 %v9056
    %v9225 = vunpack.c.h.b16 %v9057
    %v9226 = vpack.c.b16 %v9115, %v9114
    %v9227 = vpack.c.b16 %v9117, %v9116
    %v9228 = vpack.c.b16 %v9119, %v9118
    %v9229 = vpack.c.b16 %v9120, %v9120
    %v9230 = vpack.c.b16 %v9122, %v9121
    %v9231 = vpack.c.b16 %v9124, %v9123
    %v9232 = vpack.c.b16 %v9126, %v9125
    %v9233 = vpack.c.b16 %v9127, %v9127
    %v9234 = vpack.c.b16 %v9129, %v9128
    %v9235 = vpack.c.b16 %v9131, %v9130
    %v9236 = vpack.c.b16 %v9133, %v9132
    %v9237 = vpack.c.b16 %v9134, %v9134
    %v9238 = vpack.c.b16 %v9136, %v9135
    %v9239 = vpack.c.b16 %v9138, %v9137
    %v9240 = vpack.c.b16 %v9140, %v9139
    %v9241 = vpack.c.b16 %v9141, %v9141
    %v9242 = vpack.c.b16 %v9143, %v9142
    %v9243 = vpack.c.b16 %v9145, %v9144
    %v9244 = vpack.c.b16 %v9147, %v9146
    %v9245 = vpack.c.b16 %v9148, %v9148
    %v9246 = vpack.c.b16 %v9150, %v9149
    %v9247 = vpack.c.b16 %v9152, %v9151
    %v9248 = vpack.c.b16 %v9154, %v9153
    %v9249 = vpack.c.b16 %v9155, %v9155
    %v9250 = vpack.c.b16 %v9157, %v9156
    %v9251 = vpack.c.b16 %v9159, %v9158
    %v9252 = vpack.c.b16 %v9161, %v9160
    %v9253 = vpack.c.b16 %v9162, %v9162
    %v9254 = vpack.c.b16 %v9164, %v9163
    %v9255 = vpack.c.b16 %v9166, %v9165
    %v9256 = vpack.c.b16 %v9168, %v9167
    %v9257 = vpack.c.b16 %v9169, %v9169
    %v9258 = vpack.c.b16 %v9171, %v9170
    %v9259 = vpack.c.b16 %v9173, %v9172
    %v9260 = vpack.c.b16 %v9175, %v9174
    %v9261 = vpack.c.b16 %v9176, %v9176
    %v9262 = vpack.c.b16 %v9178, %v9177
    %v9263 = vpack.c.b16 %v9180, %v9179
    %v9264 = vpack.c.b16 %v9182, %v9181
    %v9265 = vpack.c.b16 %v9183, %v9183
    %v9266 = vpack.c.b16 %v9185, %v9184
    %v9267 = vpack.c.b16 %v9187, %v9186
    %v9268 = vpack.c.b16 %v9189, %v9188
    %v9269 = vpack.c.b16 %v9190, %v9190
    %v9270 = vpack.c.b16 %v9192, %v9191
    %v9271 = vpack.c.b16 %v9194, %v9193
    %v9272 = vpack.c.b16 %v9196, %v9195
    %v9273 = vpack.c.b16 %v9197, %v9197
    %v9274 = vpack.c.b16 %v9199, %v9198
    %v9275 = vpack.c.b16 %v9201, %v9200
    %v9276 = vpack.c.b16 %v9203, %v9202
    %v9277 = vpack.c.b16 %v9204, %v9204
    %v9278 = vpack.c.b16 %v9206, %v9205
    %v9279 = vpack.c.b16 %v9208, %v9207
    %v9280 = vpack.c.b16 %v9210, %v9209
    %v9281 = vpack.c.b16 %v9211, %v9211
    %v9282 = vpack.c.b16 %v9213, %v9212
    %v9283 = vpack.c.b16 %v9215, %v9214
    %v9284 = vpack.c.b16 %v9217, %v9216
    %v9285 = vpack.c.b16 %v9218, %v9218
    %v9286 = vpack.c.b16 %v9220, %v9219
    %v9287 = vpack.c.b16 %v9222, %v9221
    %v9288 = vpack.c.b16 %v9224, %v9223
    %v9289 = vpack.c.b16 %v9225, %v9225
    %9354 = vst [vmem:[#allocation17] sm:$0xff] %v9226
    %9355 = vst [vmem:[#allocation17 + $0x8] sm:$0xff] %v9227
    %9356 = vst [vmem:[#allocation17 + $0x10] sm:$0xff] %v9228
    %9357 = vst [vmem:[#allocation17 + $0x18] sm:$0xf] %v9229
    %9358 = vst [vmem:[#allocation17 + $0x1c] sm:$0xff] %v9230
    %9359 = vst [vmem:[#allocation17 + $0x24] sm:$0xff] %v9231
    %9360 = vst [vmem:[#allocation17 + $0x2c] sm:$0xff] %v9232
    %9361 = vst [vmem:[#allocation17 + $0x34] sm:$0xf] %v9233
    %9362 = vst [vmem:[#allocation17 + $0x38] sm:$0xff] %v9234
    %9363 = vst [vmem:[#allocation17 + $0x40] sm:$0xff] %v9235
    %9364 = vst [vmem:[#allocation17 + $0x48] sm:$0xff] %v9236
    %9365 = vst [vmem:[#allocation17 + $0x50] sm:$0xf] %v9237
    %9366 = vst [vmem:[#allocation17 + $0x54] sm:$0xff] %v9238
    %9367 = vst [vmem:[#allocation17 + $0x5c] sm:$0xff] %v9239
    %9368 = vst [vmem:[#allocation17 + $0x64] sm:$0xff] %v9240
    %9369 = vst [vmem:[#allocation17 + $0x6c] sm:$0xf] %v9241
    %9370 = vst [vmem:[#allocation17 + $0x70] sm:$0xff] %v9242
    %9371 = vst [vmem:[#allocation17 + $0x78] sm:$0xff] %v9243
    %9372 = vst [vmem:[#allocation17 + $0x80] sm:$0xff] %v9244
    %9373 = vst [vmem:[#allocation17 + $0x88] sm:$0xf] %v9245
    %9374 = vst [vmem:[#allocation17 + $0x8c] sm:$0xff] %v9246
    %9375 = vst [vmem:[#allocation17 + $0x94] sm:$0xff] %v9247
    %9376 = vst [vmem:[#allocation17 + $0x9c] sm:$0xff] %v9248
    %9377 = vst [vmem:[#allocation17 + $0xa4] sm:$0xf] %v9249
    %9378 = vst [vmem:[#allocation17 + $0xa8] sm:$0xff] %v9250
    %9379 = vst [vmem:[#allocation17 + $0xb0] sm:$0xff] %v9251
    %9380 = vst [vmem:[#allocation17 + $0xb8] sm:$0xff] %v9252
    %9381 = vst [vmem:[#allocation17 + $0xc0] sm:$0xf] %v9253
    %9382 = vst [vmem:[#allocation17 + $0xc4] sm:$0xff] %v9254
    %9383 = vst [vmem:[#allocation17 + $0xcc] sm:$0xff] %v9255
    %9384 = vst [vmem:[#allocation17 + $0xd4] sm:$0xff] %v9256
    %9385 = vst [vmem:[#allocation17 + $0xdc] sm:$0xf] %v9257
    %9386 = vst [vmem:[#allocation17 + $0xe0] sm:$0xff] %v9258
    %9387 = vst [vmem:[#allocation17 + $0xe8] sm:$0xff] %v9259
    %9388 = vst [vmem:[#allocation17 + $0xf0] sm:$0xff] %v9260
    %9389 = vst [vmem:[#allocation17 + $0xf8] sm:$0xf] %v9261
    %9390 = vst [vmem:[#allocation17 + $0xfc] sm:$0xff] %v9262
    %9391 = vst [vmem:[#allocation17 + $0x104] sm:$0xff] %v9263
    %9392 = vst [vmem:[#allocation17 + $0x10c] sm:$0xff] %v9264
    %9393 = vst [vmem:[#allocation17 + $0x114] sm:$0xf] %v9265
    %9394 = vst [vmem:[#allocation17 + $0x118] sm:$0xff] %v9266
    %9395 = vst [vmem:[#allocation17 + $0x120] sm:$0xff] %v9267
    %9396 = vst [vmem:[#allocation17 + $0x128] sm:$0xff] %v9268
    %9397 = vst [vmem:[#allocation17 + $0x130] sm:$0xf] %v9269
    %9398 = vst [vmem:[#allocation17 + $0x134] sm:$0xff] %v9270
    %9399 = vst [vmem:[#allocation17 + $0x13c] sm:$0xff] %v9271
    %9400 = vst [vmem:[#allocation17 + $0x144] sm:$0xff] %v9272
    %9401 = vst [vmem:[#allocation17 + $0x14c] sm:$0xf] %v9273
    %9402 = vst [vmem:[#allocation17 + $0x150] sm:$0xff] %v9274
    %9403 = vst [vmem:[#allocation17 + $0x158] sm:$0xff] %v9275
    %9404 = vst [vmem:[#allocation17 + $0x160] sm:$0xff] %v9276
    %9405 = vst [vmem:[#allocation17 + $0x168] sm:$0xf] %v9277
    %9406 = vst [vmem:[#allocation17 + $0x16c] sm:$0xff] %v9278
    %9407 = vst [vmem:[#allocation17 + $0x174] sm:$0xff] %v9279
    %9408 = vst [vmem:[#allocation17 + $0x17c] sm:$0xff] %v9280
    %9409 = vst [vmem:[#allocation17 + $0x184] sm:$0xf] %v9281
    %9410 = vst [vmem:[#allocation17 + $0x188] sm:$0xff] %v9282
    %9411 = vst [vmem:[#allocation17 + $0x190] sm:$0xff] %v9283
    %9412 = vst [vmem:[#allocation17 + $0x198] sm:$0xff] %v9284
    %9413 = vst [vmem:[#allocation17 + $0x1a0] sm:$0xf] %v9285
    %9414 = vst [vmem:[#allocation17 + $0x1a4] sm:$0xff] %v9286
    %9415 = vst [vmem:[#allocation17 + $0x1ac] sm:$0xff] %v9287
    %9416 = vst [vmem:[#allocation17 + $0x1b4] sm:$0xff] %v9288
    %9417 = vst [vmem:[#allocation17 + $0x1bc] sm:$0xf] %v9289
    // Predicated region
    $region74: #{tpu_custom_call.1} parent=1 // pred_check
      _
    $region75: #{tpu_custom_call.1} parent=1 // pred_check_branch
      %9419 = sbr.rel (0) target = $region77
    $region76: #{tpu_custom_call.1} parent=1 // pred_region
      %s9421 = ssub.s32 7168, 7168
      %9422 = vsyncadd [#allocation4], %s9421
      %s9423 = sshll.u32 [#allocation17], 4
      %s9424 = int_to_ptr.vmem [resolvable:$true] %s9423
      %9429 = dma.vmem_to_hbm [thread:$0]  %s9424, 7168, %s9, [#allocation4], 448, 448, 28
    $region77: #{tpu_custom_call.1} parent=1 // pred_fallthru
      _
    // Predicated region
    $region78: #{tpu_custom_call.1} parent=1 // pred_check
      _
    $region79: #{tpu_custom_call.1} parent=1 // pred_check_branch
      %9431 = sbr.rel (0) target = $region81
    $region80: #{tpu_custom_call.1} parent=1 // pred_region
      %9432 = dma.done [#allocation4], 7168
    $region81: #{tpu_custom_call.1} parent=1 // pred_fallthru
      _
    %9433 = vsyncpa [#allocation3], 1
    %9434 = vsyncpa [#allocation6], 1
    %9435 = vsyncpa [#allocation9], 1
    %9436 = vsyncpa [#allocation12], 1
    %9437 = vsyncpa [#allocation15], 1
    %9438 = vsyncpa [#allocation4], 1

</llo_original>
